<compile_context>
chip_gen: v6e
topology: v6e:2x2x1
jax: 0.10.0
libtpu: 0.0.40
codegen_flags: <defaults>
</compile_context>

<pallas_src>
import functools

import jax
import jax.numpy as jnp
from jax import lax
from jax.experimental import pallas as pl
from jax.experimental.pallas import tpu as pltpu


def _deconv_sample_kernel(x_ref, w_ref, o_ref, rhs_ref, *,
                          kD, kH, kW, dil, Wp, HpWp, CinP, Lout):
    # x_ref  : (1, CinP, Dp*Hp*Wp + tail)   bf16  whole padded/upsampled sample
    # w_ref  : (Cout, kD*kH*kW*CinP)        bf16  flipped, K ordered (kd,kh,kw,ci)
    # o_ref  : (1, Cout, OD*Hp*Wp)          f32   junk columns cropped by XLA
    # rhs_ref: (kD*kH*kW*CinP, OD*Hp*Wp)    bf16  im2col slab (VMEM scratch)
    tap = 0
    for kd in range(kD):
        for kh in range(kH):
            for kw in range(kW):
                # constant (static) lane shift for this tap over the flattened volume
                shift = dil * (kd * HpWp + kh * Wp + kw)
                rhs_ref[pl.ds(tap * CinP, CinP), :] = x_ref[0, :, pl.ds(shift, Lout)]
                tap += 1

    # Single fat matmul: (Cout, K) @ (K, OD*Hp*Wp) with f32 accumulation.
    acc = jnp.dot(w_ref[...], rhs_ref[...], preferred_element_type=jnp.float32)
    o_ref[0] = acc.astype(o_ref.dtype)


def conv_transpose3d_pallas(x, w, *, stride, padding, dilation):
    """x: (N, Cin, D, H, W) float32;  w: (Cin, Cout, kD, kH, kW) (PyTorch layout)."""
    N, Cin, D, H, W = x.shape
    _, Cout, kD, kH, kW = w.shape
    s, p, dil = stride, padding, dilation

    pe = dil * (kD - 1) - p  # effective padding of the equivalent forward conv
    # TODO(synk): padding > dilation*(kernel_size-1) and output_padding unsupported.
    assert pe >= 0, "padding > dilation*(kernel_size-1) not supported"

    # zero-insert stride, then symmetric pad -> stride-1 dilated forward conv input
    Du, Hu, Wu = (D - 1) * s + 1, (H - 1) * s + 1, (W - 1) * s + 1
    x_up = jnp.zeros((N, Cin, Du, Hu, Wu), x.dtype).at[:, :, ::s, ::s, ::s].set(x)
    x_pad = jnp.pad(x_up, ((0, 0), (0, 0), (pe, pe), (pe, pe), (pe, pe)))
    Dp, Hp, Wp = x_pad.shape[2:]
    OD = Dp - dil * (kD - 1)
    OH = Hp - dil * (kH - 1)
    OW = Wp - dil * (kW - 1)

    CinP = -(-Cin // 8) * 8                 # pad channels to a sublane multiple
    HpWp = Hp * Wp
    Lout = OD * HpWp                        # lane-dense output width per sample
    tail = dil * ((kH - 1) * Wp + (kW - 1)) # extra lanes so every tap slice is in-bounds
    Ltot = Dp * HpWp + tail
    Ktot = kD * kH * kW * CinP

    # kernel-side input: (N, CinP, Dp*Hp*Wp + tail) -- channels on sublanes,
    # the whole padded volume flattened onto the lane axis (no transpose needed).
    xk = jnp.pad(x_pad, ((0, 0), (0, CinP - Cin), (0, 0), (0, 0), (0, 0)))
    xk = xk.reshape(N, CinP, Dp * HpWp)
    xk = jnp.pad(xk, ((0, 0), (0, 0), (0, tail))).astype(jnp.bfloat16)

    # kernel-side weights: flipped, (Cout, kD*kH*kW*CinP), K ordered (kd, kh, kw, ci)
    wk = jnp.flip(w, (2, 3, 4))
    wk = jnp.pad(wk, ((0, CinP - Cin), (0, 0), (0, 0), (0, 0), (0, 0)))
    wk = wk.transpose(1, 2, 3, 4, 0).reshape(Cout, Ktot).astype(jnp.bfloat16)

    out = pl.pallas_call(
        functools.partial(_deconv_sample_kernel, kD=kD, kH=kH, kW=kW, dil=dil,
                          Wp=Wp, HpWp=HpWp, CinP=CinP, Lout=Lout),
        out_shape=jax.ShapeDtypeStruct((N, Cout, Lout), jnp.float32),
        grid_spec=pltpu.PrefetchScalarGridSpec(
            num_scalar_prefetch=0,
            grid=(N,),
            in_specs=[
                pl.BlockSpec((1, CinP, Ltot), lambda n: (n, 0, 0)),
                pl.BlockSpec((Cout, Ktot), lambda n: (0, 0)),
            ],
            out_specs=pl.BlockSpec((1, Cout, Lout), lambda n: (n, 0, 0)),
            scratch_shapes=[pltpu.VMEM((Ktot, Lout), jnp.bfloat16)],
        ),
        compiler_params=pltpu.CompilerParams(
            dimension_semantics=("parallel",),
            vmem_limit_bytes=48 * 1024 * 1024),
    )(xk, wk)

    # (N, Cout, OD*Hp*Wp) -> crop junk rows/cols -> NCDHW (no transpose needed)
    out = out.reshape(N, Cout, OD, Hp, Wp)[..., :OH, :OW]
    return out.astype(x.dtype)


def conv_transpose3d_ref(x, w, *, stride, padding, dilation):
    """Pure-JAX f32 reference for ConvTranspose3d (bias=False), NCDHW."""
    k = w.shape[2]
    pe = dilation * (k - 1) - padding
    w_conv = jnp.flip(w, (2, 3, 4)).transpose(1, 0, 2, 3, 4)  # (Cout, Cin, k, k, k)
    return lax.conv_general_dilated(
        x, w_conv,
        window_strides=(1, 1, 1),
        padding=[(pe, pe)] * 3,
        lhs_dilation=(stride,) * 3,
        rhs_dilation=(dilation,) * 3,
        dimension_numbers=("NCDHW", "OIDHW", "NCDHW"))


class DeConv3dTestPallas:
    """Mirror of DeConv3dTestTorch: num_layers stacked ConvTranspose3d (no bias)."""

    def __init__(self, num_layers, ndim, shape, in_channels, out_channels,
                 kernel_size, stride, padding, dilation, key):
        del ndim  # unused (matches the PyTorch module)
        self.shape = shape
        self.stride, self.padding, self.dilation = stride, padding, dilation
        self.weights = []
        cin = in_channels
        for _ in range(num_layers):
            key, sub = jax.random.split(key)
            fan_in = cin * kernel_size ** 3
            w = jax.random.normal(
                sub, (cin, out_channels, kernel_size, kernel_size, kernel_size),
                jnp.float32) / jnp.sqrt(float(fan_in))
            self.weights.append(w)
            cin = out_channels

    def __call__(self, x):
        for w in self.weights:
            x = conv_transpose3d_pallas(x, w, stride=self.stride,
                                        padding=self.padding,
                                        dilation=self.dilation)
        return x

    def reference(self, x):
        for w in self.weights:
            x = conv_transpose3d_ref(x, w, stride=self.stride,
                                     padding=self.padding,
                                     dilation=self.dilation)
        return x


if __name__ == "__main__":
    # Small, deterministic config consistent with the module's __init__.
    num_layers = 2
    shape = 8           # D = H = W = 8
    in_channels = 4
    out_channels = 8
    kernel_size = 3
    stride = 2
    padding = 1
    dilation = 1
    batch = 2

    key = jax.random.PRNGKey(0)
    key, xkey, wkey = jax.random.split(key, 3)
    x = jax.random.normal(
        xkey, (batch, in_channels, shape, shape, shape), jnp.float32)

    model = DeConv3dTestPallas(num_layers, 3, shape, in_channels, out_channels,
                               kernel_size, stride, padding, dilation, wkey)

    y = jax.block_until_ready(model(x))
    y_ref = jax.block_until_ready(model.reference(x))

    assert y.shape == y_ref.shape, (y.shape, y_ref.shape)
    assert jnp.allclose(y, y_ref, rtol=2e-2, atol=2e-2), (
        "max abs diff", float(jnp.max(jnp.abs(y - y_ref))))

    print("KERNEL_OK")
</pallas_src>

<mosaic_0001>
module attributes {stable_mosaic.version = 11 : i64} {
  func.func @_deconv_sample_kernel(%arg0: i32, %arg1: memref<1x8x4949xbf16, #tpu.memory_space<vmem>>, %arg2: memref<8x216xbf16, #tpu.memory_space<vmem>>, %arg3: memref<1x8x4335xf32, #tpu.memory_space<vmem>>, %arg4: memref<216x4335xbf16, #tpu.memory_space<vmem>>) attributes {dimension_semantics = [#tpu.dimension_semantics<parallel>], iteration_bounds = array<i64: 2>, scalar_prefetch = 0 : i64, scratch_operands = 1 : i64, tpu.core_type = #tpu.core_type<tc>, window_params = [{transform_indices = @transform_0, window_bounds = array<i64: 1, 8, 4949>}, {pipeline_mode = #tpu.pipeline_mode<synchronous>, transform_indices = @transform_1, window_bounds = array<i64: 8, 216>}, {transform_indices = @transform_2, window_bounds = array<i64: 1, 8, 4335>}]} {
    %c0 = arith.constant 0 : index
    %c0_0 = arith.constant 0 : index
    %c0_1 = arith.constant 0 : index
    %0 = vector.load %arg1[%c0, %c0_0, %c0_1] : memref<1x8x4949xbf16, #tpu.memory_space<vmem>>, vector<1x8x4335xbf16>
    %1 = vector.shape_cast %0 : vector<1x8x4335xbf16> to vector<8x4335xbf16>
    %c0_2 = arith.constant 0 : index
    %c0_3 = arith.constant 0 : index
    %2 = vector.load %arg4[%c0_2, %c0_3] : memref<216x4335xbf16, #tpu.memory_space<vmem>>, vector<8x4335xbf16>
    tpu.vector_store %arg4[%c0_2, %c0_3], %1 {strides = array<i32>} : memref<216x4335xbf16, #tpu.memory_space<vmem>>, vector<8x4335xbf16>,
    %c0_4 = arith.constant 0 : index
    %c0_5 = arith.constant 0 : index
    %c1 = arith.constant 1 : index
    %3 = vector.load %arg1[%c0_4, %c0_5, %c1] : memref<1x8x4949xbf16, #tpu.memory_space<vmem>>, vector<1x8x4335xbf16>
    %4 = vector.shape_cast %3 : vector<1x8x4335xbf16> to vector<8x4335xbf16>
    %c8 = arith.constant 8 : index
    %c0_6 = arith.constant 0 : index
    %5 = vector.load %arg4[%c8, %c0_6] : memref<216x4335xbf16, #tpu.memory_space<vmem>>, vector<8x4335xbf16>
    tpu.vector_store %arg4[%c8, %c0_6], %4 {strides = array<i32>} : memref<216x4335xbf16, #tpu.memory_space<vmem>>, vector<8x4335xbf16>,
    %c0_7 = arith.constant 0 : index
    %c0_8 = arith.constant 0 : index
    %c2 = arith.constant 2 : index
    %6 = vector.load %arg1[%c0_7, %c0_8, %c2] : memref<1x8x4949xbf16, #tpu.memory_space<vmem>>, vector<1x8x4335xbf16>
    %7 = vector.shape_cast %6 : vector<1x8x4335xbf16> to vector<8x4335xbf16>
    %c16 = arith.constant 16 : index
    %c0_9 = arith.constant 0 : index
    %8 = vector.load %arg4[%c16, %c0_9] : memref<216x4335xbf16, #tpu.memory_space<vmem>>, vector<8x4335xbf16>
    tpu.vector_store %arg4[%c16, %c0_9], %7 {strides = array<i32>} : memref<216x4335xbf16, #tpu.memory_space<vmem>>, vector<8x4335xbf16>,
    %c0_10 = arith.constant 0 : index
    %c0_11 = arith.constant 0 : index
    %c17 = arith.constant 17 : index
    %9 = vector.load %arg1[%c0_10, %c0_11, %c17] : memref<1x8x4949xbf16, #tpu.memory_space<vmem>>, vector<1x8x4335xbf16>
    %10 = vector.shape_cast %9 : vector<1x8x4335xbf16> to vector<8x4335xbf16>
    %c24 = arith.constant 24 : index
    %c0_12 = arith.constant 0 : index
    %11 = vector.load %arg4[%c24, %c0_12] : memref<216x4335xbf16, #tpu.memory_space<vmem>>, vector<8x4335xbf16>
    tpu.vector_store %arg4[%c24, %c0_12], %10 {strides = array<i32>} : memref<216x4335xbf16, #tpu.memory_space<vmem>>, vector<8x4335xbf16>,
    %c0_13 = arith.constant 0 : index
    %c0_14 = arith.constant 0 : index
    %c18 = arith.constant 18 : index
    %12 = vector.load %arg1[%c0_13, %c0_14, %c18] : memref<1x8x4949xbf16, #tpu.memory_space<vmem>>, vector<1x8x4335xbf16>
    %13 = vector.shape_cast %12 : vector<1x8x4335xbf16> to vector<8x4335xbf16>
    %c32 = arith.constant 32 : index
    %c0_15 = arith.constant 0 : index
    %14 = vector.load %arg4[%c32, %c0_15] : memref<216x4335xbf16, #tpu.memory_space<vmem>>, vector<8x4335xbf16>
    tpu.vector_store %arg4[%c32, %c0_15], %13 {strides = array<i32>} : memref<216x4335xbf16, #tpu.memory_space<vmem>>, vector<8x4335xbf16>,
    %c0_16 = arith.constant 0 : index
    %c0_17 = arith.constant 0 : index
    %c19 = arith.constant 19 : index
    %15 = vector.load %arg1[%c0_16, %c0_17, %c19] : memref<1x8x4949xbf16, #tpu.memory_space<vmem>>, vector<1x8x4335xbf16>
    %16 = vector.shape_cast %15 : vector<1x8x4335xbf16> to vector<8x4335xbf16>
    %c40 = arith.constant 40 : index
    %c0_18 = arith.constant 0 : index
    %17 = vector.load %arg4[%c40, %c0_18] : memref<216x4335xbf16, #tpu.memory_space<vmem>>, vector<8x4335xbf16>
    tpu.vector_store %arg4[%c40, %c0_18], %16 {strides = array<i32>} : memref<216x4335xbf16, #tpu.memory_space<vmem>>, vector<8x4335xbf16>,
    %c0_19 = arith.constant 0 : index
    %c0_20 = arith.constant 0 : index
    %c34 = arith.constant 34 : index
    %18 = vector.load %arg1[%c0_19, %c0_20, %c34] : memref<1x8x4949xbf16, #tpu.memory_space<vmem>>, vector<1x8x4335xbf16>
    %19 = vector.shape_cast %18 : vector<1x8x4335xbf16> to vector<8x4335xbf16>
    %c48 = arith.constant 48 : index
    %c0_21 = arith.constant 0 : index
    %20 = vector.load %arg4[%c48, %c0_21] : memref<216x4335xbf16, #tpu.memory_space<vmem>>, vector<8x4335xbf16>
    tpu.vector_store %arg4[%c48, %c0_21], %19 {strides = array<i32>} : memref<216x4335xbf16, #tpu.memory_space<vmem>>, vector<8x4335xbf16>,
    %c0_22 = arith.constant 0 : index
    %c0_23 = arith.constant 0 : index
    %c35 = arith.constant 35 : index
    %21 = vector.load %arg1[%c0_22, %c0_23, %c35] : memref<1x8x4949xbf16, #tpu.memory_space<vmem>>, vector<1x8x4335xbf16>
    %22 = vector.shape_cast %21 : vector<1x8x4335xbf16> to vector<8x4335xbf16>
    %c56 = arith.constant 56 : index
    %c0_24 = arith.constant 0 : index
    %23 = vector.load %arg4[%c56, %c0_24] : memref<216x4335xbf16, #tpu.memory_space<vmem>>, vector<8x4335xbf16>
    tpu.vector_store %arg4[%c56, %c0_24], %22 {strides = array<i32>} : memref<216x4335xbf16, #tpu.memory_space<vmem>>, vector<8x4335xbf16>,
    %c0_25 = arith.constant 0 : index
    %c0_26 = arith.constant 0 : index
    %c36 = arith.constant 36 : index
    %24 = vector.load %arg1[%c0_25, %c0_26, %c36] : memref<1x8x4949xbf16, #tpu.memory_space<vmem>>, vector<1x8x4335xbf16>
    %25 = vector.shape_cast %24 : vector<1x8x4335xbf16> to vector<8x4335xbf16>
    %c64 = arith.constant 64 : index
    %c0_27 = arith.constant 0 : index
    %26 = vector.load %arg4[%c64, %c0_27] : memref<216x4335xbf16, #tpu.memory_space<vmem>>, vector<8x4335xbf16>
    tpu.vector_store %arg4[%c64, %c0_27], %25 {strides = array<i32>} : memref<216x4335xbf16, #tpu.memory_space<vmem>>, vector<8x4335xbf16>,
    %c0_28 = arith.constant 0 : index
    %c0_29 = arith.constant 0 : index
    %c289 = arith.constant 289 : index
    %27 = vector.load %arg1[%c0_28, %c0_29, %c289] : memref<1x8x4949xbf16, #tpu.memory_space<vmem>>, vector<1x8x4335xbf16>
    %28 = vector.shape_cast %27 : vector<1x8x4335xbf16> to vector<8x4335xbf16>
    %c72 = arith.constant 72 : index
    %c0_30 = arith.constant 0 : index
    %29 = vector.load %arg4[%c72, %c0_30] : memref<216x4335xbf16, #tpu.memory_space<vmem>>, vector<8x4335xbf16>
    tpu.vector_store %arg4[%c72, %c0_30], %28 {strides = array<i32>} : memref<216x4335xbf16, #tpu.memory_space<vmem>>, vector<8x4335xbf16>,
    %c0_31 = arith.constant 0 : index
    %c0_32 = arith.constant 0 : index
    %c290 = arith.constant 290 : index
    %30 = vector.load %arg1[%c0_31, %c0_32, %c290] : memref<1x8x4949xbf16, #tpu.memory_space<vmem>>, vector<1x8x4335xbf16>
    %31 = vector.shape_cast %30 : vector<1x8x4335xbf16> to vector<8x4335xbf16>
    %c80 = arith.constant 80 : index
    %c0_33 = arith.constant 0 : index
    %32 = vector.load %arg4[%c80, %c0_33] : memref<216x4335xbf16, #tpu.memory_space<vmem>>, vector<8x4335xbf16>
    tpu.vector_store %arg4[%c80, %c0_33], %31 {strides = array<i32>} : memref<216x4335xbf16, #tpu.memory_space<vmem>>, vector<8x4335xbf16>,
    %c0_34 = arith.constant 0 : index
    %c0_35 = arith.constant 0 : index
    %c291 = arith.constant 291 : index
    %33 = vector.load %arg1[%c0_34, %c0_35, %c291] : memref<1x8x4949xbf16, #tpu.memory_space<vmem>>, vector<1x8x4335xbf16>
    %34 = vector.shape_cast %33 : vector<1x8x4335xbf16> to vector<8x4335xbf16>
    %c88 = arith.constant 88 : index
    %c0_36 = arith.constant 0 : index
    %35 = vector.load %arg4[%c88, %c0_36] : memref<216x4335xbf16, #tpu.memory_space<vmem>>, vector<8x4335xbf16>
    tpu.vector_store %arg4[%c88, %c0_36], %34 {strides = array<i32>} : memref<216x4335xbf16, #tpu.memory_space<vmem>>, vector<8x4335xbf16>,
    %c0_37 = arith.constant 0 : index
    %c0_38 = arith.constant 0 : index
    %c306 = arith.constant 306 : index
    %36 = vector.load %arg1[%c0_37, %c0_38, %c306] : memref<1x8x4949xbf16, #tpu.memory_space<vmem>>, vector<1x8x4335xbf16>
    %37 = vector.shape_cast %36 : vector<1x8x4335xbf16> to vector<8x4335xbf16>
    %c96 = arith.constant 96 : index
    %c0_39 = arith.constant 0 : index
    %38 = vector.load %arg4[%c96, %c0_39] : memref<216x4335xbf16, #tpu.memory_space<vmem>>, vector<8x4335xbf16>
    tpu.vector_store %arg4[%c96, %c0_39], %37 {strides = array<i32>} : memref<216x4335xbf16, #tpu.memory_space<vmem>>, vector<8x4335xbf16>,
    %c0_40 = arith.constant 0 : index
    %c0_41 = arith.constant 0 : index
    %c307 = arith.constant 307 : index
    %39 = vector.load %arg1[%c0_40, %c0_41, %c307] : memref<1x8x4949xbf16, #tpu.memory_space<vmem>>, vector<1x8x4335xbf16>
    %40 = vector.shape_cast %39 : vector<1x8x4335xbf16> to vector<8x4335xbf16>
    %c104 = arith.constant 104 : index
    %c0_42 = arith.constant 0 : index
    %41 = vector.load %arg4[%c104, %c0_42] : memref<216x4335xbf16, #tpu.memory_space<vmem>>, vector<8x4335xbf16>
    tpu.vector_store %arg4[%c104, %c0_42], %40 {strides = array<i32>} : memref<216x4335xbf16, #tpu.memory_space<vmem>>, vector<8x4335xbf16>,
    %c0_43 = arith.constant 0 : index
    %c0_44 = arith.constant 0 : index
    %c308 = arith.constant 308 : index
    %42 = vector.load %arg1[%c0_43, %c0_44, %c308] : memref<1x8x4949xbf16, #tpu.memory_space<vmem>>, vector<1x8x4335xbf16>
    %43 = vector.shape_cast %42 : vector<1x8x4335xbf16> to vector<8x4335xbf16>
    %c112 = arith.constant 112 : index
    %c0_45 = arith.constant 0 : index
    %44 = vector.load %arg4[%c112, %c0_45] : memref<216x4335xbf16, #tpu.memory_space<vmem>>, vector<8x4335xbf16>
    tpu.vector_store %arg4[%c112, %c0_45], %43 {strides = array<i32>} : memref<216x4335xbf16, #tpu.memory_space<vmem>>, vector<8x4335xbf16>,
    %c0_46 = arith.constant 0 : index
    %c0_47 = arith.constant 0 : index
    %c323 = arith.constant 323 : index
    %45 = vector.load %arg1[%c0_46, %c0_47, %c323] : memref<1x8x4949xbf16, #tpu.memory_space<vmem>>, vector<1x8x4335xbf16>
    %46 = vector.shape_cast %45 : vector<1x8x4335xbf16> to vector<8x4335xbf16>
    %c120 = arith.constant 120 : index
    %c0_48 = arith.constant 0 : index
    %47 = vector.load %arg4[%c120, %c0_48] : memref<216x4335xbf16, #tpu.memory_space<vmem>>, vector<8x4335xbf16>
    tpu.vector_store %arg4[%c120, %c0_48], %46 {strides = array<i32>} : memref<216x4335xbf16, #tpu.memory_space<vmem>>, vector<8x4335xbf16>,
    %c0_49 = arith.constant 0 : index
    %c0_50 = arith.constant 0 : index
    %c324 = arith.constant 324 : index
    %48 = vector.load %arg1[%c0_49, %c0_50, %c324] : memref<1x8x4949xbf16, #tpu.memory_space<vmem>>, vector<1x8x4335xbf16>
    %49 = vector.shape_cast %48 : vector<1x8x4335xbf16> to vector<8x4335xbf16>
    %c128 = arith.constant 128 : index
    %c0_51 = arith.constant 0 : index
    %50 = vector.load %arg4[%c128, %c0_51] : memref<216x4335xbf16, #tpu.memory_space<vmem>>, vector<8x4335xbf16>
    tpu.vector_store %arg4[%c128, %c0_51], %49 {strides = array<i32>} : memref<216x4335xbf16, #tpu.memory_space<vmem>>, vector<8x4335xbf16>,
    %c0_52 = arith.constant 0 : index
    %c0_53 = arith.constant 0 : index
    %c325 = arith.constant 325 : index
    %51 = vector.load %arg1[%c0_52, %c0_53, %c325] : memref<1x8x4949xbf16, #tpu.memory_space<vmem>>, vector<1x8x4335xbf16>
    %52 = vector.shape_cast %51 : vector<1x8x4335xbf16> to vector<8x4335xbf16>
    %c136 = arith.constant 136 : index
    %c0_54 = arith.constant 0 : index
    %53 = vector.load %arg4[%c136, %c0_54] : memref<216x4335xbf16, #tpu.memory_space<vmem>>, vector<8x4335xbf16>
    tpu.vector_store %arg4[%c136, %c0_54], %52 {strides = array<i32>} : memref<216x4335xbf16, #tpu.memory_space<vmem>>, vector<8x4335xbf16>,
    %c0_55 = arith.constant 0 : index
    %c0_56 = arith.constant 0 : index
    %c578 = arith.constant 578 : index
    %54 = vector.load %arg1[%c0_55, %c0_56, %c578] : memref<1x8x4949xbf16, #tpu.memory_space<vmem>>, vector<1x8x4335xbf16>
    %55 = vector.shape_cast %54 : vector<1x8x4335xbf16> to vector<8x4335xbf16>
    %c144 = arith.constant 144 : index
    %c0_57 = arith.constant 0 : index
    %56 = vector.load %arg4[%c144, %c0_57] : memref<216x4335xbf16, #tpu.memory_space<vmem>>, vector<8x4335xbf16>
    tpu.vector_store %arg4[%c144, %c0_57], %55 {strides = array<i32>} : memref<216x4335xbf16, #tpu.memory_space<vmem>>, vector<8x4335xbf16>,
    %c0_58 = arith.constant 0 : index
    %c0_59 = arith.constant 0 : index
    %c579 = arith.constant 579 : index
    %57 = vector.load %arg1[%c0_58, %c0_59, %c579] : memref<1x8x4949xbf16, #tpu.memory_space<vmem>>, vector<1x8x4335xbf16>
    %58 = vector.shape_cast %57 : vector<1x8x4335xbf16> to vector<8x4335xbf16>
    %c152 = arith.constant 152 : index
    %c0_60 = arith.constant 0 : index
    %59 = vector.load %arg4[%c152, %c0_60] : memref<216x4335xbf16, #tpu.memory_space<vmem>>, vector<8x4335xbf16>
    tpu.vector_store %arg4[%c152, %c0_60], %58 {strides = array<i32>} : memref<216x4335xbf16, #tpu.memory_space<vmem>>, vector<8x4335xbf16>,
    %c0_61 = arith.constant 0 : index
    %c0_62 = arith.constant 0 : index
    %c580 = arith.constant 580 : index
    %60 = vector.load %arg1[%c0_61, %c0_62, %c580] : memref<1x8x4949xbf16, #tpu.memory_space<vmem>>, vector<1x8x4335xbf16>
    %61 = vector.shape_cast %60 : vector<1x8x4335xbf16> to vector<8x4335xbf16>
    %c160 = arith.constant 160 : index
    %c0_63 = arith.constant 0 : index
    %62 = vector.load %arg4[%c160, %c0_63] : memref<216x4335xbf16, #tpu.memory_space<vmem>>, vector<8x4335xbf16>
    tpu.vector_store %arg4[%c160, %c0_63], %61 {strides = array<i32>} : memref<216x4335xbf16, #tpu.memory_space<vmem>>, vector<8x4335xbf16>,
    %c0_64 = arith.constant 0 : index
    %c0_65 = arith.constant 0 : index
    %c595 = arith.constant 595 : index
    %63 = vector.load %arg1[%c0_64, %c0_65, %c595] : memref<1x8x4949xbf16, #tpu.memory_space<vmem>>, vector<1x8x4335xbf16>
    %64 = vector.shape_cast %63 : vector<1x8x4335xbf16> to vector<8x4335xbf16>
    %c168 = arith.constant 168 : index
    %c0_66 = arith.constant 0 : index
    %65 = vector.load %arg4[%c168, %c0_66] : memref<216x4335xbf16, #tpu.memory_space<vmem>>, vector<8x4335xbf16>
    tpu.vector_store %arg4[%c168, %c0_66], %64 {strides = array<i32>} : memref<216x4335xbf16, #tpu.memory_space<vmem>>, vector<8x4335xbf16>,
    %c0_67 = arith.constant 0 : index
    %c0_68 = arith.constant 0 : index
    %c596 = arith.constant 596 : index
    %66 = vector.load %arg1[%c0_67, %c0_68, %c596] : memref<1x8x4949xbf16, #tpu.memory_space<vmem>>, vector<1x8x4335xbf16>
    %67 = vector.shape_cast %66 : vector<1x8x4335xbf16> to vector<8x4335xbf16>
    %c176 = arith.constant 176 : index
    %c0_69 = arith.constant 0 : index
    %68 = vector.load %arg4[%c176, %c0_69] : memref<216x4335xbf16, #tpu.memory_space<vmem>>, vector<8x4335xbf16>
    tpu.vector_store %arg4[%c176, %c0_69], %67 {strides = array<i32>} : memref<216x4335xbf16, #tpu.memory_space<vmem>>, vector<8x4335xbf16>,
    %c0_70 = arith.constant 0 : index
    %c0_71 = arith.constant 0 : index
    %c597 = arith.constant 597 : index
    %69 = vector.load %arg1[%c0_70, %c0_71, %c597] : memref<1x8x4949xbf16, #tpu.memory_space<vmem>>, vector<1x8x4335xbf16>
    %70 = vector.shape_cast %69 : vector<1x8x4335xbf16> to vector<8x4335xbf16>
    %c184 = arith.constant 184 : index
    %c0_72 = arith.constant 0 : index
    %71 = vector.load %arg4[%c184, %c0_72] : memref<216x4335xbf16, #tpu.memory_space<vmem>>, vector<8x4335xbf16>
    tpu.vector_store %arg4[%c184, %c0_72], %70 {strides = array<i32>} : memref<216x4335xbf16, #tpu.memory_space<vmem>>, vector<8x4335xbf16>,
    %c0_73 = arith.constant 0 : index
    %c0_74 = arith.constant 0 : index
    %c612 = arith.constant 612 : index
    %72 = vector.load %arg1[%c0_73, %c0_74, %c612] : memref<1x8x4949xbf16, #tpu.memory_space<vmem>>, vector<1x8x4335xbf16>
    %73 = vector.shape_cast %72 : vector<1x8x4335xbf16> to vector<8x4335xbf16>
    %c192 = arith.constant 192 : index
    %c0_75 = arith.constant 0 : index
    %74 = vector.load %arg4[%c192, %c0_75] : memref<216x4335xbf16, #tpu.memory_space<vmem>>, vector<8x4335xbf16>
    tpu.vector_store %arg4[%c192, %c0_75], %73 {strides = array<i32>} : memref<216x4335xbf16, #tpu.memory_space<vmem>>, vector<8x4335xbf16>,
    %c0_76 = arith.constant 0 : index
    %c0_77 = arith.constant 0 : index
    %c613 = arith.constant 613 : index
    %75 = vector.load %arg1[%c0_76, %c0_77, %c613] : memref<1x8x4949xbf16, #tpu.memory_space<vmem>>, vector<1x8x4335xbf16>
    %76 = vector.shape_cast %75 : vector<1x8x4335xbf16> to vector<8x4335xbf16>
    %c200 = arith.constant 200 : index
    %c0_78 = arith.constant 0 : index
    %77 = vector.load %arg4[%c200, %c0_78] : memref<216x4335xbf16, #tpu.memory_space<vmem>>, vector<8x4335xbf16>
    tpu.vector_store %arg4[%c200, %c0_78], %76 {strides = array<i32>} : memref<216x4335xbf16, #tpu.memory_space<vmem>>, vector<8x4335xbf16>,
    %c0_79 = arith.constant 0 : index
    %c0_80 = arith.constant 0 : index
    %c614 = arith.constant 614 : index
    %78 = vector.load %arg1[%c0_79, %c0_80, %c614] : memref<1x8x4949xbf16, #tpu.memory_space<vmem>>, vector<1x8x4335xbf16>
    %79 = vector.shape_cast %78 : vector<1x8x4335xbf16> to vector<8x4335xbf16>
    %c208 = arith.constant 208 : index
    %c0_81 = arith.constant 0 : index
    %80 = vector.load %arg4[%c208, %c0_81] : memref<216x4335xbf16, #tpu.memory_space<vmem>>, vector<8x4335xbf16>
    tpu.vector_store %arg4[%c208, %c0_81], %79 {strides = array<i32>} : memref<216x4335xbf16, #tpu.memory_space<vmem>>, vector<8x4335xbf16>,
    %c0_82 = arith.constant 0 : index
    %c0_83 = arith.constant 0 : index
    %81 = vector.load %arg2[%c0_82, %c0_83] : memref<8x216xbf16, #tpu.memory_space<vmem>>, vector<8x216xbf16>
    %c0_84 = arith.constant 0 : index
    %c0_85 = arith.constant 0 : index
    %82 = vector.load %arg4[%c0_84, %c0_85] : memref<216x4335xbf16, #tpu.memory_space<vmem>>, vector<216x4335xbf16>
    %cst = arith.constant dense<0.000000e+00> : vector<8x4335xf32>
    %83 = tpu.matmul %81, %82, %cst {dimension_numbers = #tpu.dot_dimension_numbers<[1], [0], [0], [1], [0, 0, 1, 1], [], []>} : vector<8x216xbf16>, vector<216x4335xbf16>, vector<8x4335xf32> -> vector<8x4335xf32>
    %c0_86 = arith.constant 0 : index
    %c0_87 = arith.constant 0 : index
    %c0_88 = arith.constant 0 : index
    %84 = vector.load %arg3[%c0_86, %c0_87, %c0_88] : memref<1x8x4335xf32, #tpu.memory_space<vmem>>, vector<1x8x4335xf32>
    %85 = vector.shape_cast %84 : vector<1x8x4335xf32> to vector<8x4335xf32>
    %86 = vector.shape_cast %83 : vector<8x4335xf32> to vector<1x8x4335xf32>
    tpu.vector_store %arg3[%c0_86, %c0_87, %c0_88], %86 {strides = array<i32>} : memref<1x8x4335xf32, #tpu.memory_space<vmem>>, vector<1x8x4335xf32>,
    return
  }
  func.func @transform_0(%arg0: i32) -> (i32, i32, i32) {
    %c0_i32 = arith.constant 0 : i32
    %c0_i32_0 = arith.constant 0 : i32
    %c0_i32_1 = arith.constant 0 : i32
    return %arg0, %c0_i32, %c0_i32_0 : i32, i32, i32
  }
  func.func @transform_1(%arg0: i32) -> (i32, i32) {
    %c0_i32 = arith.constant 0 : i32
    %c0_i32_0 = arith.constant 0 : i32
    %c0_i32_1 = arith.constant 0 : i32
    return %c0_i32, %c0_i32_0 : i32, i32
  }
  func.func @transform_2(%arg0: i32) -> (i32, i32, i32) {
    %c0_i32 = arith.constant 0 : i32
    %c0_i32_0 = arith.constant 0 : i32
    %c0_i32_1 = arith.constant 0 : i32
    return %arg0, %c0_i32, %c0_i32_0 : i32, i32, i32
  }
}

</mosaic_0001>

<llo_original>
// kernel: tpu_custom_call.1
$region0: #{tpu_custom_call.1}
  #allocation0 [shape = 'u32[]', space=smem, size = 0x4, offset = 0x4, fixed_abs, tag = 'smem constant byte address 0x4 - core index']
  #allocation1 [shape = 'u32[144,128]{1,0:T(1,128)}', space=vmem, size = 0x12000, scoped, tag = 'internal scratch']
  #allocation2 [shape = 'bf16[216,4335]{1,0:T(8,128)(2,1)}', space=vmem, size = 0x1cb000, scoped, tag = 'scratch operand']
  %s0 = inlined_call_operand.hbm [shape: bf16[2,8,4949], index: 0, kind: input, shape index: {}]
  %s1 = inlined_call_operand.hbm [shape: bf16[8,216], index: 1, kind: input, shape index: {}]
  %s2 = inlined_call_operand.hbm [shape: f32[2,8,4335], index: 2, kind: output, shape index: {}]
  %s3 = sld [smem:[#allocation0]]
  $region49: #{tpu_custom_call.1} parent=0
    _
  %s5 = ssub.s32 1, %s3
  %s6 = scalar_select 0, %s5, %s3
  $region1: #{tpu_custom_call.1} parent=0
    #allocation3 [shape = 'u8[159744]{0}', space=vmem, size = 0x27000, scoped, tag = 'input window, operand 0']
    #allocation4 [shape = 's32[2]{0}', space=sflag, size = 0x8, scoped, tag = 'scoped memory for tpu_custom_call.1']
    #allocation5 [shape = 's32[2]{0}', space=sflag, size = 0x8, scoped, tag = 'scoped memory for tpu_custom_call.1']
    #allocation6 [shape = 'u8[4096]{0}', space=vmem, size = 0x1000, scoped, tag = 'input window, operand 1, single buffered']
    #allocation7 [shape = 's32[1]{0}', space=sflag, size = 0x4, scoped, tag = 'scoped memory for tpu_custom_call.1']
    #allocation8 [shape = 'u8[278528]{0}', space=vmem, size = 0x44000, scoped, tag = 'output window, operand 0']
    %7 = vsyncpa [#allocation4], 0
    %s8 = scalar_lea.sflag [#allocation4], 1
    %9 = vsyncpa %s8, 0
    %10 = vsyncpa [#allocation7], 0
    %11 = vsyncpa [#allocation5], 0
    %s12 = scalar_lea.sflag [#allocation5], 1
    %13 = vsyncpa %s12, 0
    loop: start=0, step=1, limit=4
    $region2: #{tpu_custom_call.1} parent=1 // loop_pre_header
      _
    $region3: #{tpu_custom_call.1} parent=1 // loop_header
      %s15 = sphi 0, %s19
      %p16 = scmp.ge.s32.totalorder %s15, 4
      %s25 = sphi 0, %s27
      %s28 = sphi 0, %s25
      %s29 = sphi 0, %s28
      %s45 = sphi 0, %s29
      %s49 = sphi 0, %s49
      %s51 = sphi 0, %s49
      %s52 = sphi 0, %s51
      %s66 = sphi 0, %s52
      %s72 = sphi 0, %s74
      %s75 = sphi 0, %s72
      %s76 = sphi 0, %s75
      %s92 = sphi 0, %s76
    $region4: #{tpu_custom_call.1} parent=1 // loop_header_branch
      %18 = sbr.rel (%p16) target = $region8
    $region5: #{tpu_custom_call.1} parent=1 // loop_body
      %s20 = ssub.s32 %s15, 1
      %s21 = ssub.s32 %s15, 2
      %s22 = sadd.s32 %s15, 1
      %s23 = ssub.s32 %s15, %s22
      %p24 = scmp.eq.s32.totalorder %s23, 0
      %s26 = sadd.s32 %s25, 1
      %s27 = scalar_select %p24, %s25, %s26
      %p30 = pneg %p24
      %p31 = scmp.eq.s32.totalorder %s15, 1
      %p32 = por %p30, %p31
      %p33 = scmp.ne.s32.totalorder %s25, %s28
      %p34 = scmp.eq.s32.totalorder %s15, 0
      %p35 = por %p33, %p34
      %p36 = scmp.ne.s32.totalorder %s25, %s28
      %p37 = scmp.eq.s32.totalorder %s20, 1
      %p38 = por %p36, %p37
      %p39 = scmp.ne.s32.totalorder %s28, %s29
      %p40 = scmp.eq.s32.totalorder %s20, 0
      %p41 = por %p39, %p40
      %p42 = scmp.ne.s32.totalorder %s28, %s29
      %p43 = scmp.eq.s32.totalorder %s21, 1
      %p44 = por %p42, %p43
      %p46 = scmp.ne.s32.totalorder %s29, %s45
      %p47 = scmp.eq.s32.totalorder %s21, 0
      %p48 = por %p46, %p47
      %s50 = sadd.s32 %s49, 1
      %p53 = scmp.eq.s32.totalorder %s15, 1
      %p54 = scmp.ne.s32.totalorder %s49, %s51
      %p55 = scmp.eq.s32.totalorder %s15, 0
      %p56 = por %p54, %p55
      %p57 = scmp.ne.s32.totalorder %s49, %s51
      %p58 = scmp.eq.s32.totalorder %s20, 1
      %p59 = por %p57, %p58
      %p60 = scmp.ne.s32.totalorder %s51, %s52
      %p61 = scmp.eq.s32.totalorder %s20, 0
      %p62 = por %p60, %p61
      %p63 = scmp.ne.s32.totalorder %s51, %s52
      %p64 = scmp.eq.s32.totalorder %s21, 1
      %p65 = por %p63, %p64
      %p67 = scmp.ne.s32.totalorder %s52, %s66
      %p68 = scmp.eq.s32.totalorder %s21, 0
      %p69 = por %p67, %p68
      %s70 = ssub.s32 %s15, %s22
      %p71 = scmp.eq.s32.totalorder %s70, 0
      %s73 = sadd.s32 %s72, 1
      %s74 = scalar_select %p71, %s72, %s73
      %p77 = pneg %p71
      %p78 = scmp.eq.s32.totalorder %s15, 1
      %p79 = por %p77, %p78
      %p80 = scmp.ne.s32.totalorder %s72, %s75
      %p81 = scmp.eq.s32.totalorder %s15, 0
      %p82 = por %p80, %p81
      %p83 = scmp.ne.s32.totalorder %s72, %s75
      %p84 = scmp.eq.s32.totalorder %s20, 1
      %p85 = por %p83, %p84
      %p86 = scmp.ne.s32.totalorder %s75, %s76
      %p87 = scmp.eq.s32.totalorder %s20, 0
      %p88 = por %p86, %p87
      %p89 = scmp.ne.s32.totalorder %s75, %s76
      %p90 = scmp.eq.s32.totalorder %s21, 1
      %p91 = por %p89, %p90
      %p93 = scmp.ne.s32.totalorder %s76, %s92
      %p94 = scmp.eq.s32.totalorder %s21, 0
      %p95 = por %p93, %p94
      %p96 = scmp.le.s32.totalorder 1, %s15
      %p97 = scmp.lt.s32.totalorder %s15, 3
      %p98 = pnand %p96, %p97
      %p99 = pneg %p98
      // Predicated region
      $region9: #{tpu_custom_call.1} parent=5 // pred_check
        _
      $region10: #{tpu_custom_call.1} parent=5 // pred_check_branch
        %101 = sbr.rel (%p98) target = $region12
      $region11: #{tpu_custom_call.1} parent=5 // pred_region
        %s102 = ssub.s32 %s15, 1
        // Predicated region
        $region13: #{tpu_custom_call.1} parent=11 // pred_check
          %p103 = pneg %p62
        $region14: #{tpu_custom_call.1} parent=11 // pred_check_branch
          %105 = sbr.rel (%p103) target = $region16
        $region15: #{tpu_custom_call.1} parent=11 // pred_region
          %s107 = ssub.s32 128, 128
          %108 = vsyncadd [#allocation7], %s107
          %s110 = sshll.u32 [#allocation6], 4
          %s111 = int_to_ptr.vmem [resolvable:$true] %s110
          %113 = dma.hbm_to_vmem [thread:$0]  %s1, 128, %s111, [#allocation7]
        $region16: #{tpu_custom_call.1} parent=11 // pred_fallthru
          _
      $region12: #{tpu_custom_call.1} parent=5 // pred_fallthru
        _
      %p114 = scmp.lt.s32.totalorder %s15, 2
      // Predicated region
      $region17: #{tpu_custom_call.1} parent=5 // pred_check
        %p115 = pneg %p114
      $region18: #{tpu_custom_call.1} parent=5 // pred_check_branch
        %117 = sbr.rel (%p115) target = $region20
      $region19: #{tpu_custom_call.1} parent=5 // pred_region
        // Predicated region
        $region21: #{tpu_custom_call.1} parent=19 // pred_check
          %p118 = pneg %p35
        $region22: #{tpu_custom_call.1} parent=19 // pred_check_branch
          %120 = sbr.rel (%p118) target = $region24
        $region23: #{tpu_custom_call.1} parent=19 // pred_region
          %s121 = sand.u32 %s25, 1
          %s122 = scalar_lea.sflag [#allocation4], %s121
          %s123 = sand.u32 %s25, 1
          %s124 = smul.addr %s123, 156
          %s125 = scalar_lea.vmem [#allocation3], %s124
          %s127 = ssub.s32 2496, 2496
          %128 = vsyncadd %s122, %s127
          %s129 = smul.addr %s15, 39
          %s130 = smul.addr %s129, 64
          %s131 = scalar_lea.hbm %s0, %s130
          %s133 = sshll.u32 %s125, 4
          %s134 = int_to_ptr.vmem [resolvable:$true] %s133
          %136 = dma.hbm_to_vmem [thread:$0]  %s131, 2496, %s134, %s122
        $region24: #{tpu_custom_call.1} parent=19 // pred_fallthru
          _
      $region20: #{tpu_custom_call.1} parent=5 // pred_fallthru
        _
      %p137 = scmp.le.s32.totalorder 1, %s15
      %p138 = scmp.lt.s32.totalorder %s15, 3
      %p139 = pnand %p137, %p138
      %p140 = pneg %p139
      // Predicated region
      $region25: #{tpu_custom_call.1} parent=5 // pred_check
        _
      $region26: #{tpu_custom_call.1} parent=5 // pred_check_branch
        %142 = sbr.rel (%p139) target = $region28
      $region27: #{tpu_custom_call.1} parent=5 // pred_region
        %s143 = ssub.s32 %s15, 1
        %s144 = sand.u32 %s28, 1
        %s145 = scalar_lea.sflag [#allocation4], %s144
        %s146 = sand.u32 %s28, 1
        %s147 = smul.addr %s146, 156
        %s148 = scalar_lea.vmem [#allocation3], %s147
        // Predicated region
        $region29: #{tpu_custom_call.1} parent=27 // pred_check
          %p149 = pneg %p41
        $region30: #{tpu_custom_call.1} parent=27 // pred_check_branch
          %151 = sbr.rel (%p149) target = $region32
        $region31: #{tpu_custom_call.1} parent=27 // pred_region
          %152 = dma.done %s145, 2496
        $region32: #{tpu_custom_call.1} parent=27 // pred_fallthru
          _
        // Predicated region
        $region33: #{tpu_custom_call.1} parent=27 // pred_check
          %p153 = pneg %p62
        $region34: #{tpu_custom_call.1} parent=27 // pred_check_branch
          %155 = sbr.rel (%p153) target = $region36
        $region35: #{tpu_custom_call.1} parent=27 // pred_region
          %156 = dma.done [#allocation7], 128
        $region36: #{tpu_custom_call.1} parent=27 // pred_fallthru
          _
        %s157 = sand.u32 %s28, 1
        %s158 = scalar_lea.sflag [#allocation4], %s157
        %s159 = sand.u32 %s28, 1
        %s160 = smul.addr %s159, 156
        %s161 = scalar_lea.vmem [#allocation3], %s160
        %p162 = pneg %p41
        %p163 = pneg %p38
        %p164 = pneg %p62
        %p165 = pneg %p59
        %p166 = pneg %p88
        %p167 = pneg %p85
        %s168 = sand.u32 %s75, 1
        %s169 = scalar_lea.sflag [#allocation5], %s168
        %s170 = sand.u32 %s75, 1
        %s171 = smul.addr %s170, 272
        %s172 = scalar_lea.vmem [#allocation8], %s171
        %v174 = vld [vmem:[%s148] sm:$0xff]
        %v175 = vld [vmem:[%s148 + $0x8] sm:$0xff]
        %v176 = vld [vmem:[%s148 + $0x10] sm:$0xff]
        %v177 = vld [vmem:[%s148 + $0x18] sm:$0xff]
        %v178 = vld [vmem:[%s148 + $0x20] sm:$0xff]
        %v179 = vld [vmem:[%s148 + $0x28] sm:$0xff]
        %v180 = vld [vmem:[%s148 + $0x30] sm:$0xff]
        %v181 = vld [vmem:[%s148 + $0x38] sm:$0xff]
        %v182 = vld [vmem:[%s148 + $0x40] sm:$0xff]
        %v183 = vld [vmem:[%s148 + $0x48] sm:$0xff]
        %v184 = vld [vmem:[%s148 + $0x50] sm:$0xff]
        %v185 = vld [vmem:[%s148 + $0x58] sm:$0xff]
        %v186 = vld [vmem:[%s148 + $0x60] sm:$0xff]
        %v187 = vld [vmem:[%s148 + $0x68] sm:$0xff]
        %v188 = vld [vmem:[%s148 + $0x70] sm:$0xff]
        %v189 = vld [vmem:[%s148 + $0x78] sm:$0xff]
        %v190 = vld [vmem:[%s148 + $0x80] sm:$0xff]
        %191 = vst [vmem:[#allocation2] sm:$0xff] %v174
        %192 = vst [vmem:[#allocation2 + $0x8] sm:$0xff] %v175
        %193 = vst [vmem:[#allocation2 + $0x10] sm:$0xff] %v176
        %194 = vst [vmem:[#allocation2 + $0x18] sm:$0xff] %v177
        %195 = vst [vmem:[#allocation2 + $0x20] sm:$0xff] %v178
        %196 = vst [vmem:[#allocation2 + $0x28] sm:$0xff] %v179
        %197 = vst [vmem:[#allocation2 + $0x30] sm:$0xff] %v180
        %198 = vst [vmem:[#allocation2 + $0x38] sm:$0xff] %v181
        %199 = vst [vmem:[#allocation2 + $0x40] sm:$0xff] %v182
        %200 = vst [vmem:[#allocation2 + $0x48] sm:$0xff] %v183
        %201 = vst [vmem:[#allocation2 + $0x50] sm:$0xff] %v184
        %202 = vst [vmem:[#allocation2 + $0x58] sm:$0xff] %v185
        %203 = vst [vmem:[#allocation2 + $0x60] sm:$0xff] %v186
        %204 = vst [vmem:[#allocation2 + $0x68] sm:$0xff] %v187
        %205 = vst [vmem:[#allocation2 + $0x70] sm:$0xff] %v188
        %206 = vst [vmem:[#allocation2 + $0x78] sm:$0xff] %v189
        %vm207 = vcmask 1043456
        %vm208 = vcmask 908292
        %vm209 = vmor %vm208, %vm207
        %210 = vst.msk [vmem:[#allocation2 + $0x80] sm:$0xff] %vm209, %v190
        %v211 = vld [vmem:[%s148] sm:$0xff]
        %v212 = vld [vmem:[%s148 + $0x8] sm:$0xff]
        %v213 = vld [vmem:[%s148 + $0x10] sm:$0xff]
        %v214 = vld [vmem:[%s148 + $0x18] sm:$0xff]
        %v215 = vld [vmem:[%s148 + $0x20] sm:$0xff]
        %v216 = vld [vmem:[%s148 + $0x28] sm:$0xff]
        %v217 = vld [vmem:[%s148 + $0x30] sm:$0xff]
        %v218 = vld [vmem:[%s148 + $0x38] sm:$0xff]
        %v219 = vld [vmem:[%s148 + $0x40] sm:$0xff]
        %v220 = vld [vmem:[%s148 + $0x48] sm:$0xff]
        %v221 = vld [vmem:[%s148 + $0x50] sm:$0xff]
        %v222 = vld [vmem:[%s148 + $0x58] sm:$0xff]
        %v223 = vld [vmem:[%s148 + $0x60] sm:$0xff]
        %v224 = vld [vmem:[%s148 + $0x68] sm:$0xff]
        %v225 = vld [vmem:[%s148 + $0x70] sm:$0xff]
        %v226 = vld [vmem:[%s148 + $0x78] sm:$0xff]
        %v227 = vld [vmem:[%s148 + $0x80] sm:$0xff]
        %245 = vrot.lane.b32.xlu0 %v211, 127
        %v246 = vpop.permute.xlu0 %245
        %247 = vrot.lane.b32.xlu0 %v212, 127
        %v248 = vpop.permute.xlu0 %247
        %249 = vrot.lane.b32.xlu0 %v213, 127
        %v250 = vpop.permute.xlu0 %249
        %251 = vrot.lane.b32.xlu0 %v214, 127
        %v252 = vpop.permute.xlu0 %251
        %253 = vrot.lane.b32.xlu0 %v215, 127
        %v254 = vpop.permute.xlu0 %253
        %255 = vrot.lane.b32.xlu0 %v216, 127
        %v256 = vpop.permute.xlu0 %255
        %257 = vrot.lane.b32.xlu0 %v217, 127
        %v258 = vpop.permute.xlu0 %257
        %259 = vrot.lane.b32.xlu0 %v218, 127
        %v260 = vpop.permute.xlu0 %259
        %261 = vrot.lane.b32.xlu0 %v219, 127
        %v262 = vpop.permute.xlu0 %261
        %263 = vrot.lane.b32.xlu0 %v220, 127
        %v264 = vpop.permute.xlu0 %263
        %265 = vrot.lane.b32.xlu0 %v221, 127
        %v266 = vpop.permute.xlu0 %265
        %267 = vrot.lane.b32.xlu0 %v222, 127
        %v268 = vpop.permute.xlu0 %267
        %269 = vrot.lane.b32.xlu0 %v223, 127
        %v270 = vpop.permute.xlu0 %269
        %271 = vrot.lane.b32.xlu0 %v224, 127
        %v272 = vpop.permute.xlu0 %271
        %273 = vrot.lane.b32.xlu0 %v225, 127
        %v274 = vpop.permute.xlu0 %273
        %275 = vrot.lane.b32.xlu0 %v226, 127
        %v276 = vpop.permute.xlu0 %275
        %277 = vrot.lane.b32.xlu0 %v227, 127
        %v278 = vpop.permute.xlu0 %277
        %v279 = vrot.slane %v246, 4
        %v280 = vrot.slane %v248, 4
        %v281 = vrot.slane %v250, 4
        %v282 = vrot.slane %v252, 4
        %v283 = vrot.slane %v254, 4
        %v284 = vrot.slane %v256, 4
        %v285 = vrot.slane %v258, 4
        %v286 = vrot.slane %v260, 4
        %v287 = vrot.slane %v262, 4
        %v288 = vrot.slane %v264, 4
        %v289 = vrot.slane %v266, 4
        %v290 = vrot.slane %v268, 4
        %v291 = vrot.slane %v270, 4
        %v292 = vrot.slane %v272, 4
        %v293 = vrot.slane %v274, 4
        %v294 = vrot.slane %v276, 4
        %v295 = vrot.slane %v278, 4
        %vm296 = vcmask 1043456
        %v297 = vsel %vm296, %v279, %v280
        %vm298 = vcmask 1039360
        %v299 = vsel %vm298, %v246, %v297
        %v300 = vsel %vm296, %v280, %v281
        %v301 = vsel %vm298, %v248, %v300
        %v302 = vsel %vm296, %v281, %v282
        %v303 = vsel %vm298, %v250, %v302
        %v304 = vsel %vm296, %v282, %v283
        %v305 = vsel %vm298, %v252, %v304
        %v306 = vsel %vm296, %v283, %v284
        %v307 = vsel %vm298, %v254, %v306
        %v308 = vsel %vm296, %v284, %v285
        %v309 = vsel %vm298, %v256, %v308
        %v310 = vsel %vm296, %v285, %v286
        %v311 = vsel %vm298, %v258, %v310
        %v312 = vsel %vm296, %v286, %v287
        %v313 = vsel %vm298, %v260, %v312
        %v314 = vsel %vm296, %v287, %v288
        %v315 = vsel %vm298, %v262, %v314
        %v316 = vsel %vm296, %v288, %v289
        %v317 = vsel %vm298, %v264, %v316
        %v318 = vsel %vm296, %v289, %v290
        %v319 = vsel %vm298, %v266, %v318
        %v320 = vsel %vm296, %v290, %v291
        %v321 = vsel %vm298, %v268, %v320
        %v322 = vsel %vm296, %v291, %v292
        %v323 = vsel %vm298, %v270, %v322
        %v324 = vsel %vm296, %v292, %v293
        %v325 = vsel %vm298, %v272, %v324
        %v326 = vsel %vm296, %v293, %v294
        %v327 = vsel %vm298, %v274, %v326
        %v328 = vsel %vm296, %v294, %v295
        %v329 = vsel %vm298, %v276, %v328
        %v330 = vsel %vm298, %v278, %v295
        %348 = vst [vmem:[#allocation2 + $0x88] sm:$0xff] %v299
        %349 = vst [vmem:[#allocation2 + $0x90] sm:$0xff] %v301
        %350 = vst [vmem:[#allocation2 + $0x98] sm:$0xff] %v303
        %351 = vst [vmem:[#allocation2 + $0xa0] sm:$0xff] %v305
        %352 = vst [vmem:[#allocation2 + $0xa8] sm:$0xff] %v307
        %353 = vst [vmem:[#allocation2 + $0xb0] sm:$0xff] %v309
        %354 = vst [vmem:[#allocation2 + $0xb8] sm:$0xff] %v311
        %355 = vst [vmem:[#allocation2 + $0xc0] sm:$0xff] %v313
        %356 = vst [vmem:[#allocation2 + $0xc8] sm:$0xff] %v315
        %357 = vst [vmem:[#allocation2 + $0xd0] sm:$0xff] %v317
        %358 = vst [vmem:[#allocation2 + $0xd8] sm:$0xff] %v319
        %359 = vst [vmem:[#allocation2 + $0xe0] sm:$0xff] %v321
        %360 = vst [vmem:[#allocation2 + $0xe8] sm:$0xff] %v323
        %361 = vst [vmem:[#allocation2 + $0xf0] sm:$0xff] %v325
        %362 = vst [vmem:[#allocation2 + $0xf8] sm:$0xff] %v327
        %363 = vst [vmem:[#allocation2 + $0x100] sm:$0xff] %v329
        %364 = vst.msk [vmem:[#allocation2 + $0x108] sm:$0xff] %vm209, %v330
        %v365 = vld [vmem:[%s148] sm:$0xff]
        %v366 = vld [vmem:[%s148 + $0x8] sm:$0xff]
        %v367 = vld [vmem:[%s148 + $0x10] sm:$0xff]
        %v368 = vld [vmem:[%s148 + $0x18] sm:$0xff]
        %v369 = vld [vmem:[%s148 + $0x20] sm:$0xff]
        %v370 = vld [vmem:[%s148 + $0x28] sm:$0xff]
        %v371 = vld [vmem:[%s148 + $0x30] sm:$0xff]
        %v372 = vld [vmem:[%s148 + $0x38] sm:$0xff]
        %v373 = vld [vmem:[%s148 + $0x40] sm:$0xff]
        %v374 = vld [vmem:[%s148 + $0x48] sm:$0xff]
        %v375 = vld [vmem:[%s148 + $0x50] sm:$0xff]
        %v376 = vld [vmem:[%s148 + $0x58] sm:$0xff]
        %v377 = vld [vmem:[%s148 + $0x60] sm:$0xff]
        %v378 = vld [vmem:[%s148 + $0x68] sm:$0xff]
        %v379 = vld [vmem:[%s148 + $0x70] sm:$0xff]
        %v380 = vld [vmem:[%s148 + $0x78] sm:$0xff]
        %v381 = vld [vmem:[%s148 + $0x80] sm:$0xff]
        %399 = vrot.lane.b32.xlu0 %v365, 126
        %v400 = vpop.permute.xlu0 %399
        %401 = vrot.lane.b32.xlu0 %v366, 126
        %v402 = vpop.permute.xlu0 %401
        %403 = vrot.lane.b32.xlu0 %v367, 126
        %v404 = vpop.permute.xlu0 %403
        %405 = vrot.lane.b32.xlu0 %v368, 126
        %v406 = vpop.permute.xlu0 %405
        %407 = vrot.lane.b32.xlu0 %v369, 126
        %v408 = vpop.permute.xlu0 %407
        %409 = vrot.lane.b32.xlu0 %v370, 126
        %v410 = vpop.permute.xlu0 %409
        %411 = vrot.lane.b32.xlu0 %v371, 126
        %v412 = vpop.permute.xlu0 %411
        %413 = vrot.lane.b32.xlu0 %v372, 126
        %v414 = vpop.permute.xlu0 %413
        %415 = vrot.lane.b32.xlu0 %v373, 126
        %v416 = vpop.permute.xlu0 %415
        %417 = vrot.lane.b32.xlu0 %v374, 126
        %v418 = vpop.permute.xlu0 %417
        %419 = vrot.lane.b32.xlu0 %v375, 126
        %v420 = vpop.permute.xlu0 %419
        %421 = vrot.lane.b32.xlu0 %v376, 126
        %v422 = vpop.permute.xlu0 %421
        %423 = vrot.lane.b32.xlu0 %v377, 126
        %v424 = vpop.permute.xlu0 %423
        %425 = vrot.lane.b32.xlu0 %v378, 126
        %v426 = vpop.permute.xlu0 %425
        %427 = vrot.lane.b32.xlu0 %v379, 126
        %v428 = vpop.permute.xlu0 %427
        %429 = vrot.lane.b32.xlu0 %v380, 126
        %v430 = vpop.permute.xlu0 %429
        %431 = vrot.lane.b32.xlu0 %v381, 126
        %v432 = vpop.permute.xlu0 %431
        %v433 = vrot.slane %v400, 4
        %v434 = vrot.slane %v402, 4
        %v435 = vrot.slane %v404, 4
        %v436 = vrot.slane %v406, 4
        %v437 = vrot.slane %v408, 4
        %v438 = vrot.slane %v410, 4
        %v439 = vrot.slane %v412, 4
        %v440 = vrot.slane %v414, 4
        %v441 = vrot.slane %v416, 4
        %v442 = vrot.slane %v418, 4
        %v443 = vrot.slane %v420, 4
        %v444 = vrot.slane %v422, 4
        %v445 = vrot.slane %v424, 4
        %v446 = vrot.slane %v426, 4
        %v447 = vrot.slane %v428, 4
        %v448 = vrot.slane %v430, 4
        %v449 = vrot.slane %v432, 4
        %v450 = vsel %vm296, %v433, %v434
        %vm451 = vcmask 1031168
        %v452 = vsel %vm451, %v400, %v450
        %v453 = vsel %vm296, %v434, %v435
        %v454 = vsel %vm451, %v402, %v453
        %v455 = vsel %vm296, %v435, %v436
        %v456 = vsel %vm451, %v404, %v455
        %v457 = vsel %vm296, %v436, %v437
        %v458 = vsel %vm451, %v406, %v457
        %v459 = vsel %vm296, %v437, %v438
        %v460 = vsel %vm451, %v408, %v459
        %v461 = vsel %vm296, %v438, %v439
        %v462 = vsel %vm451, %v410, %v461
        %v463 = vsel %vm296, %v439, %v440
        %v464 = vsel %vm451, %v412, %v463
        %v465 = vsel %vm296, %v440, %v441
        %v466 = vsel %vm451, %v414, %v465
        %v467 = vsel %vm296, %v441, %v442
        %v468 = vsel %vm451, %v416, %v467
        %v469 = vsel %vm296, %v442, %v443
        %v470 = vsel %vm451, %v418, %v469
        %v471 = vsel %vm296, %v443, %v444
        %v472 = vsel %vm451, %v420, %v471
        %v473 = vsel %vm296, %v444, %v445
        %v474 = vsel %vm451, %v422, %v473
        %v475 = vsel %vm296, %v445, %v446
        %v476 = vsel %vm451, %v424, %v475
        %v477 = vsel %vm296, %v446, %v447
        %v478 = vsel %vm451, %v426, %v477
        %v479 = vsel %vm296, %v447, %v448
        %v480 = vsel %vm451, %v428, %v479
        %v481 = vsel %vm296, %v448, %v449
        %v482 = vsel %vm451, %v430, %v481
        %v483 = vsel %vm451, %v432, %v449
        %501 = vst [vmem:[#allocation2 + $0x110] sm:$0xff] %v452
        %502 = vst [vmem:[#allocation2 + $0x118] sm:$0xff] %v454
        %503 = vst [vmem:[#allocation2 + $0x120] sm:$0xff] %v456
        %504 = vst [vmem:[#allocation2 + $0x128] sm:$0xff] %v458
        %505 = vst [vmem:[#allocation2 + $0x130] sm:$0xff] %v460
        %506 = vst [vmem:[#allocation2 + $0x138] sm:$0xff] %v462
        %507 = vst [vmem:[#allocation2 + $0x140] sm:$0xff] %v464
        %508 = vst [vmem:[#allocation2 + $0x148] sm:$0xff] %v466
        %509 = vst [vmem:[#allocation2 + $0x150] sm:$0xff] %v468
        %510 = vst [vmem:[#allocation2 + $0x158] sm:$0xff] %v470
        %511 = vst [vmem:[#allocation2 + $0x160] sm:$0xff] %v472
        %512 = vst [vmem:[#allocation2 + $0x168] sm:$0xff] %v474
        %513 = vst [vmem:[#allocation2 + $0x170] sm:$0xff] %v476
        %514 = vst [vmem:[#allocation2 + $0x178] sm:$0xff] %v478
        %515 = vst [vmem:[#allocation2 + $0x180] sm:$0xff] %v480
        %516 = vst [vmem:[#allocation2 + $0x188] sm:$0xff] %v482
        %517 = vst.msk [vmem:[#allocation2 + $0x190] sm:$0xff] %vm209, %v483
        %v518 = vld [vmem:[%s148] sm:$0xff]
        %v519 = vld [vmem:[%s148 + $0x8] sm:$0xff]
        %v520 = vld [vmem:[%s148 + $0x10] sm:$0xff]
        %v521 = vld [vmem:[%s148 + $0x18] sm:$0xff]
        %v522 = vld [vmem:[%s148 + $0x20] sm:$0xff]
        %v523 = vld [vmem:[%s148 + $0x28] sm:$0xff]
        %v524 = vld [vmem:[%s148 + $0x30] sm:$0xff]
        %v525 = vld [vmem:[%s148 + $0x38] sm:$0xff]
        %v526 = vld [vmem:[%s148 + $0x40] sm:$0xff]
        %v527 = vld [vmem:[%s148 + $0x48] sm:$0xff]
        %v528 = vld [vmem:[%s148 + $0x50] sm:$0xff]
        %v529 = vld [vmem:[%s148 + $0x58] sm:$0xff]
        %v530 = vld [vmem:[%s148 + $0x60] sm:$0xff]
        %v531 = vld [vmem:[%s148 + $0x68] sm:$0xff]
        %v532 = vld [vmem:[%s148 + $0x70] sm:$0xff]
        %v533 = vld [vmem:[%s148 + $0x78] sm:$0xff]
        %v534 = vld [vmem:[%s148 + $0x80] sm:$0xff]
        %552 = vrot.lane.b32.xlu0 %v518, 111
        %v553 = vpop.permute.xlu0 %552
        %554 = vrot.lane.b32.xlu0 %v519, 111
        %v555 = vpop.permute.xlu0 %554
        %556 = vrot.lane.b32.xlu0 %v520, 111
        %v557 = vpop.permute.xlu0 %556
        %558 = vrot.lane.b32.xlu0 %v521, 111
        %v559 = vpop.permute.xlu0 %558
        %560 = vrot.lane.b32.xlu0 %v522, 111
        %v561 = vpop.permute.xlu0 %560
        %562 = vrot.lane.b32.xlu0 %v523, 111
        %v563 = vpop.permute.xlu0 %562
        %564 = vrot.lane.b32.xlu0 %v524, 111
        %v565 = vpop.permute.xlu0 %564
        %566 = vrot.lane.b32.xlu0 %v525, 111
        %v567 = vpop.permute.xlu0 %566
        %568 = vrot.lane.b32.xlu0 %v526, 111
        %v569 = vpop.permute.xlu0 %568
        %570 = vrot.lane.b32.xlu0 %v527, 111
        %v571 = vpop.permute.xlu0 %570
        %572 = vrot.lane.b32.xlu0 %v528, 111
        %v573 = vpop.permute.xlu0 %572
        %574 = vrot.lane.b32.xlu0 %v529, 111
        %v575 = vpop.permute.xlu0 %574
        %576 = vrot.lane.b32.xlu0 %v530, 111
        %v577 = vpop.permute.xlu0 %576
        %578 = vrot.lane.b32.xlu0 %v531, 111
        %v579 = vpop.permute.xlu0 %578
        %580 = vrot.lane.b32.xlu0 %v532, 111
        %v581 = vpop.permute.xlu0 %580
        %582 = vrot.lane.b32.xlu0 %v533, 111
        %v583 = vpop.permute.xlu0 %582
        %584 = vrot.lane.b32.xlu0 %v534, 111
        %v585 = vpop.permute.xlu0 %584
        %v586 = vrot.slane %v553, 4
        %v587 = vrot.slane %v555, 4
        %v588 = vrot.slane %v557, 4
        %v589 = vrot.slane %v559, 4
        %v590 = vrot.slane %v561, 4
        %v591 = vrot.slane %v563, 4
        %v592 = vrot.slane %v565, 4
        %v593 = vrot.slane %v567, 4
        %v594 = vrot.slane %v569, 4
        %v595 = vrot.slane %v571, 4
        %v596 = vrot.slane %v573, 4
        %v597 = vrot.slane %v575, 4
        %v598 = vrot.slane %v577, 4
        %v599 = vrot.slane %v579, 4
        %v600 = vrot.slane %v581, 4
        %v601 = vrot.slane %v583, 4
        %v602 = vrot.slane %v585, 4
        %v603 = vsel %vm296, %v586, %v587
        %vm604 = vcmask 908288
        %v605 = vsel %vm604, %v553, %v603
        %v606 = vsel %vm296, %v587, %v588
        %v607 = vsel %vm604, %v555, %v606
        %v608 = vsel %vm296, %v588, %v589
        %v609 = vsel %vm604, %v557, %v608
        %v610 = vsel %vm296, %v589, %v590
        %v611 = vsel %vm604, %v559, %v610
        %v612 = vsel %vm296, %v590, %v591
        %v613 = vsel %vm604, %v561, %v612
        %v614 = vsel %vm296, %v591, %v592
        %v615 = vsel %vm604, %v563, %v614
        %v616 = vsel %vm296, %v592, %v593
        %v617 = vsel %vm604, %v565, %v616
        %v618 = vsel %vm296, %v593, %v594
        %v619 = vsel %vm604, %v567, %v618
        %v620 = vsel %vm296, %v594, %v595
        %v621 = vsel %vm604, %v569, %v620
        %v622 = vsel %vm296, %v595, %v596
        %v623 = vsel %vm604, %v571, %v622
        %v624 = vsel %vm296, %v596, %v597
        %v625 = vsel %vm604, %v573, %v624
        %v626 = vsel %vm296, %v597, %v598
        %v627 = vsel %vm604, %v575, %v626
        %v628 = vsel %vm296, %v598, %v599
        %v629 = vsel %vm604, %v577, %v628
        %v630 = vsel %vm296, %v599, %v600
        %v631 = vsel %vm604, %v579, %v630
        %v632 = vsel %vm296, %v600, %v601
        %v633 = vsel %vm604, %v581, %v632
        %v634 = vsel %vm296, %v601, %v602
        %v635 = vsel %vm604, %v583, %v634
        %v636 = vsel %vm604, %v585, %v602
        %654 = vst [vmem:[#allocation2 + $0x198] sm:$0xff] %v605
        %655 = vst [vmem:[#allocation2 + $0x1a0] sm:$0xff] %v607
        %656 = vst [vmem:[#allocation2 + $0x1a8] sm:$0xff] %v609
        %657 = vst [vmem:[#allocation2 + $0x1b0] sm:$0xff] %v611
        %658 = vst [vmem:[#allocation2 + $0x1b8] sm:$0xff] %v613
        %659 = vst [vmem:[#allocation2 + $0x1c0] sm:$0xff] %v615
        %660 = vst [vmem:[#allocation2 + $0x1c8] sm:$0xff] %v617
        %661 = vst [vmem:[#allocation2 + $0x1d0] sm:$0xff] %v619
        %662 = vst [vmem:[#allocation2 + $0x1d8] sm:$0xff] %v621
        %663 = vst [vmem:[#allocation2 + $0x1e0] sm:$0xff] %v623
        %664 = vst [vmem:[#allocation2 + $0x1e8] sm:$0xff] %v625
        %665 = vst [vmem:[#allocation2 + $0x1f0] sm:$0xff] %v627
        %666 = vst [vmem:[#allocation2 + $0x1f8] sm:$0xff] %v629
        %667 = vst [vmem:[#allocation2 + $0x200] sm:$0xff] %v631
        %668 = vst [vmem:[#allocation2 + $0x208] sm:$0xff] %v633
        %669 = vst [vmem:[#allocation2 + $0x210] sm:$0xff] %v635
        %670 = vst.msk [vmem:[#allocation2 + $0x218] sm:$0xff] %vm209, %v636
        %v671 = vld [vmem:[%s148] sm:$0xff]
        %v672 = vld [vmem:[%s148 + $0x8] sm:$0xff]
        %v673 = vld [vmem:[%s148 + $0x10] sm:$0xff]
        %v674 = vld [vmem:[%s148 + $0x18] sm:$0xff]
        %v675 = vld [vmem:[%s148 + $0x20] sm:$0xff]
        %v676 = vld [vmem:[%s148 + $0x28] sm:$0xff]
        %v677 = vld [vmem:[%s148 + $0x30] sm:$0xff]
        %v678 = vld [vmem:[%s148 + $0x38] sm:$0xff]
        %v679 = vld [vmem:[%s148 + $0x40] sm:$0xff]
        %v680 = vld [vmem:[%s148 + $0x48] sm:$0xff]
        %v681 = vld [vmem:[%s148 + $0x50] sm:$0xff]
        %v682 = vld [vmem:[%s148 + $0x58] sm:$0xff]
        %v683 = vld [vmem:[%s148 + $0x60] sm:$0xff]
        %v684 = vld [vmem:[%s148 + $0x68] sm:$0xff]
        %v685 = vld [vmem:[%s148 + $0x70] sm:$0xff]
        %v686 = vld [vmem:[%s148 + $0x78] sm:$0xff]
        %v687 = vld [vmem:[%s148 + $0x80] sm:$0xff]
        %v688 = vld [vmem:[%s148 + $0x88] sm:$0xf]
        %707 = vrot.lane.b32.xlu0 %v671, 110
        %v708 = vpop.permute.xlu0 %707
        %709 = vrot.lane.b32.xlu0 %v672, 110
        %v710 = vpop.permute.xlu0 %709
        %711 = vrot.lane.b32.xlu0 %v673, 110
        %v712 = vpop.permute.xlu0 %711
        %713 = vrot.lane.b32.xlu0 %v674, 110
        %v714 = vpop.permute.xlu0 %713
        %715 = vrot.lane.b32.xlu0 %v675, 110
        %v716 = vpop.permute.xlu0 %715
        %717 = vrot.lane.b32.xlu0 %v676, 110
        %v718 = vpop.permute.xlu0 %717
        %719 = vrot.lane.b32.xlu0 %v677, 110
        %v720 = vpop.permute.xlu0 %719
        %721 = vrot.lane.b32.xlu0 %v678, 110
        %v722 = vpop.permute.xlu0 %721
        %723 = vrot.lane.b32.xlu0 %v679, 110
        %v724 = vpop.permute.xlu0 %723
        %725 = vrot.lane.b32.xlu0 %v680, 110
        %v726 = vpop.permute.xlu0 %725
        %727 = vrot.lane.b32.xlu0 %v681, 110
        %v728 = vpop.permute.xlu0 %727
        %729 = vrot.lane.b32.xlu0 %v682, 110
        %v730 = vpop.permute.xlu0 %729
        %731 = vrot.lane.b32.xlu0 %v683, 110
        %v732 = vpop.permute.xlu0 %731
        %733 = vrot.lane.b32.xlu0 %v684, 110
        %v734 = vpop.permute.xlu0 %733
        %735 = vrot.lane.b32.xlu0 %v685, 110
        %v736 = vpop.permute.xlu0 %735
        %737 = vrot.lane.b32.xlu0 %v686, 110
        %v738 = vpop.permute.xlu0 %737
        %739 = vrot.lane.b32.xlu0 %v687, 110
        %v740 = vpop.permute.xlu0 %739
        %741 = vrot.lane.b32.xlu0 %v688, 110
        %v742 = vpop.permute.xlu0 %741
        %v743 = vrot.slane %v708, 4
        %v744 = vrot.slane %v710, 4
        %v745 = vrot.slane %v712, 4
        %v746 = vrot.slane %v714, 4
        %v747 = vrot.slane %v716, 4
        %v748 = vrot.slane %v718, 4
        %v749 = vrot.slane %v720, 4
        %v750 = vrot.slane %v722, 4
        %v751 = vrot.slane %v724, 4
        %v752 = vrot.slane %v726, 4
        %v753 = vrot.slane %v728, 4
        %v754 = vrot.slane %v730, 4
        %v755 = vrot.slane %v732, 4
        %v756 = vrot.slane %v734, 4
        %v757 = vrot.slane %v736, 4
        %v758 = vrot.slane %v738, 4
        %v759 = vrot.slane %v740, 4
        %v760 = vrot.slane %v742, 4
        %v761 = vsel %vm296, %v743, %v744
        %vm762 = vcmask 900096
        %v763 = vsel %vm762, %v708, %v761
        %v764 = vsel %vm296, %v744, %v745
        %v765 = vsel %vm762, %v710, %v764
        %v766 = vsel %vm296, %v745, %v746
        %v767 = vsel %vm762, %v712, %v766
        %v768 = vsel %vm296, %v746, %v747
        %v769 = vsel %vm762, %v714, %v768
        %v770 = vsel %vm296, %v747, %v748
        %v771 = vsel %vm762, %v716, %v770
        %v772 = vsel %vm296, %v748, %v749
        %v773 = vsel %vm762, %v718, %v772
        %v774 = vsel %vm296, %v749, %v750
        %v775 = vsel %vm762, %v720, %v774
        %v776 = vsel %vm296, %v750, %v751
        %v777 = vsel %vm762, %v722, %v776
        %v778 = vsel %vm296, %v751, %v752
        %v779 = vsel %vm762, %v724, %v778
        %v780 = vsel %vm296, %v752, %v753
        %v781 = vsel %vm762, %v726, %v780
        %v782 = vsel %vm296, %v753, %v754
        %v783 = vsel %vm762, %v728, %v782
        %v784 = vsel %vm296, %v754, %v755
        %v785 = vsel %vm762, %v730, %v784
        %v786 = vsel %vm296, %v755, %v756
        %v787 = vsel %vm762, %v732, %v786
        %v788 = vsel %vm296, %v756, %v757
        %v789 = vsel %vm762, %v734, %v788
        %v790 = vsel %vm296, %v757, %v758
        %v791 = vsel %vm762, %v736, %v790
        %v792 = vsel %vm296, %v758, %v759
        %v793 = vsel %vm762, %v738, %v792
        %v794 = vsel %vm296, %v759, %v760
        %v795 = vsel %vm762, %v740, %v794
        %813 = vst [vmem:[#allocation2 + $0x220] sm:$0xff] %v763
        %814 = vst [vmem:[#allocation2 + $0x228] sm:$0xff] %v765
        %815 = vst [vmem:[#allocation2 + $0x230] sm:$0xff] %v767
        %816 = vst [vmem:[#allocation2 + $0x238] sm:$0xff] %v769
        %817 = vst [vmem:[#allocation2 + $0x240] sm:$0xff] %v771
        %818 = vst [vmem:[#allocation2 + $0x248] sm:$0xff] %v773
        %819 = vst [vmem:[#allocation2 + $0x250] sm:$0xff] %v775
        %820 = vst [vmem:[#allocation2 + $0x258] sm:$0xff] %v777
        %821 = vst [vmem:[#allocation2 + $0x260] sm:$0xff] %v779
        %822 = vst [vmem:[#allocation2 + $0x268] sm:$0xff] %v781
        %823 = vst [vmem:[#allocation2 + $0x270] sm:$0xff] %v783
        %824 = vst [vmem:[#allocation2 + $0x278] sm:$0xff] %v785
        %825 = vst [vmem:[#allocation2 + $0x280] sm:$0xff] %v787
        %826 = vst [vmem:[#allocation2 + $0x288] sm:$0xff] %v789
        %827 = vst [vmem:[#allocation2 + $0x290] sm:$0xff] %v791
        %828 = vst [vmem:[#allocation2 + $0x298] sm:$0xff] %v793
        %829 = vst.msk [vmem:[#allocation2 + $0x2a0] sm:$0xff] %vm209, %v795
        %v830 = vld [vmem:[%s148] sm:$0xff]
        %v831 = vld [vmem:[%s148 + $0x8] sm:$0xff]
        %v832 = vld [vmem:[%s148 + $0x10] sm:$0xff]
        %v833 = vld [vmem:[%s148 + $0x18] sm:$0xff]
        %v834 = vld [vmem:[%s148 + $0x20] sm:$0xff]
        %v835 = vld [vmem:[%s148 + $0x28] sm:$0xff]
        %v836 = vld [vmem:[%s148 + $0x30] sm:$0xff]
        %v837 = vld [vmem:[%s148 + $0x38] sm:$0xff]
        %v838 = vld [vmem:[%s148 + $0x40] sm:$0xff]
        %v839 = vld [vmem:[%s148 + $0x48] sm:$0xff]
        %v840 = vld [vmem:[%s148 + $0x50] sm:$0xff]
        %v841 = vld [vmem:[%s148 + $0x58] sm:$0xff]
        %v842 = vld [vmem:[%s148 + $0x60] sm:$0xff]
        %v843 = vld [vmem:[%s148 + $0x68] sm:$0xff]
        %v844 = vld [vmem:[%s148 + $0x70] sm:$0xff]
        %v845 = vld [vmem:[%s148 + $0x78] sm:$0xff]
        %v846 = vld [vmem:[%s148 + $0x80] sm:$0xff]
        %v847 = vld [vmem:[%s148 + $0x88] sm:$0xf]
        %866 = vrot.lane.b32.xlu0 %v830, 109
        %v867 = vpop.permute.xlu0 %866
        %868 = vrot.lane.b32.xlu0 %v831, 109
        %v869 = vpop.permute.xlu0 %868
        %870 = vrot.lane.b32.xlu0 %v832, 109
        %v871 = vpop.permute.xlu0 %870
        %872 = vrot.lane.b32.xlu0 %v833, 109
        %v873 = vpop.permute.xlu0 %872
        %874 = vrot.lane.b32.xlu0 %v834, 109
        %v875 = vpop.permute.xlu0 %874
        %876 = vrot.lane.b32.xlu0 %v835, 109
        %v877 = vpop.permute.xlu0 %876
        %878 = vrot.lane.b32.xlu0 %v836, 109
        %v879 = vpop.permute.xlu0 %878
        %880 = vrot.lane.b32.xlu0 %v837, 109
        %v881 = vpop.permute.xlu0 %880
        %882 = vrot.lane.b32.xlu0 %v838, 109
        %v883 = vpop.permute.xlu0 %882
        %884 = vrot.lane.b32.xlu0 %v839, 109
        %v885 = vpop.permute.xlu0 %884
        %886 = vrot.lane.b32.xlu0 %v840, 109
        %v887 = vpop.permute.xlu0 %886
        %888 = vrot.lane.b32.xlu0 %v841, 109
        %v889 = vpop.permute.xlu0 %888
        %890 = vrot.lane.b32.xlu0 %v842, 109
        %v891 = vpop.permute.xlu0 %890
        %892 = vrot.lane.b32.xlu0 %v843, 109
        %v893 = vpop.permute.xlu0 %892
        %894 = vrot.lane.b32.xlu0 %v844, 109
        %v895 = vpop.permute.xlu0 %894
        %896 = vrot.lane.b32.xlu0 %v845, 109
        %v897 = vpop.permute.xlu0 %896
        %898 = vrot.lane.b32.xlu0 %v846, 109
        %v899 = vpop.permute.xlu0 %898
        %900 = vrot.lane.b32.xlu0 %v847, 109
        %v901 = vpop.permute.xlu0 %900
        %v902 = vrot.slane %v867, 4
        %v903 = vrot.slane %v869, 4
        %v904 = vrot.slane %v871, 4
        %v905 = vrot.slane %v873, 4
        %v906 = vrot.slane %v875, 4
        %v907 = vrot.slane %v877, 4
        %v908 = vrot.slane %v879, 4
        %v909 = vrot.slane %v881, 4
        %v910 = vrot.slane %v883, 4
        %v911 = vrot.slane %v885, 4
        %v912 = vrot.slane %v887, 4
        %v913 = vrot.slane %v889, 4
        %v914 = vrot.slane %v891, 4
        %v915 = vrot.slane %v893, 4
        %v916 = vrot.slane %v895, 4
        %v917 = vrot.slane %v897, 4
        %v918 = vrot.slane %v899, 4
        %v919 = vrot.slane %v901, 4
        %v920 = vsel %vm296, %v902, %v903
        %vm921 = vcmask 891904
        %v922 = vsel %vm921, %v867, %v920
        %v923 = vsel %vm296, %v903, %v904
        %v924 = vsel %vm921, %v869, %v923
        %v925 = vsel %vm296, %v904, %v905
        %v926 = vsel %vm921, %v871, %v925
        %v927 = vsel %vm296, %v905, %v906
        %v928 = vsel %vm921, %v873, %v927
        %v929 = vsel %vm296, %v906, %v907
        %v930 = vsel %vm921, %v875, %v929
        %v931 = vsel %vm296, %v907, %v908
        %v932 = vsel %vm921, %v877, %v931
        %v933 = vsel %vm296, %v908, %v909
        %v934 = vsel %vm921, %v879, %v933
        %v935 = vsel %vm296, %v909, %v910
        %v936 = vsel %vm921, %v881, %v935
        %v937 = vsel %vm296, %v910, %v911
        %v938 = vsel %vm921, %v883, %v937
        %v939 = vsel %vm296, %v911, %v912
        %v940 = vsel %vm921, %v885, %v939
        %v941 = vsel %vm296, %v912, %v913
        %v942 = vsel %vm921, %v887, %v941
        %v943 = vsel %vm296, %v913, %v914
        %v944 = vsel %vm921, %v889, %v943
        %v945 = vsel %vm296, %v914, %v915
        %v946 = vsel %vm921, %v891, %v945
        %v947 = vsel %vm296, %v915, %v916
        %v948 = vsel %vm921, %v893, %v947
        %v949 = vsel %vm296, %v916, %v917
        %v950 = vsel %vm921, %v895, %v949
        %v951 = vsel %vm296, %v917, %v918
        %v952 = vsel %vm921, %v897, %v951
        %v953 = vsel %vm296, %v918, %v919
        %v954 = vsel %vm921, %v899, %v953
        %972 = vst [vmem:[#allocation2 + $0x2a8] sm:$0xff] %v922
        %973 = vst [vmem:[#allocation2 + $0x2b0] sm:$0xff] %v924
        %974 = vst [vmem:[#allocation2 + $0x2b8] sm:$0xff] %v926
        %975 = vst [vmem:[#allocation2 + $0x2c0] sm:$0xff] %v928
        %976 = vst [vmem:[#allocation2 + $0x2c8] sm:$0xff] %v930
        %977 = vst [vmem:[#allocation2 + $0x2d0] sm:$0xff] %v932
        %978 = vst [vmem:[#allocation2 + $0x2d8] sm:$0xff] %v934
        %979 = vst [vmem:[#allocation2 + $0x2e0] sm:$0xff] %v936
        %980 = vst [vmem:[#allocation2 + $0x2e8] sm:$0xff] %v938
        %981 = vst [vmem:[#allocation2 + $0x2f0] sm:$0xff] %v940
        %982 = vst [vmem:[#allocation2 + $0x2f8] sm:$0xff] %v942
        %983 = vst [vmem:[#allocation2 + $0x300] sm:$0xff] %v944
        %984 = vst [vmem:[#allocation2 + $0x308] sm:$0xff] %v946
        %985 = vst [vmem:[#allocation2 + $0x310] sm:$0xff] %v948
        %986 = vst [vmem:[#allocation2 + $0x318] sm:$0xff] %v950
        %987 = vst [vmem:[#allocation2 + $0x320] sm:$0xff] %v952
        %988 = vst.msk [vmem:[#allocation2 + $0x328] sm:$0xff] %vm209, %v954
        %v989 = vld [vmem:[%s148] sm:$0xff]
        %v990 = vld [vmem:[%s148 + $0x8] sm:$0xff]
        %v991 = vld [vmem:[%s148 + $0x10] sm:$0xff]
        %v992 = vld [vmem:[%s148 + $0x18] sm:$0xff]
        %v993 = vld [vmem:[%s148 + $0x20] sm:$0xff]
        %v994 = vld [vmem:[%s148 + $0x28] sm:$0xff]
        %v995 = vld [vmem:[%s148 + $0x30] sm:$0xff]
        %v996 = vld [vmem:[%s148 + $0x38] sm:$0xff]
        %v997 = vld [vmem:[%s148 + $0x40] sm:$0xff]
        %v998 = vld [vmem:[%s148 + $0x48] sm:$0xff]
        %v999 = vld [vmem:[%s148 + $0x50] sm:$0xff]
        %v1000 = vld [vmem:[%s148 + $0x58] sm:$0xff]
        %v1001 = vld [vmem:[%s148 + $0x60] sm:$0xff]
        %v1002 = vld [vmem:[%s148 + $0x68] sm:$0xff]
        %v1003 = vld [vmem:[%s148 + $0x70] sm:$0xff]
        %v1004 = vld [vmem:[%s148 + $0x78] sm:$0xff]
        %v1005 = vld [vmem:[%s148 + $0x80] sm:$0xff]
        %v1006 = vld [vmem:[%s148 + $0x88] sm:$0xf]
        %1025 = vrot.lane.b32.xlu0 %v989, 94
        %v1026 = vpop.permute.xlu0 %1025
        %1027 = vrot.lane.b32.xlu0 %v990, 94
        %v1028 = vpop.permute.xlu0 %1027
        %1029 = vrot.lane.b32.xlu0 %v991, 94
        %v1030 = vpop.permute.xlu0 %1029
        %1031 = vrot.lane.b32.xlu0 %v992, 94
        %v1032 = vpop.permute.xlu0 %1031
        %1033 = vrot.lane.b32.xlu0 %v993, 94
        %v1034 = vpop.permute.xlu0 %1033
        %1035 = vrot.lane.b32.xlu0 %v994, 94
        %v1036 = vpop.permute.xlu0 %1035
        %1037 = vrot.lane.b32.xlu0 %v995, 94
        %v1038 = vpop.permute.xlu0 %1037
        %1039 = vrot.lane.b32.xlu0 %v996, 94
        %v1040 = vpop.permute.xlu0 %1039
        %1041 = vrot.lane.b32.xlu0 %v997, 94
        %v1042 = vpop.permute.xlu0 %1041
        %1043 = vrot.lane.b32.xlu0 %v998, 94
        %v1044 = vpop.permute.xlu0 %1043
        %1045 = vrot.lane.b32.xlu0 %v999, 94
        %v1046 = vpop.permute.xlu0 %1045
        %1047 = vrot.lane.b32.xlu0 %v1000, 94
        %v1048 = vpop.permute.xlu0 %1047
        %1049 = vrot.lane.b32.xlu0 %v1001, 94
        %v1050 = vpop.permute.xlu0 %1049
        %1051 = vrot.lane.b32.xlu0 %v1002, 94
        %v1052 = vpop.permute.xlu0 %1051
        %1053 = vrot.lane.b32.xlu0 %v1003, 94
        %v1054 = vpop.permute.xlu0 %1053
        %1055 = vrot.lane.b32.xlu0 %v1004, 94
        %v1056 = vpop.permute.xlu0 %1055
        %1057 = vrot.lane.b32.xlu0 %v1005, 94
        %v1058 = vpop.permute.xlu0 %1057
        %1059 = vrot.lane.b32.xlu0 %v1006, 94
        %v1060 = vpop.permute.xlu0 %1059
        %v1061 = vrot.slane %v1026, 4
        %v1062 = vrot.slane %v1028, 4
        %v1063 = vrot.slane %v1030, 4
        %v1064 = vrot.slane %v1032, 4
        %v1065 = vrot.slane %v1034, 4
        %v1066 = vrot.slane %v1036, 4
        %v1067 = vrot.slane %v1038, 4
        %v1068 = vrot.slane %v1040, 4
        %v1069 = vrot.slane %v1042, 4
        %v1070 = vrot.slane %v1044, 4
        %v1071 = vrot.slane %v1046, 4
        %v1072 = vrot.slane %v1048, 4
        %v1073 = vrot.slane %v1050, 4
        %v1074 = vrot.slane %v1052, 4
        %v1075 = vrot.slane %v1054, 4
        %v1076 = vrot.slane %v1056, 4
        %v1077 = vrot.slane %v1058, 4
        %v1078 = vrot.slane %v1060, 4
        %v1079 = vsel %vm296, %v1061, %v1062
        %vm1080 = vcmask 769024
        %v1081 = vsel %vm1080, %v1026, %v1079
        %v1082 = vsel %vm296, %v1062, %v1063
        %v1083 = vsel %vm1080, %v1028, %v1082
        %v1084 = vsel %vm296, %v1063, %v1064
        %v1085 = vsel %vm1080, %v1030, %v1084
        %v1086 = vsel %vm296, %v1064, %v1065
        %v1087 = vsel %vm1080, %v1032, %v1086
        %v1088 = vsel %vm296, %v1065, %v1066
        %v1089 = vsel %vm1080, %v1034, %v1088
        %v1090 = vsel %vm296, %v1066, %v1067
        %v1091 = vsel %vm1080, %v1036, %v1090
        %v1092 = vsel %vm296, %v1067, %v1068
        %v1093 = vsel %vm1080, %v1038, %v1092
        %v1094 = vsel %vm296, %v1068, %v1069
        %v1095 = vsel %vm1080, %v1040, %v1094
        %v1096 = vsel %vm296, %v1069, %v1070
        %v1097 = vsel %vm1080, %v1042, %v1096
        %v1098 = vsel %vm296, %v1070, %v1071
        %v1099 = vsel %vm1080, %v1044, %v1098
        %v1100 = vsel %vm296, %v1071, %v1072
        %v1101 = vsel %vm1080, %v1046, %v1100
        %v1102 = vsel %vm296, %v1072, %v1073
        %v1103 = vsel %vm1080, %v1048, %v1102
        %v1104 = vsel %vm296, %v1073, %v1074
        %v1105 = vsel %vm1080, %v1050, %v1104
        %v1106 = vsel %vm296, %v1074, %v1075
        %v1107 = vsel %vm1080, %v1052, %v1106
        %v1108 = vsel %vm296, %v1075, %v1076
        %v1109 = vsel %vm1080, %v1054, %v1108
        %v1110 = vsel %vm296, %v1076, %v1077
        %v1111 = vsel %vm1080, %v1056, %v1110
        %v1112 = vsel %vm296, %v1077, %v1078
        %v1113 = vsel %vm1080, %v1058, %v1112
        %1131 = vst [vmem:[#allocation2 + $0x330] sm:$0xff] %v1081
        %1132 = vst [vmem:[#allocation2 + $0x338] sm:$0xff] %v1083
        %1133 = vst [vmem:[#allocation2 + $0x340] sm:$0xff] %v1085
        %1134 = vst [vmem:[#allocation2 + $0x348] sm:$0xff] %v1087
        %1135 = vst [vmem:[#allocation2 + $0x350] sm:$0xff] %v1089
        %1136 = vst [vmem:[#allocation2 + $0x358] sm:$0xff] %v1091
        %1137 = vst [vmem:[#allocation2 + $0x360] sm:$0xff] %v1093
        %1138 = vst [vmem:[#allocation2 + $0x368] sm:$0xff] %v1095
        %1139 = vst [vmem:[#allocation2 + $0x370] sm:$0xff] %v1097
        %1140 = vst [vmem:[#allocation2 + $0x378] sm:$0xff] %v1099
        %1141 = vst [vmem:[#allocation2 + $0x380] sm:$0xff] %v1101
        %1142 = vst [vmem:[#allocation2 + $0x388] sm:$0xff] %v1103
        %1143 = vst [vmem:[#allocation2 + $0x390] sm:$0xff] %v1105
        %1144 = vst [vmem:[#allocation2 + $0x398] sm:$0xff] %v1107
        %1145 = vst [vmem:[#allocation2 + $0x3a0] sm:$0xff] %v1109
        %1146 = vst [vmem:[#allocation2 + $0x3a8] sm:$0xff] %v1111
        %1147 = vst.msk [vmem:[#allocation2 + $0x3b0] sm:$0xff] %vm209, %v1113
        %v1148 = vld [vmem:[%s148] sm:$0xff]
        %v1149 = vld [vmem:[%s148 + $0x8] sm:$0xff]
        %v1150 = vld [vmem:[%s148 + $0x10] sm:$0xff]
        %v1151 = vld [vmem:[%s148 + $0x18] sm:$0xff]
        %v1152 = vld [vmem:[%s148 + $0x20] sm:$0xff]
        %v1153 = vld [vmem:[%s148 + $0x28] sm:$0xff]
        %v1154 = vld [vmem:[%s148 + $0x30] sm:$0xff]
        %v1155 = vld [vmem:[%s148 + $0x38] sm:$0xff]
        %v1156 = vld [vmem:[%s148 + $0x40] sm:$0xff]
        %v1157 = vld [vmem:[%s148 + $0x48] sm:$0xff]
        %v1158 = vld [vmem:[%s148 + $0x50] sm:$0xff]
        %v1159 = vld [vmem:[%s148 + $0x58] sm:$0xff]
        %v1160 = vld [vmem:[%s148 + $0x60] sm:$0xff]
        %v1161 = vld [vmem:[%s148 + $0x68] sm:$0xff]
        %v1162 = vld [vmem:[%s148 + $0x70] sm:$0xff]
        %v1163 = vld [vmem:[%s148 + $0x78] sm:$0xff]
        %v1164 = vld [vmem:[%s148 + $0x80] sm:$0xff]
        %v1165 = vld [vmem:[%s148 + $0x88] sm:$0xf]
        %1184 = vrot.lane.b32.xlu0 %v1148, 93
        %v1185 = vpop.permute.xlu0 %1184
        %1186 = vrot.lane.b32.xlu0 %v1149, 93
        %v1187 = vpop.permute.xlu0 %1186
        %1188 = vrot.lane.b32.xlu0 %v1150, 93
        %v1189 = vpop.permute.xlu0 %1188
        %1190 = vrot.lane.b32.xlu0 %v1151, 93
        %v1191 = vpop.permute.xlu0 %1190
        %1192 = vrot.lane.b32.xlu0 %v1152, 93
        %v1193 = vpop.permute.xlu0 %1192
        %1194 = vrot.lane.b32.xlu0 %v1153, 93
        %v1195 = vpop.permute.xlu0 %1194
        %1196 = vrot.lane.b32.xlu0 %v1154, 93
        %v1197 = vpop.permute.xlu0 %1196
        %1198 = vrot.lane.b32.xlu0 %v1155, 93
        %v1199 = vpop.permute.xlu0 %1198
        %1200 = vrot.lane.b32.xlu0 %v1156, 93
        %v1201 = vpop.permute.xlu0 %1200
        %1202 = vrot.lane.b32.xlu0 %v1157, 93
        %v1203 = vpop.permute.xlu0 %1202
        %1204 = vrot.lane.b32.xlu0 %v1158, 93
        %v1205 = vpop.permute.xlu0 %1204
        %1206 = vrot.lane.b32.xlu0 %v1159, 93
        %v1207 = vpop.permute.xlu0 %1206
        %1208 = vrot.lane.b32.xlu0 %v1160, 93
        %v1209 = vpop.permute.xlu0 %1208
        %1210 = vrot.lane.b32.xlu0 %v1161, 93
        %v1211 = vpop.permute.xlu0 %1210
        %1212 = vrot.lane.b32.xlu0 %v1162, 93
        %v1213 = vpop.permute.xlu0 %1212
        %1214 = vrot.lane.b32.xlu0 %v1163, 93
        %v1215 = vpop.permute.xlu0 %1214
        %1216 = vrot.lane.b32.xlu0 %v1164, 93
        %v1217 = vpop.permute.xlu0 %1216
        %1218 = vrot.lane.b32.xlu0 %v1165, 93
        %v1219 = vpop.permute.xlu0 %1218
        %v1220 = vrot.slane %v1185, 4
        %v1221 = vrot.slane %v1187, 4
        %v1222 = vrot.slane %v1189, 4
        %v1223 = vrot.slane %v1191, 4
        %v1224 = vrot.slane %v1193, 4
        %v1225 = vrot.slane %v1195, 4
        %v1226 = vrot.slane %v1197, 4
        %v1227 = vrot.slane %v1199, 4
        %v1228 = vrot.slane %v1201, 4
        %v1229 = vrot.slane %v1203, 4
        %v1230 = vrot.slane %v1205, 4
        %v1231 = vrot.slane %v1207, 4
        %v1232 = vrot.slane %v1209, 4
        %v1233 = vrot.slane %v1211, 4
        %v1234 = vrot.slane %v1213, 4
        %v1235 = vrot.slane %v1215, 4
        %v1236 = vrot.slane %v1217, 4
        %v1237 = vrot.slane %v1219, 4
        %v1238 = vsel %vm296, %v1220, %v1221
        %vm1239 = vcmask 760832
        %v1240 = vsel %vm1239, %v1185, %v1238
        %v1241 = vsel %vm296, %v1221, %v1222
        %v1242 = vsel %vm1239, %v1187, %v1241
        %v1243 = vsel %vm296, %v1222, %v1223
        %v1244 = vsel %vm1239, %v1189, %v1243
        %v1245 = vsel %vm296, %v1223, %v1224
        %v1246 = vsel %vm1239, %v1191, %v1245
        %v1247 = vsel %vm296, %v1224, %v1225
        %v1248 = vsel %vm1239, %v1193, %v1247
        %v1249 = vsel %vm296, %v1225, %v1226
        %v1250 = vsel %vm1239, %v1195, %v1249
        %v1251 = vsel %vm296, %v1226, %v1227
        %v1252 = vsel %vm1239, %v1197, %v1251
        %v1253 = vsel %vm296, %v1227, %v1228
        %v1254 = vsel %vm1239, %v1199, %v1253
        %v1255 = vsel %vm296, %v1228, %v1229
        %v1256 = vsel %vm1239, %v1201, %v1255
        %v1257 = vsel %vm296, %v1229, %v1230
        %v1258 = vsel %vm1239, %v1203, %v1257
        %v1259 = vsel %vm296, %v1230, %v1231
        %v1260 = vsel %vm1239, %v1205, %v1259
        %v1261 = vsel %vm296, %v1231, %v1232
        %v1262 = vsel %vm1239, %v1207, %v1261
        %v1263 = vsel %vm296, %v1232, %v1233
        %v1264 = vsel %vm1239, %v1209, %v1263
        %v1265 = vsel %vm296, %v1233, %v1234
        %v1266 = vsel %vm1239, %v1211, %v1265
        %v1267 = vsel %vm296, %v1234, %v1235
        %v1268 = vsel %vm1239, %v1213, %v1267
        %v1269 = vsel %vm296, %v1235, %v1236
        %v1270 = vsel %vm1239, %v1215, %v1269
        %v1271 = vsel %vm296, %v1236, %v1237
        %v1272 = vsel %vm1239, %v1217, %v1271
        %1290 = vst [vmem:[#allocation2 + $0x3b8] sm:$0xff] %v1240
        %1291 = vst [vmem:[#allocation2 + $0x3c0] sm:$0xff] %v1242
        %1292 = vst [vmem:[#allocation2 + $0x3c8] sm:$0xff] %v1244
        %1293 = vst [vmem:[#allocation2 + $0x3d0] sm:$0xff] %v1246
        %1294 = vst [vmem:[#allocation2 + $0x3d8] sm:$0xff] %v1248
        %1295 = vst [vmem:[#allocation2 + $0x3e0] sm:$0xff] %v1250
        %1296 = vst [vmem:[#allocation2 + $0x3e8] sm:$0xff] %v1252
        %1297 = vst [vmem:[#allocation2 + $0x3f0] sm:$0xff] %v1254
        %1298 = vst [vmem:[#allocation2 + $0x3f8] sm:$0xff] %v1256
        %1299 = vst [vmem:[#allocation2 + $0x400] sm:$0xff] %v1258
        %1300 = vst [vmem:[#allocation2 + $0x408] sm:$0xff] %v1260
        %1301 = vst [vmem:[#allocation2 + $0x410] sm:$0xff] %v1262
        %1302 = vst [vmem:[#allocation2 + $0x418] sm:$0xff] %v1264
        %1303 = vst [vmem:[#allocation2 + $0x420] sm:$0xff] %v1266
        %1304 = vst [vmem:[#allocation2 + $0x428] sm:$0xff] %v1268
        %1305 = vst [vmem:[#allocation2 + $0x430] sm:$0xff] %v1270
        %1306 = vst.msk [vmem:[#allocation2 + $0x438] sm:$0xff] %vm209, %v1272
        %v1307 = vld [vmem:[%s148] sm:$0xff]
        %v1308 = vld [vmem:[%s148 + $0x8] sm:$0xff]
        %v1309 = vld [vmem:[%s148 + $0x10] sm:$0xff]
        %v1310 = vld [vmem:[%s148 + $0x18] sm:$0xff]
        %v1311 = vld [vmem:[%s148 + $0x20] sm:$0xff]
        %v1312 = vld [vmem:[%s148 + $0x28] sm:$0xff]
        %v1313 = vld [vmem:[%s148 + $0x30] sm:$0xff]
        %v1314 = vld [vmem:[%s148 + $0x38] sm:$0xff]
        %v1315 = vld [vmem:[%s148 + $0x40] sm:$0xff]
        %v1316 = vld [vmem:[%s148 + $0x48] sm:$0xff]
        %v1317 = vld [vmem:[%s148 + $0x50] sm:$0xff]
        %v1318 = vld [vmem:[%s148 + $0x58] sm:$0xff]
        %v1319 = vld [vmem:[%s148 + $0x60] sm:$0xff]
        %v1320 = vld [vmem:[%s148 + $0x68] sm:$0xff]
        %v1321 = vld [vmem:[%s148 + $0x70] sm:$0xff]
        %v1322 = vld [vmem:[%s148 + $0x78] sm:$0xff]
        %v1323 = vld [vmem:[%s148 + $0x80] sm:$0xff]
        %v1324 = vld [vmem:[%s148 + $0x88] sm:$0xf]
        %1343 = vrot.lane.b32.xlu0 %v1307, 92
        %v1344 = vpop.permute.xlu0 %1343
        %1345 = vrot.lane.b32.xlu0 %v1308, 92
        %v1346 = vpop.permute.xlu0 %1345
        %1347 = vrot.lane.b32.xlu0 %v1309, 92
        %v1348 = vpop.permute.xlu0 %1347
        %1349 = vrot.lane.b32.xlu0 %v1310, 92
        %v1350 = vpop.permute.xlu0 %1349
        %1351 = vrot.lane.b32.xlu0 %v1311, 92
        %v1352 = vpop.permute.xlu0 %1351
        %1353 = vrot.lane.b32.xlu0 %v1312, 92
        %v1354 = vpop.permute.xlu0 %1353
        %1355 = vrot.lane.b32.xlu0 %v1313, 92
        %v1356 = vpop.permute.xlu0 %1355
        %1357 = vrot.lane.b32.xlu0 %v1314, 92
        %v1358 = vpop.permute.xlu0 %1357
        %1359 = vrot.lane.b32.xlu0 %v1315, 92
        %v1360 = vpop.permute.xlu0 %1359
        %1361 = vrot.lane.b32.xlu0 %v1316, 92
        %v1362 = vpop.permute.xlu0 %1361
        %1363 = vrot.lane.b32.xlu0 %v1317, 92
        %v1364 = vpop.permute.xlu0 %1363
        %1365 = vrot.lane.b32.xlu0 %v1318, 92
        %v1366 = vpop.permute.xlu0 %1365
        %1367 = vrot.lane.b32.xlu0 %v1319, 92
        %v1368 = vpop.permute.xlu0 %1367
        %1369 = vrot.lane.b32.xlu0 %v1320, 92
        %v1370 = vpop.permute.xlu0 %1369
        %1371 = vrot.lane.b32.xlu0 %v1321, 92
        %v1372 = vpop.permute.xlu0 %1371
        %1373 = vrot.lane.b32.xlu0 %v1322, 92
        %v1374 = vpop.permute.xlu0 %1373
        %1375 = vrot.lane.b32.xlu0 %v1323, 92
        %v1376 = vpop.permute.xlu0 %1375
        %1377 = vrot.lane.b32.xlu0 %v1324, 92
        %v1378 = vpop.permute.xlu0 %1377
        %v1379 = vrot.slane %v1344, 4
        %v1380 = vrot.slane %v1346, 4
        %v1381 = vrot.slane %v1348, 4
        %v1382 = vrot.slane %v1350, 4
        %v1383 = vrot.slane %v1352, 4
        %v1384 = vrot.slane %v1354, 4
        %v1385 = vrot.slane %v1356, 4
        %v1386 = vrot.slane %v1358, 4
        %v1387 = vrot.slane %v1360, 4
        %v1388 = vrot.slane %v1362, 4
        %v1389 = vrot.slane %v1364, 4
        %v1390 = vrot.slane %v1366, 4
        %v1391 = vrot.slane %v1368, 4
        %v1392 = vrot.slane %v1370, 4
        %v1393 = vrot.slane %v1372, 4
        %v1394 = vrot.slane %v1374, 4
        %v1395 = vrot.slane %v1376, 4
        %v1396 = vrot.slane %v1378, 4
        %v1397 = vsel %vm296, %v1379, %v1380
        %vm1398 = vcmask 752640
        %v1399 = vsel %vm1398, %v1344, %v1397
        %v1400 = vsel %vm296, %v1380, %v1381
        %v1401 = vsel %vm1398, %v1346, %v1400
        %v1402 = vsel %vm296, %v1381, %v1382
        %v1403 = vsel %vm1398, %v1348, %v1402
        %v1404 = vsel %vm296, %v1382, %v1383
        %v1405 = vsel %vm1398, %v1350, %v1404
        %v1406 = vsel %vm296, %v1383, %v1384
        %v1407 = vsel %vm1398, %v1352, %v1406
        %v1408 = vsel %vm296, %v1384, %v1385
        %v1409 = vsel %vm1398, %v1354, %v1408
        %v1410 = vsel %vm296, %v1385, %v1386
        %v1411 = vsel %vm1398, %v1356, %v1410
        %v1412 = vsel %vm296, %v1386, %v1387
        %v1413 = vsel %vm1398, %v1358, %v1412
        %v1414 = vsel %vm296, %v1387, %v1388
        %v1415 = vsel %vm1398, %v1360, %v1414
        %v1416 = vsel %vm296, %v1388, %v1389
        %v1417 = vsel %vm1398, %v1362, %v1416
        %v1418 = vsel %vm296, %v1389, %v1390
        %v1419 = vsel %vm1398, %v1364, %v1418
        %v1420 = vsel %vm296, %v1390, %v1391
        %v1421 = vsel %vm1398, %v1366, %v1420
        %v1422 = vsel %vm296, %v1391, %v1392
        %v1423 = vsel %vm1398, %v1368, %v1422
        %v1424 = vsel %vm296, %v1392, %v1393
        %v1425 = vsel %vm1398, %v1370, %v1424
        %v1426 = vsel %vm296, %v1393, %v1394
        %v1427 = vsel %vm1398, %v1372, %v1426
        %v1428 = vsel %vm296, %v1394, %v1395
        %v1429 = vsel %vm1398, %v1374, %v1428
        %v1430 = vsel %vm296, %v1395, %v1396
        %v1431 = vsel %vm1398, %v1376, %v1430
        %1449 = vst [vmem:[#allocation2 + $0x440] sm:$0xff] %v1399
        %1450 = vst [vmem:[#allocation2 + $0x448] sm:$0xff] %v1401
        %1451 = vst [vmem:[#allocation2 + $0x450] sm:$0xff] %v1403
        %1452 = vst [vmem:[#allocation2 + $0x458] sm:$0xff] %v1405
        %1453 = vst [vmem:[#allocation2 + $0x460] sm:$0xff] %v1407
        %1454 = vst [vmem:[#allocation2 + $0x468] sm:$0xff] %v1409
        %1455 = vst [vmem:[#allocation2 + $0x470] sm:$0xff] %v1411
        %1456 = vst [vmem:[#allocation2 + $0x478] sm:$0xff] %v1413
        %1457 = vst [vmem:[#allocation2 + $0x480] sm:$0xff] %v1415
        %1458 = vst [vmem:[#allocation2 + $0x488] sm:$0xff] %v1417
        %1459 = vst [vmem:[#allocation2 + $0x490] sm:$0xff] %v1419
        %1460 = vst [vmem:[#allocation2 + $0x498] sm:$0xff] %v1421
        %1461 = vst [vmem:[#allocation2 + $0x4a0] sm:$0xff] %v1423
        %1462 = vst [vmem:[#allocation2 + $0x4a8] sm:$0xff] %v1425
        %1463 = vst [vmem:[#allocation2 + $0x4b0] sm:$0xff] %v1427
        %1464 = vst [vmem:[#allocation2 + $0x4b8] sm:$0xff] %v1429
        %1465 = vst.msk [vmem:[#allocation2 + $0x4c0] sm:$0xff] %vm209, %v1431
        %v1466 = vld [vmem:[%s148 + $0x8] sm:$0xff]
        %v1467 = vld [vmem:[%s148 + $0x10] sm:$0xff]
        %v1468 = vld [vmem:[%s148 + $0x18] sm:$0xff]
        %v1469 = vld [vmem:[%s148 + $0x20] sm:$0xff]
        %v1470 = vld [vmem:[%s148 + $0x28] sm:$0xff]
        %v1471 = vld [vmem:[%s148 + $0x30] sm:$0xff]
        %v1472 = vld [vmem:[%s148 + $0x38] sm:$0xff]
        %v1473 = vld [vmem:[%s148 + $0x40] sm:$0xff]
        %v1474 = vld [vmem:[%s148 + $0x48] sm:$0xff]
        %v1475 = vld [vmem:[%s148 + $0x50] sm:$0xff]
        %v1476 = vld [vmem:[%s148 + $0x58] sm:$0xff]
        %v1477 = vld [vmem:[%s148 + $0x60] sm:$0xff]
        %v1478 = vld [vmem:[%s148 + $0x68] sm:$0xff]
        %v1479 = vld [vmem:[%s148 + $0x70] sm:$0xff]
        %v1480 = vld [vmem:[%s148 + $0x78] sm:$0xff]
        %v1481 = vld [vmem:[%s148 + $0x80] sm:$0xff]
        %v1482 = vld [vmem:[%s148 + $0x88] sm:$0xff]
        %v1483 = vld [vmem:[%s148 + $0x90] sm:$0xf]
        %1502 = vrot.lane.b32.xlu0 %v1466, 95
        %v1503 = vpop.permute.xlu0 %1502
        %1504 = vrot.lane.b32.xlu0 %v1467, 95
        %v1505 = vpop.permute.xlu0 %1504
        %1506 = vrot.lane.b32.xlu0 %v1468, 95
        %v1507 = vpop.permute.xlu0 %1506
        %1508 = vrot.lane.b32.xlu0 %v1469, 95
        %v1509 = vpop.permute.xlu0 %1508
        %1510 = vrot.lane.b32.xlu0 %v1470, 95
        %v1511 = vpop.permute.xlu0 %1510
        %1512 = vrot.lane.b32.xlu0 %v1471, 95
        %v1513 = vpop.permute.xlu0 %1512
        %1514 = vrot.lane.b32.xlu0 %v1472, 95
        %v1515 = vpop.permute.xlu0 %1514
        %1516 = vrot.lane.b32.xlu0 %v1473, 95
        %v1517 = vpop.permute.xlu0 %1516
        %1518 = vrot.lane.b32.xlu0 %v1474, 95
        %v1519 = vpop.permute.xlu0 %1518
        %1520 = vrot.lane.b32.xlu0 %v1475, 95
        %v1521 = vpop.permute.xlu0 %1520
        %1522 = vrot.lane.b32.xlu0 %v1476, 95
        %v1523 = vpop.permute.xlu0 %1522
        %1524 = vrot.lane.b32.xlu0 %v1477, 95
        %v1525 = vpop.permute.xlu0 %1524
        %1526 = vrot.lane.b32.xlu0 %v1478, 95
        %v1527 = vpop.permute.xlu0 %1526
        %1528 = vrot.lane.b32.xlu0 %v1479, 95
        %v1529 = vpop.permute.xlu0 %1528
        %1530 = vrot.lane.b32.xlu0 %v1480, 95
        %v1531 = vpop.permute.xlu0 %1530
        %1532 = vrot.lane.b32.xlu0 %v1481, 95
        %v1533 = vpop.permute.xlu0 %1532
        %1534 = vrot.lane.b32.xlu0 %v1482, 95
        %v1535 = vpop.permute.xlu0 %1534
        %1536 = vrot.lane.b32.xlu0 %v1483, 95
        %v1537 = vpop.permute.xlu0 %1536
        %v1538 = vrot.slane %v1503, 4
        %v1539 = vrot.slane %v1505, 4
        %v1540 = vrot.slane %v1507, 4
        %v1541 = vrot.slane %v1509, 4
        %v1542 = vrot.slane %v1511, 4
        %v1543 = vrot.slane %v1513, 4
        %v1544 = vrot.slane %v1515, 4
        %v1545 = vrot.slane %v1517, 4
        %v1546 = vrot.slane %v1519, 4
        %v1547 = vrot.slane %v1521, 4
        %v1548 = vrot.slane %v1523, 4
        %v1549 = vrot.slane %v1525, 4
        %v1550 = vrot.slane %v1527, 4
        %v1551 = vrot.slane %v1529, 4
        %v1552 = vrot.slane %v1531, 4
        %v1553 = vrot.slane %v1533, 4
        %v1554 = vrot.slane %v1535, 4
        %v1555 = vrot.slane %v1537, 4
        %v1556 = vsel %vm296, %v1538, %v1539
        %vm1557 = vcmask 777216
        %v1558 = vsel %vm1557, %v1503, %v1556
        %v1559 = vsel %vm296, %v1539, %v1540
        %v1560 = vsel %vm1557, %v1505, %v1559
        %v1561 = vsel %vm296, %v1540, %v1541
        %v1562 = vsel %vm1557, %v1507, %v1561
        %v1563 = vsel %vm296, %v1541, %v1542
        %v1564 = vsel %vm1557, %v1509, %v1563
        %v1565 = vsel %vm296, %v1542, %v1543
        %v1566 = vsel %vm1557, %v1511, %v1565
        %v1567 = vsel %vm296, %v1543, %v1544
        %v1568 = vsel %vm1557, %v1513, %v1567
        %v1569 = vsel %vm296, %v1544, %v1545
        %v1570 = vsel %vm1557, %v1515, %v1569
        %v1571 = vsel %vm296, %v1545, %v1546
        %v1572 = vsel %vm1557, %v1517, %v1571
        %v1573 = vsel %vm296, %v1546, %v1547
        %v1574 = vsel %vm1557, %v1519, %v1573
        %v1575 = vsel %vm296, %v1547, %v1548
        %v1576 = vsel %vm1557, %v1521, %v1575
        %v1577 = vsel %vm296, %v1548, %v1549
        %v1578 = vsel %vm1557, %v1523, %v1577
        %v1579 = vsel %vm296, %v1549, %v1550
        %v1580 = vsel %vm1557, %v1525, %v1579
        %v1581 = vsel %vm296, %v1550, %v1551
        %v1582 = vsel %vm1557, %v1527, %v1581
        %v1583 = vsel %vm296, %v1551, %v1552
        %v1584 = vsel %vm1557, %v1529, %v1583
        %v1585 = vsel %vm296, %v1552, %v1553
        %v1586 = vsel %vm1557, %v1531, %v1585
        %v1587 = vsel %vm296, %v1553, %v1554
        %v1588 = vsel %vm1557, %v1533, %v1587
        %v1589 = vsel %vm296, %v1554, %v1555
        %v1590 = vsel %vm1557, %v1535, %v1589
        %1608 = vst [vmem:[#allocation2 + $0x4c8] sm:$0xff] %v1558
        %1609 = vst [vmem:[#allocation2 + $0x4d0] sm:$0xff] %v1560
        %1610 = vst [vmem:[#allocation2 + $0x4d8] sm:$0xff] %v1562
        %1611 = vst [vmem:[#allocation2 + $0x4e0] sm:$0xff] %v1564
        %1612 = vst [vmem:[#allocation2 + $0x4e8] sm:$0xff] %v1566
        %1613 = vst [vmem:[#allocation2 + $0x4f0] sm:$0xff] %v1568
        %1614 = vst [vmem:[#allocation2 + $0x4f8] sm:$0xff] %v1570
        %1615 = vst [vmem:[#allocation2 + $0x500] sm:$0xff] %v1572
        %1616 = vst [vmem:[#allocation2 + $0x508] sm:$0xff] %v1574
        %1617 = vst [vmem:[#allocation2 + $0x510] sm:$0xff] %v1576
        %1618 = vst [vmem:[#allocation2 + $0x518] sm:$0xff] %v1578
        %1619 = vst [vmem:[#allocation2 + $0x520] sm:$0xff] %v1580
        %1620 = vst [vmem:[#allocation2 + $0x528] sm:$0xff] %v1582
        %1621 = vst [vmem:[#allocation2 + $0x530] sm:$0xff] %v1584
        %1622 = vst [vmem:[#allocation2 + $0x538] sm:$0xff] %v1586
        %1623 = vst [vmem:[#allocation2 + $0x540] sm:$0xff] %v1588
        %1624 = vst.msk [vmem:[#allocation2 + $0x548] sm:$0xff] %vm209, %v1590
        %v1625 = vld [vmem:[%s148 + $0x8] sm:$0xff]
        %v1626 = vld [vmem:[%s148 + $0x10] sm:$0xff]
        %v1627 = vld [vmem:[%s148 + $0x18] sm:$0xff]
        %v1628 = vld [vmem:[%s148 + $0x20] sm:$0xff]
        %v1629 = vld [vmem:[%s148 + $0x28] sm:$0xff]
        %v1630 = vld [vmem:[%s148 + $0x30] sm:$0xff]
        %v1631 = vld [vmem:[%s148 + $0x38] sm:$0xff]
        %v1632 = vld [vmem:[%s148 + $0x40] sm:$0xff]
        %v1633 = vld [vmem:[%s148 + $0x48] sm:$0xff]
        %v1634 = vld [vmem:[%s148 + $0x50] sm:$0xff]
        %v1635 = vld [vmem:[%s148 + $0x58] sm:$0xff]
        %v1636 = vld [vmem:[%s148 + $0x60] sm:$0xff]
        %v1637 = vld [vmem:[%s148 + $0x68] sm:$0xff]
        %v1638 = vld [vmem:[%s148 + $0x70] sm:$0xff]
        %v1639 = vld [vmem:[%s148 + $0x78] sm:$0xff]
        %v1640 = vld [vmem:[%s148 + $0x80] sm:$0xff]
        %v1641 = vld [vmem:[%s148 + $0x88] sm:$0xff]
        %v1642 = vld [vmem:[%s148 + $0x90] sm:$0xf]
        %1661 = vrot.lane.b32.xlu0 %v1625, 94
        %v1662 = vpop.permute.xlu0 %1661
        %1663 = vrot.lane.b32.xlu0 %v1626, 94
        %v1664 = vpop.permute.xlu0 %1663
        %1665 = vrot.lane.b32.xlu0 %v1627, 94
        %v1666 = vpop.permute.xlu0 %1665
        %1667 = vrot.lane.b32.xlu0 %v1628, 94
        %v1668 = vpop.permute.xlu0 %1667
        %1669 = vrot.lane.b32.xlu0 %v1629, 94
        %v1670 = vpop.permute.xlu0 %1669
        %1671 = vrot.lane.b32.xlu0 %v1630, 94
        %v1672 = vpop.permute.xlu0 %1671
        %1673 = vrot.lane.b32.xlu0 %v1631, 94
        %v1674 = vpop.permute.xlu0 %1673
        %1675 = vrot.lane.b32.xlu0 %v1632, 94
        %v1676 = vpop.permute.xlu0 %1675
        %1677 = vrot.lane.b32.xlu0 %v1633, 94
        %v1678 = vpop.permute.xlu0 %1677
        %1679 = vrot.lane.b32.xlu0 %v1634, 94
        %v1680 = vpop.permute.xlu0 %1679
        %1681 = vrot.lane.b32.xlu0 %v1635, 94
        %v1682 = vpop.permute.xlu0 %1681
        %1683 = vrot.lane.b32.xlu0 %v1636, 94
        %v1684 = vpop.permute.xlu0 %1683
        %1685 = vrot.lane.b32.xlu0 %v1637, 94
        %v1686 = vpop.permute.xlu0 %1685
        %1687 = vrot.lane.b32.xlu0 %v1638, 94
        %v1688 = vpop.permute.xlu0 %1687
        %1689 = vrot.lane.b32.xlu0 %v1639, 94
        %v1690 = vpop.permute.xlu0 %1689
        %1691 = vrot.lane.b32.xlu0 %v1640, 94
        %v1692 = vpop.permute.xlu0 %1691
        %1693 = vrot.lane.b32.xlu0 %v1641, 94
        %v1694 = vpop.permute.xlu0 %1693
        %1695 = vrot.lane.b32.xlu0 %v1642, 94
        %v1696 = vpop.permute.xlu0 %1695
        %v1697 = vrot.slane %v1662, 4
        %v1698 = vrot.slane %v1664, 4
        %v1699 = vrot.slane %v1666, 4
        %v1700 = vrot.slane %v1668, 4
        %v1701 = vrot.slane %v1670, 4
        %v1702 = vrot.slane %v1672, 4
        %v1703 = vrot.slane %v1674, 4
        %v1704 = vrot.slane %v1676, 4
        %v1705 = vrot.slane %v1678, 4
        %v1706 = vrot.slane %v1680, 4
        %v1707 = vrot.slane %v1682, 4
        %v1708 = vrot.slane %v1684, 4
        %v1709 = vrot.slane %v1686, 4
        %v1710 = vrot.slane %v1688, 4
        %v1711 = vrot.slane %v1690, 4
        %v1712 = vrot.slane %v1692, 4
        %v1713 = vrot.slane %v1694, 4
        %v1714 = vrot.slane %v1696, 4
        %v1715 = vsel %vm296, %v1697, %v1698
        %v1716 = vsel %vm1080, %v1662, %v1715
        %v1717 = vsel %vm296, %v1698, %v1699
        %v1718 = vsel %vm1080, %v1664, %v1717
        %v1719 = vsel %vm296, %v1699, %v1700
        %v1720 = vsel %vm1080, %v1666, %v1719
        %v1721 = vsel %vm296, %v1700, %v1701
        %v1722 = vsel %vm1080, %v1668, %v1721
        %v1723 = vsel %vm296, %v1701, %v1702
        %v1724 = vsel %vm1080, %v1670, %v1723
        %v1725 = vsel %vm296, %v1702, %v1703
        %v1726 = vsel %vm1080, %v1672, %v1725
        %v1727 = vsel %vm296, %v1703, %v1704
        %v1728 = vsel %vm1080, %v1674, %v1727
        %v1729 = vsel %vm296, %v1704, %v1705
        %v1730 = vsel %vm1080, %v1676, %v1729
        %v1731 = vsel %vm296, %v1705, %v1706
        %v1732 = vsel %vm1080, %v1678, %v1731
        %v1733 = vsel %vm296, %v1706, %v1707
        %v1734 = vsel %vm1080, %v1680, %v1733
        %v1735 = vsel %vm296, %v1707, %v1708
        %v1736 = vsel %vm1080, %v1682, %v1735
        %v1737 = vsel %vm296, %v1708, %v1709
        %v1738 = vsel %vm1080, %v1684, %v1737
        %v1739 = vsel %vm296, %v1709, %v1710
        %v1740 = vsel %vm1080, %v1686, %v1739
        %v1741 = vsel %vm296, %v1710, %v1711
        %v1742 = vsel %vm1080, %v1688, %v1741
        %v1743 = vsel %vm296, %v1711, %v1712
        %v1744 = vsel %vm1080, %v1690, %v1743
        %v1745 = vsel %vm296, %v1712, %v1713
        %v1746 = vsel %vm1080, %v1692, %v1745
        %v1747 = vsel %vm296, %v1713, %v1714
        %v1748 = vsel %vm1080, %v1694, %v1747
        %1766 = vst [vmem:[#allocation2 + $0x550] sm:$0xff] %v1716
        %1767 = vst [vmem:[#allocation2 + $0x558] sm:$0xff] %v1718
        %1768 = vst [vmem:[#allocation2 + $0x560] sm:$0xff] %v1720
        %1769 = vst [vmem:[#allocation2 + $0x568] sm:$0xff] %v1722
        %1770 = vst [vmem:[#allocation2 + $0x570] sm:$0xff] %v1724
        %1771 = vst [vmem:[#allocation2 + $0x578] sm:$0xff] %v1726
        %1772 = vst [vmem:[#allocation2 + $0x580] sm:$0xff] %v1728
        %1773 = vst [vmem:[#allocation2 + $0x588] sm:$0xff] %v1730
        %1774 = vst [vmem:[#allocation2 + $0x590] sm:$0xff] %v1732
        %1775 = vst [vmem:[#allocation2 + $0x598] sm:$0xff] %v1734
        %1776 = vst [vmem:[#allocation2 + $0x5a0] sm:$0xff] %v1736
        %1777 = vst [vmem:[#allocation2 + $0x5a8] sm:$0xff] %v1738
        %1778 = vst [vmem:[#allocation2 + $0x5b0] sm:$0xff] %v1740
        %1779 = vst [vmem:[#allocation2 + $0x5b8] sm:$0xff] %v1742
        %1780 = vst [vmem:[#allocation2 + $0x5c0] sm:$0xff] %v1744
        %1781 = vst [vmem:[#allocation2 + $0x5c8] sm:$0xff] %v1746
        %1782 = vst.msk [vmem:[#allocation2 + $0x5d0] sm:$0xff] %vm209, %v1748
        %v1783 = vld [vmem:[%s148 + $0x8] sm:$0xff]
        %v1784 = vld [vmem:[%s148 + $0x10] sm:$0xff]
        %v1785 = vld [vmem:[%s148 + $0x18] sm:$0xff]
        %v1786 = vld [vmem:[%s148 + $0x20] sm:$0xff]
        %v1787 = vld [vmem:[%s148 + $0x28] sm:$0xff]
        %v1788 = vld [vmem:[%s148 + $0x30] sm:$0xff]
        %v1789 = vld [vmem:[%s148 + $0x38] sm:$0xff]
        %v1790 = vld [vmem:[%s148 + $0x40] sm:$0xff]
        %v1791 = vld [vmem:[%s148 + $0x48] sm:$0xff]
        %v1792 = vld [vmem:[%s148 + $0x50] sm:$0xff]
        %v1793 = vld [vmem:[%s148 + $0x58] sm:$0xff]
        %v1794 = vld [vmem:[%s148 + $0x60] sm:$0xff]
        %v1795 = vld [vmem:[%s148 + $0x68] sm:$0xff]
        %v1796 = vld [vmem:[%s148 + $0x70] sm:$0xff]
        %v1797 = vld [vmem:[%s148 + $0x78] sm:$0xff]
        %v1798 = vld [vmem:[%s148 + $0x80] sm:$0xff]
        %v1799 = vld [vmem:[%s148 + $0x88] sm:$0xff]
        %v1800 = vld [vmem:[%s148 + $0x90] sm:$0xf]
        %1819 = vrot.lane.b32.xlu0 %v1783, 93
        %v1820 = vpop.permute.xlu0 %1819
        %1821 = vrot.lane.b32.xlu0 %v1784, 93
        %v1822 = vpop.permute.xlu0 %1821
        %1823 = vrot.lane.b32.xlu0 %v1785, 93
        %v1824 = vpop.permute.xlu0 %1823
        %1825 = vrot.lane.b32.xlu0 %v1786, 93
        %v1826 = vpop.permute.xlu0 %1825
        %1827 = vrot.lane.b32.xlu0 %v1787, 93
        %v1828 = vpop.permute.xlu0 %1827
        %1829 = vrot.lane.b32.xlu0 %v1788, 93
        %v1830 = vpop.permute.xlu0 %1829
        %1831 = vrot.lane.b32.xlu0 %v1789, 93
        %v1832 = vpop.permute.xlu0 %1831
        %1833 = vrot.lane.b32.xlu0 %v1790, 93
        %v1834 = vpop.permute.xlu0 %1833
        %1835 = vrot.lane.b32.xlu0 %v1791, 93
        %v1836 = vpop.permute.xlu0 %1835
        %1837 = vrot.lane.b32.xlu0 %v1792, 93
        %v1838 = vpop.permute.xlu0 %1837
        %1839 = vrot.lane.b32.xlu0 %v1793, 93
        %v1840 = vpop.permute.xlu0 %1839
        %1841 = vrot.lane.b32.xlu0 %v1794, 93
        %v1842 = vpop.permute.xlu0 %1841
        %1843 = vrot.lane.b32.xlu0 %v1795, 93
        %v1844 = vpop.permute.xlu0 %1843
        %1845 = vrot.lane.b32.xlu0 %v1796, 93
        %v1846 = vpop.permute.xlu0 %1845
        %1847 = vrot.lane.b32.xlu0 %v1797, 93
        %v1848 = vpop.permute.xlu0 %1847
        %1849 = vrot.lane.b32.xlu0 %v1798, 93
        %v1850 = vpop.permute.xlu0 %1849
        %1851 = vrot.lane.b32.xlu0 %v1799, 93
        %v1852 = vpop.permute.xlu0 %1851
        %1853 = vrot.lane.b32.xlu0 %v1800, 93
        %v1854 = vpop.permute.xlu0 %1853
        %v1855 = vrot.slane %v1820, 4
        %v1856 = vrot.slane %v1822, 4
        %v1857 = vrot.slane %v1824, 4
        %v1858 = vrot.slane %v1826, 4
        %v1859 = vrot.slane %v1828, 4
        %v1860 = vrot.slane %v1830, 4
        %v1861 = vrot.slane %v1832, 4
        %v1862 = vrot.slane %v1834, 4
        %v1863 = vrot.slane %v1836, 4
        %v1864 = vrot.slane %v1838, 4
        %v1865 = vrot.slane %v1840, 4
        %v1866 = vrot.slane %v1842, 4
        %v1867 = vrot.slane %v1844, 4
        %v1868 = vrot.slane %v1846, 4
        %v1869 = vrot.slane %v1848, 4
        %v1870 = vrot.slane %v1850, 4
        %v1871 = vrot.slane %v1852, 4
        %v1872 = vrot.slane %v1854, 4
        %v1873 = vsel %vm296, %v1855, %v1856
        %v1874 = vsel %vm1239, %v1820, %v1873
        %v1875 = vsel %vm296, %v1856, %v1857
        %v1876 = vsel %vm1239, %v1822, %v1875
        %v1877 = vsel %vm296, %v1857, %v1858
        %v1878 = vsel %vm1239, %v1824, %v1877
        %v1879 = vsel %vm296, %v1858, %v1859
        %v1880 = vsel %vm1239, %v1826, %v1879
        %v1881 = vsel %vm296, %v1859, %v1860
        %v1882 = vsel %vm1239, %v1828, %v1881
        %v1883 = vsel %vm296, %v1860, %v1861
        %v1884 = vsel %vm1239, %v1830, %v1883
        %v1885 = vsel %vm296, %v1861, %v1862
        %v1886 = vsel %vm1239, %v1832, %v1885
        %v1887 = vsel %vm296, %v1862, %v1863
        %v1888 = vsel %vm1239, %v1834, %v1887
        %v1889 = vsel %vm296, %v1863, %v1864
        %v1890 = vsel %vm1239, %v1836, %v1889
        %v1891 = vsel %vm296, %v1864, %v1865
        %v1892 = vsel %vm1239, %v1838, %v1891
        %v1893 = vsel %vm296, %v1865, %v1866
        %v1894 = vsel %vm1239, %v1840, %v1893
        %v1895 = vsel %vm296, %v1866, %v1867
        %v1896 = vsel %vm1239, %v1842, %v1895
        %v1897 = vsel %vm296, %v1867, %v1868
        %v1898 = vsel %vm1239, %v1844, %v1897
        %v1899 = vsel %vm296, %v1868, %v1869
        %v1900 = vsel %vm1239, %v1846, %v1899
        %v1901 = vsel %vm296, %v1869, %v1870
        %v1902 = vsel %vm1239, %v1848, %v1901
        %v1903 = vsel %vm296, %v1870, %v1871
        %v1904 = vsel %vm1239, %v1850, %v1903
        %v1905 = vsel %vm296, %v1871, %v1872
        %v1906 = vsel %vm1239, %v1852, %v1905
        %1924 = vst [vmem:[#allocation2 + $0x5d8] sm:$0xff] %v1874
        %1925 = vst [vmem:[#allocation2 + $0x5e0] sm:$0xff] %v1876
        %1926 = vst [vmem:[#allocation2 + $0x5e8] sm:$0xff] %v1878
        %1927 = vst [vmem:[#allocation2 + $0x5f0] sm:$0xff] %v1880
        %1928 = vst [vmem:[#allocation2 + $0x5f8] sm:$0xff] %v1882
        %1929 = vst [vmem:[#allocation2 + $0x600] sm:$0xff] %v1884
        %1930 = vst [vmem:[#allocation2 + $0x608] sm:$0xff] %v1886
        %1931 = vst [vmem:[#allocation2 + $0x610] sm:$0xff] %v1888
        %1932 = vst [vmem:[#allocation2 + $0x618] sm:$0xff] %v1890
        %1933 = vst [vmem:[#allocation2 + $0x620] sm:$0xff] %v1892
        %1934 = vst [vmem:[#allocation2 + $0x628] sm:$0xff] %v1894
        %1935 = vst [vmem:[#allocation2 + $0x630] sm:$0xff] %v1896
        %1936 = vst [vmem:[#allocation2 + $0x638] sm:$0xff] %v1898
        %1937 = vst [vmem:[#allocation2 + $0x640] sm:$0xff] %v1900
        %1938 = vst [vmem:[#allocation2 + $0x648] sm:$0xff] %v1902
        %1939 = vst [vmem:[#allocation2 + $0x650] sm:$0xff] %v1904
        %1940 = vst.msk [vmem:[#allocation2 + $0x658] sm:$0xff] %vm209, %v1906
        %v1941 = vld [vmem:[%s148 + $0x8] sm:$0xff]
        %v1942 = vld [vmem:[%s148 + $0x10] sm:$0xff]
        %v1943 = vld [vmem:[%s148 + $0x18] sm:$0xff]
        %v1944 = vld [vmem:[%s148 + $0x20] sm:$0xff]
        %v1945 = vld [vmem:[%s148 + $0x28] sm:$0xff]
        %v1946 = vld [vmem:[%s148 + $0x30] sm:$0xff]
        %v1947 = vld [vmem:[%s148 + $0x38] sm:$0xff]
        %v1948 = vld [vmem:[%s148 + $0x40] sm:$0xff]
        %v1949 = vld [vmem:[%s148 + $0x48] sm:$0xff]
        %v1950 = vld [vmem:[%s148 + $0x50] sm:$0xff]
        %v1951 = vld [vmem:[%s148 + $0x58] sm:$0xff]
        %v1952 = vld [vmem:[%s148 + $0x60] sm:$0xff]
        %v1953 = vld [vmem:[%s148 + $0x68] sm:$0xff]
        %v1954 = vld [vmem:[%s148 + $0x70] sm:$0xff]
        %v1955 = vld [vmem:[%s148 + $0x78] sm:$0xff]
        %v1956 = vld [vmem:[%s148 + $0x80] sm:$0xff]
        %v1957 = vld [vmem:[%s148 + $0x88] sm:$0xff]
        %v1958 = vld [vmem:[%s148 + $0x90] sm:$0xf]
        %1977 = vrot.lane.b32.xlu0 %v1941, 78
        %v1978 = vpop.permute.xlu0 %1977
        %1979 = vrot.lane.b32.xlu0 %v1942, 78
        %v1980 = vpop.permute.xlu0 %1979
        %1981 = vrot.lane.b32.xlu0 %v1943, 78
        %v1982 = vpop.permute.xlu0 %1981
        %1983 = vrot.lane.b32.xlu0 %v1944, 78
        %v1984 = vpop.permute.xlu0 %1983
        %1985 = vrot.lane.b32.xlu0 %v1945, 78
        %v1986 = vpop.permute.xlu0 %1985
        %1987 = vrot.lane.b32.xlu0 %v1946, 78
        %v1988 = vpop.permute.xlu0 %1987
        %1989 = vrot.lane.b32.xlu0 %v1947, 78
        %v1990 = vpop.permute.xlu0 %1989
        %1991 = vrot.lane.b32.xlu0 %v1948, 78
        %v1992 = vpop.permute.xlu0 %1991
        %1993 = vrot.lane.b32.xlu0 %v1949, 78
        %v1994 = vpop.permute.xlu0 %1993
        %1995 = vrot.lane.b32.xlu0 %v1950, 78
        %v1996 = vpop.permute.xlu0 %1995
        %1997 = vrot.lane.b32.xlu0 %v1951, 78
        %v1998 = vpop.permute.xlu0 %1997
        %1999 = vrot.lane.b32.xlu0 %v1952, 78
        %v2000 = vpop.permute.xlu0 %1999
        %2001 = vrot.lane.b32.xlu0 %v1953, 78
        %v2002 = vpop.permute.xlu0 %2001
        %2003 = vrot.lane.b32.xlu0 %v1954, 78
        %v2004 = vpop.permute.xlu0 %2003
        %2005 = vrot.lane.b32.xlu0 %v1955, 78
        %v2006 = vpop.permute.xlu0 %2005
        %2007 = vrot.lane.b32.xlu0 %v1956, 78
        %v2008 = vpop.permute.xlu0 %2007
        %2009 = vrot.lane.b32.xlu0 %v1957, 78
        %v2010 = vpop.permute.xlu0 %2009
        %2011 = vrot.lane.b32.xlu0 %v1958, 78
        %v2012 = vpop.permute.xlu0 %2011
        %v2013 = vrot.slane %v1978, 4
        %v2014 = vrot.slane %v1980, 4
        %v2015 = vrot.slane %v1982, 4
        %v2016 = vrot.slane %v1984, 4
        %v2017 = vrot.slane %v1986, 4
        %v2018 = vrot.slane %v1988, 4
        %v2019 = vrot.slane %v1990, 4
        %v2020 = vrot.slane %v1992, 4
        %v2021 = vrot.slane %v1994, 4
        %v2022 = vrot.slane %v1996, 4
        %v2023 = vrot.slane %v1998, 4
        %v2024 = vrot.slane %v2000, 4
        %v2025 = vrot.slane %v2002, 4
        %v2026 = vrot.slane %v2004, 4
        %v2027 = vrot.slane %v2006, 4
        %v2028 = vrot.slane %v2008, 4
        %v2029 = vrot.slane %v2010, 4
        %v2030 = vrot.slane %v2012, 4
        %v2031 = vsel %vm296, %v2013, %v2014
        %vm2032 = vcmask 637952
        %v2033 = vsel %vm2032, %v1978, %v2031
        %v2034 = vsel %vm296, %v2014, %v2015
        %v2035 = vsel %vm2032, %v1980, %v2034
        %v2036 = vsel %vm296, %v2015, %v2016
        %v2037 = vsel %vm2032, %v1982, %v2036
        %v2038 = vsel %vm296, %v2016, %v2017
        %v2039 = vsel %vm2032, %v1984, %v2038
        %v2040 = vsel %vm296, %v2017, %v2018
        %v2041 = vsel %vm2032, %v1986, %v2040
        %v2042 = vsel %vm296, %v2018, %v2019
        %v2043 = vsel %vm2032, %v1988, %v2042
        %v2044 = vsel %vm296, %v2019, %v2020
        %v2045 = vsel %vm2032, %v1990, %v2044
        %v2046 = vsel %vm296, %v2020, %v2021
        %v2047 = vsel %vm2032, %v1992, %v2046
        %v2048 = vsel %vm296, %v2021, %v2022
        %v2049 = vsel %vm2032, %v1994, %v2048
        %v2050 = vsel %vm296, %v2022, %v2023
        %v2051 = vsel %vm2032, %v1996, %v2050
        %v2052 = vsel %vm296, %v2023, %v2024
        %v2053 = vsel %vm2032, %v1998, %v2052
        %v2054 = vsel %vm296, %v2024, %v2025
        %v2055 = vsel %vm2032, %v2000, %v2054
        %v2056 = vsel %vm296, %v2025, %v2026
        %v2057 = vsel %vm2032, %v2002, %v2056
        %v2058 = vsel %vm296, %v2026, %v2027
        %v2059 = vsel %vm2032, %v2004, %v2058
        %v2060 = vsel %vm296, %v2027, %v2028
        %v2061 = vsel %vm2032, %v2006, %v2060
        %v2062 = vsel %vm296, %v2028, %v2029
        %v2063 = vsel %vm2032, %v2008, %v2062
        %v2064 = vsel %vm296, %v2029, %v2030
        %v2065 = vsel %vm2032, %v2010, %v2064
        %2083 = vst [vmem:[#allocation2 + $0x660] sm:$0xff] %v2033
        %2084 = vst [vmem:[#allocation2 + $0x668] sm:$0xff] %v2035
        %2085 = vst [vmem:[#allocation2 + $0x670] sm:$0xff] %v2037
        %2086 = vst [vmem:[#allocation2 + $0x678] sm:$0xff] %v2039
        %2087 = vst [vmem:[#allocation2 + $0x680] sm:$0xff] %v2041
        %2088 = vst [vmem:[#allocation2 + $0x688] sm:$0xff] %v2043
        %2089 = vst [vmem:[#allocation2 + $0x690] sm:$0xff] %v2045
        %2090 = vst [vmem:[#allocation2 + $0x698] sm:$0xff] %v2047
        %2091 = vst [vmem:[#allocation2 + $0x6a0] sm:$0xff] %v2049
        %2092 = vst [vmem:[#allocation2 + $0x6a8] sm:$0xff] %v2051
        %2093 = vst [vmem:[#allocation2 + $0x6b0] sm:$0xff] %v2053
        %2094 = vst [vmem:[#allocation2 + $0x6b8] sm:$0xff] %v2055
        %2095 = vst [vmem:[#allocation2 + $0x6c0] sm:$0xff] %v2057
        %2096 = vst [vmem:[#allocation2 + $0x6c8] sm:$0xff] %v2059
        %2097 = vst [vmem:[#allocation2 + $0x6d0] sm:$0xff] %v2061
        %2098 = vst [vmem:[#allocation2 + $0x6d8] sm:$0xff] %v2063
        %2099 = vst.msk [vmem:[#allocation2 + $0x6e0] sm:$0xff] %vm209, %v2065
        %v2100 = vld [vmem:[%s148 + $0x8] sm:$0xff]
        %v2101 = vld [vmem:[%s148 + $0x10] sm:$0xff]
        %v2102 = vld [vmem:[%s148 + $0x18] sm:$0xff]
        %v2103 = vld [vmem:[%s148 + $0x20] sm:$0xff]
        %v2104 = vld [vmem:[%s148 + $0x28] sm:$0xff]
        %v2105 = vld [vmem:[%s148 + $0x30] sm:$0xff]
        %v2106 = vld [vmem:[%s148 + $0x38] sm:$0xff]
        %v2107 = vld [vmem:[%s148 + $0x40] sm:$0xff]
        %v2108 = vld [vmem:[%s148 + $0x48] sm:$0xff]
        %v2109 = vld [vmem:[%s148 + $0x50] sm:$0xff]
        %v2110 = vld [vmem:[%s148 + $0x58] sm:$0xff]
        %v2111 = vld [vmem:[%s148 + $0x60] sm:$0xff]
        %v2112 = vld [vmem:[%s148 + $0x68] sm:$0xff]
        %v2113 = vld [vmem:[%s148 + $0x70] sm:$0xff]
        %v2114 = vld [vmem:[%s148 + $0x78] sm:$0xff]
        %v2115 = vld [vmem:[%s148 + $0x80] sm:$0xff]
        %v2116 = vld [vmem:[%s148 + $0x88] sm:$0xff]
        %v2117 = vld [vmem:[%s148 + $0x90] sm:$0xf]
        %2136 = vrot.lane.b32.xlu0 %v2100, 77
        %v2137 = vpop.permute.xlu0 %2136
        %2138 = vrot.lane.b32.xlu0 %v2101, 77
        %v2139 = vpop.permute.xlu0 %2138
        %2140 = vrot.lane.b32.xlu0 %v2102, 77
        %v2141 = vpop.permute.xlu0 %2140
        %2142 = vrot.lane.b32.xlu0 %v2103, 77
        %v2143 = vpop.permute.xlu0 %2142
        %2144 = vrot.lane.b32.xlu0 %v2104, 77
        %v2145 = vpop.permute.xlu0 %2144
        %2146 = vrot.lane.b32.xlu0 %v2105, 77
        %v2147 = vpop.permute.xlu0 %2146
        %2148 = vrot.lane.b32.xlu0 %v2106, 77
        %v2149 = vpop.permute.xlu0 %2148
        %2150 = vrot.lane.b32.xlu0 %v2107, 77
        %v2151 = vpop.permute.xlu0 %2150
        %2152 = vrot.lane.b32.xlu0 %v2108, 77
        %v2153 = vpop.permute.xlu0 %2152
        %2154 = vrot.lane.b32.xlu0 %v2109, 77
        %v2155 = vpop.permute.xlu0 %2154
        %2156 = vrot.lane.b32.xlu0 %v2110, 77
        %v2157 = vpop.permute.xlu0 %2156
        %2158 = vrot.lane.b32.xlu0 %v2111, 77
        %v2159 = vpop.permute.xlu0 %2158
        %2160 = vrot.lane.b32.xlu0 %v2112, 77
        %v2161 = vpop.permute.xlu0 %2160
        %2162 = vrot.lane.b32.xlu0 %v2113, 77
        %v2163 = vpop.permute.xlu0 %2162
        %2164 = vrot.lane.b32.xlu0 %v2114, 77
        %v2165 = vpop.permute.xlu0 %2164
        %2166 = vrot.lane.b32.xlu0 %v2115, 77
        %v2167 = vpop.permute.xlu0 %2166
        %2168 = vrot.lane.b32.xlu0 %v2116, 77
        %v2169 = vpop.permute.xlu0 %2168
        %2170 = vrot.lane.b32.xlu0 %v2117, 77
        %v2171 = vpop.permute.xlu0 %2170
        %v2172 = vrot.slane %v2137, 4
        %v2173 = vrot.slane %v2139, 4
        %v2174 = vrot.slane %v2141, 4
        %v2175 = vrot.slane %v2143, 4
        %v2176 = vrot.slane %v2145, 4
        %v2177 = vrot.slane %v2147, 4
        %v2178 = vrot.slane %v2149, 4
        %v2179 = vrot.slane %v2151, 4
        %v2180 = vrot.slane %v2153, 4
        %v2181 = vrot.slane %v2155, 4
        %v2182 = vrot.slane %v2157, 4
        %v2183 = vrot.slane %v2159, 4
        %v2184 = vrot.slane %v2161, 4
        %v2185 = vrot.slane %v2163, 4
        %v2186 = vrot.slane %v2165, 4
        %v2187 = vrot.slane %v2167, 4
        %v2188 = vrot.slane %v2169, 4
        %v2189 = vrot.slane %v2171, 4
        %v2190 = vsel %vm296, %v2172, %v2173
        %vm2191 = vcmask 629760
        %v2192 = vsel %vm2191, %v2137, %v2190
        %v2193 = vsel %vm296, %v2173, %v2174
        %v2194 = vsel %vm2191, %v2139, %v2193
        %v2195 = vsel %vm296, %v2174, %v2175
        %v2196 = vsel %vm2191, %v2141, %v2195
        %v2197 = vsel %vm296, %v2175, %v2176
        %v2198 = vsel %vm2191, %v2143, %v2197
        %v2199 = vsel %vm296, %v2176, %v2177
        %v2200 = vsel %vm2191, %v2145, %v2199
        %v2201 = vsel %vm296, %v2177, %v2178
        %v2202 = vsel %vm2191, %v2147, %v2201
        %v2203 = vsel %vm296, %v2178, %v2179
        %v2204 = vsel %vm2191, %v2149, %v2203
        %v2205 = vsel %vm296, %v2179, %v2180
        %v2206 = vsel %vm2191, %v2151, %v2205
        %v2207 = vsel %vm296, %v2180, %v2181
        %v2208 = vsel %vm2191, %v2153, %v2207
        %v2209 = vsel %vm296, %v2181, %v2182
        %v2210 = vsel %vm2191, %v2155, %v2209
        %v2211 = vsel %vm296, %v2182, %v2183
        %v2212 = vsel %vm2191, %v2157, %v2211
        %v2213 = vsel %vm296, %v2183, %v2184
        %v2214 = vsel %vm2191, %v2159, %v2213
        %v2215 = vsel %vm296, %v2184, %v2185
        %v2216 = vsel %vm2191, %v2161, %v2215
        %v2217 = vsel %vm296, %v2185, %v2186
        %v2218 = vsel %vm2191, %v2163, %v2217
        %v2219 = vsel %vm296, %v2186, %v2187
        %v2220 = vsel %vm2191, %v2165, %v2219
        %v2221 = vsel %vm296, %v2187, %v2188
        %v2222 = vsel %vm2191, %v2167, %v2221
        %v2223 = vsel %vm296, %v2188, %v2189
        %v2224 = vsel %vm2191, %v2169, %v2223
        %2242 = vst [vmem:[#allocation2 + $0x6e8] sm:$0xff] %v2192
        %2243 = vst [vmem:[#allocation2 + $0x6f0] sm:$0xff] %v2194
        %2244 = vst [vmem:[#allocation2 + $0x6f8] sm:$0xff] %v2196
        %2245 = vst [vmem:[#allocation2 + $0x700] sm:$0xff] %v2198
        %2246 = vst [vmem:[#allocation2 + $0x708] sm:$0xff] %v2200
        %2247 = vst [vmem:[#allocation2 + $0x710] sm:$0xff] %v2202
        %2248 = vst [vmem:[#allocation2 + $0x718] sm:$0xff] %v2204
        %2249 = vst [vmem:[#allocation2 + $0x720] sm:$0xff] %v2206
        %2250 = vst [vmem:[#allocation2 + $0x728] sm:$0xff] %v2208
        %2251 = vst [vmem:[#allocation2 + $0x730] sm:$0xff] %v2210
        %2252 = vst [vmem:[#allocation2 + $0x738] sm:$0xff] %v2212
        %2253 = vst [vmem:[#allocation2 + $0x740] sm:$0xff] %v2214
        %2254 = vst [vmem:[#allocation2 + $0x748] sm:$0xff] %v2216
        %2255 = vst [vmem:[#allocation2 + $0x750] sm:$0xff] %v2218
        %2256 = vst [vmem:[#allocation2 + $0x758] sm:$0xff] %v2220
        %2257 = vst [vmem:[#allocation2 + $0x760] sm:$0xff] %v2222
        %2258 = vst.msk [vmem:[#allocation2 + $0x768] sm:$0xff] %vm209, %v2224
        %v2259 = vld [vmem:[%s148 + $0x8] sm:$0xff]
        %v2260 = vld [vmem:[%s148 + $0x10] sm:$0xff]
        %v2261 = vld [vmem:[%s148 + $0x18] sm:$0xff]
        %v2262 = vld [vmem:[%s148 + $0x20] sm:$0xff]
        %v2263 = vld [vmem:[%s148 + $0x28] sm:$0xff]
        %v2264 = vld [vmem:[%s148 + $0x30] sm:$0xff]
        %v2265 = vld [vmem:[%s148 + $0x38] sm:$0xff]
        %v2266 = vld [vmem:[%s148 + $0x40] sm:$0xff]
        %v2267 = vld [vmem:[%s148 + $0x48] sm:$0xff]
        %v2268 = vld [vmem:[%s148 + $0x50] sm:$0xff]
        %v2269 = vld [vmem:[%s148 + $0x58] sm:$0xff]
        %v2270 = vld [vmem:[%s148 + $0x60] sm:$0xff]
        %v2271 = vld [vmem:[%s148 + $0x68] sm:$0xff]
        %v2272 = vld [vmem:[%s148 + $0x70] sm:$0xff]
        %v2273 = vld [vmem:[%s148 + $0x78] sm:$0xff]
        %v2274 = vld [vmem:[%s148 + $0x80] sm:$0xff]
        %v2275 = vld [vmem:[%s148 + $0x88] sm:$0xff]
        %v2276 = vld [vmem:[%s148 + $0x90] sm:$0xf]
        %2295 = vrot.lane.b32.xlu0 %v2259, 76
        %v2296 = vpop.permute.xlu0 %2295
        %2297 = vrot.lane.b32.xlu0 %v2260, 76
        %v2298 = vpop.permute.xlu0 %2297
        %2299 = vrot.lane.b32.xlu0 %v2261, 76
        %v2300 = vpop.permute.xlu0 %2299
        %2301 = vrot.lane.b32.xlu0 %v2262, 76
        %v2302 = vpop.permute.xlu0 %2301
        %2303 = vrot.lane.b32.xlu0 %v2263, 76
        %v2304 = vpop.permute.xlu0 %2303
        %2305 = vrot.lane.b32.xlu0 %v2264, 76
        %v2306 = vpop.permute.xlu0 %2305
        %2307 = vrot.lane.b32.xlu0 %v2265, 76
        %v2308 = vpop.permute.xlu0 %2307
        %2309 = vrot.lane.b32.xlu0 %v2266, 76
        %v2310 = vpop.permute.xlu0 %2309
        %2311 = vrot.lane.b32.xlu0 %v2267, 76
        %v2312 = vpop.permute.xlu0 %2311
        %2313 = vrot.lane.b32.xlu0 %v2268, 76
        %v2314 = vpop.permute.xlu0 %2313
        %2315 = vrot.lane.b32.xlu0 %v2269, 76
        %v2316 = vpop.permute.xlu0 %2315
        %2317 = vrot.lane.b32.xlu0 %v2270, 76
        %v2318 = vpop.permute.xlu0 %2317
        %2319 = vrot.lane.b32.xlu0 %v2271, 76
        %v2320 = vpop.permute.xlu0 %2319
        %2321 = vrot.lane.b32.xlu0 %v2272, 76
        %v2322 = vpop.permute.xlu0 %2321
        %2323 = vrot.lane.b32.xlu0 %v2273, 76
        %v2324 = vpop.permute.xlu0 %2323
        %2325 = vrot.lane.b32.xlu0 %v2274, 76
        %v2326 = vpop.permute.xlu0 %2325
        %2327 = vrot.lane.b32.xlu0 %v2275, 76
        %v2328 = vpop.permute.xlu0 %2327
        %2329 = vrot.lane.b32.xlu0 %v2276, 76
        %v2330 = vpop.permute.xlu0 %2329
        %v2331 = vrot.slane %v2296, 4
        %v2332 = vrot.slane %v2298, 4
        %v2333 = vrot.slane %v2300, 4
        %v2334 = vrot.slane %v2302, 4
        %v2335 = vrot.slane %v2304, 4
        %v2336 = vrot.slane %v2306, 4
        %v2337 = vrot.slane %v2308, 4
        %v2338 = vrot.slane %v2310, 4
        %v2339 = vrot.slane %v2312, 4
        %v2340 = vrot.slane %v2314, 4
        %v2341 = vrot.slane %v2316, 4
        %v2342 = vrot.slane %v2318, 4
        %v2343 = vrot.slane %v2320, 4
        %v2344 = vrot.slane %v2322, 4
        %v2345 = vrot.slane %v2324, 4
        %v2346 = vrot.slane %v2326, 4
        %v2347 = vrot.slane %v2328, 4
        %v2348 = vrot.slane %v2330, 4
        %v2349 = vsel %vm296, %v2331, %v2332
        %vm2350 = vcmask 621568
        %v2351 = vsel %vm2350, %v2296, %v2349
        %v2352 = vsel %vm296, %v2332, %v2333
        %v2353 = vsel %vm2350, %v2298, %v2352
        %v2354 = vsel %vm296, %v2333, %v2334
        %v2355 = vsel %vm2350, %v2300, %v2354
        %v2356 = vsel %vm296, %v2334, %v2335
        %v2357 = vsel %vm2350, %v2302, %v2356
        %v2358 = vsel %vm296, %v2335, %v2336
        %v2359 = vsel %vm2350, %v2304, %v2358
        %v2360 = vsel %vm296, %v2336, %v2337
        %v2361 = vsel %vm2350, %v2306, %v2360
        %v2362 = vsel %vm296, %v2337, %v2338
        %v2363 = vsel %vm2350, %v2308, %v2362
        %v2364 = vsel %vm296, %v2338, %v2339
        %v2365 = vsel %vm2350, %v2310, %v2364
        %v2366 = vsel %vm296, %v2339, %v2340
        %v2367 = vsel %vm2350, %v2312, %v2366
        %v2368 = vsel %vm296, %v2340, %v2341
        %v2369 = vsel %vm2350, %v2314, %v2368
        %v2370 = vsel %vm296, %v2341, %v2342
        %v2371 = vsel %vm2350, %v2316, %v2370
        %v2372 = vsel %vm296, %v2342, %v2343
        %v2373 = vsel %vm2350, %v2318, %v2372
        %v2374 = vsel %vm296, %v2343, %v2344
        %v2375 = vsel %vm2350, %v2320, %v2374
        %v2376 = vsel %vm296, %v2344, %v2345
        %v2377 = vsel %vm2350, %v2322, %v2376
        %v2378 = vsel %vm296, %v2345, %v2346
        %v2379 = vsel %vm2350, %v2324, %v2378
        %v2380 = vsel %vm296, %v2346, %v2347
        %v2381 = vsel %vm2350, %v2326, %v2380
        %v2382 = vsel %vm296, %v2347, %v2348
        %v2383 = vsel %vm2350, %v2328, %v2382
        %2401 = vst [vmem:[#allocation2 + $0x770] sm:$0xff] %v2351
        %2402 = vst [vmem:[#allocation2 + $0x778] sm:$0xff] %v2353
        %2403 = vst [vmem:[#allocation2 + $0x780] sm:$0xff] %v2355
        %2404 = vst [vmem:[#allocation2 + $0x788] sm:$0xff] %v2357
        %2405 = vst [vmem:[#allocation2 + $0x790] sm:$0xff] %v2359
        %2406 = vst [vmem:[#allocation2 + $0x798] sm:$0xff] %v2361
        %2407 = vst [vmem:[#allocation2 + $0x7a0] sm:$0xff] %v2363
        %2408 = vst [vmem:[#allocation2 + $0x7a8] sm:$0xff] %v2365
        %2409 = vst [vmem:[#allocation2 + $0x7b0] sm:$0xff] %v2367
        %2410 = vst [vmem:[#allocation2 + $0x7b8] sm:$0xff] %v2369
        %2411 = vst [vmem:[#allocation2 + $0x7c0] sm:$0xff] %v2371
        %2412 = vst [vmem:[#allocation2 + $0x7c8] sm:$0xff] %v2373
        %2413 = vst [vmem:[#allocation2 + $0x7d0] sm:$0xff] %v2375
        %2414 = vst [vmem:[#allocation2 + $0x7d8] sm:$0xff] %v2377
        %2415 = vst [vmem:[#allocation2 + $0x7e0] sm:$0xff] %v2379
        %2416 = vst [vmem:[#allocation2 + $0x7e8] sm:$0xff] %v2381
        %2417 = vst.msk [vmem:[#allocation2 + $0x7f0] sm:$0xff] %vm209, %v2383
        %v2418 = vld [vmem:[%s148 + $0x8] sm:$0xff]
        %v2419 = vld [vmem:[%s148 + $0x10] sm:$0xff]
        %v2420 = vld [vmem:[%s148 + $0x18] sm:$0xff]
        %v2421 = vld [vmem:[%s148 + $0x20] sm:$0xff]
        %v2422 = vld [vmem:[%s148 + $0x28] sm:$0xff]
        %v2423 = vld [vmem:[%s148 + $0x30] sm:$0xff]
        %v2424 = vld [vmem:[%s148 + $0x38] sm:$0xff]
        %v2425 = vld [vmem:[%s148 + $0x40] sm:$0xff]
        %v2426 = vld [vmem:[%s148 + $0x48] sm:$0xff]
        %v2427 = vld [vmem:[%s148 + $0x50] sm:$0xff]
        %v2428 = vld [vmem:[%s148 + $0x58] sm:$0xff]
        %v2429 = vld [vmem:[%s148 + $0x60] sm:$0xff]
        %v2430 = vld [vmem:[%s148 + $0x68] sm:$0xff]
        %v2431 = vld [vmem:[%s148 + $0x70] sm:$0xff]
        %v2432 = vld [vmem:[%s148 + $0x78] sm:$0xff]
        %v2433 = vld [vmem:[%s148 + $0x80] sm:$0xff]
        %v2434 = vld [vmem:[%s148 + $0x88] sm:$0xff]
        %v2435 = vld [vmem:[%s148 + $0x90] sm:$0xf]
        %2454 = vrot.lane.b32.xlu0 %v2418, 61
        %v2455 = vpop.permute.xlu0 %2454
        %2456 = vrot.lane.b32.xlu0 %v2419, 61
        %v2457 = vpop.permute.xlu0 %2456
        %2458 = vrot.lane.b32.xlu0 %v2420, 61
        %v2459 = vpop.permute.xlu0 %2458
        %2460 = vrot.lane.b32.xlu0 %v2421, 61
        %v2461 = vpop.permute.xlu0 %2460
        %2462 = vrot.lane.b32.xlu0 %v2422, 61
        %v2463 = vpop.permute.xlu0 %2462
        %2464 = vrot.lane.b32.xlu0 %v2423, 61
        %v2465 = vpop.permute.xlu0 %2464
        %2466 = vrot.lane.b32.xlu0 %v2424, 61
        %v2467 = vpop.permute.xlu0 %2466
        %2468 = vrot.lane.b32.xlu0 %v2425, 61
        %v2469 = vpop.permute.xlu0 %2468
        %2470 = vrot.lane.b32.xlu0 %v2426, 61
        %v2471 = vpop.permute.xlu0 %2470
        %2472 = vrot.lane.b32.xlu0 %v2427, 61
        %v2473 = vpop.permute.xlu0 %2472
        %2474 = vrot.lane.b32.xlu0 %v2428, 61
        %v2475 = vpop.permute.xlu0 %2474
        %2476 = vrot.lane.b32.xlu0 %v2429, 61
        %v2477 = vpop.permute.xlu0 %2476
        %2478 = vrot.lane.b32.xlu0 %v2430, 61
        %v2479 = vpop.permute.xlu0 %2478
        %2480 = vrot.lane.b32.xlu0 %v2431, 61
        %v2481 = vpop.permute.xlu0 %2480
        %2482 = vrot.lane.b32.xlu0 %v2432, 61
        %v2483 = vpop.permute.xlu0 %2482
        %2484 = vrot.lane.b32.xlu0 %v2433, 61
        %v2485 = vpop.permute.xlu0 %2484
        %2486 = vrot.lane.b32.xlu0 %v2434, 61
        %v2487 = vpop.permute.xlu0 %2486
        %2488 = vrot.lane.b32.xlu0 %v2435, 61
        %v2489 = vpop.permute.xlu0 %2488
        %v2490 = vrot.slane %v2455, 4
        %v2491 = vrot.slane %v2457, 4
        %v2492 = vrot.slane %v2459, 4
        %v2493 = vrot.slane %v2461, 4
        %v2494 = vrot.slane %v2463, 4
        %v2495 = vrot.slane %v2465, 4
        %v2496 = vrot.slane %v2467, 4
        %v2497 = vrot.slane %v2469, 4
        %v2498 = vrot.slane %v2471, 4
        %v2499 = vrot.slane %v2473, 4
        %v2500 = vrot.slane %v2475, 4
        %v2501 = vrot.slane %v2477, 4
        %v2502 = vrot.slane %v2479, 4
        %v2503 = vrot.slane %v2481, 4
        %v2504 = vrot.slane %v2483, 4
        %v2505 = vrot.slane %v2485, 4
        %v2506 = vrot.slane %v2487, 4
        %v2507 = vrot.slane %v2489, 4
        %v2508 = vsel %vm296, %v2490, %v2491
        %vm2509 = vcmask 498688
        %v2510 = vsel %vm2509, %v2455, %v2508
        %v2511 = vsel %vm296, %v2491, %v2492
        %v2512 = vsel %vm2509, %v2457, %v2511
        %v2513 = vsel %vm296, %v2492, %v2493
        %v2514 = vsel %vm2509, %v2459, %v2513
        %v2515 = vsel %vm296, %v2493, %v2494
        %v2516 = vsel %vm2509, %v2461, %v2515
        %v2517 = vsel %vm296, %v2494, %v2495
        %v2518 = vsel %vm2509, %v2463, %v2517
        %v2519 = vsel %vm296, %v2495, %v2496
        %v2520 = vsel %vm2509, %v2465, %v2519
        %v2521 = vsel %vm296, %v2496, %v2497
        %v2522 = vsel %vm2509, %v2467, %v2521
        %v2523 = vsel %vm296, %v2497, %v2498
        %v2524 = vsel %vm2509, %v2469, %v2523
        %v2525 = vsel %vm296, %v2498, %v2499
        %v2526 = vsel %vm2509, %v2471, %v2525
        %v2527 = vsel %vm296, %v2499, %v2500
        %v2528 = vsel %vm2509, %v2473, %v2527
        %v2529 = vsel %vm296, %v2500, %v2501
        %v2530 = vsel %vm2509, %v2475, %v2529
        %v2531 = vsel %vm296, %v2501, %v2502
        %v2532 = vsel %vm2509, %v2477, %v2531
        %v2533 = vsel %vm296, %v2502, %v2503
        %v2534 = vsel %vm2509, %v2479, %v2533
        %v2535 = vsel %vm296, %v2503, %v2504
        %v2536 = vsel %vm2509, %v2481, %v2535
        %v2537 = vsel %vm296, %v2504, %v2505
        %v2538 = vsel %vm2509, %v2483, %v2537
        %v2539 = vsel %vm296, %v2505, %v2506
        %v2540 = vsel %vm2509, %v2485, %v2539
        %v2541 = vsel %vm296, %v2506, %v2507
        %v2542 = vsel %vm2509, %v2487, %v2541
        %2560 = vst [vmem:[#allocation2 + $0x7f8] sm:$0xff] %v2510
        %2561 = vst [vmem:[#allocation2 + $0x800] sm:$0xff] %v2512
        %2562 = vst [vmem:[#allocation2 + $0x808] sm:$0xff] %v2514
        %2563 = vst [vmem:[#allocation2 + $0x810] sm:$0xff] %v2516
        %2564 = vst [vmem:[#allocation2 + $0x818] sm:$0xff] %v2518
        %2565 = vst [vmem:[#allocation2 + $0x820] sm:$0xff] %v2520
        %2566 = vst [vmem:[#allocation2 + $0x828] sm:$0xff] %v2522
        %2567 = vst [vmem:[#allocation2 + $0x830] sm:$0xff] %v2524
        %2568 = vst [vmem:[#allocation2 + $0x838] sm:$0xff] %v2526
        %2569 = vst [vmem:[#allocation2 + $0x840] sm:$0xff] %v2528
        %2570 = vst [vmem:[#allocation2 + $0x848] sm:$0xff] %v2530
        %2571 = vst [vmem:[#allocation2 + $0x850] sm:$0xff] %v2532
        %2572 = vst [vmem:[#allocation2 + $0x858] sm:$0xff] %v2534
        %2573 = vst [vmem:[#allocation2 + $0x860] sm:$0xff] %v2536
        %2574 = vst [vmem:[#allocation2 + $0x868] sm:$0xff] %v2538
        %2575 = vst [vmem:[#allocation2 + $0x870] sm:$0xff] %v2540
        %2576 = vst.msk [vmem:[#allocation2 + $0x878] sm:$0xff] %vm209, %v2542
        %v2577 = vld [vmem:[%s148 + $0x8] sm:$0xff]
        %v2578 = vld [vmem:[%s148 + $0x10] sm:$0xff]
        %v2579 = vld [vmem:[%s148 + $0x18] sm:$0xff]
        %v2580 = vld [vmem:[%s148 + $0x20] sm:$0xff]
        %v2581 = vld [vmem:[%s148 + $0x28] sm:$0xff]
        %v2582 = vld [vmem:[%s148 + $0x30] sm:$0xff]
        %v2583 = vld [vmem:[%s148 + $0x38] sm:$0xff]
        %v2584 = vld [vmem:[%s148 + $0x40] sm:$0xff]
        %v2585 = vld [vmem:[%s148 + $0x48] sm:$0xff]
        %v2586 = vld [vmem:[%s148 + $0x50] sm:$0xff]
        %v2587 = vld [vmem:[%s148 + $0x58] sm:$0xff]
        %v2588 = vld [vmem:[%s148 + $0x60] sm:$0xff]
        %v2589 = vld [vmem:[%s148 + $0x68] sm:$0xff]
        %v2590 = vld [vmem:[%s148 + $0x70] sm:$0xff]
        %v2591 = vld [vmem:[%s148 + $0x78] sm:$0xff]
        %v2592 = vld [vmem:[%s148 + $0x80] sm:$0xff]
        %v2593 = vld [vmem:[%s148 + $0x88] sm:$0xff]
        %v2594 = vld [vmem:[%s148 + $0x90] sm:$0xf]
        %2613 = vrot.lane.b32.xlu0 %v2577, 60
        %v2614 = vpop.permute.xlu0 %2613
        %2615 = vrot.lane.b32.xlu0 %v2578, 60
        %v2616 = vpop.permute.xlu0 %2615
        %2617 = vrot.lane.b32.xlu0 %v2579, 60
        %v2618 = vpop.permute.xlu0 %2617
        %2619 = vrot.lane.b32.xlu0 %v2580, 60
        %v2620 = vpop.permute.xlu0 %2619
        %2621 = vrot.lane.b32.xlu0 %v2581, 60
        %v2622 = vpop.permute.xlu0 %2621
        %2623 = vrot.lane.b32.xlu0 %v2582, 60
        %v2624 = vpop.permute.xlu0 %2623
        %2625 = vrot.lane.b32.xlu0 %v2583, 60
        %v2626 = vpop.permute.xlu0 %2625
        %2627 = vrot.lane.b32.xlu0 %v2584, 60
        %v2628 = vpop.permute.xlu0 %2627
        %2629 = vrot.lane.b32.xlu0 %v2585, 60
        %v2630 = vpop.permute.xlu0 %2629
        %2631 = vrot.lane.b32.xlu0 %v2586, 60
        %v2632 = vpop.permute.xlu0 %2631
        %2633 = vrot.lane.b32.xlu0 %v2587, 60
        %v2634 = vpop.permute.xlu0 %2633
        %2635 = vrot.lane.b32.xlu0 %v2588, 60
        %v2636 = vpop.permute.xlu0 %2635
        %2637 = vrot.lane.b32.xlu0 %v2589, 60
        %v2638 = vpop.permute.xlu0 %2637
        %2639 = vrot.lane.b32.xlu0 %v2590, 60
        %v2640 = vpop.permute.xlu0 %2639
        %2641 = vrot.lane.b32.xlu0 %v2591, 60
        %v2642 = vpop.permute.xlu0 %2641
        %2643 = vrot.lane.b32.xlu0 %v2592, 60
        %v2644 = vpop.permute.xlu0 %2643
        %2645 = vrot.lane.b32.xlu0 %v2593, 60
        %v2646 = vpop.permute.xlu0 %2645
        %2647 = vrot.lane.b32.xlu0 %v2594, 60
        %v2648 = vpop.permute.xlu0 %2647
        %v2649 = vrot.slane %v2614, 4
        %v2650 = vrot.slane %v2616, 4
        %v2651 = vrot.slane %v2618, 4
        %v2652 = vrot.slane %v2620, 4
        %v2653 = vrot.slane %v2622, 4
        %v2654 = vrot.slane %v2624, 4
        %v2655 = vrot.slane %v2626, 4
        %v2656 = vrot.slane %v2628, 4
        %v2657 = vrot.slane %v2630, 4
        %v2658 = vrot.slane %v2632, 4
        %v2659 = vrot.slane %v2634, 4
        %v2660 = vrot.slane %v2636, 4
        %v2661 = vrot.slane %v2638, 4
        %v2662 = vrot.slane %v2640, 4
        %v2663 = vrot.slane %v2642, 4
        %v2664 = vrot.slane %v2644, 4
        %v2665 = vrot.slane %v2646, 4
        %v2666 = vrot.slane %v2648, 4
        %v2667 = vsel %vm296, %v2649, %v2650
        %vm2668 = vcmask 490496
        %v2669 = vsel %vm2668, %v2614, %v2667
        %v2670 = vsel %vm296, %v2650, %v2651
        %v2671 = vsel %vm2668, %v2616, %v2670
        %v2672 = vsel %vm296, %v2651, %v2652
        %v2673 = vsel %vm2668, %v2618, %v2672
        %v2674 = vsel %vm296, %v2652, %v2653
        %v2675 = vsel %vm2668, %v2620, %v2674
        %v2676 = vsel %vm296, %v2653, %v2654
        %v2677 = vsel %vm2668, %v2622, %v2676
        %v2678 = vsel %vm296, %v2654, %v2655
        %v2679 = vsel %vm2668, %v2624, %v2678
        %v2680 = vsel %vm296, %v2655, %v2656
        %v2681 = vsel %vm2668, %v2626, %v2680
        %v2682 = vsel %vm296, %v2656, %v2657
        %v2683 = vsel %vm2668, %v2628, %v2682
        %v2684 = vsel %vm296, %v2657, %v2658
        %v2685 = vsel %vm2668, %v2630, %v2684
        %v2686 = vsel %vm296, %v2658, %v2659
        %v2687 = vsel %vm2668, %v2632, %v2686
        %v2688 = vsel %vm296, %v2659, %v2660
        %v2689 = vsel %vm2668, %v2634, %v2688
        %v2690 = vsel %vm296, %v2660, %v2661
        %v2691 = vsel %vm2668, %v2636, %v2690
        %v2692 = vsel %vm296, %v2661, %v2662
        %v2693 = vsel %vm2668, %v2638, %v2692
        %v2694 = vsel %vm296, %v2662, %v2663
        %v2695 = vsel %vm2668, %v2640, %v2694
        %v2696 = vsel %vm296, %v2663, %v2664
        %v2697 = vsel %vm2668, %v2642, %v2696
        %v2698 = vsel %vm296, %v2664, %v2665
        %v2699 = vsel %vm2668, %v2644, %v2698
        %v2700 = vsel %vm296, %v2665, %v2666
        %v2701 = vsel %vm2668, %v2646, %v2700
        %2719 = vst [vmem:[#allocation2 + $0x880] sm:$0xff] %v2669
        %2720 = vst [vmem:[#allocation2 + $0x888] sm:$0xff] %v2671
        %2721 = vst [vmem:[#allocation2 + $0x890] sm:$0xff] %v2673
        %2722 = vst [vmem:[#allocation2 + $0x898] sm:$0xff] %v2675
        %2723 = vst [vmem:[#allocation2 + $0x8a0] sm:$0xff] %v2677
        %2724 = vst [vmem:[#allocation2 + $0x8a8] sm:$0xff] %v2679
        %2725 = vst [vmem:[#allocation2 + $0x8b0] sm:$0xff] %v2681
        %2726 = vst [vmem:[#allocation2 + $0x8b8] sm:$0xff] %v2683
        %2727 = vst [vmem:[#allocation2 + $0x8c0] sm:$0xff] %v2685
        %2728 = vst [vmem:[#allocation2 + $0x8c8] sm:$0xff] %v2687
        %2729 = vst [vmem:[#allocation2 + $0x8d0] sm:$0xff] %v2689
        %2730 = vst [vmem:[#allocation2 + $0x8d8] sm:$0xff] %v2691
        %2731 = vst [vmem:[#allocation2 + $0x8e0] sm:$0xff] %v2693
        %2732 = vst [vmem:[#allocation2 + $0x8e8] sm:$0xff] %v2695
        %2733 = vst [vmem:[#allocation2 + $0x8f0] sm:$0xff] %v2697
        %2734 = vst [vmem:[#allocation2 + $0x8f8] sm:$0xff] %v2699
        %2735 = vst.msk [vmem:[#allocation2 + $0x900] sm:$0xff] %vm209, %v2701
        %v2736 = vld [vmem:[%s148 + $0x8] sm:$0xff]
        %v2737 = vld [vmem:[%s148 + $0x10] sm:$0xff]
        %v2738 = vld [vmem:[%s148 + $0x18] sm:$0xff]
        %v2739 = vld [vmem:[%s148 + $0x20] sm:$0xff]
        %v2740 = vld [vmem:[%s148 + $0x28] sm:$0xff]
        %v2741 = vld [vmem:[%s148 + $0x30] sm:$0xff]
        %v2742 = vld [vmem:[%s148 + $0x38] sm:$0xff]
        %v2743 = vld [vmem:[%s148 + $0x40] sm:$0xff]
        %v2744 = vld [vmem:[%s148 + $0x48] sm:$0xff]
        %v2745 = vld [vmem:[%s148 + $0x50] sm:$0xff]
        %v2746 = vld [vmem:[%s148 + $0x58] sm:$0xff]
        %v2747 = vld [vmem:[%s148 + $0x60] sm:$0xff]
        %v2748 = vld [vmem:[%s148 + $0x68] sm:$0xff]
        %v2749 = vld [vmem:[%s148 + $0x70] sm:$0xff]
        %v2750 = vld [vmem:[%s148 + $0x78] sm:$0xff]
        %v2751 = vld [vmem:[%s148 + $0x80] sm:$0xff]
        %v2752 = vld [vmem:[%s148 + $0x88] sm:$0xff]
        %v2753 = vld [vmem:[%s148 + $0x90] sm:$0xf]
        %2772 = vrot.lane.b32.xlu0 %v2736, 59
        %v2773 = vpop.permute.xlu0 %2772
        %2774 = vrot.lane.b32.xlu0 %v2737, 59
        %v2775 = vpop.permute.xlu0 %2774
        %2776 = vrot.lane.b32.xlu0 %v2738, 59
        %v2777 = vpop.permute.xlu0 %2776
        %2778 = vrot.lane.b32.xlu0 %v2739, 59
        %v2779 = vpop.permute.xlu0 %2778
        %2780 = vrot.lane.b32.xlu0 %v2740, 59
        %v2781 = vpop.permute.xlu0 %2780
        %2782 = vrot.lane.b32.xlu0 %v2741, 59
        %v2783 = vpop.permute.xlu0 %2782
        %2784 = vrot.lane.b32.xlu0 %v2742, 59
        %v2785 = vpop.permute.xlu0 %2784
        %2786 = vrot.lane.b32.xlu0 %v2743, 59
        %v2787 = vpop.permute.xlu0 %2786
        %2788 = vrot.lane.b32.xlu0 %v2744, 59
        %v2789 = vpop.permute.xlu0 %2788
        %2790 = vrot.lane.b32.xlu0 %v2745, 59
        %v2791 = vpop.permute.xlu0 %2790
        %2792 = vrot.lane.b32.xlu0 %v2746, 59
        %v2793 = vpop.permute.xlu0 %2792
        %2794 = vrot.lane.b32.xlu0 %v2747, 59
        %v2795 = vpop.permute.xlu0 %2794
        %2796 = vrot.lane.b32.xlu0 %v2748, 59
        %v2797 = vpop.permute.xlu0 %2796
        %2798 = vrot.lane.b32.xlu0 %v2749, 59
        %v2799 = vpop.permute.xlu0 %2798
        %2800 = vrot.lane.b32.xlu0 %v2750, 59
        %v2801 = vpop.permute.xlu0 %2800
        %2802 = vrot.lane.b32.xlu0 %v2751, 59
        %v2803 = vpop.permute.xlu0 %2802
        %2804 = vrot.lane.b32.xlu0 %v2752, 59
        %v2805 = vpop.permute.xlu0 %2804
        %2806 = vrot.lane.b32.xlu0 %v2753, 59
        %v2807 = vpop.permute.xlu0 %2806
        %v2808 = vrot.slane %v2773, 4
        %v2809 = vrot.slane %v2775, 4
        %v2810 = vrot.slane %v2777, 4
        %v2811 = vrot.slane %v2779, 4
        %v2812 = vrot.slane %v2781, 4
        %v2813 = vrot.slane %v2783, 4
        %v2814 = vrot.slane %v2785, 4
        %v2815 = vrot.slane %v2787, 4
        %v2816 = vrot.slane %v2789, 4
        %v2817 = vrot.slane %v2791, 4
        %v2818 = vrot.slane %v2793, 4
        %v2819 = vrot.slane %v2795, 4
        %v2820 = vrot.slane %v2797, 4
        %v2821 = vrot.slane %v2799, 4
        %v2822 = vrot.slane %v2801, 4
        %v2823 = vrot.slane %v2803, 4
        %v2824 = vrot.slane %v2805, 4
        %v2825 = vrot.slane %v2807, 4
        %v2826 = vsel %vm296, %v2808, %v2809
        %vm2827 = vcmask 482304
        %v2828 = vsel %vm2827, %v2773, %v2826
        %v2829 = vsel %vm296, %v2809, %v2810
        %v2830 = vsel %vm2827, %v2775, %v2829
        %v2831 = vsel %vm296, %v2810, %v2811
        %v2832 = vsel %vm2827, %v2777, %v2831
        %v2833 = vsel %vm296, %v2811, %v2812
        %v2834 = vsel %vm2827, %v2779, %v2833
        %v2835 = vsel %vm296, %v2812, %v2813
        %v2836 = vsel %vm2827, %v2781, %v2835
        %v2837 = vsel %vm296, %v2813, %v2814
        %v2838 = vsel %vm2827, %v2783, %v2837
        %v2839 = vsel %vm296, %v2814, %v2815
        %v2840 = vsel %vm2827, %v2785, %v2839
        %v2841 = vsel %vm296, %v2815, %v2816
        %v2842 = vsel %vm2827, %v2787, %v2841
        %v2843 = vsel %vm296, %v2816, %v2817
        %v2844 = vsel %vm2827, %v2789, %v2843
        %v2845 = vsel %vm296, %v2817, %v2818
        %v2846 = vsel %vm2827, %v2791, %v2845
        %v2847 = vsel %vm296, %v2818, %v2819
        %v2848 = vsel %vm2827, %v2793, %v2847
        %v2849 = vsel %vm296, %v2819, %v2820
        %v2850 = vsel %vm2827, %v2795, %v2849
        %v2851 = vsel %vm296, %v2820, %v2821
        %v2852 = vsel %vm2827, %v2797, %v2851
        %v2853 = vsel %vm296, %v2821, %v2822
        %v2854 = vsel %vm2827, %v2799, %v2853
        %v2855 = vsel %vm296, %v2822, %v2823
        %v2856 = vsel %vm2827, %v2801, %v2855
        %v2857 = vsel %vm296, %v2823, %v2824
        %v2858 = vsel %vm2827, %v2803, %v2857
        %v2859 = vsel %vm296, %v2824, %v2825
        %v2860 = vsel %vm2827, %v2805, %v2859
        %2878 = vst [vmem:[#allocation2 + $0x908] sm:$0xff] %v2828
        %2879 = vst [vmem:[#allocation2 + $0x910] sm:$0xff] %v2830
        %2880 = vst [vmem:[#allocation2 + $0x918] sm:$0xff] %v2832
        %2881 = vst [vmem:[#allocation2 + $0x920] sm:$0xff] %v2834
        %2882 = vst [vmem:[#allocation2 + $0x928] sm:$0xff] %v2836
        %2883 = vst [vmem:[#allocation2 + $0x930] sm:$0xff] %v2838
        %2884 = vst [vmem:[#allocation2 + $0x938] sm:$0xff] %v2840
        %2885 = vst [vmem:[#allocation2 + $0x940] sm:$0xff] %v2842
        %2886 = vst [vmem:[#allocation2 + $0x948] sm:$0xff] %v2844
        %2887 = vst [vmem:[#allocation2 + $0x950] sm:$0xff] %v2846
        %2888 = vst [vmem:[#allocation2 + $0x958] sm:$0xff] %v2848
        %2889 = vst [vmem:[#allocation2 + $0x960] sm:$0xff] %v2850
        %2890 = vst [vmem:[#allocation2 + $0x968] sm:$0xff] %v2852
        %2891 = vst [vmem:[#allocation2 + $0x970] sm:$0xff] %v2854
        %2892 = vst [vmem:[#allocation2 + $0x978] sm:$0xff] %v2856
        %2893 = vst [vmem:[#allocation2 + $0x980] sm:$0xff] %v2858
        %2894 = vst.msk [vmem:[#allocation2 + $0x988] sm:$0xff] %vm209, %v2860
        %v2895 = vld [vmem:[%s148 + $0x10] sm:$0xff]
        %v2896 = vld [vmem:[%s148 + $0x18] sm:$0xff]
        %v2897 = vld [vmem:[%s148 + $0x20] sm:$0xff]
        %v2898 = vld [vmem:[%s148 + $0x28] sm:$0xff]
        %v2899 = vld [vmem:[%s148 + $0x30] sm:$0xff]
        %v2900 = vld [vmem:[%s148 + $0x38] sm:$0xff]
        %v2901 = vld [vmem:[%s148 + $0x40] sm:$0xff]
        %v2902 = vld [vmem:[%s148 + $0x48] sm:$0xff]
        %v2903 = vld [vmem:[%s148 + $0x50] sm:$0xff]
        %v2904 = vld [vmem:[%s148 + $0x58] sm:$0xff]
        %v2905 = vld [vmem:[%s148 + $0x60] sm:$0xff]
        %v2906 = vld [vmem:[%s148 + $0x68] sm:$0xff]
        %v2907 = vld [vmem:[%s148 + $0x70] sm:$0xff]
        %v2908 = vld [vmem:[%s148 + $0x78] sm:$0xff]
        %v2909 = vld [vmem:[%s148 + $0x80] sm:$0xff]
        %v2910 = vld [vmem:[%s148 + $0x88] sm:$0xff]
        %v2911 = vld [vmem:[%s148 + $0x90] sm:$0xff]
        %v2912 = vld [vmem:[%s148 + $0x98] sm:$0xf]
        %2931 = vrot.lane.b32.xlu0 %v2895, 62
        %v2932 = vpop.permute.xlu0 %2931
        %2933 = vrot.lane.b32.xlu0 %v2896, 62
        %v2934 = vpop.permute.xlu0 %2933
        %2935 = vrot.lane.b32.xlu0 %v2897, 62
        %v2936 = vpop.permute.xlu0 %2935
        %2937 = vrot.lane.b32.xlu0 %v2898, 62
        %v2938 = vpop.permute.xlu0 %2937
        %2939 = vrot.lane.b32.xlu0 %v2899, 62
        %v2940 = vpop.permute.xlu0 %2939
        %2941 = vrot.lane.b32.xlu0 %v2900, 62
        %v2942 = vpop.permute.xlu0 %2941
        %2943 = vrot.lane.b32.xlu0 %v2901, 62
        %v2944 = vpop.permute.xlu0 %2943
        %2945 = vrot.lane.b32.xlu0 %v2902, 62
        %v2946 = vpop.permute.xlu0 %2945
        %2947 = vrot.lane.b32.xlu0 %v2903, 62
        %v2948 = vpop.permute.xlu0 %2947
        %2949 = vrot.lane.b32.xlu0 %v2904, 62
        %v2950 = vpop.permute.xlu0 %2949
        %2951 = vrot.lane.b32.xlu0 %v2905, 62
        %v2952 = vpop.permute.xlu0 %2951
        %2953 = vrot.lane.b32.xlu0 %v2906, 62
        %v2954 = vpop.permute.xlu0 %2953
        %2955 = vrot.lane.b32.xlu0 %v2907, 62
        %v2956 = vpop.permute.xlu0 %2955
        %2957 = vrot.lane.b32.xlu0 %v2908, 62
        %v2958 = vpop.permute.xlu0 %2957
        %2959 = vrot.lane.b32.xlu0 %v2909, 62
        %v2960 = vpop.permute.xlu0 %2959
        %2961 = vrot.lane.b32.xlu0 %v2910, 62
        %v2962 = vpop.permute.xlu0 %2961
        %2963 = vrot.lane.b32.xlu0 %v2911, 62
        %v2964 = vpop.permute.xlu0 %2963
        %2965 = vrot.lane.b32.xlu0 %v2912, 62
        %v2966 = vpop.permute.xlu0 %2965
        %v2967 = vrot.slane %v2932, 4
        %v2968 = vrot.slane %v2934, 4
        %v2969 = vrot.slane %v2936, 4
        %v2970 = vrot.slane %v2938, 4
        %v2971 = vrot.slane %v2940, 4
        %v2972 = vrot.slane %v2942, 4
        %v2973 = vrot.slane %v2944, 4
        %v2974 = vrot.slane %v2946, 4
        %v2975 = vrot.slane %v2948, 4
        %v2976 = vrot.slane %v2950, 4
        %v2977 = vrot.slane %v2952, 4
        %v2978 = vrot.slane %v2954, 4
        %v2979 = vrot.slane %v2956, 4
        %v2980 = vrot.slane %v2958, 4
        %v2981 = vrot.slane %v2960, 4
        %v2982 = vrot.slane %v2962, 4
        %v2983 = vrot.slane %v2964, 4
        %v2984 = vrot.slane %v2966, 4
        %v2985 = vsel %vm296, %v2967, %v2968
        %vm2986 = vcmask 506880
        %v2987 = vsel %vm2986, %v2932, %v2985
        %v2988 = vsel %vm296, %v2968, %v2969
        %v2989 = vsel %vm2986, %v2934, %v2988
        %v2990 = vsel %vm296, %v2969, %v2970
        %v2991 = vsel %vm2986, %v2936, %v2990
        %v2992 = vsel %vm296, %v2970, %v2971
        %v2993 = vsel %vm2986, %v2938, %v2992
        %v2994 = vsel %vm296, %v2971, %v2972
        %v2995 = vsel %vm2986, %v2940, %v2994
        %v2996 = vsel %vm296, %v2972, %v2973
        %v2997 = vsel %vm2986, %v2942, %v2996
        %v2998 = vsel %vm296, %v2973, %v2974
        %v2999 = vsel %vm2986, %v2944, %v2998
        %v3000 = vsel %vm296, %v2974, %v2975
        %v3001 = vsel %vm2986, %v2946, %v3000
        %v3002 = vsel %vm296, %v2975, %v2976
        %v3003 = vsel %vm2986, %v2948, %v3002
        %v3004 = vsel %vm296, %v2976, %v2977
        %v3005 = vsel %vm2986, %v2950, %v3004
        %v3006 = vsel %vm296, %v2977, %v2978
        %v3007 = vsel %vm2986, %v2952, %v3006
        %v3008 = vsel %vm296, %v2978, %v2979
        %v3009 = vsel %vm2986, %v2954, %v3008
        %v3010 = vsel %vm296, %v2979, %v2980
        %v3011 = vsel %vm2986, %v2956, %v3010
        %v3012 = vsel %vm296, %v2980, %v2981
        %v3013 = vsel %vm2986, %v2958, %v3012
        %v3014 = vsel %vm296, %v2981, %v2982
        %v3015 = vsel %vm2986, %v2960, %v3014
        %v3016 = vsel %vm296, %v2982, %v2983
        %v3017 = vsel %vm2986, %v2962, %v3016
        %v3018 = vsel %vm296, %v2983, %v2984
        %v3019 = vsel %vm2986, %v2964, %v3018
        %3037 = vst [vmem:[#allocation2 + $0x990] sm:$0xff] %v2987
        %3038 = vst [vmem:[#allocation2 + $0x998] sm:$0xff] %v2989
        %3039 = vst [vmem:[#allocation2 + $0x9a0] sm:$0xff] %v2991
        %3040 = vst [vmem:[#allocation2 + $0x9a8] sm:$0xff] %v2993
        %3041 = vst [vmem:[#allocation2 + $0x9b0] sm:$0xff] %v2995
        %3042 = vst [vmem:[#allocation2 + $0x9b8] sm:$0xff] %v2997
        %3043 = vst [vmem:[#allocation2 + $0x9c0] sm:$0xff] %v2999
        %3044 = vst [vmem:[#allocation2 + $0x9c8] sm:$0xff] %v3001
        %3045 = vst [vmem:[#allocation2 + $0x9d0] sm:$0xff] %v3003
        %3046 = vst [vmem:[#allocation2 + $0x9d8] sm:$0xff] %v3005
        %3047 = vst [vmem:[#allocation2 + $0x9e0] sm:$0xff] %v3007
        %3048 = vst [vmem:[#allocation2 + $0x9e8] sm:$0xff] %v3009
        %3049 = vst [vmem:[#allocation2 + $0x9f0] sm:$0xff] %v3011
        %3050 = vst [vmem:[#allocation2 + $0x9f8] sm:$0xff] %v3013
        %3051 = vst [vmem:[#allocation2 + $0xa00] sm:$0xff] %v3015
        %3052 = vst [vmem:[#allocation2 + $0xa08] sm:$0xff] %v3017
        %3053 = vst.msk [vmem:[#allocation2 + $0xa10] sm:$0xff] %vm209, %v3019
        %v3054 = vld [vmem:[%s148 + $0x10] sm:$0xff]
        %v3055 = vld [vmem:[%s148 + $0x18] sm:$0xff]
        %v3056 = vld [vmem:[%s148 + $0x20] sm:$0xff]
        %v3057 = vld [vmem:[%s148 + $0x28] sm:$0xff]
        %v3058 = vld [vmem:[%s148 + $0x30] sm:$0xff]
        %v3059 = vld [vmem:[%s148 + $0x38] sm:$0xff]
        %v3060 = vld [vmem:[%s148 + $0x40] sm:$0xff]
        %v3061 = vld [vmem:[%s148 + $0x48] sm:$0xff]
        %v3062 = vld [vmem:[%s148 + $0x50] sm:$0xff]
        %v3063 = vld [vmem:[%s148 + $0x58] sm:$0xff]
        %v3064 = vld [vmem:[%s148 + $0x60] sm:$0xff]
        %v3065 = vld [vmem:[%s148 + $0x68] sm:$0xff]
        %v3066 = vld [vmem:[%s148 + $0x70] sm:$0xff]
        %v3067 = vld [vmem:[%s148 + $0x78] sm:$0xff]
        %v3068 = vld [vmem:[%s148 + $0x80] sm:$0xff]
        %v3069 = vld [vmem:[%s148 + $0x88] sm:$0xff]
        %v3070 = vld [vmem:[%s148 + $0x90] sm:$0xff]
        %v3071 = vld [vmem:[%s148 + $0x98] sm:$0xf]
        %3090 = vrot.lane.b32.xlu0 %v3054, 61
        %v3091 = vpop.permute.xlu0 %3090
        %3092 = vrot.lane.b32.xlu0 %v3055, 61
        %v3093 = vpop.permute.xlu0 %3092
        %3094 = vrot.lane.b32.xlu0 %v3056, 61
        %v3095 = vpop.permute.xlu0 %3094
        %3096 = vrot.lane.b32.xlu0 %v3057, 61
        %v3097 = vpop.permute.xlu0 %3096
        %3098 = vrot.lane.b32.xlu0 %v3058, 61
        %v3099 = vpop.permute.xlu0 %3098
        %3100 = vrot.lane.b32.xlu0 %v3059, 61
        %v3101 = vpop.permute.xlu0 %3100
        %3102 = vrot.lane.b32.xlu0 %v3060, 61
        %v3103 = vpop.permute.xlu0 %3102
        %3104 = vrot.lane.b32.xlu0 %v3061, 61
        %v3105 = vpop.permute.xlu0 %3104
        %3106 = vrot.lane.b32.xlu0 %v3062, 61
        %v3107 = vpop.permute.xlu0 %3106
        %3108 = vrot.lane.b32.xlu0 %v3063, 61
        %v3109 = vpop.permute.xlu0 %3108
        %3110 = vrot.lane.b32.xlu0 %v3064, 61
        %v3111 = vpop.permute.xlu0 %3110
        %3112 = vrot.lane.b32.xlu0 %v3065, 61
        %v3113 = vpop.permute.xlu0 %3112
        %3114 = vrot.lane.b32.xlu0 %v3066, 61
        %v3115 = vpop.permute.xlu0 %3114
        %3116 = vrot.lane.b32.xlu0 %v3067, 61
        %v3117 = vpop.permute.xlu0 %3116
        %3118 = vrot.lane.b32.xlu0 %v3068, 61
        %v3119 = vpop.permute.xlu0 %3118
        %3120 = vrot.lane.b32.xlu0 %v3069, 61
        %v3121 = vpop.permute.xlu0 %3120
        %3122 = vrot.lane.b32.xlu0 %v3070, 61
        %v3123 = vpop.permute.xlu0 %3122
        %3124 = vrot.lane.b32.xlu0 %v3071, 61
        %v3125 = vpop.permute.xlu0 %3124
        %v3126 = vrot.slane %v3091, 4
        %v3127 = vrot.slane %v3093, 4
        %v3128 = vrot.slane %v3095, 4
        %v3129 = vrot.slane %v3097, 4
        %v3130 = vrot.slane %v3099, 4
        %v3131 = vrot.slane %v3101, 4
        %v3132 = vrot.slane %v3103, 4
        %v3133 = vrot.slane %v3105, 4
        %v3134 = vrot.slane %v3107, 4
        %v3135 = vrot.slane %v3109, 4
        %v3136 = vrot.slane %v3111, 4
        %v3137 = vrot.slane %v3113, 4
        %v3138 = vrot.slane %v3115, 4
        %v3139 = vrot.slane %v3117, 4
        %v3140 = vrot.slane %v3119, 4
        %v3141 = vrot.slane %v3121, 4
        %v3142 = vrot.slane %v3123, 4
        %v3143 = vrot.slane %v3125, 4
        %v3144 = vsel %vm296, %v3126, %v3127
        %v3145 = vsel %vm2509, %v3091, %v3144
        %v3146 = vsel %vm296, %v3127, %v3128
        %v3147 = vsel %vm2509, %v3093, %v3146
        %v3148 = vsel %vm296, %v3128, %v3129
        %v3149 = vsel %vm2509, %v3095, %v3148
        %v3150 = vsel %vm296, %v3129, %v3130
        %v3151 = vsel %vm2509, %v3097, %v3150
        %v3152 = vsel %vm296, %v3130, %v3131
        %v3153 = vsel %vm2509, %v3099, %v3152
        %v3154 = vsel %vm296, %v3131, %v3132
        %v3155 = vsel %vm2509, %v3101, %v3154
        %v3156 = vsel %vm296, %v3132, %v3133
        %v3157 = vsel %vm2509, %v3103, %v3156
        %v3158 = vsel %vm296, %v3133, %v3134
        %v3159 = vsel %vm2509, %v3105, %v3158
        %v3160 = vsel %vm296, %v3134, %v3135
        %v3161 = vsel %vm2509, %v3107, %v3160
        %v3162 = vsel %vm296, %v3135, %v3136
        %v3163 = vsel %vm2509, %v3109, %v3162
        %v3164 = vsel %vm296, %v3136, %v3137
        %v3165 = vsel %vm2509, %v3111, %v3164
        %v3166 = vsel %vm296, %v3137, %v3138
        %v3167 = vsel %vm2509, %v3113, %v3166
        %v3168 = vsel %vm296, %v3138, %v3139
        %v3169 = vsel %vm2509, %v3115, %v3168
        %v3170 = vsel %vm296, %v3139, %v3140
        %v3171 = vsel %vm2509, %v3117, %v3170
        %v3172 = vsel %vm296, %v3140, %v3141
        %v3173 = vsel %vm2509, %v3119, %v3172
        %v3174 = vsel %vm296, %v3141, %v3142
        %v3175 = vsel %vm2509, %v3121, %v3174
        %v3176 = vsel %vm296, %v3142, %v3143
        %v3177 = vsel %vm2509, %v3123, %v3176
        %3195 = vst [vmem:[#allocation2 + $0xa18] sm:$0xff] %v3145
        %3196 = vst [vmem:[#allocation2 + $0xa20] sm:$0xff] %v3147
        %3197 = vst [vmem:[#allocation2 + $0xa28] sm:$0xff] %v3149
        %3198 = vst [vmem:[#allocation2 + $0xa30] sm:$0xff] %v3151
        %3199 = vst [vmem:[#allocation2 + $0xa38] sm:$0xff] %v3153
        %3200 = vst [vmem:[#allocation2 + $0xa40] sm:$0xff] %v3155
        %3201 = vst [vmem:[#allocation2 + $0xa48] sm:$0xff] %v3157
        %3202 = vst [vmem:[#allocation2 + $0xa50] sm:$0xff] %v3159
        %3203 = vst [vmem:[#allocation2 + $0xa58] sm:$0xff] %v3161
        %3204 = vst [vmem:[#allocation2 + $0xa60] sm:$0xff] %v3163
        %3205 = vst [vmem:[#allocation2 + $0xa68] sm:$0xff] %v3165
        %3206 = vst [vmem:[#allocation2 + $0xa70] sm:$0xff] %v3167
        %3207 = vst [vmem:[#allocation2 + $0xa78] sm:$0xff] %v3169
        %3208 = vst [vmem:[#allocation2 + $0xa80] sm:$0xff] %v3171
        %3209 = vst [vmem:[#allocation2 + $0xa88] sm:$0xff] %v3173
        %3210 = vst [vmem:[#allocation2 + $0xa90] sm:$0xff] %v3175
        %3211 = vst.msk [vmem:[#allocation2 + $0xa98] sm:$0xff] %vm209, %v3177
        %v3212 = vld [vmem:[%s148 + $0x10] sm:$0xff]
        %v3213 = vld [vmem:[%s148 + $0x18] sm:$0xff]
        %v3214 = vld [vmem:[%s148 + $0x20] sm:$0xff]
        %v3215 = vld [vmem:[%s148 + $0x28] sm:$0xff]
        %v3216 = vld [vmem:[%s148 + $0x30] sm:$0xff]
        %v3217 = vld [vmem:[%s148 + $0x38] sm:$0xff]
        %v3218 = vld [vmem:[%s148 + $0x40] sm:$0xff]
        %v3219 = vld [vmem:[%s148 + $0x48] sm:$0xff]
        %v3220 = vld [vmem:[%s148 + $0x50] sm:$0xff]
        %v3221 = vld [vmem:[%s148 + $0x58] sm:$0xff]
        %v3222 = vld [vmem:[%s148 + $0x60] sm:$0xff]
        %v3223 = vld [vmem:[%s148 + $0x68] sm:$0xff]
        %v3224 = vld [vmem:[%s148 + $0x70] sm:$0xff]
        %v3225 = vld [vmem:[%s148 + $0x78] sm:$0xff]
        %v3226 = vld [vmem:[%s148 + $0x80] sm:$0xff]
        %v3227 = vld [vmem:[%s148 + $0x88] sm:$0xff]
        %v3228 = vld [vmem:[%s148 + $0x90] sm:$0xff]
        %v3229 = vld [vmem:[%s148 + $0x98] sm:$0xf]
        %3248 = vrot.lane.b32.xlu0 %v3212, 60
        %v3249 = vpop.permute.xlu0 %3248
        %3250 = vrot.lane.b32.xlu0 %v3213, 60
        %v3251 = vpop.permute.xlu0 %3250
        %3252 = vrot.lane.b32.xlu0 %v3214, 60
        %v3253 = vpop.permute.xlu0 %3252
        %3254 = vrot.lane.b32.xlu0 %v3215, 60
        %v3255 = vpop.permute.xlu0 %3254
        %3256 = vrot.lane.b32.xlu0 %v3216, 60
        %v3257 = vpop.permute.xlu0 %3256
        %3258 = vrot.lane.b32.xlu0 %v3217, 60
        %v3259 = vpop.permute.xlu0 %3258
        %3260 = vrot.lane.b32.xlu0 %v3218, 60
        %v3261 = vpop.permute.xlu0 %3260
        %3262 = vrot.lane.b32.xlu0 %v3219, 60
        %v3263 = vpop.permute.xlu0 %3262
        %3264 = vrot.lane.b32.xlu0 %v3220, 60
        %v3265 = vpop.permute.xlu0 %3264
        %3266 = vrot.lane.b32.xlu0 %v3221, 60
        %v3267 = vpop.permute.xlu0 %3266
        %3268 = vrot.lane.b32.xlu0 %v3222, 60
        %v3269 = vpop.permute.xlu0 %3268
        %3270 = vrot.lane.b32.xlu0 %v3223, 60
        %v3271 = vpop.permute.xlu0 %3270
        %3272 = vrot.lane.b32.xlu0 %v3224, 60
        %v3273 = vpop.permute.xlu0 %3272
        %3274 = vrot.lane.b32.xlu0 %v3225, 60
        %v3275 = vpop.permute.xlu0 %3274
        %3276 = vrot.lane.b32.xlu0 %v3226, 60
        %v3277 = vpop.permute.xlu0 %3276
        %3278 = vrot.lane.b32.xlu0 %v3227, 60
        %v3279 = vpop.permute.xlu0 %3278
        %3280 = vrot.lane.b32.xlu0 %v3228, 60
        %v3281 = vpop.permute.xlu0 %3280
        %3282 = vrot.lane.b32.xlu0 %v3229, 60
        %v3283 = vpop.permute.xlu0 %3282
        %v3284 = vrot.slane %v3249, 4
        %v3285 = vrot.slane %v3251, 4
        %v3286 = vrot.slane %v3253, 4
        %v3287 = vrot.slane %v3255, 4
        %v3288 = vrot.slane %v3257, 4
        %v3289 = vrot.slane %v3259, 4
        %v3290 = vrot.slane %v3261, 4
        %v3291 = vrot.slane %v3263, 4
        %v3292 = vrot.slane %v3265, 4
        %v3293 = vrot.slane %v3267, 4
        %v3294 = vrot.slane %v3269, 4
        %v3295 = vrot.slane %v3271, 4
        %v3296 = vrot.slane %v3273, 4
        %v3297 = vrot.slane %v3275, 4
        %v3298 = vrot.slane %v3277, 4
        %v3299 = vrot.slane %v3279, 4
        %v3300 = vrot.slane %v3281, 4
        %v3301 = vrot.slane %v3283, 4
        %v3302 = vsel %vm296, %v3284, %v3285
        %v3303 = vsel %vm2668, %v3249, %v3302
        %v3304 = vsel %vm296, %v3285, %v3286
        %v3305 = vsel %vm2668, %v3251, %v3304
        %v3306 = vsel %vm296, %v3286, %v3287
        %v3307 = vsel %vm2668, %v3253, %v3306
        %v3308 = vsel %vm296, %v3287, %v3288
        %v3309 = vsel %vm2668, %v3255, %v3308
        %v3310 = vsel %vm296, %v3288, %v3289
        %v3311 = vsel %vm2668, %v3257, %v3310
        %v3312 = vsel %vm296, %v3289, %v3290
        %v3313 = vsel %vm2668, %v3259, %v3312
        %v3314 = vsel %vm296, %v3290, %v3291
        %v3315 = vsel %vm2668, %v3261, %v3314
        %v3316 = vsel %vm296, %v3291, %v3292
        %v3317 = vsel %vm2668, %v3263, %v3316
        %v3318 = vsel %vm296, %v3292, %v3293
        %v3319 = vsel %vm2668, %v3265, %v3318
        %v3320 = vsel %vm296, %v3293, %v3294
        %v3321 = vsel %vm2668, %v3267, %v3320
        %v3322 = vsel %vm296, %v3294, %v3295
        %v3323 = vsel %vm2668, %v3269, %v3322
        %v3324 = vsel %vm296, %v3295, %v3296
        %v3325 = vsel %vm2668, %v3271, %v3324
        %v3326 = vsel %vm296, %v3296, %v3297
        %v3327 = vsel %vm2668, %v3273, %v3326
        %v3328 = vsel %vm296, %v3297, %v3298
        %v3329 = vsel %vm2668, %v3275, %v3328
        %v3330 = vsel %vm296, %v3298, %v3299
        %v3331 = vsel %vm2668, %v3277, %v3330
        %v3332 = vsel %vm296, %v3299, %v3300
        %v3333 = vsel %vm2668, %v3279, %v3332
        %v3334 = vsel %vm296, %v3300, %v3301
        %v3335 = vsel %vm2668, %v3281, %v3334
        %3353 = vst [vmem:[#allocation2 + $0xaa0] sm:$0xff] %v3303
        %3354 = vst [vmem:[#allocation2 + $0xaa8] sm:$0xff] %v3305
        %3355 = vst [vmem:[#allocation2 + $0xab0] sm:$0xff] %v3307
        %3356 = vst [vmem:[#allocation2 + $0xab8] sm:$0xff] %v3309
        %3357 = vst [vmem:[#allocation2 + $0xac0] sm:$0xff] %v3311
        %3358 = vst [vmem:[#allocation2 + $0xac8] sm:$0xff] %v3313
        %3359 = vst [vmem:[#allocation2 + $0xad0] sm:$0xff] %v3315
        %3360 = vst [vmem:[#allocation2 + $0xad8] sm:$0xff] %v3317
        %3361 = vst [vmem:[#allocation2 + $0xae0] sm:$0xff] %v3319
        %3362 = vst [vmem:[#allocation2 + $0xae8] sm:$0xff] %v3321
        %3363 = vst [vmem:[#allocation2 + $0xaf0] sm:$0xff] %v3323
        %3364 = vst [vmem:[#allocation2 + $0xaf8] sm:$0xff] %v3325
        %3365 = vst [vmem:[#allocation2 + $0xb00] sm:$0xff] %v3327
        %3366 = vst [vmem:[#allocation2 + $0xb08] sm:$0xff] %v3329
        %3367 = vst [vmem:[#allocation2 + $0xb10] sm:$0xff] %v3331
        %3368 = vst [vmem:[#allocation2 + $0xb18] sm:$0xff] %v3333
        %3369 = vst.msk [vmem:[#allocation2 + $0xb20] sm:$0xff] %vm209, %v3335
        %v3370 = vld [vmem:[%s148 + $0x10] sm:$0xff]
        %v3371 = vld [vmem:[%s148 + $0x18] sm:$0xff]
        %v3372 = vld [vmem:[%s148 + $0x20] sm:$0xff]
        %v3373 = vld [vmem:[%s148 + $0x28] sm:$0xff]
        %v3374 = vld [vmem:[%s148 + $0x30] sm:$0xff]
        %v3375 = vld [vmem:[%s148 + $0x38] sm:$0xff]
        %v3376 = vld [vmem:[%s148 + $0x40] sm:$0xff]
        %v3377 = vld [vmem:[%s148 + $0x48] sm:$0xff]
        %v3378 = vld [vmem:[%s148 + $0x50] sm:$0xff]
        %v3379 = vld [vmem:[%s148 + $0x58] sm:$0xff]
        %v3380 = vld [vmem:[%s148 + $0x60] sm:$0xff]
        %v3381 = vld [vmem:[%s148 + $0x68] sm:$0xff]
        %v3382 = vld [vmem:[%s148 + $0x70] sm:$0xff]
        %v3383 = vld [vmem:[%s148 + $0x78] sm:$0xff]
        %v3384 = vld [vmem:[%s148 + $0x80] sm:$0xff]
        %v3385 = vld [vmem:[%s148 + $0x88] sm:$0xff]
        %v3386 = vld [vmem:[%s148 + $0x90] sm:$0xff]
        %v3387 = vld [vmem:[%s148 + $0x98] sm:$0xf]
        %3406 = vrot.lane.b32.xlu0 %v3370, 45
        %v3407 = vpop.permute.xlu0 %3406
        %3408 = vrot.lane.b32.xlu0 %v3371, 45
        %v3409 = vpop.permute.xlu0 %3408
        %3410 = vrot.lane.b32.xlu0 %v3372, 45
        %v3411 = vpop.permute.xlu0 %3410
        %3412 = vrot.lane.b32.xlu0 %v3373, 45
        %v3413 = vpop.permute.xlu0 %3412
        %3414 = vrot.lane.b32.xlu0 %v3374, 45
        %v3415 = vpop.permute.xlu0 %3414
        %3416 = vrot.lane.b32.xlu0 %v3375, 45
        %v3417 = vpop.permute.xlu0 %3416
        %3418 = vrot.lane.b32.xlu0 %v3376, 45
        %v3419 = vpop.permute.xlu0 %3418
        %3420 = vrot.lane.b32.xlu0 %v3377, 45
        %v3421 = vpop.permute.xlu0 %3420
        %3422 = vrot.lane.b32.xlu0 %v3378, 45
        %v3423 = vpop.permute.xlu0 %3422
        %3424 = vrot.lane.b32.xlu0 %v3379, 45
        %v3425 = vpop.permute.xlu0 %3424
        %3426 = vrot.lane.b32.xlu0 %v3380, 45
        %v3427 = vpop.permute.xlu0 %3426
        %3428 = vrot.lane.b32.xlu0 %v3381, 45
        %v3429 = vpop.permute.xlu0 %3428
        %3430 = vrot.lane.b32.xlu0 %v3382, 45
        %v3431 = vpop.permute.xlu0 %3430
        %3432 = vrot.lane.b32.xlu0 %v3383, 45
        %v3433 = vpop.permute.xlu0 %3432
        %3434 = vrot.lane.b32.xlu0 %v3384, 45
        %v3435 = vpop.permute.xlu0 %3434
        %3436 = vrot.lane.b32.xlu0 %v3385, 45
        %v3437 = vpop.permute.xlu0 %3436
        %3438 = vrot.lane.b32.xlu0 %v3386, 45
        %v3439 = vpop.permute.xlu0 %3438
        %3440 = vrot.lane.b32.xlu0 %v3387, 45
        %v3441 = vpop.permute.xlu0 %3440
        %v3442 = vrot.slane %v3407, 4
        %v3443 = vrot.slane %v3409, 4
        %v3444 = vrot.slane %v3411, 4
        %v3445 = vrot.slane %v3413, 4
        %v3446 = vrot.slane %v3415, 4
        %v3447 = vrot.slane %v3417, 4
        %v3448 = vrot.slane %v3419, 4
        %v3449 = vrot.slane %v3421, 4
        %v3450 = vrot.slane %v3423, 4
        %v3451 = vrot.slane %v3425, 4
        %v3452 = vrot.slane %v3427, 4
        %v3453 = vrot.slane %v3429, 4
        %v3454 = vrot.slane %v3431, 4
        %v3455 = vrot.slane %v3433, 4
        %v3456 = vrot.slane %v3435, 4
        %v3457 = vrot.slane %v3437, 4
        %v3458 = vrot.slane %v3439, 4
        %v3459 = vrot.slane %v3441, 4
        %v3460 = vsel %vm296, %v3442, %v3443
        %vm3461 = vcmask 367616
        %v3462 = vsel %vm3461, %v3407, %v3460
        %v3463 = vsel %vm296, %v3443, %v3444
        %v3464 = vsel %vm3461, %v3409, %v3463
        %v3465 = vsel %vm296, %v3444, %v3445
        %v3466 = vsel %vm3461, %v3411, %v3465
        %v3467 = vsel %vm296, %v3445, %v3446
        %v3468 = vsel %vm3461, %v3413, %v3467
        %v3469 = vsel %vm296, %v3446, %v3447
        %v3470 = vsel %vm3461, %v3415, %v3469
        %v3471 = vsel %vm296, %v3447, %v3448
        %v3472 = vsel %vm3461, %v3417, %v3471
        %v3473 = vsel %vm296, %v3448, %v3449
        %v3474 = vsel %vm3461, %v3419, %v3473
        %v3475 = vsel %vm296, %v3449, %v3450
        %v3476 = vsel %vm3461, %v3421, %v3475
        %v3477 = vsel %vm296, %v3450, %v3451
        %v3478 = vsel %vm3461, %v3423, %v3477
        %v3479 = vsel %vm296, %v3451, %v3452
        %v3480 = vsel %vm3461, %v3425, %v3479
        %v3481 = vsel %vm296, %v3452, %v3453
        %v3482 = vsel %vm3461, %v3427, %v3481
        %v3483 = vsel %vm296, %v3453, %v3454
        %v3484 = vsel %vm3461, %v3429, %v3483
        %v3485 = vsel %vm296, %v3454, %v3455
        %v3486 = vsel %vm3461, %v3431, %v3485
        %v3487 = vsel %vm296, %v3455, %v3456
        %v3488 = vsel %vm3461, %v3433, %v3487
        %v3489 = vsel %vm296, %v3456, %v3457
        %v3490 = vsel %vm3461, %v3435, %v3489
        %v3491 = vsel %vm296, %v3457, %v3458
        %v3492 = vsel %vm3461, %v3437, %v3491
        %v3493 = vsel %vm296, %v3458, %v3459
        %v3494 = vsel %vm3461, %v3439, %v3493
        %3512 = vst [vmem:[#allocation2 + $0xb28] sm:$0xff] %v3462
        %3513 = vst [vmem:[#allocation2 + $0xb30] sm:$0xff] %v3464
        %3514 = vst [vmem:[#allocation2 + $0xb38] sm:$0xff] %v3466
        %3515 = vst [vmem:[#allocation2 + $0xb40] sm:$0xff] %v3468
        %3516 = vst [vmem:[#allocation2 + $0xb48] sm:$0xff] %v3470
        %3517 = vst [vmem:[#allocation2 + $0xb50] sm:$0xff] %v3472
        %3518 = vst [vmem:[#allocation2 + $0xb58] sm:$0xff] %v3474
        %3519 = vst [vmem:[#allocation2 + $0xb60] sm:$0xff] %v3476
        %3520 = vst [vmem:[#allocation2 + $0xb68] sm:$0xff] %v3478
        %3521 = vst [vmem:[#allocation2 + $0xb70] sm:$0xff] %v3480
        %3522 = vst [vmem:[#allocation2 + $0xb78] sm:$0xff] %v3482
        %3523 = vst [vmem:[#allocation2 + $0xb80] sm:$0xff] %v3484
        %3524 = vst [vmem:[#allocation2 + $0xb88] sm:$0xff] %v3486
        %3525 = vst [vmem:[#allocation2 + $0xb90] sm:$0xff] %v3488
        %3526 = vst [vmem:[#allocation2 + $0xb98] sm:$0xff] %v3490
        %3527 = vst [vmem:[#allocation2 + $0xba0] sm:$0xff] %v3492
        %3528 = vst.msk [vmem:[#allocation2 + $0xba8] sm:$0xff] %vm209, %v3494
        %v3529 = vld [vmem:[%s148 + $0x10] sm:$0xff]
        %v3530 = vld [vmem:[%s148 + $0x18] sm:$0xff]
        %v3531 = vld [vmem:[%s148 + $0x20] sm:$0xff]
        %v3532 = vld [vmem:[%s148 + $0x28] sm:$0xff]
        %v3533 = vld [vmem:[%s148 + $0x30] sm:$0xff]
        %v3534 = vld [vmem:[%s148 + $0x38] sm:$0xff]
        %v3535 = vld [vmem:[%s148 + $0x40] sm:$0xff]
        %v3536 = vld [vmem:[%s148 + $0x48] sm:$0xff]
        %v3537 = vld [vmem:[%s148 + $0x50] sm:$0xff]
        %v3538 = vld [vmem:[%s148 + $0x58] sm:$0xff]
        %v3539 = vld [vmem:[%s148 + $0x60] sm:$0xff]
        %v3540 = vld [vmem:[%s148 + $0x68] sm:$0xff]
        %v3541 = vld [vmem:[%s148 + $0x70] sm:$0xff]
        %v3542 = vld [vmem:[%s148 + $0x78] sm:$0xff]
        %v3543 = vld [vmem:[%s148 + $0x80] sm:$0xff]
        %v3544 = vld [vmem:[%s148 + $0x88] sm:$0xff]
        %v3545 = vld [vmem:[%s148 + $0x90] sm:$0xff]
        %v3546 = vld [vmem:[%s148 + $0x98] sm:$0xf]
        %3565 = vrot.lane.b32.xlu0 %v3529, 44
        %v3566 = vpop.permute.xlu0 %3565
        %3567 = vrot.lane.b32.xlu0 %v3530, 44
        %v3568 = vpop.permute.xlu0 %3567
        %3569 = vrot.lane.b32.xlu0 %v3531, 44
        %v3570 = vpop.permute.xlu0 %3569
        %3571 = vrot.lane.b32.xlu0 %v3532, 44
        %v3572 = vpop.permute.xlu0 %3571
        %3573 = vrot.lane.b32.xlu0 %v3533, 44
        %v3574 = vpop.permute.xlu0 %3573
        %3575 = vrot.lane.b32.xlu0 %v3534, 44
        %v3576 = vpop.permute.xlu0 %3575
        %3577 = vrot.lane.b32.xlu0 %v3535, 44
        %v3578 = vpop.permute.xlu0 %3577
        %3579 = vrot.lane.b32.xlu0 %v3536, 44
        %v3580 = vpop.permute.xlu0 %3579
        %3581 = vrot.lane.b32.xlu0 %v3537, 44
        %v3582 = vpop.permute.xlu0 %3581
        %3583 = vrot.lane.b32.xlu0 %v3538, 44
        %v3584 = vpop.permute.xlu0 %3583
        %3585 = vrot.lane.b32.xlu0 %v3539, 44
        %v3586 = vpop.permute.xlu0 %3585
        %3587 = vrot.lane.b32.xlu0 %v3540, 44
        %v3588 = vpop.permute.xlu0 %3587
        %3589 = vrot.lane.b32.xlu0 %v3541, 44
        %v3590 = vpop.permute.xlu0 %3589
        %3591 = vrot.lane.b32.xlu0 %v3542, 44
        %v3592 = vpop.permute.xlu0 %3591
        %3593 = vrot.lane.b32.xlu0 %v3543, 44
        %v3594 = vpop.permute.xlu0 %3593
        %3595 = vrot.lane.b32.xlu0 %v3544, 44
        %v3596 = vpop.permute.xlu0 %3595
        %3597 = vrot.lane.b32.xlu0 %v3545, 44
        %v3598 = vpop.permute.xlu0 %3597
        %3599 = vrot.lane.b32.xlu0 %v3546, 44
        %v3600 = vpop.permute.xlu0 %3599
        %v3601 = vrot.slane %v3566, 4
        %v3602 = vrot.slane %v3568, 4
        %v3603 = vrot.slane %v3570, 4
        %v3604 = vrot.slane %v3572, 4
        %v3605 = vrot.slane %v3574, 4
        %v3606 = vrot.slane %v3576, 4
        %v3607 = vrot.slane %v3578, 4
        %v3608 = vrot.slane %v3580, 4
        %v3609 = vrot.slane %v3582, 4
        %v3610 = vrot.slane %v3584, 4
        %v3611 = vrot.slane %v3586, 4
        %v3612 = vrot.slane %v3588, 4
        %v3613 = vrot.slane %v3590, 4
        %v3614 = vrot.slane %v3592, 4
        %v3615 = vrot.slane %v3594, 4
        %v3616 = vrot.slane %v3596, 4
        %v3617 = vrot.slane %v3598, 4
        %v3618 = vrot.slane %v3600, 4
        %v3619 = vsel %vm296, %v3601, %v3602
        %vm3620 = vcmask 359424
        %v3621 = vsel %vm3620, %v3566, %v3619
        %v3622 = vsel %vm296, %v3602, %v3603
        %v3623 = vsel %vm3620, %v3568, %v3622
        %v3624 = vsel %vm296, %v3603, %v3604
        %v3625 = vsel %vm3620, %v3570, %v3624
        %v3626 = vsel %vm296, %v3604, %v3605
        %v3627 = vsel %vm3620, %v3572, %v3626
        %v3628 = vsel %vm296, %v3605, %v3606
        %v3629 = vsel %vm3620, %v3574, %v3628
        %v3630 = vsel %vm296, %v3606, %v3607
        %v3631 = vsel %vm3620, %v3576, %v3630
        %v3632 = vsel %vm296, %v3607, %v3608
        %v3633 = vsel %vm3620, %v3578, %v3632
        %v3634 = vsel %vm296, %v3608, %v3609
        %v3635 = vsel %vm3620, %v3580, %v3634
        %v3636 = vsel %vm296, %v3609, %v3610
        %v3637 = vsel %vm3620, %v3582, %v3636
        %v3638 = vsel %vm296, %v3610, %v3611
        %v3639 = vsel %vm3620, %v3584, %v3638
        %v3640 = vsel %vm296, %v3611, %v3612
        %v3641 = vsel %vm3620, %v3586, %v3640
        %v3642 = vsel %vm296, %v3612, %v3613
        %v3643 = vsel %vm3620, %v3588, %v3642
        %v3644 = vsel %vm296, %v3613, %v3614
        %v3645 = vsel %vm3620, %v3590, %v3644
        %v3646 = vsel %vm296, %v3614, %v3615
        %v3647 = vsel %vm3620, %v3592, %v3646
        %v3648 = vsel %vm296, %v3615, %v3616
        %v3649 = vsel %vm3620, %v3594, %v3648
        %v3650 = vsel %vm296, %v3616, %v3617
        %v3651 = vsel %vm3620, %v3596, %v3650
        %v3652 = vsel %vm296, %v3617, %v3618
        %v3653 = vsel %vm3620, %v3598, %v3652
        %3671 = vst [vmem:[#allocation2 + $0xbb0] sm:$0xff] %v3621
        %3672 = vst [vmem:[#allocation2 + $0xbb8] sm:$0xff] %v3623
        %3673 = vst [vmem:[#allocation2 + $0xbc0] sm:$0xff] %v3625
        %3674 = vst [vmem:[#allocation2 + $0xbc8] sm:$0xff] %v3627
        %3675 = vst [vmem:[#allocation2 + $0xbd0] sm:$0xff] %v3629
        %3676 = vst [vmem:[#allocation2 + $0xbd8] sm:$0xff] %v3631
        %3677 = vst [vmem:[#allocation2 + $0xbe0] sm:$0xff] %v3633
        %3678 = vst [vmem:[#allocation2 + $0xbe8] sm:$0xff] %v3635
        %3679 = vst [vmem:[#allocation2 + $0xbf0] sm:$0xff] %v3637
        %3680 = vst [vmem:[#allocation2 + $0xbf8] sm:$0xff] %v3639
        %3681 = vst [vmem:[#allocation2 + $0xc00] sm:$0xff] %v3641
        %3682 = vst [vmem:[#allocation2 + $0xc08] sm:$0xff] %v3643
        %3683 = vst [vmem:[#allocation2 + $0xc10] sm:$0xff] %v3645
        %3684 = vst [vmem:[#allocation2 + $0xc18] sm:$0xff] %v3647
        %3685 = vst [vmem:[#allocation2 + $0xc20] sm:$0xff] %v3649
        %3686 = vst [vmem:[#allocation2 + $0xc28] sm:$0xff] %v3651
        %3687 = vst.msk [vmem:[#allocation2 + $0xc30] sm:$0xff] %vm209, %v3653
        %v3688 = vld [vmem:[%s148 + $0x10] sm:$0xff]
        %v3689 = vld [vmem:[%s148 + $0x18] sm:$0xff]
        %v3690 = vld [vmem:[%s148 + $0x20] sm:$0xff]
        %v3691 = vld [vmem:[%s148 + $0x28] sm:$0xff]
        %v3692 = vld [vmem:[%s148 + $0x30] sm:$0xff]
        %v3693 = vld [vmem:[%s148 + $0x38] sm:$0xff]
        %v3694 = vld [vmem:[%s148 + $0x40] sm:$0xff]
        %v3695 = vld [vmem:[%s148 + $0x48] sm:$0xff]
        %v3696 = vld [vmem:[%s148 + $0x50] sm:$0xff]
        %v3697 = vld [vmem:[%s148 + $0x58] sm:$0xff]
        %v3698 = vld [vmem:[%s148 + $0x60] sm:$0xff]
        %v3699 = vld [vmem:[%s148 + $0x68] sm:$0xff]
        %v3700 = vld [vmem:[%s148 + $0x70] sm:$0xff]
        %v3701 = vld [vmem:[%s148 + $0x78] sm:$0xff]
        %v3702 = vld [vmem:[%s148 + $0x80] sm:$0xff]
        %v3703 = vld [vmem:[%s148 + $0x88] sm:$0xff]
        %v3704 = vld [vmem:[%s148 + $0x90] sm:$0xff]
        %v3705 = vld [vmem:[%s148 + $0x98] sm:$0xf]
        %3724 = vrot.lane.b32.xlu0 %v3688, 43
        %v3725 = vpop.permute.xlu0 %3724
        %3726 = vrot.lane.b32.xlu0 %v3689, 43
        %v3727 = vpop.permute.xlu0 %3726
        %3728 = vrot.lane.b32.xlu0 %v3690, 43
        %v3729 = vpop.permute.xlu0 %3728
        %3730 = vrot.lane.b32.xlu0 %v3691, 43
        %v3731 = vpop.permute.xlu0 %3730
        %3732 = vrot.lane.b32.xlu0 %v3692, 43
        %v3733 = vpop.permute.xlu0 %3732
        %3734 = vrot.lane.b32.xlu0 %v3693, 43
        %v3735 = vpop.permute.xlu0 %3734
        %3736 = vrot.lane.b32.xlu0 %v3694, 43
        %v3737 = vpop.permute.xlu0 %3736
        %3738 = vrot.lane.b32.xlu0 %v3695, 43
        %v3739 = vpop.permute.xlu0 %3738
        %3740 = vrot.lane.b32.xlu0 %v3696, 43
        %v3741 = vpop.permute.xlu0 %3740
        %3742 = vrot.lane.b32.xlu0 %v3697, 43
        %v3743 = vpop.permute.xlu0 %3742
        %3744 = vrot.lane.b32.xlu0 %v3698, 43
        %v3745 = vpop.permute.xlu0 %3744
        %3746 = vrot.lane.b32.xlu0 %v3699, 43
        %v3747 = vpop.permute.xlu0 %3746
        %3748 = vrot.lane.b32.xlu0 %v3700, 43
        %v3749 = vpop.permute.xlu0 %3748
        %3750 = vrot.lane.b32.xlu0 %v3701, 43
        %v3751 = vpop.permute.xlu0 %3750
        %3752 = vrot.lane.b32.xlu0 %v3702, 43
        %v3753 = vpop.permute.xlu0 %3752
        %3754 = vrot.lane.b32.xlu0 %v3703, 43
        %v3755 = vpop.permute.xlu0 %3754
        %3756 = vrot.lane.b32.xlu0 %v3704, 43
        %v3757 = vpop.permute.xlu0 %3756
        %3758 = vrot.lane.b32.xlu0 %v3705, 43
        %v3759 = vpop.permute.xlu0 %3758
        %v3760 = vrot.slane %v3725, 4
        %v3761 = vrot.slane %v3727, 4
        %v3762 = vrot.slane %v3729, 4
        %v3763 = vrot.slane %v3731, 4
        %v3764 = vrot.slane %v3733, 4
        %v3765 = vrot.slane %v3735, 4
        %v3766 = vrot.slane %v3737, 4
        %v3767 = vrot.slane %v3739, 4
        %v3768 = vrot.slane %v3741, 4
        %v3769 = vrot.slane %v3743, 4
        %v3770 = vrot.slane %v3745, 4
        %v3771 = vrot.slane %v3747, 4
        %v3772 = vrot.slane %v3749, 4
        %v3773 = vrot.slane %v3751, 4
        %v3774 = vrot.slane %v3753, 4
        %v3775 = vrot.slane %v3755, 4
        %v3776 = vrot.slane %v3757, 4
        %v3777 = vrot.slane %v3759, 4
        %v3778 = vsel %vm296, %v3760, %v3761
        %vm3779 = vcmask 351232
        %v3780 = vsel %vm3779, %v3725, %v3778
        %v3781 = vsel %vm296, %v3761, %v3762
        %v3782 = vsel %vm3779, %v3727, %v3781
        %v3783 = vsel %vm296, %v3762, %v3763
        %v3784 = vsel %vm3779, %v3729, %v3783
        %v3785 = vsel %vm296, %v3763, %v3764
        %v3786 = vsel %vm3779, %v3731, %v3785
        %v3787 = vsel %vm296, %v3764, %v3765
        %v3788 = vsel %vm3779, %v3733, %v3787
        %v3789 = vsel %vm296, %v3765, %v3766
        %v3790 = vsel %vm3779, %v3735, %v3789
        %v3791 = vsel %vm296, %v3766, %v3767
        %v3792 = vsel %vm3779, %v3737, %v3791
        %v3793 = vsel %vm296, %v3767, %v3768
        %v3794 = vsel %vm3779, %v3739, %v3793
        %v3795 = vsel %vm296, %v3768, %v3769
        %v3796 = vsel %vm3779, %v3741, %v3795
        %v3797 = vsel %vm296, %v3769, %v3770
        %v3798 = vsel %vm3779, %v3743, %v3797
        %v3799 = vsel %vm296, %v3770, %v3771
        %v3800 = vsel %vm3779, %v3745, %v3799
        %v3801 = vsel %vm296, %v3771, %v3772
        %v3802 = vsel %vm3779, %v3747, %v3801
        %v3803 = vsel %vm296, %v3772, %v3773
        %v3804 = vsel %vm3779, %v3749, %v3803
        %v3805 = vsel %vm296, %v3773, %v3774
        %v3806 = vsel %vm3779, %v3751, %v3805
        %v3807 = vsel %vm296, %v3774, %v3775
        %v3808 = vsel %vm3779, %v3753, %v3807
        %v3809 = vsel %vm296, %v3775, %v3776
        %v3810 = vsel %vm3779, %v3755, %v3809
        %v3811 = vsel %vm296, %v3776, %v3777
        %v3812 = vsel %vm3779, %v3757, %v3811
        %3830 = vst [vmem:[#allocation2 + $0xc38] sm:$0xff] %v3780
        %3831 = vst [vmem:[#allocation2 + $0xc40] sm:$0xff] %v3782
        %3832 = vst [vmem:[#allocation2 + $0xc48] sm:$0xff] %v3784
        %3833 = vst [vmem:[#allocation2 + $0xc50] sm:$0xff] %v3786
        %3834 = vst [vmem:[#allocation2 + $0xc58] sm:$0xff] %v3788
        %3835 = vst [vmem:[#allocation2 + $0xc60] sm:$0xff] %v3790
        %3836 = vst [vmem:[#allocation2 + $0xc68] sm:$0xff] %v3792
        %3837 = vst [vmem:[#allocation2 + $0xc70] sm:$0xff] %v3794
        %3838 = vst [vmem:[#allocation2 + $0xc78] sm:$0xff] %v3796
        %3839 = vst [vmem:[#allocation2 + $0xc80] sm:$0xff] %v3798
        %3840 = vst [vmem:[#allocation2 + $0xc88] sm:$0xff] %v3800
        %3841 = vst [vmem:[#allocation2 + $0xc90] sm:$0xff] %v3802
        %3842 = vst [vmem:[#allocation2 + $0xc98] sm:$0xff] %v3804
        %3843 = vst [vmem:[#allocation2 + $0xca0] sm:$0xff] %v3806
        %3844 = vst [vmem:[#allocation2 + $0xca8] sm:$0xff] %v3808
        %3845 = vst [vmem:[#allocation2 + $0xcb0] sm:$0xff] %v3810
        %3846 = vst.msk [vmem:[#allocation2 + $0xcb8] sm:$0xff] %vm209, %v3812
        %v3847 = vld [vmem:[%s148 + $0x10] sm:$0xff]
        %v3848 = vld [vmem:[%s148 + $0x18] sm:$0xff]
        %v3849 = vld [vmem:[%s148 + $0x20] sm:$0xff]
        %v3850 = vld [vmem:[%s148 + $0x28] sm:$0xff]
        %v3851 = vld [vmem:[%s148 + $0x30] sm:$0xff]
        %v3852 = vld [vmem:[%s148 + $0x38] sm:$0xff]
        %v3853 = vld [vmem:[%s148 + $0x40] sm:$0xff]
        %v3854 = vld [vmem:[%s148 + $0x48] sm:$0xff]
        %v3855 = vld [vmem:[%s148 + $0x50] sm:$0xff]
        %v3856 = vld [vmem:[%s148 + $0x58] sm:$0xff]
        %v3857 = vld [vmem:[%s148 + $0x60] sm:$0xff]
        %v3858 = vld [vmem:[%s148 + $0x68] sm:$0xff]
        %v3859 = vld [vmem:[%s148 + $0x70] sm:$0xff]
        %v3860 = vld [vmem:[%s148 + $0x78] sm:$0xff]
        %v3861 = vld [vmem:[%s148 + $0x80] sm:$0xff]
        %v3862 = vld [vmem:[%s148 + $0x88] sm:$0xff]
        %v3863 = vld [vmem:[%s148 + $0x90] sm:$0xff]
        %v3864 = vld [vmem:[%s148 + $0x98] sm:$0xf]
        %3883 = vrot.lane.b32.xlu0 %v3847, 28
        %v3884 = vpop.permute.xlu0 %3883
        %3885 = vrot.lane.b32.xlu0 %v3848, 28
        %v3886 = vpop.permute.xlu0 %3885
        %3887 = vrot.lane.b32.xlu0 %v3849, 28
        %v3888 = vpop.permute.xlu0 %3887
        %3889 = vrot.lane.b32.xlu0 %v3850, 28
        %v3890 = vpop.permute.xlu0 %3889
        %3891 = vrot.lane.b32.xlu0 %v3851, 28
        %v3892 = vpop.permute.xlu0 %3891
        %3893 = vrot.lane.b32.xlu0 %v3852, 28
        %v3894 = vpop.permute.xlu0 %3893
        %3895 = vrot.lane.b32.xlu0 %v3853, 28
        %v3896 = vpop.permute.xlu0 %3895
        %3897 = vrot.lane.b32.xlu0 %v3854, 28
        %v3898 = vpop.permute.xlu0 %3897
        %3899 = vrot.lane.b32.xlu0 %v3855, 28
        %v3900 = vpop.permute.xlu0 %3899
        %3901 = vrot.lane.b32.xlu0 %v3856, 28
        %v3902 = vpop.permute.xlu0 %3901
        %3903 = vrot.lane.b32.xlu0 %v3857, 28
        %v3904 = vpop.permute.xlu0 %3903
        %3905 = vrot.lane.b32.xlu0 %v3858, 28
        %v3906 = vpop.permute.xlu0 %3905
        %3907 = vrot.lane.b32.xlu0 %v3859, 28
        %v3908 = vpop.permute.xlu0 %3907
        %3909 = vrot.lane.b32.xlu0 %v3860, 28
        %v3910 = vpop.permute.xlu0 %3909
        %3911 = vrot.lane.b32.xlu0 %v3861, 28
        %v3912 = vpop.permute.xlu0 %3911
        %3913 = vrot.lane.b32.xlu0 %v3862, 28
        %v3914 = vpop.permute.xlu0 %3913
        %3915 = vrot.lane.b32.xlu0 %v3863, 28
        %v3916 = vpop.permute.xlu0 %3915
        %3917 = vrot.lane.b32.xlu0 %v3864, 28
        %v3918 = vpop.permute.xlu0 %3917
        %v3919 = vrot.slane %v3884, 4
        %v3920 = vrot.slane %v3886, 4
        %v3921 = vrot.slane %v3888, 4
        %v3922 = vrot.slane %v3890, 4
        %v3923 = vrot.slane %v3892, 4
        %v3924 = vrot.slane %v3894, 4
        %v3925 = vrot.slane %v3896, 4
        %v3926 = vrot.slane %v3898, 4
        %v3927 = vrot.slane %v3900, 4
        %v3928 = vrot.slane %v3902, 4
        %v3929 = vrot.slane %v3904, 4
        %v3930 = vrot.slane %v3906, 4
        %v3931 = vrot.slane %v3908, 4
        %v3932 = vrot.slane %v3910, 4
        %v3933 = vrot.slane %v3912, 4
        %v3934 = vrot.slane %v3914, 4
        %v3935 = vrot.slane %v3916, 4
        %v3936 = vrot.slane %v3918, 4
        %v3937 = vsel %vm296, %v3919, %v3920
        %vm3938 = vcmask 228352
        %v3939 = vsel %vm3938, %v3884, %v3937
        %v3940 = vsel %vm296, %v3920, %v3921
        %v3941 = vsel %vm3938, %v3886, %v3940
        %v3942 = vsel %vm296, %v3921, %v3922
        %v3943 = vsel %vm3938, %v3888, %v3942
        %v3944 = vsel %vm296, %v3922, %v3923
        %v3945 = vsel %vm3938, %v3890, %v3944
        %v3946 = vsel %vm296, %v3923, %v3924
        %v3947 = vsel %vm3938, %v3892, %v3946
        %v3948 = vsel %vm296, %v3924, %v3925
        %v3949 = vsel %vm3938, %v3894, %v3948
        %v3950 = vsel %vm296, %v3925, %v3926
        %v3951 = vsel %vm3938, %v3896, %v3950
        %v3952 = vsel %vm296, %v3926, %v3927
        %v3953 = vsel %vm3938, %v3898, %v3952
        %v3954 = vsel %vm296, %v3927, %v3928
        %v3955 = vsel %vm3938, %v3900, %v3954
        %v3956 = vsel %vm296, %v3928, %v3929
        %v3957 = vsel %vm3938, %v3902, %v3956
        %v3958 = vsel %vm296, %v3929, %v3930
        %v3959 = vsel %vm3938, %v3904, %v3958
        %v3960 = vsel %vm296, %v3930, %v3931
        %v3961 = vsel %vm3938, %v3906, %v3960
        %v3962 = vsel %vm296, %v3931, %v3932
        %v3963 = vsel %vm3938, %v3908, %v3962
        %v3964 = vsel %vm296, %v3932, %v3933
        %v3965 = vsel %vm3938, %v3910, %v3964
        %v3966 = vsel %vm296, %v3933, %v3934
        %v3967 = vsel %vm3938, %v3912, %v3966
        %v3968 = vsel %vm296, %v3934, %v3935
        %v3969 = vsel %vm3938, %v3914, %v3968
        %v3970 = vsel %vm296, %v3935, %v3936
        %v3971 = vsel %vm3938, %v3916, %v3970
        %3989 = vst [vmem:[#allocation2 + $0xcc0] sm:$0xff] %v3939
        %3990 = vst [vmem:[#allocation2 + $0xcc8] sm:$0xff] %v3941
        %3991 = vst [vmem:[#allocation2 + $0xcd0] sm:$0xff] %v3943
        %3992 = vst [vmem:[#allocation2 + $0xcd8] sm:$0xff] %v3945
        %3993 = vst [vmem:[#allocation2 + $0xce0] sm:$0xff] %v3947
        %3994 = vst [vmem:[#allocation2 + $0xce8] sm:$0xff] %v3949
        %3995 = vst [vmem:[#allocation2 + $0xcf0] sm:$0xff] %v3951
        %3996 = vst [vmem:[#allocation2 + $0xcf8] sm:$0xff] %v3953
        %3997 = vst [vmem:[#allocation2 + $0xd00] sm:$0xff] %v3955
        %3998 = vst [vmem:[#allocation2 + $0xd08] sm:$0xff] %v3957
        %3999 = vst [vmem:[#allocation2 + $0xd10] sm:$0xff] %v3959
        %4000 = vst [vmem:[#allocation2 + $0xd18] sm:$0xff] %v3961
        %4001 = vst [vmem:[#allocation2 + $0xd20] sm:$0xff] %v3963
        %4002 = vst [vmem:[#allocation2 + $0xd28] sm:$0xff] %v3965
        %4003 = vst [vmem:[#allocation2 + $0xd30] sm:$0xff] %v3967
        %4004 = vst [vmem:[#allocation2 + $0xd38] sm:$0xff] %v3969
        %4005 = vst.msk [vmem:[#allocation2 + $0xd40] sm:$0xff] %vm209, %v3971
        %v4006 = vld [vmem:[%s148 + $0x10] sm:$0xff]
        %v4007 = vld [vmem:[%s148 + $0x18] sm:$0xff]
        %v4008 = vld [vmem:[%s148 + $0x20] sm:$0xff]
        %v4009 = vld [vmem:[%s148 + $0x28] sm:$0xff]
        %v4010 = vld [vmem:[%s148 + $0x30] sm:$0xff]
        %v4011 = vld [vmem:[%s148 + $0x38] sm:$0xff]
        %v4012 = vld [vmem:[%s148 + $0x40] sm:$0xff]
        %v4013 = vld [vmem:[%s148 + $0x48] sm:$0xff]
        %v4014 = vld [vmem:[%s148 + $0x50] sm:$0xff]
        %v4015 = vld [vmem:[%s148 + $0x58] sm:$0xff]
        %v4016 = vld [vmem:[%s148 + $0x60] sm:$0xff]
        %v4017 = vld [vmem:[%s148 + $0x68] sm:$0xff]
        %v4018 = vld [vmem:[%s148 + $0x70] sm:$0xff]
        %v4019 = vld [vmem:[%s148 + $0x78] sm:$0xff]
        %v4020 = vld [vmem:[%s148 + $0x80] sm:$0xff]
        %v4021 = vld [vmem:[%s148 + $0x88] sm:$0xff]
        %v4022 = vld [vmem:[%s148 + $0x90] sm:$0xff]
        %v4023 = vld [vmem:[%s148 + $0x98] sm:$0xf]
        %4042 = vrot.lane.b32.xlu0 %v4006, 27
        %v4043 = vpop.permute.xlu0 %4042
        %4044 = vrot.lane.b32.xlu0 %v4007, 27
        %v4045 = vpop.permute.xlu0 %4044
        %4046 = vrot.lane.b32.xlu0 %v4008, 27
        %v4047 = vpop.permute.xlu0 %4046
        %4048 = vrot.lane.b32.xlu0 %v4009, 27
        %v4049 = vpop.permute.xlu0 %4048
        %4050 = vrot.lane.b32.xlu0 %v4010, 27
        %v4051 = vpop.permute.xlu0 %4050
        %4052 = vrot.lane.b32.xlu0 %v4011, 27
        %v4053 = vpop.permute.xlu0 %4052
        %4054 = vrot.lane.b32.xlu0 %v4012, 27
        %v4055 = vpop.permute.xlu0 %4054
        %4056 = vrot.lane.b32.xlu0 %v4013, 27
        %v4057 = vpop.permute.xlu0 %4056
        %4058 = vrot.lane.b32.xlu0 %v4014, 27
        %v4059 = vpop.permute.xlu0 %4058
        %4060 = vrot.lane.b32.xlu0 %v4015, 27
        %v4061 = vpop.permute.xlu0 %4060
        %4062 = vrot.lane.b32.xlu0 %v4016, 27
        %v4063 = vpop.permute.xlu0 %4062
        %4064 = vrot.lane.b32.xlu0 %v4017, 27
        %v4065 = vpop.permute.xlu0 %4064
        %4066 = vrot.lane.b32.xlu0 %v4018, 27
        %v4067 = vpop.permute.xlu0 %4066
        %4068 = vrot.lane.b32.xlu0 %v4019, 27
        %v4069 = vpop.permute.xlu0 %4068
        %4070 = vrot.lane.b32.xlu0 %v4020, 27
        %v4071 = vpop.permute.xlu0 %4070
        %4072 = vrot.lane.b32.xlu0 %v4021, 27
        %v4073 = vpop.permute.xlu0 %4072
        %4074 = vrot.lane.b32.xlu0 %v4022, 27
        %v4075 = vpop.permute.xlu0 %4074
        %4076 = vrot.lane.b32.xlu0 %v4023, 27
        %v4077 = vpop.permute.xlu0 %4076
        %v4078 = vrot.slane %v4043, 4
        %v4079 = vrot.slane %v4045, 4
        %v4080 = vrot.slane %v4047, 4
        %v4081 = vrot.slane %v4049, 4
        %v4082 = vrot.slane %v4051, 4
        %v4083 = vrot.slane %v4053, 4
        %v4084 = vrot.slane %v4055, 4
        %v4085 = vrot.slane %v4057, 4
        %v4086 = vrot.slane %v4059, 4
        %v4087 = vrot.slane %v4061, 4
        %v4088 = vrot.slane %v4063, 4
        %v4089 = vrot.slane %v4065, 4
        %v4090 = vrot.slane %v4067, 4
        %v4091 = vrot.slane %v4069, 4
        %v4092 = vrot.slane %v4071, 4
        %v4093 = vrot.slane %v4073, 4
        %v4094 = vrot.slane %v4075, 4
        %v4095 = vrot.slane %v4077, 4
        %v4096 = vsel %vm296, %v4078, %v4079
        %vm4097 = vcmask 220160
        %v4098 = vsel %vm4097, %v4043, %v4096
        %v4099 = vsel %vm296, %v4079, %v4080
        %v4100 = vsel %vm4097, %v4045, %v4099
        %v4101 = vsel %vm296, %v4080, %v4081
        %v4102 = vsel %vm4097, %v4047, %v4101
        %v4103 = vsel %vm296, %v4081, %v4082
        %v4104 = vsel %vm4097, %v4049, %v4103
        %v4105 = vsel %vm296, %v4082, %v4083
        %v4106 = vsel %vm4097, %v4051, %v4105
        %v4107 = vsel %vm296, %v4083, %v4084
        %v4108 = vsel %vm4097, %v4053, %v4107
        %v4109 = vsel %vm296, %v4084, %v4085
        %v4110 = vsel %vm4097, %v4055, %v4109
        %v4111 = vsel %vm296, %v4085, %v4086
        %v4112 = vsel %vm4097, %v4057, %v4111
        %v4113 = vsel %vm296, %v4086, %v4087
        %v4114 = vsel %vm4097, %v4059, %v4113
        %v4115 = vsel %vm296, %v4087, %v4088
        %v4116 = vsel %vm4097, %v4061, %v4115
        %v4117 = vsel %vm296, %v4088, %v4089
        %v4118 = vsel %vm4097, %v4063, %v4117
        %v4119 = vsel %vm296, %v4089, %v4090
        %v4120 = vsel %vm4097, %v4065, %v4119
        %v4121 = vsel %vm296, %v4090, %v4091
        %v4122 = vsel %vm4097, %v4067, %v4121
        %v4123 = vsel %vm296, %v4091, %v4092
        %v4124 = vsel %vm4097, %v4069, %v4123
        %v4125 = vsel %vm296, %v4092, %v4093
        %v4126 = vsel %vm4097, %v4071, %v4125
        %v4127 = vsel %vm296, %v4093, %v4094
        %v4128 = vsel %vm4097, %v4073, %v4127
        %v4129 = vsel %vm296, %v4094, %v4095
        %v4130 = vsel %vm4097, %v4075, %v4129
        %4148 = vst [vmem:[#allocation2 + $0xd48] sm:$0xff] %v4098
        %4149 = vst [vmem:[#allocation2 + $0xd50] sm:$0xff] %v4100
        %4150 = vst [vmem:[#allocation2 + $0xd58] sm:$0xff] %v4102
        %4151 = vst [vmem:[#allocation2 + $0xd60] sm:$0xff] %v4104
        %4152 = vst [vmem:[#allocation2 + $0xd68] sm:$0xff] %v4106
        %4153 = vst [vmem:[#allocation2 + $0xd70] sm:$0xff] %v4108
        %4154 = vst [vmem:[#allocation2 + $0xd78] sm:$0xff] %v4110
        %4155 = vst [vmem:[#allocation2 + $0xd80] sm:$0xff] %v4112
        %4156 = vst [vmem:[#allocation2 + $0xd88] sm:$0xff] %v4114
        %4157 = vst [vmem:[#allocation2 + $0xd90] sm:$0xff] %v4116
        %4158 = vst [vmem:[#allocation2 + $0xd98] sm:$0xff] %v4118
        %4159 = vst [vmem:[#allocation2 + $0xda0] sm:$0xff] %v4120
        %4160 = vst [vmem:[#allocation2 + $0xda8] sm:$0xff] %v4122
        %4161 = vst [vmem:[#allocation2 + $0xdb0] sm:$0xff] %v4124
        %4162 = vst [vmem:[#allocation2 + $0xdb8] sm:$0xff] %v4126
        %4163 = vst [vmem:[#allocation2 + $0xdc0] sm:$0xff] %v4128
        %4164 = vst.msk [vmem:[#allocation2 + $0xdc8] sm:$0xff] %vm209, %v4130
        %v4165 = vld [vmem:[%s148 + $0x10] sm:$0xff]
        %v4166 = vld [vmem:[%s148 + $0x18] sm:$0xff]
        %v4167 = vld [vmem:[%s148 + $0x20] sm:$0xff]
        %v4168 = vld [vmem:[%s148 + $0x28] sm:$0xff]
        %v4169 = vld [vmem:[%s148 + $0x30] sm:$0xff]
        %v4170 = vld [vmem:[%s148 + $0x38] sm:$0xff]
        %v4171 = vld [vmem:[%s148 + $0x40] sm:$0xff]
        %v4172 = vld [vmem:[%s148 + $0x48] sm:$0xff]
        %v4173 = vld [vmem:[%s148 + $0x50] sm:$0xff]
        %v4174 = vld [vmem:[%s148 + $0x58] sm:$0xff]
        %v4175 = vld [vmem:[%s148 + $0x60] sm:$0xff]
        %v4176 = vld [vmem:[%s148 + $0x68] sm:$0xff]
        %v4177 = vld [vmem:[%s148 + $0x70] sm:$0xff]
        %v4178 = vld [vmem:[%s148 + $0x78] sm:$0xff]
        %v4179 = vld [vmem:[%s148 + $0x80] sm:$0xff]
        %v4180 = vld [vmem:[%s148 + $0x88] sm:$0xff]
        %v4181 = vld [vmem:[%s148 + $0x90] sm:$0xff]
        %v4182 = vld [vmem:[%s148 + $0x98] sm:$0xf]
        %4201 = vrot.lane.b32.xlu0 %v4165, 26
        %v4202 = vpop.permute.xlu0 %4201
        %4203 = vrot.lane.b32.xlu0 %v4166, 26
        %v4204 = vpop.permute.xlu0 %4203
        %4205 = vrot.lane.b32.xlu0 %v4167, 26
        %v4206 = vpop.permute.xlu0 %4205
        %4207 = vrot.lane.b32.xlu0 %v4168, 26
        %v4208 = vpop.permute.xlu0 %4207
        %4209 = vrot.lane.b32.xlu0 %v4169, 26
        %v4210 = vpop.permute.xlu0 %4209
        %4211 = vrot.lane.b32.xlu0 %v4170, 26
        %v4212 = vpop.permute.xlu0 %4211
        %4213 = vrot.lane.b32.xlu0 %v4171, 26
        %v4214 = vpop.permute.xlu0 %4213
        %4215 = vrot.lane.b32.xlu0 %v4172, 26
        %v4216 = vpop.permute.xlu0 %4215
        %4217 = vrot.lane.b32.xlu0 %v4173, 26
        %v4218 = vpop.permute.xlu0 %4217
        %4219 = vrot.lane.b32.xlu0 %v4174, 26
        %v4220 = vpop.permute.xlu0 %4219
        %4221 = vrot.lane.b32.xlu0 %v4175, 26
        %v4222 = vpop.permute.xlu0 %4221
        %4223 = vrot.lane.b32.xlu0 %v4176, 26
        %v4224 = vpop.permute.xlu0 %4223
        %4225 = vrot.lane.b32.xlu0 %v4177, 26
        %v4226 = vpop.permute.xlu0 %4225
        %4227 = vrot.lane.b32.xlu0 %v4178, 26
        %v4228 = vpop.permute.xlu0 %4227
        %4229 = vrot.lane.b32.xlu0 %v4179, 26
        %v4230 = vpop.permute.xlu0 %4229
        %4231 = vrot.lane.b32.xlu0 %v4180, 26
        %v4232 = vpop.permute.xlu0 %4231
        %4233 = vrot.lane.b32.xlu0 %v4181, 26
        %v4234 = vpop.permute.xlu0 %4233
        %4235 = vrot.lane.b32.xlu0 %v4182, 26
        %v4236 = vpop.permute.xlu0 %4235
        %v4237 = vrot.slane %v4202, 4
        %v4238 = vrot.slane %v4204, 4
        %v4239 = vrot.slane %v4206, 4
        %v4240 = vrot.slane %v4208, 4
        %v4241 = vrot.slane %v4210, 4
        %v4242 = vrot.slane %v4212, 4
        %v4243 = vrot.slane %v4214, 4
        %v4244 = vrot.slane %v4216, 4
        %v4245 = vrot.slane %v4218, 4
        %v4246 = vrot.slane %v4220, 4
        %v4247 = vrot.slane %v4222, 4
        %v4248 = vrot.slane %v4224, 4
        %v4249 = vrot.slane %v4226, 4
        %v4250 = vrot.slane %v4228, 4
        %v4251 = vrot.slane %v4230, 4
        %v4252 = vrot.slane %v4232, 4
        %v4253 = vrot.slane %v4234, 4
        %v4254 = vrot.slane %v4236, 4
        %v4255 = vsel %vm296, %v4237, %v4238
        %vm4256 = vcmask 211968
        %v4257 = vsel %vm4256, %v4202, %v4255
        %v4258 = vsel %vm296, %v4238, %v4239
        %v4259 = vsel %vm4256, %v4204, %v4258
        %v4260 = vsel %vm296, %v4239, %v4240
        %v4261 = vsel %vm4256, %v4206, %v4260
        %v4262 = vsel %vm296, %v4240, %v4241
        %v4263 = vsel %vm4256, %v4208, %v4262
        %v4264 = vsel %vm296, %v4241, %v4242
        %v4265 = vsel %vm4256, %v4210, %v4264
        %v4266 = vsel %vm296, %v4242, %v4243
        %v4267 = vsel %vm4256, %v4212, %v4266
        %v4268 = vsel %vm296, %v4243, %v4244
        %v4269 = vsel %vm4256, %v4214, %v4268
        %v4270 = vsel %vm296, %v4244, %v4245
        %v4271 = vsel %vm4256, %v4216, %v4270
        %v4272 = vsel %vm296, %v4245, %v4246
        %v4273 = vsel %vm4256, %v4218, %v4272
        %v4274 = vsel %vm296, %v4246, %v4247
        %v4275 = vsel %vm4256, %v4220, %v4274
        %v4276 = vsel %vm296, %v4247, %v4248
        %v4277 = vsel %vm4256, %v4222, %v4276
        %v4278 = vsel %vm296, %v4248, %v4249
        %v4279 = vsel %vm4256, %v4224, %v4278
        %v4280 = vsel %vm296, %v4249, %v4250
        %v4281 = vsel %vm4256, %v4226, %v4280
        %v4282 = vsel %vm296, %v4250, %v4251
        %v4283 = vsel %vm4256, %v4228, %v4282
        %v4284 = vsel %vm296, %v4251, %v4252
        %v4285 = vsel %vm4256, %v4230, %v4284
        %v4286 = vsel %vm296, %v4252, %v4253
        %v4287 = vsel %vm4256, %v4232, %v4286
        %v4288 = vsel %vm296, %v4253, %v4254
        %v4289 = vsel %vm4256, %v4234, %v4288
        %4307 = vst [vmem:[#allocation2 + $0xdd0] sm:$0xff] %v4257
        %4308 = vst [vmem:[#allocation2 + $0xdd8] sm:$0xff] %v4259
        %4309 = vst [vmem:[#allocation2 + $0xde0] sm:$0xff] %v4261
        %4310 = vst [vmem:[#allocation2 + $0xde8] sm:$0xff] %v4263
        %4311 = vst [vmem:[#allocation2 + $0xdf0] sm:$0xff] %v4265
        %4312 = vst [vmem:[#allocation2 + $0xdf8] sm:$0xff] %v4267
        %4313 = vst [vmem:[#allocation2 + $0xe00] sm:$0xff] %v4269
        %4314 = vst [vmem:[#allocation2 + $0xe08] sm:$0xff] %v4271
        %4315 = vst [vmem:[#allocation2 + $0xe10] sm:$0xff] %v4273
        %4316 = vst [vmem:[#allocation2 + $0xe18] sm:$0xff] %v4275
        %4317 = vst [vmem:[#allocation2 + $0xe20] sm:$0xff] %v4277
        %4318 = vst [vmem:[#allocation2 + $0xe28] sm:$0xff] %v4279
        %4319 = vst [vmem:[#allocation2 + $0xe30] sm:$0xff] %v4281
        %4320 = vst [vmem:[#allocation2 + $0xe38] sm:$0xff] %v4283
        %4321 = vst [vmem:[#allocation2 + $0xe40] sm:$0xff] %v4285
        %4322 = vst [vmem:[#allocation2 + $0xe48] sm:$0xff] %v4287
        %4323 = vst.msk [vmem:[#allocation2 + $0xe50] sm:$0xff] %vm209, %v4289
        %v4324 = vld [vmem:[#allocation6] sm:$0xff]
        %v4325 = vld [vmem:[#allocation2] sm:$0xff]
        %v4326 = vld [vmem:[#allocation2 + $0x8] sm:$0xff]
        %v4327 = vld [vmem:[#allocation2 + $0x10] sm:$0xff]
        %v4328 = vld [vmem:[#allocation2 + $0x18] sm:$0xff]
        %v4329 = vld [vmem:[#allocation2 + $0x20] sm:$0xff]
        %v4330 = vld [vmem:[#allocation2 + $0x28] sm:$0xff]
        %v4331 = vld [vmem:[#allocation2 + $0x30] sm:$0xff]
        %v4332 = vld [vmem:[#allocation2 + $0x38] sm:$0xff]
        %v4333 = vld [vmem:[#allocation2 + $0x40] sm:$0xff]
        %v4334 = vld [vmem:[#allocation2 + $0x48] sm:$0xff]
        %v4335 = vld [vmem:[#allocation2 + $0x50] sm:$0xff]
        %v4336 = vld [vmem:[#allocation2 + $0x58] sm:$0xff]
        %v4337 = vld [vmem:[#allocation2 + $0x60] sm:$0xff]
        %v4338 = vld [vmem:[#allocation2 + $0x68] sm:$0xff]
        %v4339 = vld [vmem:[#allocation2 + $0x70] sm:$0xff]
        %v4340 = vld [vmem:[#allocation2 + $0x78] sm:$0xff]
        %v4341 = vld [vmem:[#allocation2 + $0x80] sm:$0xff]
        %v4342 = vld [vmem:[#allocation2 + $0x88] sm:$0xff]
        %v4343 = vld [vmem:[#allocation2 + $0x90] sm:$0xff]
        %v4344 = vld [vmem:[#allocation2 + $0x98] sm:$0xff]
        %v4345 = vld [vmem:[#allocation2 + $0xa0] sm:$0xff]
        %v4346 = vld [vmem:[#allocation2 + $0xa8] sm:$0xff]
        %v4347 = vld [vmem:[#allocation2 + $0xb0] sm:$0xff]
        %v4348 = vld [vmem:[#allocation2 + $0xb8] sm:$0xff]
        %v4349 = vld [vmem:[#allocation2 + $0xc0] sm:$0xff]
        %v4350 = vld [vmem:[#allocation2 + $0xc8] sm:$0xff]
        %v4351 = vld [vmem:[#allocation2 + $0xd0] sm:$0xff]
        %v4352 = vld [vmem:[#allocation2 + $0xd8] sm:$0xff]
        %v4353 = vld [vmem:[#allocation2 + $0xe0] sm:$0xff]
        %v4354 = vld [vmem:[#allocation2 + $0xe8] sm:$0xff]
        %v4355 = vld [vmem:[#allocation2 + $0xf0] sm:$0xff]
        %v4356 = vld [vmem:[#allocation2 + $0xf8] sm:$0xff]
        %v4357 = vld [vmem:[#allocation2 + $0x100] sm:$0xff]
        %v4358 = vld [vmem:[#allocation2 + $0x108] sm:$0xff]
        %v4359 = vld [vmem:[#allocation2 + $0x110] sm:$0xff]
        %v4360 = vld [vmem:[#allocation2 + $0x118] sm:$0xff]
        %v4361 = vld [vmem:[#allocation2 + $0x120] sm:$0xff]
        %v4362 = vld [vmem:[#allocation2 + $0x128] sm:$0xff]
        %v4363 = vld [vmem:[#allocation2 + $0x130] sm:$0xff]
        %v4364 = vld [vmem:[#allocation2 + $0x138] sm:$0xff]
        %v4365 = vld [vmem:[#allocation2 + $0x140] sm:$0xff]
        %v4366 = vld [vmem:[#allocation2 + $0x148] sm:$0xff]
        %v4367 = vld [vmem:[#allocation2 + $0x150] sm:$0xff]
        %v4368 = vld [vmem:[#allocation2 + $0x158] sm:$0xff]
        %v4369 = vld [vmem:[#allocation2 + $0x160] sm:$0xff]
        %v4370 = vld [vmem:[#allocation2 + $0x168] sm:$0xff]
        %v4371 = vld [vmem:[#allocation2 + $0x170] sm:$0xff]
        %v4372 = vld [vmem:[#allocation2 + $0x178] sm:$0xff]
        %v4373 = vld [vmem:[#allocation2 + $0x180] sm:$0xff]
        %v4374 = vld [vmem:[#allocation2 + $0x188] sm:$0xff]
        %v4375 = vld [vmem:[#allocation2 + $0x190] sm:$0xff]
        %v4376 = vld [vmem:[#allocation2 + $0x198] sm:$0xff]
        %v4377 = vld [vmem:[#allocation2 + $0x1a0] sm:$0xff]
        %v4378 = vld [vmem:[#allocation2 + $0x1a8] sm:$0xff]
        %v4379 = vld [vmem:[#allocation2 + $0x1b0] sm:$0xff]
        %v4380 = vld [vmem:[#allocation2 + $0x1b8] sm:$0xff]
        %v4381 = vld [vmem:[#allocation2 + $0x1c0] sm:$0xff]
        %v4382 = vld [vmem:[#allocation2 + $0x1c8] sm:$0xff]
        %v4383 = vld [vmem:[#allocation2 + $0x1d0] sm:$0xff]
        %v4384 = vld [vmem:[#allocation2 + $0x1d8] sm:$0xff]
        %v4385 = vld [vmem:[#allocation2 + $0x1e0] sm:$0xff]
        %v4386 = vld [vmem:[#allocation2 + $0x1e8] sm:$0xff]
        %v4387 = vld [vmem:[#allocation2 + $0x1f0] sm:$0xff]
        %v4388 = vld [vmem:[#allocation2 + $0x1f8] sm:$0xff]
        %v4389 = vld [vmem:[#allocation2 + $0x200] sm:$0xff]
        %v4390 = vld [vmem:[#allocation2 + $0x208] sm:$0xff]
        %v4391 = vld [vmem:[#allocation2 + $0x210] sm:$0xff]
        %v4392 = vld [vmem:[#allocation2 + $0x218] sm:$0xff]
        %v4393 = vld [vmem:[#allocation2 + $0x220] sm:$0xff]
        %v4394 = vld [vmem:[#allocation2 + $0x228] sm:$0xff]
        %v4395 = vld [vmem:[#allocation2 + $0x230] sm:$0xff]
        %v4396 = vld [vmem:[#allocation2 + $0x238] sm:$0xff]
        %v4397 = vld [vmem:[#allocation2 + $0x240] sm:$0xff]
        %v4398 = vld [vmem:[#allocation2 + $0x248] sm:$0xff]
        %v4399 = vld [vmem:[#allocation2 + $0x250] sm:$0xff]
        %v4400 = vld [vmem:[#allocation2 + $0x258] sm:$0xff]
        %v4401 = vld [vmem:[#allocation2 + $0x260] sm:$0xff]
        %v4402 = vld [vmem:[#allocation2 + $0x268] sm:$0xff]
        %v4403 = vld [vmem:[#allocation2 + $0x270] sm:$0xff]
        %v4404 = vld [vmem:[#allocation2 + $0x278] sm:$0xff]
        %v4405 = vld [vmem:[#allocation2 + $0x280] sm:$0xff]
        %v4406 = vld [vmem:[#allocation2 + $0x288] sm:$0xff]
        %v4407 = vld [vmem:[#allocation2 + $0x290] sm:$0xff]
        %v4408 = vld [vmem:[#allocation2 + $0x298] sm:$0xff]
        %v4409 = vld [vmem:[#allocation2 + $0x2a0] sm:$0xff]
        %v4410 = vld [vmem:[#allocation2 + $0x2a8] sm:$0xff]
        %v4411 = vld [vmem:[#allocation2 + $0x2b0] sm:$0xff]
        %v4412 = vld [vmem:[#allocation2 + $0x2b8] sm:$0xff]
        %v4413 = vld [vmem:[#allocation2 + $0x2c0] sm:$0xff]
        %v4414 = vld [vmem:[#allocation2 + $0x2c8] sm:$0xff]
        %v4415 = vld [vmem:[#allocation2 + $0x2d0] sm:$0xff]
        %v4416 = vld [vmem:[#allocation2 + $0x2d8] sm:$0xff]
        %v4417 = vld [vmem:[#allocation2 + $0x2e0] sm:$0xff]
        %v4418 = vld [vmem:[#allocation2 + $0x2e8] sm:$0xff]
        %v4419 = vld [vmem:[#allocation2 + $0x2f0] sm:$0xff]
        %v4420 = vld [vmem:[#allocation2 + $0x2f8] sm:$0xff]
        %v4421 = vld [vmem:[#allocation2 + $0x300] sm:$0xff]
        %v4422 = vld [vmem:[#allocation2 + $0x308] sm:$0xff]
        %v4423 = vld [vmem:[#allocation2 + $0x310] sm:$0xff]
        %v4424 = vld [vmem:[#allocation2 + $0x318] sm:$0xff]
        %v4425 = vld [vmem:[#allocation2 + $0x320] sm:$0xff]
        %v4426 = vld [vmem:[#allocation2 + $0x328] sm:$0xff]
        %v4427 = vld [vmem:[#allocation2 + $0x330] sm:$0xff]
        %v4428 = vld [vmem:[#allocation2 + $0x338] sm:$0xff]
        %v4429 = vld [vmem:[#allocation2 + $0x340] sm:$0xff]
        %v4430 = vld [vmem:[#allocation2 + $0x348] sm:$0xff]
        %v4431 = vld [vmem:[#allocation2 + $0x350] sm:$0xff]
        %v4432 = vld [vmem:[#allocation2 + $0x358] sm:$0xff]
        %v4433 = vld [vmem:[#allocation2 + $0x360] sm:$0xff]
        %v4434 = vld [vmem:[#allocation2 + $0x368] sm:$0xff]
        %v4435 = vld [vmem:[#allocation2 + $0x370] sm:$0xff]
        %v4436 = vld [vmem:[#allocation2 + $0x378] sm:$0xff]
        %v4437 = vld [vmem:[#allocation2 + $0x380] sm:$0xff]
        %v4438 = vld [vmem:[#allocation2 + $0x388] sm:$0xff]
        %v4439 = vld [vmem:[#allocation2 + $0x390] sm:$0xff]
        %v4440 = vld [vmem:[#allocation2 + $0x398] sm:$0xff]
        %v4441 = vld [vmem:[#allocation2 + $0x3a0] sm:$0xff]
        %v4442 = vld [vmem:[#allocation2 + $0x3a8] sm:$0xff]
        %v4443 = vld [vmem:[#allocation2 + $0x3b0] sm:$0xff]
        %v4444 = vld [vmem:[#allocation2 + $0x3b8] sm:$0xff]
        %v4445 = vld [vmem:[#allocation2 + $0x3c0] sm:$0xff]
        %v4446 = vld [vmem:[#allocation2 + $0x3c8] sm:$0xff]
        %v4447 = vld [vmem:[#allocation2 + $0x3d0] sm:$0xff]
        %v4448 = vld [vmem:[#allocation2 + $0x3d8] sm:$0xff]
        %v4449 = vld [vmem:[#allocation2 + $0x3e0] sm:$0xff]
        %v4450 = vld [vmem:[#allocation2 + $0x3e8] sm:$0xff]
        %v4451 = vld [vmem:[#allocation2 + $0x3f0] sm:$0xff]
        %v4452 = vld [vmem:[#allocation2 + $0x3f8] sm:$0xff]
        %v4453 = vld [vmem:[#allocation2 + $0x400] sm:$0xff]
        %v4454 = vld [vmem:[#allocation2 + $0x408] sm:$0xff]
        %v4455 = vld [vmem:[#allocation2 + $0x410] sm:$0xff]
        %v4456 = vld [vmem:[#allocation2 + $0x418] sm:$0xff]
        %v4457 = vld [vmem:[#allocation2 + $0x420] sm:$0xff]
        %v4458 = vld [vmem:[#allocation2 + $0x428] sm:$0xff]
        %v4459 = vld [vmem:[#allocation2 + $0x430] sm:$0xff]
        %v4460 = vld [vmem:[#allocation2 + $0x438] sm:$0xff]
        %v4461 = vld [vmem:[#allocation2 + $0x440] sm:$0xff]
        %v4462 = vld [vmem:[#allocation2 + $0x448] sm:$0xff]
        %v4463 = vld [vmem:[#allocation2 + $0x450] sm:$0xff]
        %v4464 = vld [vmem:[#allocation2 + $0x458] sm:$0xff]
        %v4465 = vld [vmem:[#allocation2 + $0x460] sm:$0xff]
        %v4466 = vld [vmem:[#allocation2 + $0x468] sm:$0xff]
        %v4467 = vld [vmem:[#allocation2 + $0x470] sm:$0xff]
        %v4468 = vld [vmem:[#allocation2 + $0x478] sm:$0xff]
        %v4469 = vld [vmem:[#allocation2 + $0x480] sm:$0xff]
        %v4470 = vld [vmem:[#allocation2 + $0x488] sm:$0xff]
        %v4471 = vld [vmem:[#allocation2 + $0x490] sm:$0xff]
        %v4472 = vld [vmem:[#allocation2 + $0x498] sm:$0xff]
        %v4473 = vld [vmem:[#allocation2 + $0x4a0] sm:$0xff]
        %v4474 = vld [vmem:[#allocation2 + $0x4a8] sm:$0xff]
        %v4475 = vld [vmem:[#allocation2 + $0x4b0] sm:$0xff]
        %v4476 = vld [vmem:[#allocation2 + $0x4b8] sm:$0xff]
        %v4477 = vld [vmem:[#allocation2 + $0x4c0] sm:$0xff]
        %v4478 = vld [vmem:[#allocation2 + $0x4c8] sm:$0xff]
        %v4479 = vld [vmem:[#allocation2 + $0x4d0] sm:$0xff]
        %v4480 = vld [vmem:[#allocation2 + $0x4d8] sm:$0xff]
        %v4481 = vld [vmem:[#allocation2 + $0x4e0] sm:$0xff]
        %v4482 = vld [vmem:[#allocation2 + $0x4e8] sm:$0xff]
        %v4483 = vld [vmem:[#allocation2 + $0x4f0] sm:$0xff]
        %v4484 = vld [vmem:[#allocation2 + $0x4f8] sm:$0xff]
        %v4485 = vld [vmem:[#allocation2 + $0x500] sm:$0xff]
        %v4486 = vld [vmem:[#allocation2 + $0x508] sm:$0xff]
        %v4487 = vld [vmem:[#allocation2 + $0x510] sm:$0xff]
        %v4488 = vld [vmem:[#allocation2 + $0x518] sm:$0xff]
        %v4489 = vld [vmem:[#allocation2 + $0x520] sm:$0xff]
        %v4490 = vld [vmem:[#allocation2 + $0x528] sm:$0xff]
        %v4491 = vld [vmem:[#allocation2 + $0x530] sm:$0xff]
        %v4492 = vld [vmem:[#allocation2 + $0x538] sm:$0xff]
        %v4493 = vld [vmem:[#allocation2 + $0x540] sm:$0xff]
        %v4494 = vld [vmem:[#allocation2 + $0x548] sm:$0xff]
        %v4495 = vld [vmem:[#allocation2 + $0x550] sm:$0xff]
        %v4496 = vld [vmem:[#allocation2 + $0x558] sm:$0xff]
        %v4497 = vld [vmem:[#allocation2 + $0x560] sm:$0xff]
        %v4498 = vld [vmem:[#allocation2 + $0x568] sm:$0xff]
        %v4499 = vld [vmem:[#allocation2 + $0x570] sm:$0xff]
        %v4500 = vld [vmem:[#allocation2 + $0x578] sm:$0xff]
        %v4501 = vld [vmem:[#allocation2 + $0x580] sm:$0xff]
        %v4502 = vld [vmem:[#allocation2 + $0x588] sm:$0xff]
        %v4503 = vld [vmem:[#allocation2 + $0x590] sm:$0xff]
        %v4504 = vld [vmem:[#allocation2 + $0x598] sm:$0xff]
        %v4505 = vld [vmem:[#allocation2 + $0x5a0] sm:$0xff]
        %v4506 = vld [vmem:[#allocation2 + $0x5a8] sm:$0xff]
        %v4507 = vld [vmem:[#allocation2 + $0x5b0] sm:$0xff]
        %v4508 = vld [vmem:[#allocation2 + $0x5b8] sm:$0xff]
        %v4509 = vld [vmem:[#allocation2 + $0x5c0] sm:$0xff]
        %v4510 = vld [vmem:[#allocation2 + $0x5c8] sm:$0xff]
        %v4511 = vld [vmem:[#allocation2 + $0x5d0] sm:$0xff]
        %v4512 = vld [vmem:[#allocation2 + $0x5d8] sm:$0xff]
        %v4513 = vld [vmem:[#allocation2 + $0x5e0] sm:$0xff]
        %v4514 = vld [vmem:[#allocation2 + $0x5e8] sm:$0xff]
        %v4515 = vld [vmem:[#allocation2 + $0x5f0] sm:$0xff]
        %v4516 = vld [vmem:[#allocation2 + $0x5f8] sm:$0xff]
        %v4517 = vld [vmem:[#allocation2 + $0x600] sm:$0xff]
        %v4518 = vld [vmem:[#allocation2 + $0x608] sm:$0xff]
        %v4519 = vld [vmem:[#allocation2 + $0x610] sm:$0xff]
        %v4520 = vld [vmem:[#allocation2 + $0x618] sm:$0xff]
        %v4521 = vld [vmem:[#allocation2 + $0x620] sm:$0xff]
        %v4522 = vld [vmem:[#allocation2 + $0x628] sm:$0xff]
        %v4523 = vld [vmem:[#allocation2 + $0x630] sm:$0xff]
        %v4524 = vld [vmem:[#allocation2 + $0x638] sm:$0xff]
        %v4525 = vld [vmem:[#allocation2 + $0x640] sm:$0xff]
        %v4526 = vld [vmem:[#allocation2 + $0x648] sm:$0xff]
        %v4527 = vld [vmem:[#allocation2 + $0x650] sm:$0xff]
        %v4528 = vld [vmem:[#allocation2 + $0x658] sm:$0xff]
        %v4529 = vld [vmem:[#allocation2 + $0x660] sm:$0xff]
        %v4530 = vld [vmem:[#allocation2 + $0x668] sm:$0xff]
        %v4531 = vld [vmem:[#allocation2 + $0x670] sm:$0xff]
        %v4532 = vld [vmem:[#allocation2 + $0x678] sm:$0xff]
        %v4533 = vld [vmem:[#allocation2 + $0x680] sm:$0xff]
        %v4534 = vld [vmem:[#allocation2 + $0x688] sm:$0xff]
        %v4535 = vld [vmem:[#allocation2 + $0x690] sm:$0xff]
        %v4536 = vld [vmem:[#allocation2 + $0x698] sm:$0xff]
        %v4537 = vld [vmem:[#allocation2 + $0x6a0] sm:$0xff]
        %v4538 = vld [vmem:[#allocation2 + $0x6a8] sm:$0xff]
        %v4539 = vld [vmem:[#allocation2 + $0x6b0] sm:$0xff]
        %v4540 = vld [vmem:[#allocation2 + $0x6b8] sm:$0xff]
        %v4541 = vld [vmem:[#allocation2 + $0x6c0] sm:$0xff]
        %v4542 = vld [vmem:[#allocation2 + $0x6c8] sm:$0xff]
        %v4543 = vld [vmem:[#allocation2 + $0x6d0] sm:$0xff]
        %v4544 = vld [vmem:[#allocation2 + $0x6d8] sm:$0xff]
        %v4545 = vld [vmem:[#allocation2 + $0x6e0] sm:$0xff]
        %v4546 = vld [vmem:[#allocation2 + $0x6e8] sm:$0xff]
        %v4547 = vld [vmem:[#allocation2 + $0x6f0] sm:$0xff]
        %v4548 = vld [vmem:[#allocation2 + $0x6f8] sm:$0xff]
        %v4549 = vld [vmem:[#allocation2 + $0x700] sm:$0xff]
        %v4550 = vld [vmem:[#allocation2 + $0x708] sm:$0xff]
        %v4551 = vld [vmem:[#allocation2 + $0x710] sm:$0xff]
        %v4552 = vld [vmem:[#allocation2 + $0x718] sm:$0xff]
        %v4553 = vld [vmem:[#allocation2 + $0x720] sm:$0xff]
        %v4554 = vld [vmem:[#allocation2 + $0x728] sm:$0xff]
        %v4555 = vld [vmem:[#allocation2 + $0x730] sm:$0xff]
        %v4556 = vld [vmem:[#allocation2 + $0x738] sm:$0xff]
        %v4557 = vld [vmem:[#allocation2 + $0x740] sm:$0xff]
        %v4558 = vld [vmem:[#allocation2 + $0x748] sm:$0xff]
        %v4559 = vld [vmem:[#allocation2 + $0x750] sm:$0xff]
        %v4560 = vld [vmem:[#allocation2 + $0x758] sm:$0xff]
        %v4561 = vld [vmem:[#allocation2 + $0x760] sm:$0xff]
        %v4562 = vld [vmem:[#allocation2 + $0x768] sm:$0xff]
        %v4563 = vld [vmem:[#allocation2 + $0x770] sm:$0xff]
        %v4564 = vld [vmem:[#allocation2 + $0x778] sm:$0xff]
        %v4565 = vld [vmem:[#allocation2 + $0x780] sm:$0xff]
        %v4566 = vld [vmem:[#allocation2 + $0x788] sm:$0xff]
        %v4567 = vld [vmem:[#allocation2 + $0x790] sm:$0xff]
        %v4568 = vld [vmem:[#allocation2 + $0x798] sm:$0xff]
        %v4569 = vld [vmem:[#allocation2 + $0x7a0] sm:$0xff]
        %v4570 = vld [vmem:[#allocation2 + $0x7a8] sm:$0xff]
        %v4571 = vld [vmem:[#allocation2 + $0x7b0] sm:$0xff]
        %v4572 = vld [vmem:[#allocation2 + $0x7b8] sm:$0xff]
        %v4573 = vld [vmem:[#allocation2 + $0x7c0] sm:$0xff]
        %v4574 = vld [vmem:[#allocation2 + $0x7c8] sm:$0xff]
        %v4575 = vld [vmem:[#allocation2 + $0x7d0] sm:$0xff]
        %v4576 = vld [vmem:[#allocation2 + $0x7d8] sm:$0xff]
        %v4577 = vld [vmem:[#allocation2 + $0x7e0] sm:$0xff]
        %v4578 = vld [vmem:[#allocation2 + $0x7e8] sm:$0xff]
        %v4579 = vld [vmem:[#allocation2 + $0x7f0] sm:$0xff]
        %v4580 = vld [vmem:[#allocation2 + $0x7f8] sm:$0xff]
        %v4581 = vld [vmem:[#allocation2 + $0x800] sm:$0xff]
        %v4582 = vld [vmem:[#allocation2 + $0x808] sm:$0xff]
        %v4583 = vld [vmem:[#allocation2 + $0x810] sm:$0xff]
        %v4584 = vld [vmem:[#allocation2 + $0x818] sm:$0xff]
        %v4585 = vld [vmem:[#allocation2 + $0x820] sm:$0xff]
        %v4586 = vld [vmem:[#allocation2 + $0x828] sm:$0xff]
        %v4587 = vld [vmem:[#allocation2 + $0x830] sm:$0xff]
        %v4588 = vld [vmem:[#allocation2 + $0x838] sm:$0xff]
        %v4589 = vld [vmem:[#allocation2 + $0x840] sm:$0xff]
        %v4590 = vld [vmem:[#allocation2 + $0x848] sm:$0xff]
        %v4591 = vld [vmem:[#allocation2 + $0x850] sm:$0xff]
        %v4592 = vld [vmem:[#allocation2 + $0x858] sm:$0xff]
        %v4593 = vld [vmem:[#allocation2 + $0x860] sm:$0xff]
        %v4594 = vld [vmem:[#allocation2 + $0x868] sm:$0xff]
        %v4595 = vld [vmem:[#allocation2 + $0x870] sm:$0xff]
        %v4596 = vld [vmem:[#allocation2 + $0x878] sm:$0xff]
        %v4597 = vld [vmem:[#allocation2 + $0x880] sm:$0xff]
        %v4598 = vld [vmem:[#allocation2 + $0x888] sm:$0xff]
        %v4599 = vld [vmem:[#allocation2 + $0x890] sm:$0xff]
        %v4600 = vld [vmem:[#allocation2 + $0x898] sm:$0xff]
        %v4601 = vld [vmem:[#allocation2 + $0x8a0] sm:$0xff]
        %v4602 = vld [vmem:[#allocation2 + $0x8a8] sm:$0xff]
        %v4603 = vld [vmem:[#allocation2 + $0x8b0] sm:$0xff]
        %v4604 = vld [vmem:[#allocation2 + $0x8b8] sm:$0xff]
        %v4605 = vld [vmem:[#allocation2 + $0x8c0] sm:$0xff]
        %v4606 = vld [vmem:[#allocation2 + $0x8c8] sm:$0xff]
        %v4607 = vld [vmem:[#allocation2 + $0x8d0] sm:$0xff]
        %v4608 = vld [vmem:[#allocation2 + $0x8d8] sm:$0xff]
        %v4609 = vld [vmem:[#allocation2 + $0x8e0] sm:$0xff]
        %v4610 = vld [vmem:[#allocation2 + $0x8e8] sm:$0xff]
        %v4611 = vld [vmem:[#allocation2 + $0x8f0] sm:$0xff]
        %v4612 = vld [vmem:[#allocation2 + $0x8f8] sm:$0xff]
        %v4613 = vld [vmem:[#allocation2 + $0x900] sm:$0xff]
        %v4614 = vld [vmem:[#allocation2 + $0x908] sm:$0xff]
        %v4615 = vld [vmem:[#allocation2 + $0x910] sm:$0xff]
        %v4616 = vld [vmem:[#allocation2 + $0x918] sm:$0xff]
        %v4617 = vld [vmem:[#allocation2 + $0x920] sm:$0xff]
        %v4618 = vld [vmem:[#allocation2 + $0x928] sm:$0xff]
        %v4619 = vld [vmem:[#allocation2 + $0x930] sm:$0xff]
        %v4620 = vld [vmem:[#allocation2 + $0x938] sm:$0xff]
        %v4621 = vld [vmem:[#allocation2 + $0x940] sm:$0xff]
        %v4622 = vld [vmem:[#allocation2 + $0x948] sm:$0xff]
        %v4623 = vld [vmem:[#allocation2 + $0x950] sm:$0xff]
        %v4624 = vld [vmem:[#allocation2 + $0x958] sm:$0xff]
        %v4625 = vld [vmem:[#allocation2 + $0x960] sm:$0xff]
        %v4626 = vld [vmem:[#allocation2 + $0x968] sm:$0xff]
        %v4627 = vld [vmem:[#allocation2 + $0x970] sm:$0xff]
        %v4628 = vld [vmem:[#allocation2 + $0x978] sm:$0xff]
        %v4629 = vld [vmem:[#allocation2 + $0x980] sm:$0xff]
        %v4630 = vld [vmem:[#allocation2 + $0x988] sm:$0xff]
        %v4631 = vld [vmem:[#allocation2 + $0x990] sm:$0xff]
        %v4632 = vld [vmem:[#allocation2 + $0x998] sm:$0xff]
        %v4633 = vld [vmem:[#allocation2 + $0x9a0] sm:$0xff]
        %v4634 = vld [vmem:[#allocation2 + $0x9a8] sm:$0xff]
        %v4635 = vld [vmem:[#allocation2 + $0x9b0] sm:$0xff]
        %v4636 = vld [vmem:[#allocation2 + $0x9b8] sm:$0xff]
        %v4637 = vld [vmem:[#allocation2 + $0x9c0] sm:$0xff]
        %v4638 = vld [vmem:[#allocation2 + $0x9c8] sm:$0xff]
        %v4639 = vld [vmem:[#allocation2 + $0x9d0] sm:$0xff]
        %v4640 = vld [vmem:[#allocation2 + $0x9d8] sm:$0xff]
        %v4641 = vld [vmem:[#allocation2 + $0x9e0] sm:$0xff]
        %v4642 = vld [vmem:[#allocation2 + $0x9e8] sm:$0xff]
        %v4643 = vld [vmem:[#allocation2 + $0x9f0] sm:$0xff]
        %v4644 = vld [vmem:[#allocation2 + $0x9f8] sm:$0xff]
        %v4645 = vld [vmem:[#allocation2 + $0xa00] sm:$0xff]
        %v4646 = vld [vmem:[#allocation2 + $0xa08] sm:$0xff]
        %v4647 = vld [vmem:[#allocation2 + $0xa10] sm:$0xff]
        %v4648 = vld [vmem:[#allocation2 + $0xa18] sm:$0xff]
        %v4649 = vld [vmem:[#allocation2 + $0xa20] sm:$0xff]
        %v4650 = vld [vmem:[#allocation2 + $0xa28] sm:$0xff]
        %v4651 = vld [vmem:[#allocation2 + $0xa30] sm:$0xff]
        %v4652 = vld [vmem:[#allocation2 + $0xa38] sm:$0xff]
        %v4653 = vld [vmem:[#allocation2 + $0xa40] sm:$0xff]
        %v4654 = vld [vmem:[#allocation2 + $0xa48] sm:$0xff]
        %v4655 = vld [vmem:[#allocation2 + $0xa50] sm:$0xff]
        %v4656 = vld [vmem:[#allocation2 + $0xa58] sm:$0xff]
        %v4657 = vld [vmem:[#allocation2 + $0xa60] sm:$0xff]
        %v4658 = vld [vmem:[#allocation2 + $0xa68] sm:$0xff]
        %v4659 = vld [vmem:[#allocation2 + $0xa70] sm:$0xff]
        %v4660 = vld [vmem:[#allocation2 + $0xa78] sm:$0xff]
        %v4661 = vld [vmem:[#allocation2 + $0xa80] sm:$0xff]
        %v4662 = vld [vmem:[#allocation2 + $0xa88] sm:$0xff]
        %v4663 = vld [vmem:[#allocation2 + $0xa90] sm:$0xff]
        %v4664 = vld [vmem:[#allocation2 + $0xa98] sm:$0xff]
        %v4665 = vld [vmem:[#allocation2 + $0xaa0] sm:$0xff]
        %v4666 = vld [vmem:[#allocation2 + $0xaa8] sm:$0xff]
        %v4667 = vld [vmem:[#allocation2 + $0xab0] sm:$0xff]
        %v4668 = vld [vmem:[#allocation2 + $0xab8] sm:$0xff]
        %v4669 = vld [vmem:[#allocation2 + $0xac0] sm:$0xff]
        %v4670 = vld [vmem:[#allocation2 + $0xac8] sm:$0xff]
        %v4671 = vld [vmem:[#allocation2 + $0xad0] sm:$0xff]
        %v4672 = vld [vmem:[#allocation2 + $0xad8] sm:$0xff]
        %v4673 = vld [vmem:[#allocation2 + $0xae0] sm:$0xff]
        %v4674 = vld [vmem:[#allocation2 + $0xae8] sm:$0xff]
        %v4675 = vld [vmem:[#allocation2 + $0xaf0] sm:$0xff]
        %v4676 = vld [vmem:[#allocation2 + $0xaf8] sm:$0xff]
        %v4677 = vld [vmem:[#allocation2 + $0xb00] sm:$0xff]
        %v4678 = vld [vmem:[#allocation2 + $0xb08] sm:$0xff]
        %v4679 = vld [vmem:[#allocation2 + $0xb10] sm:$0xff]
        %v4680 = vld [vmem:[#allocation2 + $0xb18] sm:$0xff]
        %v4681 = vld [vmem:[#allocation2 + $0xb20] sm:$0xff]
        %v4682 = vld [vmem:[#allocation2 + $0xb28] sm:$0xff]
        %v4683 = vld [vmem:[#allocation2 + $0xb30] sm:$0xff]
        %v4684 = vld [vmem:[#allocation2 + $0xb38] sm:$0xff]
        %v4685 = vld [vmem:[#allocation2 + $0xb40] sm:$0xff]
        %v4686 = vld [vmem:[#allocation2 + $0xb48] sm:$0xff]
        %v4687 = vld [vmem:[#allocation2 + $0xb50] sm:$0xff]
        %v4688 = vld [vmem:[#allocation2 + $0xb58] sm:$0xff]
        %v4689 = vld [vmem:[#allocation2 + $0xb60] sm:$0xff]
        %v4690 = vld [vmem:[#allocation2 + $0xb68] sm:$0xff]
        %v4691 = vld [vmem:[#allocation2 + $0xb70] sm:$0xff]
        %v4692 = vld [vmem:[#allocation2 + $0xb78] sm:$0xff]
        %v4693 = vld [vmem:[#allocation2 + $0xb80] sm:$0xff]
        %v4694 = vld [vmem:[#allocation2 + $0xb88] sm:$0xff]
        %v4695 = vld [vmem:[#allocation2 + $0xb90] sm:$0xff]
        %v4696 = vld [vmem:[#allocation2 + $0xb98] sm:$0xff]
        %v4697 = vld [vmem:[#allocation2 + $0xba0] sm:$0xff]
        %v4698 = vld [vmem:[#allocation2 + $0xba8] sm:$0xff]
        %v4699 = vld [vmem:[#allocation2 + $0xbb0] sm:$0xff]
        %v4700 = vld [vmem:[#allocation2 + $0xbb8] sm:$0xff]
        %v4701 = vld [vmem:[#allocation2 + $0xbc0] sm:$0xff]
        %v4702 = vld [vmem:[#allocation2 + $0xbc8] sm:$0xff]
        %v4703 = vld [vmem:[#allocation2 + $0xbd0] sm:$0xff]
        %v4704 = vld [vmem:[#allocation2 + $0xbd8] sm:$0xff]
        %v4705 = vld [vmem:[#allocation2 + $0xbe0] sm:$0xff]
        %v4706 = vld [vmem:[#allocation2 + $0xbe8] sm:$0xff]
        %v4707 = vld [vmem:[#allocation2 + $0xbf0] sm:$0xff]
        %v4708 = vld [vmem:[#allocation2 + $0xbf8] sm:$0xff]
        %v4709 = vld [vmem:[#allocation2 + $0xc00] sm:$0xff]
        %v4710 = vld [vmem:[#allocation2 + $0xc08] sm:$0xff]
        %v4711 = vld [vmem:[#allocation2 + $0xc10] sm:$0xff]
        %v4712 = vld [vmem:[#allocation2 + $0xc18] sm:$0xff]
        %v4713 = vld [vmem:[#allocation2 + $0xc20] sm:$0xff]
        %v4714 = vld [vmem:[#allocation2 + $0xc28] sm:$0xff]
        %v4715 = vld [vmem:[#allocation2 + $0xc30] sm:$0xff]
        %v4716 = vld [vmem:[#allocation2 + $0xc38] sm:$0xff]
        %v4717 = vld [vmem:[#allocation2 + $0xc40] sm:$0xff]
        %v4718 = vld [vmem:[#allocation2 + $0xc48] sm:$0xff]
        %v4719 = vld [vmem:[#allocation2 + $0xc50] sm:$0xff]
        %v4720 = vld [vmem:[#allocation2 + $0xc58] sm:$0xff]
        %v4721 = vld [vmem:[#allocation2 + $0xc60] sm:$0xff]
        %v4722 = vld [vmem:[#allocation2 + $0xc68] sm:$0xff]
        %v4723 = vld [vmem:[#allocation2 + $0xc70] sm:$0xff]
        %v4724 = vld [vmem:[#allocation2 + $0xc78] sm:$0xff]
        %v4725 = vld [vmem:[#allocation2 + $0xc80] sm:$0xff]
        %v4726 = vld [vmem:[#allocation2 + $0xc88] sm:$0xff]
        %v4727 = vld [vmem:[#allocation2 + $0xc90] sm:$0xff]
        %v4728 = vld [vmem:[#allocation2 + $0xc98] sm:$0xff]
        %v4729 = vld [vmem:[#allocation2 + $0xca0] sm:$0xff]
        %v4730 = vld [vmem:[#allocation2 + $0xca8] sm:$0xff]
        %v4731 = vld [vmem:[#allocation2 + $0xcb0] sm:$0xff]
        %v4732 = vld [vmem:[#allocation2 + $0xcb8] sm:$0xff]
        %v4733 = vld [vmem:[#allocation2 + $0xcc0] sm:$0xff]
        %v4734 = vld [vmem:[#allocation2 + $0xcc8] sm:$0xff]
        %v4735 = vld [vmem:[#allocation2 + $0xcd0] sm:$0xff]
        %v4736 = vld [vmem:[#allocation2 + $0xcd8] sm:$0xff]
        %v4737 = vld [vmem:[#allocation2 + $0xce0] sm:$0xff]
        %v4738 = vld [vmem:[#allocation2 + $0xce8] sm:$0xff]
        %v4739 = vld [vmem:[#allocation2 + $0xcf0] sm:$0xff]
        %v4740 = vld [vmem:[#allocation2 + $0xcf8] sm:$0xff]
        %v4741 = vld [vmem:[#allocation2 + $0xd00] sm:$0xff]
        %v4742 = vld [vmem:[#allocation2 + $0xd08] sm:$0xff]
        %v4743 = vld [vmem:[#allocation2 + $0xd10] sm:$0xff]
        %v4744 = vld [vmem:[#allocation2 + $0xd18] sm:$0xff]
        %v4745 = vld [vmem:[#allocation2 + $0xd20] sm:$0xff]
        %v4746 = vld [vmem:[#allocation2 + $0xd28] sm:$0xff]
        %v4747 = vld [vmem:[#allocation2 + $0xd30] sm:$0xff]
        %v4748 = vld [vmem:[#allocation2 + $0xd38] sm:$0xff]
        %v4749 = vld [vmem:[#allocation2 + $0xd40] sm:$0xff]
        %v4750 = vld [vmem:[#allocation2 + $0xd48] sm:$0xff]
        %v4751 = vld [vmem:[#allocation2 + $0xd50] sm:$0xff]
        %v4752 = vld [vmem:[#allocation2 + $0xd58] sm:$0xff]
        %v4753 = vld [vmem:[#allocation2 + $0xd60] sm:$0xff]
        %v4754 = vld [vmem:[#allocation2 + $0xd68] sm:$0xff]
        %v4755 = vld [vmem:[#allocation2 + $0xd70] sm:$0xff]
        %v4756 = vld [vmem:[#allocation2 + $0xd78] sm:$0xff]
        %v4757 = vld [vmem:[#allocation2 + $0xd80] sm:$0xff]
        %v4758 = vld [vmem:[#allocation2 + $0xd88] sm:$0xff]
        %v4759 = vld [vmem:[#allocation2 + $0xd90] sm:$0xff]
        %v4760 = vld [vmem:[#allocation2 + $0xd98] sm:$0xff]
        %v4761 = vld [vmem:[#allocation2 + $0xda0] sm:$0xff]
        %v4762 = vld [vmem:[#allocation2 + $0xda8] sm:$0xff]
        %v4763 = vld [vmem:[#allocation2 + $0xdb0] sm:$0xff]
        %v4764 = vld [vmem:[#allocation2 + $0xdb8] sm:$0xff]
        %v4765 = vld [vmem:[#allocation2 + $0xdc0] sm:$0xff]
        %v4766 = vld [vmem:[#allocation2 + $0xdc8] sm:$0xff]
        %v4767 = vld [vmem:[#allocation2 + $0xdd0] sm:$0xff]
        %v4768 = vld [vmem:[#allocation2 + $0xdd8] sm:$0xff]
        %v4769 = vld [vmem:[#allocation2 + $0xde0] sm:$0xff]
        %v4770 = vld [vmem:[#allocation2 + $0xde8] sm:$0xff]
        %v4771 = vld [vmem:[#allocation2 + $0xdf0] sm:$0xff]
        %v4772 = vld [vmem:[#allocation2 + $0xdf8] sm:$0xff]
        %v4773 = vld [vmem:[#allocation2 + $0xe00] sm:$0xff]
        %v4774 = vld [vmem:[#allocation2 + $0xe08] sm:$0xff]
        %v4775 = vld [vmem:[#allocation2 + $0xe10] sm:$0xff]
        %v4776 = vld [vmem:[#allocation2 + $0xe18] sm:$0xff]
        %v4777 = vld [vmem:[#allocation2 + $0xe20] sm:$0xff]
        %v4778 = vld [vmem:[#allocation2 + $0xe28] sm:$0xff]
        %v4779 = vld [vmem:[#allocation2 + $0xe30] sm:$0xff]
        %v4780 = vld [vmem:[#allocation2 + $0xe38] sm:$0xff]
        %v4781 = vld [vmem:[#allocation2 + $0xe40] sm:$0xff]
        %v4782 = vld [vmem:[#allocation2 + $0xe48] sm:$0xff]
        %v4783 = vld [vmem:[#allocation2 + $0xe50] sm:$0xff]
        %v4785 = vunpack.c.l.b16 %v4324
        %v4786 = vunpack.c.h.b16 %v4324
        %v4787 = vpack.c.b16 %v4785, %v4785
        %v4788 = vpack.c.b16 %v4786, %v4786
        %v5249 = vunpack.c.l.b16 %v4325
        %v5250 = vunpack.c.h.b16 %v4325
        %v5251 = vunpack.c.l.b16 %v4326
        %v5252 = vunpack.c.h.b16 %v4326
        %v5253 = vunpack.c.l.b16 %v4327
        %v5254 = vunpack.c.h.b16 %v4327
        %v5255 = vunpack.c.l.b16 %v4328
        %v5256 = vunpack.c.h.b16 %v4328
        %v5257 = vunpack.c.l.b16 %v4329
        %v5258 = vunpack.c.h.b16 %v4329
        %v5259 = vunpack.c.l.b16 %v4330
        %v5260 = vunpack.c.h.b16 %v4330
        %v5261 = vunpack.c.l.b16 %v4331
        %v5262 = vunpack.c.h.b16 %v4331
        %v5263 = vunpack.c.l.b16 %v4332
        %v5264 = vunpack.c.h.b16 %v4332
        %v5265 = vunpack.c.l.b16 %v4333
        %v5266 = vunpack.c.h.b16 %v4333
        %v5267 = vunpack.c.l.b16 %v4334
        %v5268 = vunpack.c.h.b16 %v4334
        %v5269 = vunpack.c.l.b16 %v4335
        %v5270 = vunpack.c.h.b16 %v4335
        %v5271 = vunpack.c.l.b16 %v4336
        %v5272 = vunpack.c.h.b16 %v4336
        %v5273 = vunpack.c.l.b16 %v4337
        %v5274 = vunpack.c.h.b16 %v4337
        %v5275 = vunpack.c.l.b16 %v4338
        %v5276 = vunpack.c.h.b16 %v4338
        %v5277 = vunpack.c.l.b16 %v4339
        %v5278 = vunpack.c.h.b16 %v4339
        %v5279 = vunpack.c.l.b16 %v4340
        %v5280 = vunpack.c.h.b16 %v4340
        %v5281 = vunpack.c.l.b16 %v4341
        %v5282 = vunpack.c.h.b16 %v4341
        %v5283 = vunpack.c.l.b16 %v4342
        %v5284 = vunpack.c.h.b16 %v4342
        %v5285 = vunpack.c.l.b16 %v4343
        %v5286 = vunpack.c.h.b16 %v4343
        %v5287 = vunpack.c.l.b16 %v4344
        %v5288 = vunpack.c.h.b16 %v4344
        %v5289 = vunpack.c.l.b16 %v4345
        %v5290 = vunpack.c.h.b16 %v4345
        %v5291 = vunpack.c.l.b16 %v4346
        %v5292 = vunpack.c.h.b16 %v4346
        %v5293 = vunpack.c.l.b16 %v4347
        %v5294 = vunpack.c.h.b16 %v4347
        %v5295 = vunpack.c.l.b16 %v4348
        %v5296 = vunpack.c.h.b16 %v4348
        %v5297 = vunpack.c.l.b16 %v4349
        %v5298 = vunpack.c.h.b16 %v4349
        %v5299 = vunpack.c.l.b16 %v4350
        %v5300 = vunpack.c.h.b16 %v4350
        %v5301 = vunpack.c.l.b16 %v4351
        %v5302 = vunpack.c.h.b16 %v4351
        %v5303 = vunpack.c.l.b16 %v4352
        %v5304 = vunpack.c.h.b16 %v4352
        %v5305 = vunpack.c.l.b16 %v4353
        %v5306 = vunpack.c.h.b16 %v4353
        %v5307 = vunpack.c.l.b16 %v4354
        %v5308 = vunpack.c.h.b16 %v4354
        %v5309 = vunpack.c.l.b16 %v4355
        %v5310 = vunpack.c.h.b16 %v4355
        %v5311 = vunpack.c.l.b16 %v4356
        %v5312 = vunpack.c.h.b16 %v4356
        %v5313 = vunpack.c.l.b16 %v4357
        %v5314 = vunpack.c.h.b16 %v4357
        %v5315 = vunpack.c.l.b16 %v4358
        %v5316 = vunpack.c.h.b16 %v4358
        %v5317 = vunpack.c.l.b16 %v4359
        %v5318 = vunpack.c.h.b16 %v4359
        %v5319 = vunpack.c.l.b16 %v4360
        %v5320 = vunpack.c.h.b16 %v4360
        %v5321 = vunpack.c.l.b16 %v4361
        %v5322 = vunpack.c.h.b16 %v4361
        %v5323 = vunpack.c.l.b16 %v4362
        %v5324 = vunpack.c.h.b16 %v4362
        %v5325 = vunpack.c.l.b16 %v4363
        %v5326 = vunpack.c.h.b16 %v4363
        %v5327 = vunpack.c.l.b16 %v4364
        %v5328 = vunpack.c.h.b16 %v4364
        %v5329 = vunpack.c.l.b16 %v4365
        %v5330 = vunpack.c.h.b16 %v4365
        %v5331 = vunpack.c.l.b16 %v4366
        %v5332 = vunpack.c.h.b16 %v4366
        %v5333 = vunpack.c.l.b16 %v4367
        %v5334 = vunpack.c.h.b16 %v4367
        %v5335 = vunpack.c.l.b16 %v4368
        %v5336 = vunpack.c.h.b16 %v4368
        %v5337 = vunpack.c.l.b16 %v4369
        %v5338 = vunpack.c.h.b16 %v4369
        %v5339 = vunpack.c.l.b16 %v4370
        %v5340 = vunpack.c.h.b16 %v4370
        %v5341 = vunpack.c.l.b16 %v4371
        %v5342 = vunpack.c.h.b16 %v4371
        %v5343 = vunpack.c.l.b16 %v4372
        %v5344 = vunpack.c.h.b16 %v4372
        %v5345 = vunpack.c.l.b16 %v4373
        %v5346 = vunpack.c.h.b16 %v4373
        %v5347 = vunpack.c.l.b16 %v4374
        %v5348 = vunpack.c.h.b16 %v4374
        %v5349 = vunpack.c.l.b16 %v4375
        %v5350 = vunpack.c.h.b16 %v4375
        %v5351 = vunpack.c.l.b16 %v4376
        %v5352 = vunpack.c.h.b16 %v4376
        %v5353 = vunpack.c.l.b16 %v4377
        %v5354 = vunpack.c.h.b16 %v4377
        %v5355 = vunpack.c.l.b16 %v4378
        %v5356 = vunpack.c.h.b16 %v4378
        %v5357 = vunpack.c.l.b16 %v4379
        %v5358 = vunpack.c.h.b16 %v4379
        %v5359 = vunpack.c.l.b16 %v4380
        %v5360 = vunpack.c.h.b16 %v4380
        %v5361 = vunpack.c.l.b16 %v4381
        %v5362 = vunpack.c.h.b16 %v4381
        %v5363 = vunpack.c.l.b16 %v4382
        %v5364 = vunpack.c.h.b16 %v4382
        %v5365 = vunpack.c.l.b16 %v4383
        %v5366 = vunpack.c.h.b16 %v4383
        %v5367 = vunpack.c.l.b16 %v4384
        %v5368 = vunpack.c.h.b16 %v4384
        %v5369 = vunpack.c.l.b16 %v4385
        %v5370 = vunpack.c.h.b16 %v4385
        %v5371 = vunpack.c.l.b16 %v4386
        %v5372 = vunpack.c.h.b16 %v4386
        %v5373 = vunpack.c.l.b16 %v4387
        %v5374 = vunpack.c.h.b16 %v4387
        %v5375 = vunpack.c.l.b16 %v4388
        %v5376 = vunpack.c.h.b16 %v4388
        %v5377 = vunpack.c.l.b16 %v4389
        %v5378 = vunpack.c.h.b16 %v4389
        %v5379 = vunpack.c.l.b16 %v4390
        %v5380 = vunpack.c.h.b16 %v4390
        %v5381 = vunpack.c.l.b16 %v4391
        %v5382 = vunpack.c.h.b16 %v4391
        %v5383 = vunpack.c.l.b16 %v4392
        %v5384 = vunpack.c.h.b16 %v4392
        %v5385 = vunpack.c.l.b16 %v4393
        %v5386 = vunpack.c.h.b16 %v4393
        %v5387 = vunpack.c.l.b16 %v4394
        %v5388 = vunpack.c.h.b16 %v4394
        %v5389 = vunpack.c.l.b16 %v4395
        %v5390 = vunpack.c.h.b16 %v4395
        %v5391 = vunpack.c.l.b16 %v4396
        %v5392 = vunpack.c.h.b16 %v4396
        %v5393 = vunpack.c.l.b16 %v4397
        %v5394 = vunpack.c.h.b16 %v4397
        %v5395 = vunpack.c.l.b16 %v4398
        %v5396 = vunpack.c.h.b16 %v4398
        %v5397 = vunpack.c.l.b16 %v4399
        %v5398 = vunpack.c.h.b16 %v4399
        %v5399 = vunpack.c.l.b16 %v4400
        %v5400 = vunpack.c.h.b16 %v4400
        %v5401 = vunpack.c.l.b16 %v4401
        %v5402 = vunpack.c.h.b16 %v4401
        %v5403 = vunpack.c.l.b16 %v4402
        %v5404 = vunpack.c.h.b16 %v4402
        %v5405 = vunpack.c.l.b16 %v4403
        %v5406 = vunpack.c.h.b16 %v4403
        %v5407 = vunpack.c.l.b16 %v4404
        %v5408 = vunpack.c.h.b16 %v4404
        %v5409 = vunpack.c.l.b16 %v4405
        %v5410 = vunpack.c.h.b16 %v4405
        %v5411 = vunpack.c.l.b16 %v4406
        %v5412 = vunpack.c.h.b16 %v4406
        %v5413 = vunpack.c.l.b16 %v4407
        %v5414 = vunpack.c.h.b16 %v4407
        %v5415 = vunpack.c.l.b16 %v4408
        %v5416 = vunpack.c.h.b16 %v4408
        %v5417 = vunpack.c.l.b16 %v4409
        %v5418 = vunpack.c.h.b16 %v4409
        %v5419 = vunpack.c.l.b16 %v4410
        %v5420 = vunpack.c.h.b16 %v4410
        %v5421 = vunpack.c.l.b16 %v4411
        %v5422 = vunpack.c.h.b16 %v4411
        %v5423 = vunpack.c.l.b16 %v4412
        %v5424 = vunpack.c.h.b16 %v4412
        %v5425 = vunpack.c.l.b16 %v4413
        %v5426 = vunpack.c.h.b16 %v4413
        %v5427 = vunpack.c.l.b16 %v4414
        %v5428 = vunpack.c.h.b16 %v4414
        %v5429 = vunpack.c.l.b16 %v4415
        %v5430 = vunpack.c.h.b16 %v4415
        %v5431 = vunpack.c.l.b16 %v4416
        %v5432 = vunpack.c.h.b16 %v4416
        %v5433 = vunpack.c.l.b16 %v4417
        %v5434 = vunpack.c.h.b16 %v4417
        %v5435 = vunpack.c.l.b16 %v4418
        %v5436 = vunpack.c.h.b16 %v4418
        %v5437 = vunpack.c.l.b16 %v4419
        %v5438 = vunpack.c.h.b16 %v4419
        %v5439 = vunpack.c.l.b16 %v4420
        %v5440 = vunpack.c.h.b16 %v4420
        %v5441 = vunpack.c.l.b16 %v4421
        %v5442 = vunpack.c.h.b16 %v4421
        %v5443 = vunpack.c.l.b16 %v4422
        %v5444 = vunpack.c.h.b16 %v4422
        %v5445 = vunpack.c.l.b16 %v4423
        %v5446 = vunpack.c.h.b16 %v4423
        %v5447 = vunpack.c.l.b16 %v4424
        %v5448 = vunpack.c.h.b16 %v4424
        %v5449 = vunpack.c.l.b16 %v4425
        %v5450 = vunpack.c.h.b16 %v4425
        %v5451 = vunpack.c.l.b16 %v4426
        %v5452 = vunpack.c.h.b16 %v4426
        %v5453 = vunpack.c.l.b16 %v4427
        %v5454 = vunpack.c.h.b16 %v4427
        %v5455 = vunpack.c.l.b16 %v4428
        %v5456 = vunpack.c.h.b16 %v4428
        %v5457 = vunpack.c.l.b16 %v4429
        %v5458 = vunpack.c.h.b16 %v4429
        %v5459 = vunpack.c.l.b16 %v4430
        %v5460 = vunpack.c.h.b16 %v4430
        %v5461 = vunpack.c.l.b16 %v4431
        %v5462 = vunpack.c.h.b16 %v4431
        %v5463 = vunpack.c.l.b16 %v4432
        %v5464 = vunpack.c.h.b16 %v4432
        %v5465 = vunpack.c.l.b16 %v4433
        %v5466 = vunpack.c.h.b16 %v4433
        %v5467 = vunpack.c.l.b16 %v4434
        %v5468 = vunpack.c.h.b16 %v4434
        %v5469 = vunpack.c.l.b16 %v4435
        %v5470 = vunpack.c.h.b16 %v4435
        %v5471 = vunpack.c.l.b16 %v4436
        %v5472 = vunpack.c.h.b16 %v4436
        %v5473 = vunpack.c.l.b16 %v4437
        %v5474 = vunpack.c.h.b16 %v4437
        %v5475 = vunpack.c.l.b16 %v4438
        %v5476 = vunpack.c.h.b16 %v4438
        %v5477 = vunpack.c.l.b16 %v4439
        %v5478 = vunpack.c.h.b16 %v4439
        %v5479 = vunpack.c.l.b16 %v4440
        %v5480 = vunpack.c.h.b16 %v4440
        %v5481 = vunpack.c.l.b16 %v4441
        %v5482 = vunpack.c.h.b16 %v4441
        %v5483 = vunpack.c.l.b16 %v4442
        %v5484 = vunpack.c.h.b16 %v4442
        %v5485 = vunpack.c.l.b16 %v4443
        %v5486 = vunpack.c.h.b16 %v4443
        %v5487 = vunpack.c.l.b16 %v4444
        %v5488 = vunpack.c.h.b16 %v4444
        %v5489 = vunpack.c.l.b16 %v4445
        %v5490 = vunpack.c.h.b16 %v4445
        %v5491 = vunpack.c.l.b16 %v4446
        %v5492 = vunpack.c.h.b16 %v4446
        %v5493 = vunpack.c.l.b16 %v4447
        %v5494 = vunpack.c.h.b16 %v4447
        %v5495 = vunpack.c.l.b16 %v4448
        %v5496 = vunpack.c.h.b16 %v4448
        %v5497 = vunpack.c.l.b16 %v4449
        %v5498 = vunpack.c.h.b16 %v4449
        %v5499 = vunpack.c.l.b16 %v4450
        %v5500 = vunpack.c.h.b16 %v4450
        %v5501 = vunpack.c.l.b16 %v4451
        %v5502 = vunpack.c.h.b16 %v4451
        %v5503 = vunpack.c.l.b16 %v4452
        %v5504 = vunpack.c.h.b16 %v4452
        %v5505 = vunpack.c.l.b16 %v4453
        %v5506 = vunpack.c.h.b16 %v4453
        %v5507 = vunpack.c.l.b16 %v4454
        %v5508 = vunpack.c.h.b16 %v4454
        %v5509 = vunpack.c.l.b16 %v4455
        %v5510 = vunpack.c.h.b16 %v4455
        %v5511 = vunpack.c.l.b16 %v4456
        %v5512 = vunpack.c.h.b16 %v4456
        %v5513 = vunpack.c.l.b16 %v4457
        %v5514 = vunpack.c.h.b16 %v4457
        %v5515 = vunpack.c.l.b16 %v4458
        %v5516 = vunpack.c.h.b16 %v4458
        %v5517 = vunpack.c.l.b16 %v4459
        %v5518 = vunpack.c.h.b16 %v4459
        %v5519 = vunpack.c.l.b16 %v4460
        %v5520 = vunpack.c.h.b16 %v4460
        %v5521 = vunpack.c.l.b16 %v4461
        %v5522 = vunpack.c.h.b16 %v4461
        %v5523 = vunpack.c.l.b16 %v4462
        %v5524 = vunpack.c.h.b16 %v4462
        %v5525 = vunpack.c.l.b16 %v4463
        %v5526 = vunpack.c.h.b16 %v4463
        %v5527 = vunpack.c.l.b16 %v4464
        %v5528 = vunpack.c.h.b16 %v4464
        %v5529 = vunpack.c.l.b16 %v4465
        %v5530 = vunpack.c.h.b16 %v4465
        %v5531 = vunpack.c.l.b16 %v4466
        %v5532 = vunpack.c.h.b16 %v4466
        %v5533 = vunpack.c.l.b16 %v4467
        %v5534 = vunpack.c.h.b16 %v4467
        %v5535 = vunpack.c.l.b16 %v4468
        %v5536 = vunpack.c.h.b16 %v4468
        %v5537 = vunpack.c.l.b16 %v4469
        %v5538 = vunpack.c.h.b16 %v4469
        %v5539 = vunpack.c.l.b16 %v4470
        %v5540 = vunpack.c.h.b16 %v4470
        %v5541 = vunpack.c.l.b16 %v4471
        %v5542 = vunpack.c.h.b16 %v4471
        %v5543 = vunpack.c.l.b16 %v4472
        %v5544 = vunpack.c.h.b16 %v4472
        %v5545 = vunpack.c.l.b16 %v4473
        %v5546 = vunpack.c.h.b16 %v4473
        %v5547 = vunpack.c.l.b16 %v4474
        %v5548 = vunpack.c.h.b16 %v4474
        %v5549 = vunpack.c.l.b16 %v4475
        %v5550 = vunpack.c.h.b16 %v4475
        %v5551 = vunpack.c.l.b16 %v4476
        %v5552 = vunpack.c.h.b16 %v4476
        %v5553 = vunpack.c.l.b16 %v4477
        %v5554 = vunpack.c.h.b16 %v4477
        %v5555 = vunpack.c.l.b16 %v4478
        %v5556 = vunpack.c.h.b16 %v4478
        %v5557 = vunpack.c.l.b16 %v4479
        %v5558 = vunpack.c.h.b16 %v4479
        %v5559 = vunpack.c.l.b16 %v4480
        %v5560 = vunpack.c.h.b16 %v4480
        %v5561 = vunpack.c.l.b16 %v4481
        %v5562 = vunpack.c.h.b16 %v4481
        %v5563 = vunpack.c.l.b16 %v4482
        %v5564 = vunpack.c.h.b16 %v4482
        %v5565 = vunpack.c.l.b16 %v4483
        %v5566 = vunpack.c.h.b16 %v4483
        %v5567 = vunpack.c.l.b16 %v4484
        %v5568 = vunpack.c.h.b16 %v4484
        %v5569 = vunpack.c.l.b16 %v4485
        %v5570 = vunpack.c.h.b16 %v4485
        %v5571 = vunpack.c.l.b16 %v4486
        %v5572 = vunpack.c.h.b16 %v4486
        %v5573 = vunpack.c.l.b16 %v4487
        %v5574 = vunpack.c.h.b16 %v4487
        %v5575 = vunpack.c.l.b16 %v4488
        %v5576 = vunpack.c.h.b16 %v4488
        %v5577 = vunpack.c.l.b16 %v4489
        %v5578 = vunpack.c.h.b16 %v4489
        %v5579 = vunpack.c.l.b16 %v4490
        %v5580 = vunpack.c.h.b16 %v4490
        %v5581 = vunpack.c.l.b16 %v4491
        %v5582 = vunpack.c.h.b16 %v4491
        %v5583 = vunpack.c.l.b16 %v4492
        %v5584 = vunpack.c.h.b16 %v4492
        %v5585 = vunpack.c.l.b16 %v4493
        %v5586 = vunpack.c.h.b16 %v4493
        %v5587 = vunpack.c.l.b16 %v4494
        %v5588 = vunpack.c.h.b16 %v4494
        %v5589 = vunpack.c.l.b16 %v4495
        %v5590 = vunpack.c.h.b16 %v4495
        %v5591 = vunpack.c.l.b16 %v4496
        %v5592 = vunpack.c.h.b16 %v4496
        %v5593 = vunpack.c.l.b16 %v4497
        %v5594 = vunpack.c.h.b16 %v4497
        %v5595 = vunpack.c.l.b16 %v4498
        %v5596 = vunpack.c.h.b16 %v4498
        %v5597 = vunpack.c.l.b16 %v4499
        %v5598 = vunpack.c.h.b16 %v4499
        %v5599 = vunpack.c.l.b16 %v4500
        %v5600 = vunpack.c.h.b16 %v4500
        %v5601 = vunpack.c.l.b16 %v4501
        %v5602 = vunpack.c.h.b16 %v4501
        %v5603 = vunpack.c.l.b16 %v4502
        %v5604 = vunpack.c.h.b16 %v4502
        %v5605 = vunpack.c.l.b16 %v4503
        %v5606 = vunpack.c.h.b16 %v4503
        %v5607 = vunpack.c.l.b16 %v4504
        %v5608 = vunpack.c.h.b16 %v4504
        %v5609 = vunpack.c.l.b16 %v4505
        %v5610 = vunpack.c.h.b16 %v4505
        %v5611 = vunpack.c.l.b16 %v4506
        %v5612 = vunpack.c.h.b16 %v4506
        %v5613 = vunpack.c.l.b16 %v4507
        %v5614 = vunpack.c.h.b16 %v4507
        %v5615 = vunpack.c.l.b16 %v4508
        %v5616 = vunpack.c.h.b16 %v4508
        %v5617 = vunpack.c.l.b16 %v4509
        %v5618 = vunpack.c.h.b16 %v4509
        %v5619 = vunpack.c.l.b16 %v4510
        %v5620 = vunpack.c.h.b16 %v4510
        %v5621 = vunpack.c.l.b16 %v4511
        %v5622 = vunpack.c.h.b16 %v4511
        %v5623 = vunpack.c.l.b16 %v4512
        %v5624 = vunpack.c.h.b16 %v4512
        %v5625 = vunpack.c.l.b16 %v4513
        %v5626 = vunpack.c.h.b16 %v4513
        %v5627 = vunpack.c.l.b16 %v4514
        %v5628 = vunpack.c.h.b16 %v4514
        %v5629 = vunpack.c.l.b16 %v4515
        %v5630 = vunpack.c.h.b16 %v4515
        %v5631 = vunpack.c.l.b16 %v4516
        %v5632 = vunpack.c.h.b16 %v4516
        %v5633 = vunpack.c.l.b16 %v4517
        %v5634 = vunpack.c.h.b16 %v4517
        %v5635 = vunpack.c.l.b16 %v4518
        %v5636 = vunpack.c.h.b16 %v4518
        %v5637 = vunpack.c.l.b16 %v4519
        %v5638 = vunpack.c.h.b16 %v4519
        %v5639 = vunpack.c.l.b16 %v4520
        %v5640 = vunpack.c.h.b16 %v4520
        %v5641 = vunpack.c.l.b16 %v4521
        %v5642 = vunpack.c.h.b16 %v4521
        %v5643 = vunpack.c.l.b16 %v4522
        %v5644 = vunpack.c.h.b16 %v4522
        %v5645 = vunpack.c.l.b16 %v4523
        %v5646 = vunpack.c.h.b16 %v4523
        %v5647 = vunpack.c.l.b16 %v4524
        %v5648 = vunpack.c.h.b16 %v4524
        %v5649 = vunpack.c.l.b16 %v4525
        %v5650 = vunpack.c.h.b16 %v4525
        %v5651 = vunpack.c.l.b16 %v4526
        %v5652 = vunpack.c.h.b16 %v4526
        %v5653 = vunpack.c.l.b16 %v4527
        %v5654 = vunpack.c.h.b16 %v4527
        %v5655 = vunpack.c.l.b16 %v4528
        %v5656 = vunpack.c.h.b16 %v4528
        %v5657 = vunpack.c.l.b16 %v4529
        %v5658 = vunpack.c.h.b16 %v4529
        %v5659 = vunpack.c.l.b16 %v4530
        %v5660 = vunpack.c.h.b16 %v4530
        %v5661 = vunpack.c.l.b16 %v4531
        %v5662 = vunpack.c.h.b16 %v4531
        %v5663 = vunpack.c.l.b16 %v4532
        %v5664 = vunpack.c.h.b16 %v4532
        %v5665 = vunpack.c.l.b16 %v4533
        %v5666 = vunpack.c.h.b16 %v4533
        %v5667 = vunpack.c.l.b16 %v4534
        %v5668 = vunpack.c.h.b16 %v4534
        %v5669 = vunpack.c.l.b16 %v4535
        %v5670 = vunpack.c.h.b16 %v4535
        %v5671 = vunpack.c.l.b16 %v4536
        %v5672 = vunpack.c.h.b16 %v4536
        %v5673 = vunpack.c.l.b16 %v4537
        %v5674 = vunpack.c.h.b16 %v4537
        %v5675 = vunpack.c.l.b16 %v4538
        %v5676 = vunpack.c.h.b16 %v4538
        %v5677 = vunpack.c.l.b16 %v4539
        %v5678 = vunpack.c.h.b16 %v4539
        %v5679 = vunpack.c.l.b16 %v4540
        %v5680 = vunpack.c.h.b16 %v4540
        %v5681 = vunpack.c.l.b16 %v4541
        %v5682 = vunpack.c.h.b16 %v4541
        %v5683 = vunpack.c.l.b16 %v4542
        %v5684 = vunpack.c.h.b16 %v4542
        %v5685 = vunpack.c.l.b16 %v4543
        %v5686 = vunpack.c.h.b16 %v4543
        %v5687 = vunpack.c.l.b16 %v4544
        %v5688 = vunpack.c.h.b16 %v4544
        %v5689 = vunpack.c.l.b16 %v4545
        %v5690 = vunpack.c.h.b16 %v4545
        %v5691 = vunpack.c.l.b16 %v4546
        %v5692 = vunpack.c.h.b16 %v4546
        %v5693 = vunpack.c.l.b16 %v4547
        %v5694 = vunpack.c.h.b16 %v4547
        %v5695 = vunpack.c.l.b16 %v4548
        %v5696 = vunpack.c.h.b16 %v4548
        %v5697 = vunpack.c.l.b16 %v4549
        %v5698 = vunpack.c.h.b16 %v4549
        %v5699 = vunpack.c.l.b16 %v4550
        %v5700 = vunpack.c.h.b16 %v4550
        %v5701 = vunpack.c.l.b16 %v4551
        %v5702 = vunpack.c.h.b16 %v4551
        %v5703 = vunpack.c.l.b16 %v4552
        %v5704 = vunpack.c.h.b16 %v4552
        %v5705 = vunpack.c.l.b16 %v4553
        %v5706 = vunpack.c.h.b16 %v4553
        %v5707 = vunpack.c.l.b16 %v4554
        %v5708 = vunpack.c.h.b16 %v4554
        %v5709 = vunpack.c.l.b16 %v4555
        %v5710 = vunpack.c.h.b16 %v4555
        %v5711 = vunpack.c.l.b16 %v4556
        %v5712 = vunpack.c.h.b16 %v4556
        %v5713 = vunpack.c.l.b16 %v4557
        %v5714 = vunpack.c.h.b16 %v4557
        %v5715 = vunpack.c.l.b16 %v4558
        %v5716 = vunpack.c.h.b16 %v4558
        %v5717 = vunpack.c.l.b16 %v4559
        %v5718 = vunpack.c.h.b16 %v4559
        %v5719 = vunpack.c.l.b16 %v4560
        %v5720 = vunpack.c.h.b16 %v4560
        %v5721 = vunpack.c.l.b16 %v4561
        %v5722 = vunpack.c.h.b16 %v4561
        %v5723 = vunpack.c.l.b16 %v4562
        %v5724 = vunpack.c.h.b16 %v4562
        %v5725 = vunpack.c.l.b16 %v4563
        %v5726 = vunpack.c.h.b16 %v4563
        %v5727 = vunpack.c.l.b16 %v4564
        %v5728 = vunpack.c.h.b16 %v4564
        %v5729 = vunpack.c.l.b16 %v4565
        %v5730 = vunpack.c.h.b16 %v4565
        %v5731 = vunpack.c.l.b16 %v4566
        %v5732 = vunpack.c.h.b16 %v4566
        %v5733 = vunpack.c.l.b16 %v4567
        %v5734 = vunpack.c.h.b16 %v4567
        %v5735 = vunpack.c.l.b16 %v4568
        %v5736 = vunpack.c.h.b16 %v4568
        %v5737 = vunpack.c.l.b16 %v4569
        %v5738 = vunpack.c.h.b16 %v4569
        %v5739 = vunpack.c.l.b16 %v4570
        %v5740 = vunpack.c.h.b16 %v4570
        %v5741 = vunpack.c.l.b16 %v4571
        %v5742 = vunpack.c.h.b16 %v4571
        %v5743 = vunpack.c.l.b16 %v4572
        %v5744 = vunpack.c.h.b16 %v4572
        %v5745 = vunpack.c.l.b16 %v4573
        %v5746 = vunpack.c.h.b16 %v4573
        %v5747 = vunpack.c.l.b16 %v4574
        %v5748 = vunpack.c.h.b16 %v4574
        %v5749 = vunpack.c.l.b16 %v4575
        %v5750 = vunpack.c.h.b16 %v4575
        %v5751 = vunpack.c.l.b16 %v4576
        %v5752 = vunpack.c.h.b16 %v4576
        %v5753 = vunpack.c.l.b16 %v4577
        %v5754 = vunpack.c.h.b16 %v4577
        %v5755 = vunpack.c.l.b16 %v4578
        %v5756 = vunpack.c.h.b16 %v4578
        %v5757 = vunpack.c.l.b16 %v4579
        %v5758 = vunpack.c.h.b16 %v4579
        %v5759 = vunpack.c.l.b16 %v4580
        %v5760 = vunpack.c.h.b16 %v4580
        %v5761 = vunpack.c.l.b16 %v4581
        %v5762 = vunpack.c.h.b16 %v4581
        %v5763 = vunpack.c.l.b16 %v4582
        %v5764 = vunpack.c.h.b16 %v4582
        %v5765 = vunpack.c.l.b16 %v4583
        %v5766 = vunpack.c.h.b16 %v4583
        %v5767 = vunpack.c.l.b16 %v4584
        %v5768 = vunpack.c.h.b16 %v4584
        %v5769 = vunpack.c.l.b16 %v4585
        %v5770 = vunpack.c.h.b16 %v4585
        %v5771 = vunpack.c.l.b16 %v4586
        %v5772 = vunpack.c.h.b16 %v4586
        %v5773 = vunpack.c.l.b16 %v4587
        %v5774 = vunpack.c.h.b16 %v4587
        %v5775 = vunpack.c.l.b16 %v4588
        %v5776 = vunpack.c.h.b16 %v4588
        %v5777 = vunpack.c.l.b16 %v4589
        %v5778 = vunpack.c.h.b16 %v4589
        %v5779 = vunpack.c.l.b16 %v4590
        %v5780 = vunpack.c.h.b16 %v4590
        %v5781 = vunpack.c.l.b16 %v4591
        %v5782 = vunpack.c.h.b16 %v4591
        %v5783 = vunpack.c.l.b16 %v4592
        %v5784 = vunpack.c.h.b16 %v4592
        %v5785 = vunpack.c.l.b16 %v4593
        %v5786 = vunpack.c.h.b16 %v4593
        %v5787 = vunpack.c.l.b16 %v4594
        %v5788 = vunpack.c.h.b16 %v4594
        %v5789 = vunpack.c.l.b16 %v4595
        %v5790 = vunpack.c.h.b16 %v4595
        %v5791 = vunpack.c.l.b16 %v4596
        %v5792 = vunpack.c.h.b16 %v4596
        %v5793 = vunpack.c.l.b16 %v4597
        %v5794 = vunpack.c.h.b16 %v4597
        %v5795 = vunpack.c.l.b16 %v4598
        %v5796 = vunpack.c.h.b16 %v4598
        %v5797 = vunpack.c.l.b16 %v4599
        %v5798 = vunpack.c.h.b16 %v4599
        %v5799 = vunpack.c.l.b16 %v4600
        %v5800 = vunpack.c.h.b16 %v4600
        %v5801 = vunpack.c.l.b16 %v4601
        %v5802 = vunpack.c.h.b16 %v4601
        %v5803 = vunpack.c.l.b16 %v4602
        %v5804 = vunpack.c.h.b16 %v4602
        %v5805 = vunpack.c.l.b16 %v4603
        %v5806 = vunpack.c.h.b16 %v4603
        %v5807 = vunpack.c.l.b16 %v4604
        %v5808 = vunpack.c.h.b16 %v4604
        %v5809 = vunpack.c.l.b16 %v4605
        %v5810 = vunpack.c.h.b16 %v4605
        %v5811 = vunpack.c.l.b16 %v4606
        %v5812 = vunpack.c.h.b16 %v4606
        %v5813 = vunpack.c.l.b16 %v4607
        %v5814 = vunpack.c.h.b16 %v4607
        %v5815 = vunpack.c.l.b16 %v4608
        %v5816 = vunpack.c.h.b16 %v4608
        %v5817 = vunpack.c.l.b16 %v4609
        %v5818 = vunpack.c.h.b16 %v4609
        %v5819 = vunpack.c.l.b16 %v4610
        %v5820 = vunpack.c.h.b16 %v4610
        %v5821 = vunpack.c.l.b16 %v4611
        %v5822 = vunpack.c.h.b16 %v4611
        %v5823 = vunpack.c.l.b16 %v4612
        %v5824 = vunpack.c.h.b16 %v4612
        %v5825 = vunpack.c.l.b16 %v4613
        %v5826 = vunpack.c.h.b16 %v4613
        %v5827 = vunpack.c.l.b16 %v4614
        %v5828 = vunpack.c.h.b16 %v4614
        %v5829 = vunpack.c.l.b16 %v4615
        %v5830 = vunpack.c.h.b16 %v4615
        %v5831 = vunpack.c.l.b16 %v4616
        %v5832 = vunpack.c.h.b16 %v4616
        %v5833 = vunpack.c.l.b16 %v4617
        %v5834 = vunpack.c.h.b16 %v4617
        %v5835 = vunpack.c.l.b16 %v4618
        %v5836 = vunpack.c.h.b16 %v4618
        %v5837 = vunpack.c.l.b16 %v4619
        %v5838 = vunpack.c.h.b16 %v4619
        %v5839 = vunpack.c.l.b16 %v4620
        %v5840 = vunpack.c.h.b16 %v4620
        %v5841 = vunpack.c.l.b16 %v4621
        %v5842 = vunpack.c.h.b16 %v4621
        %v5843 = vunpack.c.l.b16 %v4622
        %v5844 = vunpack.c.h.b16 %v4622
        %v5845 = vunpack.c.l.b16 %v4623
        %v5846 = vunpack.c.h.b16 %v4623
        %v5847 = vunpack.c.l.b16 %v4624
        %v5848 = vunpack.c.h.b16 %v4624
        %v5849 = vunpack.c.l.b16 %v4625
        %v5850 = vunpack.c.h.b16 %v4625
        %v5851 = vunpack.c.l.b16 %v4626
        %v5852 = vunpack.c.h.b16 %v4626
        %v5853 = vunpack.c.l.b16 %v4627
        %v5854 = vunpack.c.h.b16 %v4627
        %v5855 = vunpack.c.l.b16 %v4628
        %v5856 = vunpack.c.h.b16 %v4628
        %v5857 = vunpack.c.l.b16 %v4629
        %v5858 = vunpack.c.h.b16 %v4629
        %v5859 = vunpack.c.l.b16 %v4630
        %v5860 = vunpack.c.h.b16 %v4630
        %v5861 = vunpack.c.l.b16 %v4631
        %v5862 = vunpack.c.h.b16 %v4631
        %v5863 = vunpack.c.l.b16 %v4632
        %v5864 = vunpack.c.h.b16 %v4632
        %v5865 = vunpack.c.l.b16 %v4633
        %v5866 = vunpack.c.h.b16 %v4633
        %v5867 = vunpack.c.l.b16 %v4634
        %v5868 = vunpack.c.h.b16 %v4634
        %v5869 = vunpack.c.l.b16 %v4635
        %v5870 = vunpack.c.h.b16 %v4635
        %v5871 = vunpack.c.l.b16 %v4636
        %v5872 = vunpack.c.h.b16 %v4636
        %v5873 = vunpack.c.l.b16 %v4637
        %v5874 = vunpack.c.h.b16 %v4637
        %v5875 = vunpack.c.l.b16 %v4638
        %v5876 = vunpack.c.h.b16 %v4638
        %v5877 = vunpack.c.l.b16 %v4639
        %v5878 = vunpack.c.h.b16 %v4639
        %v5879 = vunpack.c.l.b16 %v4640
        %v5880 = vunpack.c.h.b16 %v4640
        %v5881 = vunpack.c.l.b16 %v4641
        %v5882 = vunpack.c.h.b16 %v4641
        %v5883 = vunpack.c.l.b16 %v4642
        %v5884 = vunpack.c.h.b16 %v4642
        %v5885 = vunpack.c.l.b16 %v4643
        %v5886 = vunpack.c.h.b16 %v4643
        %v5887 = vunpack.c.l.b16 %v4644
        %v5888 = vunpack.c.h.b16 %v4644
        %v5889 = vunpack.c.l.b16 %v4645
        %v5890 = vunpack.c.h.b16 %v4645
        %v5891 = vunpack.c.l.b16 %v4646
        %v5892 = vunpack.c.h.b16 %v4646
        %v5893 = vunpack.c.l.b16 %v4647
        %v5894 = vunpack.c.h.b16 %v4647
        %v5895 = vunpack.c.l.b16 %v4648
        %v5896 = vunpack.c.h.b16 %v4648
        %v5897 = vunpack.c.l.b16 %v4649
        %v5898 = vunpack.c.h.b16 %v4649
        %v5899 = vunpack.c.l.b16 %v4650
        %v5900 = vunpack.c.h.b16 %v4650
        %v5901 = vunpack.c.l.b16 %v4651
        %v5902 = vunpack.c.h.b16 %v4651
        %v5903 = vunpack.c.l.b16 %v4652
        %v5904 = vunpack.c.h.b16 %v4652
        %v5905 = vunpack.c.l.b16 %v4653
        %v5906 = vunpack.c.h.b16 %v4653
        %v5907 = vunpack.c.l.b16 %v4654
        %v5908 = vunpack.c.h.b16 %v4654
        %v5909 = vunpack.c.l.b16 %v4655
        %v5910 = vunpack.c.h.b16 %v4655
        %v5911 = vunpack.c.l.b16 %v4656
        %v5912 = vunpack.c.h.b16 %v4656
        %v5913 = vunpack.c.l.b16 %v4657
        %v5914 = vunpack.c.h.b16 %v4657
        %v5915 = vunpack.c.l.b16 %v4658
        %v5916 = vunpack.c.h.b16 %v4658
        %v5917 = vunpack.c.l.b16 %v4659
        %v5918 = vunpack.c.h.b16 %v4659
        %v5919 = vunpack.c.l.b16 %v4660
        %v5920 = vunpack.c.h.b16 %v4660
        %v5921 = vunpack.c.l.b16 %v4661
        %v5922 = vunpack.c.h.b16 %v4661
        %v5923 = vunpack.c.l.b16 %v4662
        %v5924 = vunpack.c.h.b16 %v4662
        %v5925 = vunpack.c.l.b16 %v4663
        %v5926 = vunpack.c.h.b16 %v4663
        %v5927 = vunpack.c.l.b16 %v4664
        %v5928 = vunpack.c.h.b16 %v4664
        %v5929 = vunpack.c.l.b16 %v4665
        %v5930 = vunpack.c.h.b16 %v4665
        %v5931 = vunpack.c.l.b16 %v4666
        %v5932 = vunpack.c.h.b16 %v4666
        %v5933 = vunpack.c.l.b16 %v4667
        %v5934 = vunpack.c.h.b16 %v4667
        %v5935 = vunpack.c.l.b16 %v4668
        %v5936 = vunpack.c.h.b16 %v4668
        %v5937 = vunpack.c.l.b16 %v4669
        %v5938 = vunpack.c.h.b16 %v4669
        %v5939 = vunpack.c.l.b16 %v4670
        %v5940 = vunpack.c.h.b16 %v4670
        %v5941 = vunpack.c.l.b16 %v4671
        %v5942 = vunpack.c.h.b16 %v4671
        %v5943 = vunpack.c.l.b16 %v4672
        %v5944 = vunpack.c.h.b16 %v4672
        %v5945 = vunpack.c.l.b16 %v4673
        %v5946 = vunpack.c.h.b16 %v4673
        %v5947 = vunpack.c.l.b16 %v4674
        %v5948 = vunpack.c.h.b16 %v4674
        %v5949 = vunpack.c.l.b16 %v4675
        %v5950 = vunpack.c.h.b16 %v4675
        %v5951 = vunpack.c.l.b16 %v4676
        %v5952 = vunpack.c.h.b16 %v4676
        %v5953 = vunpack.c.l.b16 %v4677
        %v5954 = vunpack.c.h.b16 %v4677
        %v5955 = vunpack.c.l.b16 %v4678
        %v5956 = vunpack.c.h.b16 %v4678
        %v5957 = vunpack.c.l.b16 %v4679
        %v5958 = vunpack.c.h.b16 %v4679
        %v5959 = vunpack.c.l.b16 %v4680
        %v5960 = vunpack.c.h.b16 %v4680
        %v5961 = vunpack.c.l.b16 %v4681
        %v5962 = vunpack.c.h.b16 %v4681
        %v5963 = vunpack.c.l.b16 %v4682
        %v5964 = vunpack.c.h.b16 %v4682
        %v5965 = vunpack.c.l.b16 %v4683
        %v5966 = vunpack.c.h.b16 %v4683
        %v5967 = vunpack.c.l.b16 %v4684
        %v5968 = vunpack.c.h.b16 %v4684
        %v5969 = vunpack.c.l.b16 %v4685
        %v5970 = vunpack.c.h.b16 %v4685
        %v5971 = vunpack.c.l.b16 %v4686
        %v5972 = vunpack.c.h.b16 %v4686
        %v5973 = vunpack.c.l.b16 %v4687
        %v5974 = vunpack.c.h.b16 %v4687
        %v5975 = vunpack.c.l.b16 %v4688
        %v5976 = vunpack.c.h.b16 %v4688
        %v5977 = vunpack.c.l.b16 %v4689
        %v5978 = vunpack.c.h.b16 %v4689
        %v5979 = vunpack.c.l.b16 %v4690
        %v5980 = vunpack.c.h.b16 %v4690
        %v5981 = vunpack.c.l.b16 %v4691
        %v5982 = vunpack.c.h.b16 %v4691
        %v5983 = vunpack.c.l.b16 %v4692
        %v5984 = vunpack.c.h.b16 %v4692
        %v5985 = vunpack.c.l.b16 %v4693
        %v5986 = vunpack.c.h.b16 %v4693
        %v5987 = vunpack.c.l.b16 %v4694
        %v5988 = vunpack.c.h.b16 %v4694
        %v5989 = vunpack.c.l.b16 %v4695
        %v5990 = vunpack.c.h.b16 %v4695
        %v5991 = vunpack.c.l.b16 %v4696
        %v5992 = vunpack.c.h.b16 %v4696
        %v5993 = vunpack.c.l.b16 %v4697
        %v5994 = vunpack.c.h.b16 %v4697
        %v5995 = vunpack.c.l.b16 %v4698
        %v5996 = vunpack.c.h.b16 %v4698
        %v5997 = vunpack.c.l.b16 %v4699
        %v5998 = vunpack.c.h.b16 %v4699
        %v5999 = vunpack.c.l.b16 %v4700
        %v6000 = vunpack.c.h.b16 %v4700
        %v6001 = vunpack.c.l.b16 %v4701
        %v6002 = vunpack.c.h.b16 %v4701
        %v6003 = vunpack.c.l.b16 %v4702
        %v6004 = vunpack.c.h.b16 %v4702
        %v6005 = vunpack.c.l.b16 %v4703
        %v6006 = vunpack.c.h.b16 %v4703
        %v6007 = vunpack.c.l.b16 %v4704
        %v6008 = vunpack.c.h.b16 %v4704
        %v6009 = vunpack.c.l.b16 %v4705
        %v6010 = vunpack.c.h.b16 %v4705
        %v6011 = vunpack.c.l.b16 %v4706
        %v6012 = vunpack.c.h.b16 %v4706
        %v6013 = vunpack.c.l.b16 %v4707
        %v6014 = vunpack.c.h.b16 %v4707
        %v6015 = vunpack.c.l.b16 %v4708
        %v6016 = vunpack.c.h.b16 %v4708
        %v6017 = vunpack.c.l.b16 %v4709
        %v6018 = vunpack.c.h.b16 %v4709
        %v6019 = vunpack.c.l.b16 %v4710
        %v6020 = vunpack.c.h.b16 %v4710
        %v6021 = vunpack.c.l.b16 %v4711
        %v6022 = vunpack.c.h.b16 %v4711
        %v6023 = vunpack.c.l.b16 %v4712
        %v6024 = vunpack.c.h.b16 %v4712
        %v6025 = vunpack.c.l.b16 %v4713
        %v6026 = vunpack.c.h.b16 %v4713
        %v6027 = vunpack.c.l.b16 %v4714
        %v6028 = vunpack.c.h.b16 %v4714
        %v6029 = vunpack.c.l.b16 %v4715
        %v6030 = vunpack.c.h.b16 %v4715
        %v6031 = vunpack.c.l.b16 %v4716
        %v6032 = vunpack.c.h.b16 %v4716
        %v6033 = vunpack.c.l.b16 %v4717
        %v6034 = vunpack.c.h.b16 %v4717
        %v6035 = vunpack.c.l.b16 %v4718
        %v6036 = vunpack.c.h.b16 %v4718
        %v6037 = vunpack.c.l.b16 %v4719
        %v6038 = vunpack.c.h.b16 %v4719
        %v6039 = vunpack.c.l.b16 %v4720
        %v6040 = vunpack.c.h.b16 %v4720
        %v6041 = vunpack.c.l.b16 %v4721
        %v6042 = vunpack.c.h.b16 %v4721
        %v6043 = vunpack.c.l.b16 %v4722
        %v6044 = vunpack.c.h.b16 %v4722
        %v6045 = vunpack.c.l.b16 %v4723
        %v6046 = vunpack.c.h.b16 %v4723
        %v6047 = vunpack.c.l.b16 %v4724
        %v6048 = vunpack.c.h.b16 %v4724
        %v6049 = vunpack.c.l.b16 %v4725
        %v6050 = vunpack.c.h.b16 %v4725
        %v6051 = vunpack.c.l.b16 %v4726
        %v6052 = vunpack.c.h.b16 %v4726
        %v6053 = vunpack.c.l.b16 %v4727
        %v6054 = vunpack.c.h.b16 %v4727
        %v6055 = vunpack.c.l.b16 %v4728
        %v6056 = vunpack.c.h.b16 %v4728
        %v6057 = vunpack.c.l.b16 %v4729
        %v6058 = vunpack.c.h.b16 %v4729
        %v6059 = vunpack.c.l.b16 %v4730
        %v6060 = vunpack.c.h.b16 %v4730
        %v6061 = vunpack.c.l.b16 %v4731
        %v6062 = vunpack.c.h.b16 %v4731
        %v6063 = vunpack.c.l.b16 %v4732
        %v6064 = vunpack.c.h.b16 %v4732
        %v6065 = vunpack.c.l.b16 %v4733
        %v6066 = vunpack.c.h.b16 %v4733
        %v6067 = vunpack.c.l.b16 %v4734
        %v6068 = vunpack.c.h.b16 %v4734
        %v6069 = vunpack.c.l.b16 %v4735
        %v6070 = vunpack.c.h.b16 %v4735
        %v6071 = vunpack.c.l.b16 %v4736
        %v6072 = vunpack.c.h.b16 %v4736
        %v6073 = vunpack.c.l.b16 %v4737
        %v6074 = vunpack.c.h.b16 %v4737
        %v6075 = vunpack.c.l.b16 %v4738
        %v6076 = vunpack.c.h.b16 %v4738
        %v6077 = vunpack.c.l.b16 %v4739
        %v6078 = vunpack.c.h.b16 %v4739
        %v6079 = vunpack.c.l.b16 %v4740
        %v6080 = vunpack.c.h.b16 %v4740
        %v6081 = vunpack.c.l.b16 %v4741
        %v6082 = vunpack.c.h.b16 %v4741
        %v6083 = vunpack.c.l.b16 %v4742
        %v6084 = vunpack.c.h.b16 %v4742
        %v6085 = vunpack.c.l.b16 %v4743
        %v6086 = vunpack.c.h.b16 %v4743
        %v6087 = vunpack.c.l.b16 %v4744
        %v6088 = vunpack.c.h.b16 %v4744
        %v6089 = vunpack.c.l.b16 %v4745
        %v6090 = vunpack.c.h.b16 %v4745
        %v6091 = vunpack.c.l.b16 %v4746
        %v6092 = vunpack.c.h.b16 %v4746
        %v6093 = vunpack.c.l.b16 %v4747
        %v6094 = vunpack.c.h.b16 %v4747
        %v6095 = vunpack.c.l.b16 %v4748
        %v6096 = vunpack.c.h.b16 %v4748
        %v6097 = vunpack.c.l.b16 %v4749
        %v6098 = vunpack.c.h.b16 %v4749
        %v6099 = vunpack.c.l.b16 %v4750
        %v6100 = vunpack.c.h.b16 %v4750
        %v6101 = vunpack.c.l.b16 %v4751
        %v6102 = vunpack.c.h.b16 %v4751
        %v6103 = vunpack.c.l.b16 %v4752
        %v6104 = vunpack.c.h.b16 %v4752
        %v6105 = vunpack.c.l.b16 %v4753
        %v6106 = vunpack.c.h.b16 %v4753
        %v6107 = vunpack.c.l.b16 %v4754
        %v6108 = vunpack.c.h.b16 %v4754
        %v6109 = vunpack.c.l.b16 %v4755
        %v6110 = vunpack.c.h.b16 %v4755
        %v6111 = vunpack.c.l.b16 %v4756
        %v6112 = vunpack.c.h.b16 %v4756
        %v6113 = vunpack.c.l.b16 %v4757
        %v6114 = vunpack.c.h.b16 %v4757
        %v6115 = vunpack.c.l.b16 %v4758
        %v6116 = vunpack.c.h.b16 %v4758
        %v6117 = vunpack.c.l.b16 %v4759
        %v6118 = vunpack.c.h.b16 %v4759
        %v6119 = vunpack.c.l.b16 %v4760
        %v6120 = vunpack.c.h.b16 %v4760
        %v6121 = vunpack.c.l.b16 %v4761
        %v6122 = vunpack.c.h.b16 %v4761
        %v6123 = vunpack.c.l.b16 %v4762
        %v6124 = vunpack.c.h.b16 %v4762
        %v6125 = vunpack.c.l.b16 %v4763
        %v6126 = vunpack.c.h.b16 %v4763
        %v6127 = vunpack.c.l.b16 %v4764
        %v6128 = vunpack.c.h.b16 %v4764
        %v6129 = vunpack.c.l.b16 %v4765
        %v6130 = vunpack.c.h.b16 %v4765
        %v6131 = vunpack.c.l.b16 %v4766
        %v6132 = vunpack.c.h.b16 %v4766
        %v6133 = vunpack.c.l.b16 %v4767
        %v6134 = vunpack.c.h.b16 %v4767
        %v6135 = vunpack.c.l.b16 %v4768
        %v6136 = vunpack.c.h.b16 %v4768
        %v6137 = vunpack.c.l.b16 %v4769
        %v6138 = vunpack.c.h.b16 %v4769
        %v6139 = vunpack.c.l.b16 %v4770
        %v6140 = vunpack.c.h.b16 %v4770
        %v6141 = vunpack.c.l.b16 %v4771
        %v6142 = vunpack.c.h.b16 %v4771
        %v6143 = vunpack.c.l.b16 %v4772
        %v6144 = vunpack.c.h.b16 %v4772
        %v6145 = vunpack.c.l.b16 %v4773
        %v6146 = vunpack.c.h.b16 %v4773
        %v6147 = vunpack.c.l.b16 %v4774
        %v6148 = vunpack.c.h.b16 %v4774
        %v6149 = vunpack.c.l.b16 %v4775
        %v6150 = vunpack.c.h.b16 %v4775
        %v6151 = vunpack.c.l.b16 %v4776
        %v6152 = vunpack.c.h.b16 %v4776
        %v6153 = vunpack.c.l.b16 %v4777
        %v6154 = vunpack.c.h.b16 %v4777
        %v6155 = vunpack.c.l.b16 %v4778
        %v6156 = vunpack.c.h.b16 %v4778
        %v6157 = vunpack.c.l.b16 %v4779
        %v6158 = vunpack.c.h.b16 %v4779
        %v6159 = vunpack.c.l.b16 %v4780
        %v6160 = vunpack.c.h.b16 %v4780
        %v6161 = vunpack.c.l.b16 %v4781
        %v6162 = vunpack.c.h.b16 %v4781
        %v6163 = vunpack.c.l.b16 %v4782
        %v6164 = vunpack.c.h.b16 %v4782
        %v6165 = vunpack.c.l.b16 %v4783
        %v6166 = vunpack.c.h.b16 %v4783
        %v6167 = vpack.c.b16 %v5283, %v5249
        %v6168 = vpack.c.b16 %v5284, %v5250
        %v6169 = vpack.c.b16 %v5285, %v5251
        %v6170 = vpack.c.b16 %v5286, %v5252
        %v6171 = vpack.c.b16 %v5287, %v5253
        %v6172 = vpack.c.b16 %v5288, %v5254
        %v6173 = vpack.c.b16 %v5289, %v5255
        %v6174 = vpack.c.b16 %v5290, %v5256
        %v6175 = vpack.c.b16 %v5291, %v5257
        %v6176 = vpack.c.b16 %v5292, %v5258
        %v6177 = vpack.c.b16 %v5293, %v5259
        %v6178 = vpack.c.b16 %v5294, %v5260
        %v6179 = vpack.c.b16 %v5295, %v5261
        %v6180 = vpack.c.b16 %v5296, %v5262
        %v6181 = vpack.c.b16 %v5297, %v5263
        %v6182 = vpack.c.b16 %v5298, %v5264
        %v6183 = vpack.c.b16 %v5299, %v5265
        %v6184 = vpack.c.b16 %v5300, %v5266
        %v6185 = vpack.c.b16 %v5301, %v5267
        %v6186 = vpack.c.b16 %v5302, %v5268
        %v6187 = vpack.c.b16 %v5303, %v5269
        %v6188 = vpack.c.b16 %v5304, %v5270
        %v6189 = vpack.c.b16 %v5305, %v5271
        %v6190 = vpack.c.b16 %v5306, %v5272
        %v6191 = vpack.c.b16 %v5307, %v5273
        %v6192 = vpack.c.b16 %v5308, %v5274
        %v6193 = vpack.c.b16 %v5309, %v5275
        %v6194 = vpack.c.b16 %v5310, %v5276
        %v6195 = vpack.c.b16 %v5311, %v5277
        %v6196 = vpack.c.b16 %v5312, %v5278
        %v6197 = vpack.c.b16 %v5313, %v5279
        %v6198 = vpack.c.b16 %v5314, %v5280
        %v6199 = vpack.c.b16 %v5315, %v5281
        %v6200 = vpack.c.b16 %v5316, %v5282
        %v6201 = vpack.c.b16 %v5351, %v5317
        %v6202 = vpack.c.b16 %v5352, %v5318
        %v6203 = vpack.c.b16 %v5353, %v5319
        %v6204 = vpack.c.b16 %v5354, %v5320
        %v6205 = vpack.c.b16 %v5355, %v5321
        %v6206 = vpack.c.b16 %v5356, %v5322
        %v6207 = vpack.c.b16 %v5357, %v5323
        %v6208 = vpack.c.b16 %v5358, %v5324
        %v6209 = vpack.c.b16 %v5359, %v5325
        %v6210 = vpack.c.b16 %v5360, %v5326
        %v6211 = vpack.c.b16 %v5361, %v5327
        %v6212 = vpack.c.b16 %v5362, %v5328
        %v6213 = vpack.c.b16 %v5363, %v5329
        %v6214 = vpack.c.b16 %v5364, %v5330
        %v6215 = vpack.c.b16 %v5365, %v5331
        %v6216 = vpack.c.b16 %v5366, %v5332
        %v6217 = vpack.c.b16 %v5367, %v5333
        %v6218 = vpack.c.b16 %v5368, %v5334
        %v6219 = vpack.c.b16 %v5369, %v5335
        %v6220 = vpack.c.b16 %v5370, %v5336
        %v6221 = vpack.c.b16 %v5371, %v5337
        %v6222 = vpack.c.b16 %v5372, %v5338
        %v6223 = vpack.c.b16 %v5373, %v5339
        %v6224 = vpack.c.b16 %v5374, %v5340
        %v6225 = vpack.c.b16 %v5375, %v5341
        %v6226 = vpack.c.b16 %v5376, %v5342
        %v6227 = vpack.c.b16 %v5377, %v5343
        %v6228 = vpack.c.b16 %v5378, %v5344
        %v6229 = vpack.c.b16 %v5379, %v5345
        %v6230 = vpack.c.b16 %v5380, %v5346
        %v6231 = vpack.c.b16 %v5381, %v5347
        %v6232 = vpack.c.b16 %v5382, %v5348
        %v6233 = vpack.c.b16 %v5383, %v5349
        %v6234 = vpack.c.b16 %v5384, %v5350
        %v6235 = vpack.c.b16 %v5419, %v5385
        %v6236 = vpack.c.b16 %v5420, %v5386
        %v6237 = vpack.c.b16 %v5421, %v5387
        %v6238 = vpack.c.b16 %v5422, %v5388
        %v6239 = vpack.c.b16 %v5423, %v5389
        %v6240 = vpack.c.b16 %v5424, %v5390
        %v6241 = vpack.c.b16 %v5425, %v5391
        %v6242 = vpack.c.b16 %v5426, %v5392
        %v6243 = vpack.c.b16 %v5427, %v5393
        %v6244 = vpack.c.b16 %v5428, %v5394
        %v6245 = vpack.c.b16 %v5429, %v5395
        %v6246 = vpack.c.b16 %v5430, %v5396
        %v6247 = vpack.c.b16 %v5431, %v5397
        %v6248 = vpack.c.b16 %v5432, %v5398
        %v6249 = vpack.c.b16 %v5433, %v5399
        %v6250 = vpack.c.b16 %v5434, %v5400
        %v6251 = vpack.c.b16 %v5435, %v5401
        %v6252 = vpack.c.b16 %v5436, %v5402
        %v6253 = vpack.c.b16 %v5437, %v5403
        %v6254 = vpack.c.b16 %v5438, %v5404
        %v6255 = vpack.c.b16 %v5439, %v5405
        %v6256 = vpack.c.b16 %v5440, %v5406
        %v6257 = vpack.c.b16 %v5441, %v5407
        %v6258 = vpack.c.b16 %v5442, %v5408
        %v6259 = vpack.c.b16 %v5443, %v5409
        %v6260 = vpack.c.b16 %v5444, %v5410
        %v6261 = vpack.c.b16 %v5445, %v5411
        %v6262 = vpack.c.b16 %v5446, %v5412
        %v6263 = vpack.c.b16 %v5447, %v5413
        %v6264 = vpack.c.b16 %v5448, %v5414
        %v6265 = vpack.c.b16 %v5449, %v5415
        %v6266 = vpack.c.b16 %v5450, %v5416
        %v6267 = vpack.c.b16 %v5451, %v5417
        %v6268 = vpack.c.b16 %v5452, %v5418
        %v6269 = vpack.c.b16 %v5487, %v5453
        %v6270 = vpack.c.b16 %v5488, %v5454
        %v6271 = vpack.c.b16 %v5489, %v5455
        %v6272 = vpack.c.b16 %v5490, %v5456
        %v6273 = vpack.c.b16 %v5491, %v5457
        %v6274 = vpack.c.b16 %v5492, %v5458
        %v6275 = vpack.c.b16 %v5493, %v5459
        %v6276 = vpack.c.b16 %v5494, %v5460
        %v6277 = vpack.c.b16 %v5495, %v5461
        %v6278 = vpack.c.b16 %v5496, %v5462
        %v6279 = vpack.c.b16 %v5497, %v5463
        %v6280 = vpack.c.b16 %v5498, %v5464
        %v6281 = vpack.c.b16 %v5499, %v5465
        %v6282 = vpack.c.b16 %v5500, %v5466
        %v6283 = vpack.c.b16 %v5501, %v5467
        %v6284 = vpack.c.b16 %v5502, %v5468
        %v6285 = vpack.c.b16 %v5503, %v5469
        %v6286 = vpack.c.b16 %v5504, %v5470
        %v6287 = vpack.c.b16 %v5505, %v5471
        %v6288 = vpack.c.b16 %v5506, %v5472
        %v6289 = vpack.c.b16 %v5507, %v5473
        %v6290 = vpack.c.b16 %v5508, %v5474
        %v6291 = vpack.c.b16 %v5509, %v5475
        %v6292 = vpack.c.b16 %v5510, %v5476
        %v6293 = vpack.c.b16 %v5511, %v5477
        %v6294 = vpack.c.b16 %v5512, %v5478
        %v6295 = vpack.c.b16 %v5513, %v5479
        %v6296 = vpack.c.b16 %v5514, %v5480
        %v6297 = vpack.c.b16 %v5515, %v5481
        %v6298 = vpack.c.b16 %v5516, %v5482
        %v6299 = vpack.c.b16 %v5517, %v5483
        %v6300 = vpack.c.b16 %v5518, %v5484
        %v6301 = vpack.c.b16 %v5519, %v5485
        %v6302 = vpack.c.b16 %v5520, %v5486
        %v6303 = vpack.c.b16 %v5555, %v5521
        %v6304 = vpack.c.b16 %v5556, %v5522
        %v6305 = vpack.c.b16 %v5557, %v5523
        %v6306 = vpack.c.b16 %v5558, %v5524
        %v6307 = vpack.c.b16 %v5559, %v5525
        %v6308 = vpack.c.b16 %v5560, %v5526
        %v6309 = vpack.c.b16 %v5561, %v5527
        %v6310 = vpack.c.b16 %v5562, %v5528
        %v6311 = vpack.c.b16 %v5563, %v5529
        %v6312 = vpack.c.b16 %v5564, %v5530
        %v6313 = vpack.c.b16 %v5565, %v5531
        %v6314 = vpack.c.b16 %v5566, %v5532
        %v6315 = vpack.c.b16 %v5567, %v5533
        %v6316 = vpack.c.b16 %v5568, %v5534
        %v6317 = vpack.c.b16 %v5569, %v5535
        %v6318 = vpack.c.b16 %v5570, %v5536
        %v6319 = vpack.c.b16 %v5571, %v5537
        %v6320 = vpack.c.b16 %v5572, %v5538
        %v6321 = vpack.c.b16 %v5573, %v5539
        %v6322 = vpack.c.b16 %v5574, %v5540
        %v6323 = vpack.c.b16 %v5575, %v5541
        %v6324 = vpack.c.b16 %v5576, %v5542
        %v6325 = vpack.c.b16 %v5577, %v5543
        %v6326 = vpack.c.b16 %v5578, %v5544
        %v6327 = vpack.c.b16 %v5579, %v5545
        %v6328 = vpack.c.b16 %v5580, %v5546
        %v6329 = vpack.c.b16 %v5581, %v5547
        %v6330 = vpack.c.b16 %v5582, %v5548
        %v6331 = vpack.c.b16 %v5583, %v5549
        %v6332 = vpack.c.b16 %v5584, %v5550
        %v6333 = vpack.c.b16 %v5585, %v5551
        %v6334 = vpack.c.b16 %v5586, %v5552
        %v6335 = vpack.c.b16 %v5587, %v5553
        %v6336 = vpack.c.b16 %v5588, %v5554
        %v6337 = vpack.c.b16 %v5623, %v5589
        %v6338 = vpack.c.b16 %v5624, %v5590
        %v6339 = vpack.c.b16 %v5625, %v5591
        %v6340 = vpack.c.b16 %v5626, %v5592
        %v6341 = vpack.c.b16 %v5627, %v5593
        %v6342 = vpack.c.b16 %v5628, %v5594
        %v6343 = vpack.c.b16 %v5629, %v5595
        %v6344 = vpack.c.b16 %v5630, %v5596
        %v6345 = vpack.c.b16 %v5631, %v5597
        %v6346 = vpack.c.b16 %v5632, %v5598
        %v6347 = vpack.c.b16 %v5633, %v5599
        %v6348 = vpack.c.b16 %v5634, %v5600
        %v6349 = vpack.c.b16 %v5635, %v5601
        %v6350 = vpack.c.b16 %v5636, %v5602
        %v6351 = vpack.c.b16 %v5637, %v5603
        %v6352 = vpack.c.b16 %v5638, %v5604
        %v6353 = vpack.c.b16 %v5639, %v5605
        %v6354 = vpack.c.b16 %v5640, %v5606
        %v6355 = vpack.c.b16 %v5641, %v5607
        %v6356 = vpack.c.b16 %v5642, %v5608
        %v6357 = vpack.c.b16 %v5643, %v5609
        %v6358 = vpack.c.b16 %v5644, %v5610
        %v6359 = vpack.c.b16 %v5645, %v5611
        %v6360 = vpack.c.b16 %v5646, %v5612
        %v6361 = vpack.c.b16 %v5647, %v5613
        %v6362 = vpack.c.b16 %v5648, %v5614
        %v6363 = vpack.c.b16 %v5649, %v5615
        %v6364 = vpack.c.b16 %v5650, %v5616
        %v6365 = vpack.c.b16 %v5651, %v5617
        %v6366 = vpack.c.b16 %v5652, %v5618
        %v6367 = vpack.c.b16 %v5653, %v5619
        %v6368 = vpack.c.b16 %v5654, %v5620
        %v6369 = vpack.c.b16 %v5655, %v5621
        %v6370 = vpack.c.b16 %v5656, %v5622
        %v6371 = vpack.c.b16 %v5691, %v5657
        %v6372 = vpack.c.b16 %v5692, %v5658
        %v6373 = vpack.c.b16 %v5693, %v5659
        %v6374 = vpack.c.b16 %v5694, %v5660
        %v6375 = vpack.c.b16 %v5695, %v5661
        %v6376 = vpack.c.b16 %v5696, %v5662
        %v6377 = vpack.c.b16 %v5697, %v5663
        %v6378 = vpack.c.b16 %v5698, %v5664
        %v6379 = vpack.c.b16 %v5699, %v5665
        %v6380 = vpack.c.b16 %v5700, %v5666
        %v6381 = vpack.c.b16 %v5701, %v5667
        %v6382 = vpack.c.b16 %v5702, %v5668
        %v6383 = vpack.c.b16 %v5703, %v5669
        %v6384 = vpack.c.b16 %v5704, %v5670
        %v6385 = vpack.c.b16 %v5705, %v5671
        %v6386 = vpack.c.b16 %v5706, %v5672
        %v6387 = vpack.c.b16 %v5707, %v5673
        %v6388 = vpack.c.b16 %v5708, %v5674
        %v6389 = vpack.c.b16 %v5709, %v5675
        %v6390 = vpack.c.b16 %v5710, %v5676
        %v6391 = vpack.c.b16 %v5711, %v5677
        %v6392 = vpack.c.b16 %v5712, %v5678
        %v6393 = vpack.c.b16 %v5713, %v5679
        %v6394 = vpack.c.b16 %v5714, %v5680
        %v6395 = vpack.c.b16 %v5715, %v5681
        %v6396 = vpack.c.b16 %v5716, %v5682
        %v6397 = vpack.c.b16 %v5717, %v5683
        %v6398 = vpack.c.b16 %v5718, %v5684
        %v6399 = vpack.c.b16 %v5719, %v5685
        %v6400 = vpack.c.b16 %v5720, %v5686
        %v6401 = vpack.c.b16 %v5721, %v5687
        %v6402 = vpack.c.b16 %v5722, %v5688
        %v6403 = vpack.c.b16 %v5723, %v5689
        %v6404 = vpack.c.b16 %v5724, %v5690
        %v6405 = vpack.c.b16 %v5759, %v5725
        %v6406 = vpack.c.b16 %v5760, %v5726
        %v6407 = vpack.c.b16 %v5761, %v5727
        %v6408 = vpack.c.b16 %v5762, %v5728
        %v6409 = vpack.c.b16 %v5763, %v5729
        %v6410 = vpack.c.b16 %v5764, %v5730
        %v6411 = vpack.c.b16 %v5765, %v5731
        %v6412 = vpack.c.b16 %v5766, %v5732
        %v6413 = vpack.c.b16 %v5767, %v5733
        %v6414 = vpack.c.b16 %v5768, %v5734
        %v6415 = vpack.c.b16 %v5769, %v5735
        %v6416 = vpack.c.b16 %v5770, %v5736
        %v6417 = vpack.c.b16 %v5771, %v5737
        %v6418 = vpack.c.b16 %v5772, %v5738
        %v6419 = vpack.c.b16 %v5773, %v5739
        %v6420 = vpack.c.b16 %v5774, %v5740
        %v6421 = vpack.c.b16 %v5775, %v5741
        %v6422 = vpack.c.b16 %v5776, %v5742
        %v6423 = vpack.c.b16 %v5777, %v5743
        %v6424 = vpack.c.b16 %v5778, %v5744
        %v6425 = vpack.c.b16 %v5779, %v5745
        %v6426 = vpack.c.b16 %v5780, %v5746
        %v6427 = vpack.c.b16 %v5781, %v5747
        %v6428 = vpack.c.b16 %v5782, %v5748
        %v6429 = vpack.c.b16 %v5783, %v5749
        %v6430 = vpack.c.b16 %v5784, %v5750
        %v6431 = vpack.c.b16 %v5785, %v5751
        %v6432 = vpack.c.b16 %v5786, %v5752
        %v6433 = vpack.c.b16 %v5787, %v5753
        %v6434 = vpack.c.b16 %v5788, %v5754
        %v6435 = vpack.c.b16 %v5789, %v5755
        %v6436 = vpack.c.b16 %v5790, %v5756
        %v6437 = vpack.c.b16 %v5791, %v5757
        %v6438 = vpack.c.b16 %v5792, %v5758
        %v6439 = vpack.c.b16 %v5827, %v5793
        %v6440 = vpack.c.b16 %v5828, %v5794
        %v6441 = vpack.c.b16 %v5829, %v5795
        %v6442 = vpack.c.b16 %v5830, %v5796
        %v6443 = vpack.c.b16 %v5831, %v5797
        %v6444 = vpack.c.b16 %v5832, %v5798
        %v6445 = vpack.c.b16 %v5833, %v5799
        %v6446 = vpack.c.b16 %v5834, %v5800
        %v6447 = vpack.c.b16 %v5835, %v5801
        %v6448 = vpack.c.b16 %v5836, %v5802
        %v6449 = vpack.c.b16 %v5837, %v5803
        %v6450 = vpack.c.b16 %v5838, %v5804
        %v6451 = vpack.c.b16 %v5839, %v5805
        %v6452 = vpack.c.b16 %v5840, %v5806
        %v6453 = vpack.c.b16 %v5841, %v5807
        %v6454 = vpack.c.b16 %v5842, %v5808
        %v6455 = vpack.c.b16 %v5843, %v5809
        %v6456 = vpack.c.b16 %v5844, %v5810
        %v6457 = vpack.c.b16 %v5845, %v5811
        %v6458 = vpack.c.b16 %v5846, %v5812
        %v6459 = vpack.c.b16 %v5847, %v5813
        %v6460 = vpack.c.b16 %v5848, %v5814
        %v6461 = vpack.c.b16 %v5849, %v5815
        %v6462 = vpack.c.b16 %v5850, %v5816
        %v6463 = vpack.c.b16 %v5851, %v5817
        %v6464 = vpack.c.b16 %v5852, %v5818
        %v6465 = vpack.c.b16 %v5853, %v5819
        %v6466 = vpack.c.b16 %v5854, %v5820
        %v6467 = vpack.c.b16 %v5855, %v5821
        %v6468 = vpack.c.b16 %v5856, %v5822
        %v6469 = vpack.c.b16 %v5857, %v5823
        %v6470 = vpack.c.b16 %v5858, %v5824
        %v6471 = vpack.c.b16 %v5859, %v5825
        %v6472 = vpack.c.b16 %v5860, %v5826
        %v6473 = vpack.c.b16 %v5895, %v5861
        %v6474 = vpack.c.b16 %v5896, %v5862
        %v6475 = vpack.c.b16 %v5897, %v5863
        %v6476 = vpack.c.b16 %v5898, %v5864
        %v6477 = vpack.c.b16 %v5899, %v5865
        %v6478 = vpack.c.b16 %v5900, %v5866
        %v6479 = vpack.c.b16 %v5901, %v5867
        %v6480 = vpack.c.b16 %v5902, %v5868
        %v6481 = vpack.c.b16 %v5903, %v5869
        %v6482 = vpack.c.b16 %v5904, %v5870
        %v6483 = vpack.c.b16 %v5905, %v5871
        %v6484 = vpack.c.b16 %v5906, %v5872
        %v6485 = vpack.c.b16 %v5907, %v5873
        %v6486 = vpack.c.b16 %v5908, %v5874
        %v6487 = vpack.c.b16 %v5909, %v5875
        %v6488 = vpack.c.b16 %v5910, %v5876
        %v6489 = vpack.c.b16 %v5911, %v5877
        %v6490 = vpack.c.b16 %v5912, %v5878
        %v6491 = vpack.c.b16 %v5913, %v5879
        %v6492 = vpack.c.b16 %v5914, %v5880
        %v6493 = vpack.c.b16 %v5915, %v5881
        %v6494 = vpack.c.b16 %v5916, %v5882
        %v6495 = vpack.c.b16 %v5917, %v5883
        %v6496 = vpack.c.b16 %v5918, %v5884
        %v6497 = vpack.c.b16 %v5919, %v5885
        %v6498 = vpack.c.b16 %v5920, %v5886
        %v6499 = vpack.c.b16 %v5921, %v5887
        %v6500 = vpack.c.b16 %v5922, %v5888
        %v6501 = vpack.c.b16 %v5923, %v5889
        %v6502 = vpack.c.b16 %v5924, %v5890
        %v6503 = vpack.c.b16 %v5925, %v5891
        %v6504 = vpack.c.b16 %v5926, %v5892
        %v6505 = vpack.c.b16 %v5927, %v5893
        %v6506 = vpack.c.b16 %v5928, %v5894
        %v6507 = vpack.c.b16 %v5963, %v5929
        %v6508 = vpack.c.b16 %v5964, %v5930
        %v6509 = vpack.c.b16 %v5965, %v5931
        %v6510 = vpack.c.b16 %v5966, %v5932
        %v6511 = vpack.c.b16 %v5967, %v5933
        %v6512 = vpack.c.b16 %v5968, %v5934
        %v6513 = vpack.c.b16 %v5969, %v5935
        %v6514 = vpack.c.b16 %v5970, %v5936
        %v6515 = vpack.c.b16 %v5971, %v5937
        %v6516 = vpack.c.b16 %v5972, %v5938
        %v6517 = vpack.c.b16 %v5973, %v5939
        %v6518 = vpack.c.b16 %v5974, %v5940
        %v6519 = vpack.c.b16 %v5975, %v5941
        %v6520 = vpack.c.b16 %v5976, %v5942
        %v6521 = vpack.c.b16 %v5977, %v5943
        %v6522 = vpack.c.b16 %v5978, %v5944
        %v6523 = vpack.c.b16 %v5979, %v5945
        %v6524 = vpack.c.b16 %v5980, %v5946
        %v6525 = vpack.c.b16 %v5981, %v5947
        %v6526 = vpack.c.b16 %v5982, %v5948
        %v6527 = vpack.c.b16 %v5983, %v5949
        %v6528 = vpack.c.b16 %v5984, %v5950
        %v6529 = vpack.c.b16 %v5985, %v5951
        %v6530 = vpack.c.b16 %v5986, %v5952
        %v6531 = vpack.c.b16 %v5987, %v5953
        %v6532 = vpack.c.b16 %v5988, %v5954
        %v6533 = vpack.c.b16 %v5989, %v5955
        %v6534 = vpack.c.b16 %v5990, %v5956
        %v6535 = vpack.c.b16 %v5991, %v5957
        %v6536 = vpack.c.b16 %v5992, %v5958
        %v6537 = vpack.c.b16 %v5993, %v5959
        %v6538 = vpack.c.b16 %v5994, %v5960
        %v6539 = vpack.c.b16 %v5995, %v5961
        %v6540 = vpack.c.b16 %v5996, %v5962
        %v6541 = vpack.c.b16 %v6031, %v5997
        %v6542 = vpack.c.b16 %v6032, %v5998
        %v6543 = vpack.c.b16 %v6033, %v5999
        %v6544 = vpack.c.b16 %v6034, %v6000
        %v6545 = vpack.c.b16 %v6035, %v6001
        %v6546 = vpack.c.b16 %v6036, %v6002
        %v6547 = vpack.c.b16 %v6037, %v6003
        %v6548 = vpack.c.b16 %v6038, %v6004
        %v6549 = vpack.c.b16 %v6039, %v6005
        %v6550 = vpack.c.b16 %v6040, %v6006
        %v6551 = vpack.c.b16 %v6041, %v6007
        %v6552 = vpack.c.b16 %v6042, %v6008
        %v6553 = vpack.c.b16 %v6043, %v6009
        %v6554 = vpack.c.b16 %v6044, %v6010
        %v6555 = vpack.c.b16 %v6045, %v6011
        %v6556 = vpack.c.b16 %v6046, %v6012
        %v6557 = vpack.c.b16 %v6047, %v6013
        %v6558 = vpack.c.b16 %v6048, %v6014
        %v6559 = vpack.c.b16 %v6049, %v6015
        %v6560 = vpack.c.b16 %v6050, %v6016
        %v6561 = vpack.c.b16 %v6051, %v6017
        %v6562 = vpack.c.b16 %v6052, %v6018
        %v6563 = vpack.c.b16 %v6053, %v6019
        %v6564 = vpack.c.b16 %v6054, %v6020
        %v6565 = vpack.c.b16 %v6055, %v6021
        %v6566 = vpack.c.b16 %v6056, %v6022
        %v6567 = vpack.c.b16 %v6057, %v6023
        %v6568 = vpack.c.b16 %v6058, %v6024
        %v6569 = vpack.c.b16 %v6059, %v6025
        %v6570 = vpack.c.b16 %v6060, %v6026
        %v6571 = vpack.c.b16 %v6061, %v6027
        %v6572 = vpack.c.b16 %v6062, %v6028
        %v6573 = vpack.c.b16 %v6063, %v6029
        %v6574 = vpack.c.b16 %v6064, %v6030
        %v6575 = vpack.c.b16 %v6099, %v6065
        %v6576 = vpack.c.b16 %v6100, %v6066
        %v6577 = vpack.c.b16 %v6101, %v6067
        %v6578 = vpack.c.b16 %v6102, %v6068
        %v6579 = vpack.c.b16 %v6103, %v6069
        %v6580 = vpack.c.b16 %v6104, %v6070
        %v6581 = vpack.c.b16 %v6105, %v6071
        %v6582 = vpack.c.b16 %v6106, %v6072
        %v6583 = vpack.c.b16 %v6107, %v6073
        %v6584 = vpack.c.b16 %v6108, %v6074
        %v6585 = vpack.c.b16 %v6109, %v6075
        %v6586 = vpack.c.b16 %v6110, %v6076
        %v6587 = vpack.c.b16 %v6111, %v6077
        %v6588 = vpack.c.b16 %v6112, %v6078
        %v6589 = vpack.c.b16 %v6113, %v6079
        %v6590 = vpack.c.b16 %v6114, %v6080
        %v6591 = vpack.c.b16 %v6115, %v6081
        %v6592 = vpack.c.b16 %v6116, %v6082
        %v6593 = vpack.c.b16 %v6117, %v6083
        %v6594 = vpack.c.b16 %v6118, %v6084
        %v6595 = vpack.c.b16 %v6119, %v6085
        %v6596 = vpack.c.b16 %v6120, %v6086
        %v6597 = vpack.c.b16 %v6121, %v6087
        %v6598 = vpack.c.b16 %v6122, %v6088
        %v6599 = vpack.c.b16 %v6123, %v6089
        %v6600 = vpack.c.b16 %v6124, %v6090
        %v6601 = vpack.c.b16 %v6125, %v6091
        %v6602 = vpack.c.b16 %v6126, %v6092
        %v6603 = vpack.c.b16 %v6127, %v6093
        %v6604 = vpack.c.b16 %v6128, %v6094
        %v6605 = vpack.c.b16 %v6129, %v6095
        %v6606 = vpack.c.b16 %v6130, %v6096
        %v6607 = vpack.c.b16 %v6131, %v6097
        %v6608 = vpack.c.b16 %v6132, %v6098
        %v6609 = vpack.c.b16 %v6133, %v6133
        %v6610 = vpack.c.b16 %v6134, %v6134
        %v6611 = vpack.c.b16 %v6135, %v6135
        %v6612 = vpack.c.b16 %v6136, %v6136
        %v6613 = vpack.c.b16 %v6137, %v6137
        %v6614 = vpack.c.b16 %v6138, %v6138
        %v6615 = vpack.c.b16 %v6139, %v6139
        %v6616 = vpack.c.b16 %v6140, %v6140
        %v6617 = vpack.c.b16 %v6141, %v6141
        %v6618 = vpack.c.b16 %v6142, %v6142
        %v6619 = vpack.c.b16 %v6143, %v6143
        %v6620 = vpack.c.b16 %v6144, %v6144
        %v6621 = vpack.c.b16 %v6145, %v6145
        %v6622 = vpack.c.b16 %v6146, %v6146
        %v6623 = vpack.c.b16 %v6147, %v6147
        %v6624 = vpack.c.b16 %v6148, %v6148
        %v6625 = vpack.c.b16 %v6149, %v6149
        %v6626 = vpack.c.b16 %v6150, %v6150
        %v6627 = vpack.c.b16 %v6151, %v6151
        %v6628 = vpack.c.b16 %v6152, %v6152
        %v6629 = vpack.c.b16 %v6153, %v6153
        %v6630 = vpack.c.b16 %v6154, %v6154
        %v6631 = vpack.c.b16 %v6155, %v6155
        %v6632 = vpack.c.b16 %v6156, %v6156
        %v6633 = vpack.c.b16 %v6157, %v6157
        %v6634 = vpack.c.b16 %v6158, %v6158
        %v6635 = vpack.c.b16 %v6159, %v6159
        %v6636 = vpack.c.b16 %v6160, %v6160
        %v6637 = vpack.c.b16 %v6161, %v6161
        %v6638 = vpack.c.b16 %v6162, %v6162
        %v6639 = vpack.c.b16 %v6163, %v6163
        %v6640 = vpack.c.b16 %v6164, %v6164
        %v6641 = vpack.c.b16 %v6165, %v6165
        %v6642 = vpack.c.b16 %v6166, %v6166
        %vm7085 = vcmask 719872
        %v7087 = vsel %vm7085, %v4788, 0
        %v7090 = vsel %vm207, %v6609, 0
        %v7093 = vsel %vm207, %v6610, 0
        %v7096 = vsel %vm207, %v6611, 0
        %v7099 = vsel %vm207, %v6612, 0
        %v7102 = vsel %vm207, %v6613, 0
        %v7105 = vsel %vm207, %v6614, 0
        %v7108 = vsel %vm207, %v6615, 0
        %v7111 = vsel %vm207, %v6616, 0
        %v7114 = vsel %vm207, %v6617, 0
        %v7117 = vsel %vm207, %v6618, 0
        %v7120 = vsel %vm207, %v6619, 0
        %v7123 = vsel %vm207, %v6620, 0
        %v7126 = vsel %vm207, %v6621, 0
        %v7129 = vsel %vm207, %v6622, 0
        %v7132 = vsel %vm207, %v6623, 0
        %v7135 = vsel %vm207, %v6624, 0
        %v7138 = vsel %vm207, %v6625, 0
        %v7141 = vsel %vm207, %v6626, 0
        %v7144 = vsel %vm207, %v6627, 0
        %v7147 = vsel %vm207, %v6628, 0
        %v7150 = vsel %vm207, %v6629, 0
        %v7153 = vsel %vm207, %v6630, 0
        %v7156 = vsel %vm207, %v6631, 0
        %v7159 = vsel %vm207, %v6632, 0
        %v7162 = vsel %vm207, %v6633, 0
        %v7165 = vsel %vm207, %v6634, 0
        %v7168 = vsel %vm207, %v6635, 0
        %v7171 = vsel %vm207, %v6636, 0
        %v7174 = vsel %vm207, %v6637, 0
        %v7177 = vsel %vm207, %v6638, 0
        %v7180 = vsel %vm207, %v6639, 0
        %v7183 = vsel %vm207, %v6640, 0
        %v7186 = vsel %vm207, %v6641, 0
        %v7189 = vsel %vm207, %v6642, 0
        %7191 = vmatprep.subr.bf16.mxu0 %v6406
        %7192 = vmatpush1.bf16.msra.mxu0 %v6405
        %7193 = vmatprep.subr.bf16.mxu0 %v6372
        %7194 = vmatpush1.bf16.msra.mxu0 %v6371
        %7195 = vmatprep.subr.bf16.mxu0 %v6338
        %7196 = vmatpush1.bf16.msra.mxu0 %v6337
        %7197 = vmatprep.subr.bf16.mxu0 %v6304
        %7198 = vmatpush1.bf16.msra.mxu0 %v6303
        %7199 = vmatprep.subr.bf16.mxu0 %v6270
        %7200 = vmatpush1.bf16.msra.mxu0 %v6269
        %7201 = vmatprep.subr.bf16.mxu0 %v6236
        %7202 = vmatpush1.bf16.msra.mxu0 %v6235
        %7203 = vmatprep.subr.bf16.mxu0 %v6202
        %7204 = vmatpush1.bf16.msra.mxu0 %v6201
        %7205 = vmatprep.subr.bf16.mxu0 %v6168
        %7206 = vmatpush1.bf16.msra.mxu0 %v6167
        %7207 = vmatprep.subr.bf16.mxu0 0
        %7208 = vmatpush2.bf16.msra.mxu0 0
        %7209 = vmatprep.subr.bf16.mxu0 0
        %7210 = vmatpush2.bf16.msra.mxu0 0
        %7211 = vmatprep.subr.bf16.mxu0 %v7093
        %7212 = vmatpush2.bf16.msra.mxu0 %v7090
        %7213 = vmatprep.subr.bf16.mxu0 %v6576
        %7214 = vmatpush2.bf16.msra.mxu0 %v6575
        %7215 = vmatprep.subr.bf16.mxu0 %v6542
        %7216 = vmatpush2.bf16.msra.mxu0 %v6541
        %7217 = vmatprep.subr.bf16.mxu0 %v6508
        %7218 = vmatpush2.bf16.msra.mxu0 %v6507
        %7219 = vmatprep.subr.bf16.mxu0 %v6474
        %7220 = vmatpush2.bf16.msra.mxu0 %v6473
        %7221 = vmatprep.subr.bf16.mxu0 %v6440
        %7222 = vmatpush2.bf16.msra.mxu0 %v6439
        %7223 = vmatprep.mubr.bf16.mxu0 %v7087
        %7224 = vmatmul.mubr.bf16.gmra.mxu0 %v4787
        %v7225 = vpop.f32.mrf.mxu0
        %v7226 = vadd.f32 0.0, %v7225
        %v7227 = vpop.f32.mrf.mxu0
        %v7228 = vadd.f32 0.0, %v7227
        %v7229 = vpop.f32.mrf.mxu0
        %v7230 = vpop.f32.mrf.mxu0
        %7231 = vdwg.mxu0
        %7232 = vmatprep.subr.bf16.mxu0 %v6408
        %7233 = vmatpush1.bf16.msra.mxu0 %v6407
        %7234 = vmatprep.subr.bf16.mxu0 %v6374
        %7235 = vmatpush1.bf16.msra.mxu0 %v6373
        %7236 = vmatprep.subr.bf16.mxu0 %v6340
        %7237 = vmatpush1.bf16.msra.mxu0 %v6339
        %7238 = vmatprep.subr.bf16.mxu0 %v6306
        %7239 = vmatpush1.bf16.msra.mxu0 %v6305
        %7240 = vmatprep.subr.bf16.mxu0 %v6272
        %7241 = vmatpush1.bf16.msra.mxu0 %v6271
        %7242 = vmatprep.subr.bf16.mxu0 %v6238
        %7243 = vmatpush1.bf16.msra.mxu0 %v6237
        %7244 = vmatprep.subr.bf16.mxu0 %v6204
        %7245 = vmatpush1.bf16.msra.mxu0 %v6203
        %7246 = vmatprep.subr.bf16.mxu0 %v6170
        %7247 = vmatpush1.bf16.msra.mxu0 %v6169
        %7248 = vmatprep.subr.bf16.mxu0 0
        %7249 = vmatpush2.bf16.msra.mxu0 0
        %7250 = vmatprep.subr.bf16.mxu0 0
        %7251 = vmatpush2.bf16.msra.mxu0 0
        %7252 = vmatprep.subr.bf16.mxu0 %v7099
        %7253 = vmatpush2.bf16.msra.mxu0 %v7096
        %7254 = vmatprep.subr.bf16.mxu0 %v6578
        %7255 = vmatpush2.bf16.msra.mxu0 %v6577
        %7256 = vmatprep.subr.bf16.mxu0 %v6544
        %7257 = vmatpush2.bf16.msra.mxu0 %v6543
        %7258 = vmatprep.subr.bf16.mxu0 %v6510
        %7259 = vmatpush2.bf16.msra.mxu0 %v6509
        %7260 = vmatprep.subr.bf16.mxu0 %v6476
        %7261 = vmatpush2.bf16.msra.mxu0 %v6475
        %7262 = vmatprep.subr.bf16.mxu0 %v6442
        %7263 = vmatpush2.bf16.msra.mxu0 %v6441
        %7264 = vmatprep.mubr.bf16.mxu0 %v7087
        %7265 = vmatmul.mubr.bf16.gmra.mxu0 %v4787
        %v7266 = vpop.f32.mrf.mxu0
        %v7267 = vadd.f32 0.0, %v7266
        %v7268 = vpop.f32.mrf.mxu0
        %v7269 = vadd.f32 0.0, %v7268
        %v7270 = vpop.f32.mrf.mxu0
        %v7271 = vpop.f32.mrf.mxu0
        %7272 = vdwg.mxu0
        %7273 = vmatprep.subr.bf16.mxu0 %v6410
        %7274 = vmatpush1.bf16.msra.mxu0 %v6409
        %7275 = vmatprep.subr.bf16.mxu0 %v6376
        %7276 = vmatpush1.bf16.msra.mxu0 %v6375
        %7277 = vmatprep.subr.bf16.mxu0 %v6342
        %7278 = vmatpush1.bf16.msra.mxu0 %v6341
        %7279 = vmatprep.subr.bf16.mxu0 %v6308
        %7280 = vmatpush1.bf16.msra.mxu0 %v6307
        %7281 = vmatprep.subr.bf16.mxu0 %v6274
        %7282 = vmatpush1.bf16.msra.mxu0 %v6273
        %7283 = vmatprep.subr.bf16.mxu0 %v6240
        %7284 = vmatpush1.bf16.msra.mxu0 %v6239
        %7285 = vmatprep.subr.bf16.mxu0 %v6206
        %7286 = vmatpush1.bf16.msra.mxu0 %v6205
        %7287 = vmatprep.subr.bf16.mxu0 %v6172
        %7288 = vmatpush1.bf16.msra.mxu0 %v6171
        %7289 = vmatprep.subr.bf16.mxu0 0
        %7290 = vmatpush2.bf16.msra.mxu0 0
        %7291 = vmatprep.subr.bf16.mxu0 0
        %7292 = vmatpush2.bf16.msra.mxu0 0
        %7293 = vmatprep.subr.bf16.mxu0 %v7105
        %7294 = vmatpush2.bf16.msra.mxu0 %v7102
        %7295 = vmatprep.subr.bf16.mxu0 %v6580
        %7296 = vmatpush2.bf16.msra.mxu0 %v6579
        %7297 = vmatprep.subr.bf16.mxu0 %v6546
        %7298 = vmatpush2.bf16.msra.mxu0 %v6545
        %7299 = vmatprep.subr.bf16.mxu0 %v6512
        %7300 = vmatpush2.bf16.msra.mxu0 %v6511
        %7301 = vmatprep.subr.bf16.mxu0 %v6478
        %7302 = vmatpush2.bf16.msra.mxu0 %v6477
        %7303 = vmatprep.subr.bf16.mxu0 %v6444
        %7304 = vmatpush2.bf16.msra.mxu0 %v6443
        %7305 = vmatprep.mubr.bf16.mxu0 %v7087
        %7306 = vmatmul.mubr.bf16.gmra.mxu0 %v4787
        %v7307 = vpop.f32.mrf.mxu0
        %v7308 = vadd.f32 0.0, %v7307
        %v7309 = vpop.f32.mrf.mxu0
        %v7310 = vadd.f32 0.0, %v7309
        %v7311 = vpop.f32.mrf.mxu0
        %v7312 = vpop.f32.mrf.mxu0
        %7313 = vdwg.mxu0
        %7314 = vmatprep.subr.bf16.mxu0 %v6412
        %7315 = vmatpush1.bf16.msra.mxu0 %v6411
        %7316 = vmatprep.subr.bf16.mxu0 %v6378
        %7317 = vmatpush1.bf16.msra.mxu0 %v6377
        %7318 = vmatprep.subr.bf16.mxu0 %v6344
        %7319 = vmatpush1.bf16.msra.mxu0 %v6343
        %7320 = vmatprep.subr.bf16.mxu0 %v6310
        %7321 = vmatpush1.bf16.msra.mxu0 %v6309
        %7322 = vmatprep.subr.bf16.mxu0 %v6276
        %7323 = vmatpush1.bf16.msra.mxu0 %v6275
        %7324 = vmatprep.subr.bf16.mxu0 %v6242
        %7325 = vmatpush1.bf16.msra.mxu0 %v6241
        %7326 = vmatprep.subr.bf16.mxu0 %v6208
        %7327 = vmatpush1.bf16.msra.mxu0 %v6207
        %7328 = vmatprep.subr.bf16.mxu0 %v6174
        %7329 = vmatpush1.bf16.msra.mxu0 %v6173
        %7330 = vmatprep.subr.bf16.mxu0 0
        %7331 = vmatpush2.bf16.msra.mxu0 0
        %7332 = vmatprep.subr.bf16.mxu0 0
        %7333 = vmatpush2.bf16.msra.mxu0 0
        %7334 = vmatprep.subr.bf16.mxu0 %v7111
        %7335 = vmatpush2.bf16.msra.mxu0 %v7108
        %7336 = vmatprep.subr.bf16.mxu0 %v6582
        %7337 = vmatpush2.bf16.msra.mxu0 %v6581
        %7338 = vmatprep.subr.bf16.mxu0 %v6548
        %7339 = vmatpush2.bf16.msra.mxu0 %v6547
        %7340 = vmatprep.subr.bf16.mxu0 %v6514
        %7341 = vmatpush2.bf16.msra.mxu0 %v6513
        %7342 = vmatprep.subr.bf16.mxu0 %v6480
        %7343 = vmatpush2.bf16.msra.mxu0 %v6479
        %7344 = vmatprep.subr.bf16.mxu0 %v6446
        %7345 = vmatpush2.bf16.msra.mxu0 %v6445
        %7346 = vmatprep.mubr.bf16.mxu0 %v7087
        %7347 = vmatmul.mubr.bf16.gmra.mxu0 %v4787
        %v7348 = vpop.f32.mrf.mxu0
        %v7349 = vadd.f32 0.0, %v7348
        %v7350 = vpop.f32.mrf.mxu0
        %v7351 = vadd.f32 0.0, %v7350
        %v7352 = vpop.f32.mrf.mxu0
        %v7353 = vpop.f32.mrf.mxu0
        %7354 = vdwg.mxu0
        %7355 = vmatprep.subr.bf16.mxu0 %v6414
        %7356 = vmatpush1.bf16.msra.mxu0 %v6413
        %7357 = vmatprep.subr.bf16.mxu0 %v6380
        %7358 = vmatpush1.bf16.msra.mxu0 %v6379
        %7359 = vmatprep.subr.bf16.mxu0 %v6346
        %7360 = vmatpush1.bf16.msra.mxu0 %v6345
        %7361 = vmatprep.subr.bf16.mxu0 %v6312
        %7362 = vmatpush1.bf16.msra.mxu0 %v6311
        %7363 = vmatprep.subr.bf16.mxu0 %v6278
        %7364 = vmatpush1.bf16.msra.mxu0 %v6277
        %7365 = vmatprep.subr.bf16.mxu0 %v6244
        %7366 = vmatpush1.bf16.msra.mxu0 %v6243
        %7367 = vmatprep.subr.bf16.mxu0 %v6210
        %7368 = vmatpush1.bf16.msra.mxu0 %v6209
        %7369 = vmatprep.subr.bf16.mxu0 %v6176
        %7370 = vmatpush1.bf16.msra.mxu0 %v6175
        %7371 = vmatprep.subr.bf16.mxu0 0
        %7372 = vmatpush2.bf16.msra.mxu0 0
        %7373 = vmatprep.subr.bf16.mxu0 0
        %7374 = vmatpush2.bf16.msra.mxu0 0
        %7375 = vmatprep.subr.bf16.mxu0 %v7117
        %7376 = vmatpush2.bf16.msra.mxu0 %v7114
        %7377 = vmatprep.subr.bf16.mxu0 %v6584
        %7378 = vmatpush2.bf16.msra.mxu0 %v6583
        %7379 = vmatprep.subr.bf16.mxu0 %v6550
        %7380 = vmatpush2.bf16.msra.mxu0 %v6549
        %7381 = vmatprep.subr.bf16.mxu0 %v6516
        %7382 = vmatpush2.bf16.msra.mxu0 %v6515
        %7383 = vmatprep.subr.bf16.mxu0 %v6482
        %7384 = vmatpush2.bf16.msra.mxu0 %v6481
        %7385 = vmatprep.subr.bf16.mxu0 %v6448
        %7386 = vmatpush2.bf16.msra.mxu0 %v6447
        %7387 = vmatprep.mubr.bf16.mxu0 %v7087
        %7388 = vmatmul.mubr.bf16.gmra.mxu0 %v4787
        %v7389 = vpop.f32.mrf.mxu0
        %v7390 = vadd.f32 0.0, %v7389
        %v7391 = vpop.f32.mrf.mxu0
        %v7392 = vadd.f32 0.0, %v7391
        %v7393 = vpop.f32.mrf.mxu0
        %v7394 = vpop.f32.mrf.mxu0
        %7395 = vdwg.mxu0
        %7396 = vmatprep.subr.bf16.mxu0 %v6416
        %7397 = vmatpush1.bf16.msra.mxu0 %v6415
        %7398 = vmatprep.subr.bf16.mxu0 %v6382
        %7399 = vmatpush1.bf16.msra.mxu0 %v6381
        %7400 = vmatprep.subr.bf16.mxu0 %v6348
        %7401 = vmatpush1.bf16.msra.mxu0 %v6347
        %7402 = vmatprep.subr.bf16.mxu0 %v6314
        %7403 = vmatpush1.bf16.msra.mxu0 %v6313
        %7404 = vmatprep.subr.bf16.mxu0 %v6280
        %7405 = vmatpush1.bf16.msra.mxu0 %v6279
        %7406 = vmatprep.subr.bf16.mxu0 %v6246
        %7407 = vmatpush1.bf16.msra.mxu0 %v6245
        %7408 = vmatprep.subr.bf16.mxu0 %v6212
        %7409 = vmatpush1.bf16.msra.mxu0 %v6211
        %7410 = vmatprep.subr.bf16.mxu0 %v6178
        %7411 = vmatpush1.bf16.msra.mxu0 %v6177
        %7412 = vmatprep.subr.bf16.mxu0 0
        %7413 = vmatpush2.bf16.msra.mxu0 0
        %7414 = vmatprep.subr.bf16.mxu0 0
        %7415 = vmatpush2.bf16.msra.mxu0 0
        %7416 = vmatprep.subr.bf16.mxu0 %v7123
        %7417 = vmatpush2.bf16.msra.mxu0 %v7120
        %7418 = vmatprep.subr.bf16.mxu0 %v6586
        %7419 = vmatpush2.bf16.msra.mxu0 %v6585
        %7420 = vmatprep.subr.bf16.mxu0 %v6552
        %7421 = vmatpush2.bf16.msra.mxu0 %v6551
        %7422 = vmatprep.subr.bf16.mxu0 %v6518
        %7423 = vmatpush2.bf16.msra.mxu0 %v6517
        %7424 = vmatprep.subr.bf16.mxu0 %v6484
        %7425 = vmatpush2.bf16.msra.mxu0 %v6483
        %7426 = vmatprep.subr.bf16.mxu0 %v6450
        %7427 = vmatpush2.bf16.msra.mxu0 %v6449
        %7428 = vmatprep.mubr.bf16.mxu0 %v7087
        %7429 = vmatmul.mubr.bf16.gmra.mxu0 %v4787
        %v7430 = vpop.f32.mrf.mxu0
        %v7431 = vadd.f32 0.0, %v7430
        %v7432 = vpop.f32.mrf.mxu0
        %v7433 = vadd.f32 0.0, %v7432
        %v7434 = vpop.f32.mrf.mxu0
        %v7435 = vpop.f32.mrf.mxu0
        %7436 = vdwg.mxu0
        %7437 = vmatprep.subr.bf16.mxu0 %v6418
        %7438 = vmatpush1.bf16.msra.mxu0 %v6417
        %7439 = vmatprep.subr.bf16.mxu0 %v6384
        %7440 = vmatpush1.bf16.msra.mxu0 %v6383
        %7441 = vmatprep.subr.bf16.mxu0 %v6350
        %7442 = vmatpush1.bf16.msra.mxu0 %v6349
        %7443 = vmatprep.subr.bf16.mxu0 %v6316
        %7444 = vmatpush1.bf16.msra.mxu0 %v6315
        %7445 = vmatprep.subr.bf16.mxu0 %v6282
        %7446 = vmatpush1.bf16.msra.mxu0 %v6281
        %7447 = vmatprep.subr.bf16.mxu0 %v6248
        %7448 = vmatpush1.bf16.msra.mxu0 %v6247
        %7449 = vmatprep.subr.bf16.mxu0 %v6214
        %7450 = vmatpush1.bf16.msra.mxu0 %v6213
        %7451 = vmatprep.subr.bf16.mxu0 %v6180
        %7452 = vmatpush1.bf16.msra.mxu0 %v6179
        %7453 = vmatprep.subr.bf16.mxu0 0
        %7454 = vmatpush2.bf16.msra.mxu0 0
        %7455 = vmatprep.subr.bf16.mxu0 0
        %7456 = vmatpush2.bf16.msra.mxu0 0
        %7457 = vmatprep.subr.bf16.mxu0 %v7129
        %7458 = vmatpush2.bf16.msra.mxu0 %v7126
        %7459 = vmatprep.subr.bf16.mxu0 %v6588
        %7460 = vmatpush2.bf16.msra.mxu0 %v6587
        %7461 = vmatprep.subr.bf16.mxu0 %v6554
        %7462 = vmatpush2.bf16.msra.mxu0 %v6553
        %7463 = vmatprep.subr.bf16.mxu0 %v6520
        %7464 = vmatpush2.bf16.msra.mxu0 %v6519
        %7465 = vmatprep.subr.bf16.mxu0 %v6486
        %7466 = vmatpush2.bf16.msra.mxu0 %v6485
        %7467 = vmatprep.subr.bf16.mxu0 %v6452
        %7468 = vmatpush2.bf16.msra.mxu0 %v6451
        %7469 = vmatprep.mubr.bf16.mxu0 %v7087
        %7470 = vmatmul.mubr.bf16.gmra.mxu0 %v4787
        %v7471 = vpop.f32.mrf.mxu0
        %v7472 = vadd.f32 0.0, %v7471
        %v7473 = vpop.f32.mrf.mxu0
        %v7474 = vadd.f32 0.0, %v7473
        %v7475 = vpop.f32.mrf.mxu0
        %v7476 = vpop.f32.mrf.mxu0
        %7477 = vdwg.mxu0
        %7478 = vmatprep.subr.bf16.mxu0 %v6420
        %7479 = vmatpush1.bf16.msra.mxu0 %v6419
        %7480 = vmatprep.subr.bf16.mxu0 %v6386
        %7481 = vmatpush1.bf16.msra.mxu0 %v6385
        %7482 = vmatprep.subr.bf16.mxu0 %v6352
        %7483 = vmatpush1.bf16.msra.mxu0 %v6351
        %7484 = vmatprep.subr.bf16.mxu0 %v6318
        %7485 = vmatpush1.bf16.msra.mxu0 %v6317
        %7486 = vmatprep.subr.bf16.mxu0 %v6284
        %7487 = vmatpush1.bf16.msra.mxu0 %v6283
        %7488 = vmatprep.subr.bf16.mxu0 %v6250
        %7489 = vmatpush1.bf16.msra.mxu0 %v6249
        %7490 = vmatprep.subr.bf16.mxu0 %v6216
        %7491 = vmatpush1.bf16.msra.mxu0 %v6215
        %7492 = vmatprep.subr.bf16.mxu0 %v6182
        %7493 = vmatpush1.bf16.msra.mxu0 %v6181
        %7494 = vmatprep.subr.bf16.mxu0 0
        %7495 = vmatpush2.bf16.msra.mxu0 0
        %7496 = vmatprep.subr.bf16.mxu0 0
        %7497 = vmatpush2.bf16.msra.mxu0 0
        %7498 = vmatprep.subr.bf16.mxu0 %v7135
        %7499 = vmatpush2.bf16.msra.mxu0 %v7132
        %7500 = vmatprep.subr.bf16.mxu0 %v6590
        %7501 = vmatpush2.bf16.msra.mxu0 %v6589
        %7502 = vmatprep.subr.bf16.mxu0 %v6556
        %7503 = vmatpush2.bf16.msra.mxu0 %v6555
        %7504 = vmatprep.subr.bf16.mxu0 %v6522
        %7505 = vmatpush2.bf16.msra.mxu0 %v6521
        %7506 = vmatprep.subr.bf16.mxu0 %v6488
        %7507 = vmatpush2.bf16.msra.mxu0 %v6487
        %7508 = vmatprep.subr.bf16.mxu0 %v6454
        %7509 = vmatpush2.bf16.msra.mxu0 %v6453
        %7510 = vmatprep.mubr.bf16.mxu0 %v7087
        %7511 = vmatmul.mubr.bf16.gmra.mxu0 %v4787
        %v7512 = vpop.f32.mrf.mxu0
        %v7513 = vadd.f32 0.0, %v7512
        %v7514 = vpop.f32.mrf.mxu0
        %v7515 = vadd.f32 0.0, %v7514
        %v7516 = vpop.f32.mrf.mxu0
        %v7517 = vpop.f32.mrf.mxu0
        %7518 = vdwg.mxu0
        %7519 = vmatprep.subr.bf16.mxu0 %v6422
        %7520 = vmatpush1.bf16.msra.mxu0 %v6421
        %7521 = vmatprep.subr.bf16.mxu0 %v6388
        %7522 = vmatpush1.bf16.msra.mxu0 %v6387
        %7523 = vmatprep.subr.bf16.mxu0 %v6354
        %7524 = vmatpush1.bf16.msra.mxu0 %v6353
        %7525 = vmatprep.subr.bf16.mxu0 %v6320
        %7526 = vmatpush1.bf16.msra.mxu0 %v6319
        %7527 = vmatprep.subr.bf16.mxu0 %v6286
        %7528 = vmatpush1.bf16.msra.mxu0 %v6285
        %7529 = vmatprep.subr.bf16.mxu0 %v6252
        %7530 = vmatpush1.bf16.msra.mxu0 %v6251
        %7531 = vmatprep.subr.bf16.mxu0 %v6218
        %7532 = vmatpush1.bf16.msra.mxu0 %v6217
        %7533 = vmatprep.subr.bf16.mxu0 %v6184
        %7534 = vmatpush1.bf16.msra.mxu0 %v6183
        %7535 = vmatprep.subr.bf16.mxu0 0
        %7536 = vmatpush2.bf16.msra.mxu0 0
        %7537 = vmatprep.subr.bf16.mxu0 0
        %7538 = vmatpush2.bf16.msra.mxu0 0
        %7539 = vmatprep.subr.bf16.mxu0 %v7141
        %7540 = vmatpush2.bf16.msra.mxu0 %v7138
        %7541 = vmatprep.subr.bf16.mxu0 %v6592
        %7542 = vmatpush2.bf16.msra.mxu0 %v6591
        %7543 = vmatprep.subr.bf16.mxu0 %v6558
        %7544 = vmatpush2.bf16.msra.mxu0 %v6557
        %7545 = vmatprep.subr.bf16.mxu0 %v6524
        %7546 = vmatpush2.bf16.msra.mxu0 %v6523
        %7547 = vmatprep.subr.bf16.mxu0 %v6490
        %7548 = vmatpush2.bf16.msra.mxu0 %v6489
        %7549 = vmatprep.subr.bf16.mxu0 %v6456
        %7550 = vmatpush2.bf16.msra.mxu0 %v6455
        %7551 = vmatprep.mubr.bf16.mxu0 %v7087
        %7552 = vmatmul.mubr.bf16.gmra.mxu0 %v4787
        %v7553 = vpop.f32.mrf.mxu0
        %v7554 = vadd.f32 0.0, %v7553
        %v7555 = vpop.f32.mrf.mxu0
        %v7556 = vadd.f32 0.0, %v7555
        %v7557 = vpop.f32.mrf.mxu0
        %v7558 = vpop.f32.mrf.mxu0
        %7559 = vdwg.mxu0
        %7560 = vmatprep.subr.bf16.mxu0 %v6424
        %7561 = vmatpush1.bf16.msra.mxu0 %v6423
        %7562 = vmatprep.subr.bf16.mxu0 %v6390
        %7563 = vmatpush1.bf16.msra.mxu0 %v6389
        %7564 = vmatprep.subr.bf16.mxu0 %v6356
        %7565 = vmatpush1.bf16.msra.mxu0 %v6355
        %7566 = vmatprep.subr.bf16.mxu0 %v6322
        %7567 = vmatpush1.bf16.msra.mxu0 %v6321
        %7568 = vmatprep.subr.bf16.mxu0 %v6288
        %7569 = vmatpush1.bf16.msra.mxu0 %v6287
        %7570 = vmatprep.subr.bf16.mxu0 %v6254
        %7571 = vmatpush1.bf16.msra.mxu0 %v6253
        %7572 = vmatprep.subr.bf16.mxu0 %v6220
        %7573 = vmatpush1.bf16.msra.mxu0 %v6219
        %7574 = vmatprep.subr.bf16.mxu0 %v6186
        %7575 = vmatpush1.bf16.msra.mxu0 %v6185
        %7576 = vmatprep.subr.bf16.mxu0 0
        %7577 = vmatpush2.bf16.msra.mxu0 0
        %7578 = vmatprep.subr.bf16.mxu0 0
        %7579 = vmatpush2.bf16.msra.mxu0 0
        %7580 = vmatprep.subr.bf16.mxu0 %v7147
        %7581 = vmatpush2.bf16.msra.mxu0 %v7144
        %7582 = vmatprep.subr.bf16.mxu0 %v6594
        %7583 = vmatpush2.bf16.msra.mxu0 %v6593
        %7584 = vmatprep.subr.bf16.mxu0 %v6560
        %7585 = vmatpush2.bf16.msra.mxu0 %v6559
        %7586 = vmatprep.subr.bf16.mxu0 %v6526
        %7587 = vmatpush2.bf16.msra.mxu0 %v6525
        %7588 = vmatprep.subr.bf16.mxu0 %v6492
        %7589 = vmatpush2.bf16.msra.mxu0 %v6491
        %7590 = vmatprep.subr.bf16.mxu0 %v6458
        %7591 = vmatpush2.bf16.msra.mxu0 %v6457
        %7592 = vmatprep.mubr.bf16.mxu0 %v7087
        %7593 = vmatmul.mubr.bf16.gmra.mxu0 %v4787
        %v7594 = vpop.f32.mrf.mxu0
        %v7595 = vadd.f32 0.0, %v7594
        %v7596 = vpop.f32.mrf.mxu0
        %v7597 = vadd.f32 0.0, %v7596
        %v7598 = vpop.f32.mrf.mxu0
        %v7599 = vpop.f32.mrf.mxu0
        %7600 = vdwg.mxu0
        %7601 = vmatprep.subr.bf16.mxu0 %v6426
        %7602 = vmatpush1.bf16.msra.mxu0 %v6425
        %7603 = vmatprep.subr.bf16.mxu0 %v6392
        %7604 = vmatpush1.bf16.msra.mxu0 %v6391
        %7605 = vmatprep.subr.bf16.mxu0 %v6358
        %7606 = vmatpush1.bf16.msra.mxu0 %v6357
        %7607 = vmatprep.subr.bf16.mxu0 %v6324
        %7608 = vmatpush1.bf16.msra.mxu0 %v6323
        %7609 = vmatprep.subr.bf16.mxu0 %v6290
        %7610 = vmatpush1.bf16.msra.mxu0 %v6289
        %7611 = vmatprep.subr.bf16.mxu0 %v6256
        %7612 = vmatpush1.bf16.msra.mxu0 %v6255
        %7613 = vmatprep.subr.bf16.mxu0 %v6222
        %7614 = vmatpush1.bf16.msra.mxu0 %v6221
        %7615 = vmatprep.subr.bf16.mxu0 %v6188
        %7616 = vmatpush1.bf16.msra.mxu0 %v6187
        %7617 = vmatprep.subr.bf16.mxu0 0
        %7618 = vmatpush2.bf16.msra.mxu0 0
        %7619 = vmatprep.subr.bf16.mxu0 0
        %7620 = vmatpush2.bf16.msra.mxu0 0
        %7621 = vmatprep.subr.bf16.mxu0 %v7153
        %7622 = vmatpush2.bf16.msra.mxu0 %v7150
        %7623 = vmatprep.subr.bf16.mxu0 %v6596
        %7624 = vmatpush2.bf16.msra.mxu0 %v6595
        %7625 = vmatprep.subr.bf16.mxu0 %v6562
        %7626 = vmatpush2.bf16.msra.mxu0 %v6561
        %7627 = vmatprep.subr.bf16.mxu0 %v6528
        %7628 = vmatpush2.bf16.msra.mxu0 %v6527
        %7629 = vmatprep.subr.bf16.mxu0 %v6494
        %7630 = vmatpush2.bf16.msra.mxu0 %v6493
        %7631 = vmatprep.subr.bf16.mxu0 %v6460
        %7632 = vmatpush2.bf16.msra.mxu0 %v6459
        %7633 = vmatprep.mubr.bf16.mxu0 %v7087
        %7634 = vmatmul.mubr.bf16.gmra.mxu0 %v4787
        %v7635 = vpop.f32.mrf.mxu0
        %v7636 = vadd.f32 0.0, %v7635
        %v7637 = vpop.f32.mrf.mxu0
        %v7638 = vadd.f32 0.0, %v7637
        %v7639 = vpop.f32.mrf.mxu0
        %v7640 = vpop.f32.mrf.mxu0
        %7641 = vdwg.mxu0
        %7642 = vmatprep.subr.bf16.mxu0 %v6428
        %7643 = vmatpush1.bf16.msra.mxu0 %v6427
        %7644 = vmatprep.subr.bf16.mxu0 %v6394
        %7645 = vmatpush1.bf16.msra.mxu0 %v6393
        %7646 = vmatprep.subr.bf16.mxu0 %v6360
        %7647 = vmatpush1.bf16.msra.mxu0 %v6359
        %7648 = vmatprep.subr.bf16.mxu0 %v6326
        %7649 = vmatpush1.bf16.msra.mxu0 %v6325
        %7650 = vmatprep.subr.bf16.mxu0 %v6292
        %7651 = vmatpush1.bf16.msra.mxu0 %v6291
        %7652 = vmatprep.subr.bf16.mxu0 %v6258
        %7653 = vmatpush1.bf16.msra.mxu0 %v6257
        %7654 = vmatprep.subr.bf16.mxu0 %v6224
        %7655 = vmatpush1.bf16.msra.mxu0 %v6223
        %7656 = vmatprep.subr.bf16.mxu0 %v6190
        %7657 = vmatpush1.bf16.msra.mxu0 %v6189
        %7658 = vmatprep.subr.bf16.mxu0 0
        %7659 = vmatpush2.bf16.msra.mxu0 0
        %7660 = vmatprep.subr.bf16.mxu0 0
        %7661 = vmatpush2.bf16.msra.mxu0 0
        %7662 = vmatprep.subr.bf16.mxu0 %v7159
        %7663 = vmatpush2.bf16.msra.mxu0 %v7156
        %7664 = vmatprep.subr.bf16.mxu0 %v6598
        %7665 = vmatpush2.bf16.msra.mxu0 %v6597
        %7666 = vmatprep.subr.bf16.mxu0 %v6564
        %7667 = vmatpush2.bf16.msra.mxu0 %v6563
        %7668 = vmatprep.subr.bf16.mxu0 %v6530
        %7669 = vmatpush2.bf16.msra.mxu0 %v6529
        %7670 = vmatprep.subr.bf16.mxu0 %v6496
        %7671 = vmatpush2.bf16.msra.mxu0 %v6495
        %7672 = vmatprep.subr.bf16.mxu0 %v6462
        %7673 = vmatpush2.bf16.msra.mxu0 %v6461
        %7674 = vmatprep.mubr.bf16.mxu0 %v7087
        %7675 = vmatmul.mubr.bf16.gmra.mxu0 %v4787
        %v7676 = vpop.f32.mrf.mxu0
        %v7677 = vadd.f32 0.0, %v7676
        %v7678 = vpop.f32.mrf.mxu0
        %v7679 = vadd.f32 0.0, %v7678
        %v7680 = vpop.f32.mrf.mxu0
        %v7681 = vpop.f32.mrf.mxu0
        %7682 = vdwg.mxu0
        %7683 = vmatprep.subr.bf16.mxu0 %v6430
        %7684 = vmatpush1.bf16.msra.mxu0 %v6429
        %7685 = vmatprep.subr.bf16.mxu0 %v6396
        %7686 = vmatpush1.bf16.msra.mxu0 %v6395
        %7687 = vmatprep.subr.bf16.mxu0 %v6362
        %7688 = vmatpush1.bf16.msra.mxu0 %v6361
        %7689 = vmatprep.subr.bf16.mxu0 %v6328
        %7690 = vmatpush1.bf16.msra.mxu0 %v6327
        %7691 = vmatprep.subr.bf16.mxu0 %v6294
        %7692 = vmatpush1.bf16.msra.mxu0 %v6293
        %7693 = vmatprep.subr.bf16.mxu0 %v6260
        %7694 = vmatpush1.bf16.msra.mxu0 %v6259
        %7695 = vmatprep.subr.bf16.mxu0 %v6226
        %7696 = vmatpush1.bf16.msra.mxu0 %v6225
        %7697 = vmatprep.subr.bf16.mxu0 %v6192
        %7698 = vmatpush1.bf16.msra.mxu0 %v6191
        %7699 = vmatprep.subr.bf16.mxu0 0
        %7700 = vmatpush2.bf16.msra.mxu0 0
        %7701 = vmatprep.subr.bf16.mxu0 0
        %7702 = vmatpush2.bf16.msra.mxu0 0
        %7703 = vmatprep.subr.bf16.mxu0 %v7165
        %7704 = vmatpush2.bf16.msra.mxu0 %v7162
        %7705 = vmatprep.subr.bf16.mxu0 %v6600
        %7706 = vmatpush2.bf16.msra.mxu0 %v6599
        %7707 = vmatprep.subr.bf16.mxu0 %v6566
        %7708 = vmatpush2.bf16.msra.mxu0 %v6565
        %7709 = vmatprep.subr.bf16.mxu0 %v6532
        %7710 = vmatpush2.bf16.msra.mxu0 %v6531
        %7711 = vmatprep.subr.bf16.mxu0 %v6498
        %7712 = vmatpush2.bf16.msra.mxu0 %v6497
        %7713 = vmatprep.subr.bf16.mxu0 %v6464
        %7714 = vmatpush2.bf16.msra.mxu0 %v6463
        %7715 = vmatprep.mubr.bf16.mxu0 %v7087
        %7716 = vmatmul.mubr.bf16.gmra.mxu0 %v4787
        %v7717 = vpop.f32.mrf.mxu0
        %v7718 = vadd.f32 0.0, %v7717
        %v7719 = vpop.f32.mrf.mxu0
        %v7720 = vadd.f32 0.0, %v7719
        %v7721 = vpop.f32.mrf.mxu0
        %v7722 = vpop.f32.mrf.mxu0
        %7723 = vdwg.mxu0
        %7724 = vmatprep.subr.bf16.mxu0 %v6432
        %7725 = vmatpush1.bf16.msra.mxu0 %v6431
        %7726 = vmatprep.subr.bf16.mxu0 %v6398
        %7727 = vmatpush1.bf16.msra.mxu0 %v6397
        %7728 = vmatprep.subr.bf16.mxu0 %v6364
        %7729 = vmatpush1.bf16.msra.mxu0 %v6363
        %7730 = vmatprep.subr.bf16.mxu0 %v6330
        %7731 = vmatpush1.bf16.msra.mxu0 %v6329
        %7732 = vmatprep.subr.bf16.mxu0 %v6296
        %7733 = vmatpush1.bf16.msra.mxu0 %v6295
        %7734 = vmatprep.subr.bf16.mxu0 %v6262
        %7735 = vmatpush1.bf16.msra.mxu0 %v6261
        %7736 = vmatprep.subr.bf16.mxu0 %v6228
        %7737 = vmatpush1.bf16.msra.mxu0 %v6227
        %7738 = vmatprep.subr.bf16.mxu0 %v6194
        %7739 = vmatpush1.bf16.msra.mxu0 %v6193
        %7740 = vmatprep.subr.bf16.mxu0 0
        %7741 = vmatpush2.bf16.msra.mxu0 0
        %7742 = vmatprep.subr.bf16.mxu0 0
        %7743 = vmatpush2.bf16.msra.mxu0 0
        %7744 = vmatprep.subr.bf16.mxu0 %v7171
        %7745 = vmatpush2.bf16.msra.mxu0 %v7168
        %7746 = vmatprep.subr.bf16.mxu0 %v6602
        %7747 = vmatpush2.bf16.msra.mxu0 %v6601
        %7748 = vmatprep.subr.bf16.mxu0 %v6568
        %7749 = vmatpush2.bf16.msra.mxu0 %v6567
        %7750 = vmatprep.subr.bf16.mxu0 %v6534
        %7751 = vmatpush2.bf16.msra.mxu0 %v6533
        %7752 = vmatprep.subr.bf16.mxu0 %v6500
        %7753 = vmatpush2.bf16.msra.mxu0 %v6499
        %7754 = vmatprep.subr.bf16.mxu0 %v6466
        %7755 = vmatpush2.bf16.msra.mxu0 %v6465
        %7756 = vmatprep.mubr.bf16.mxu0 %v7087
        %7757 = vmatmul.mubr.bf16.gmra.mxu0 %v4787
        %v7758 = vpop.f32.mrf.mxu0
        %v7759 = vadd.f32 0.0, %v7758
        %v7760 = vpop.f32.mrf.mxu0
        %v7761 = vadd.f32 0.0, %v7760
        %v7762 = vpop.f32.mrf.mxu0
        %v7763 = vpop.f32.mrf.mxu0
        %7764 = vdwg.mxu0
        %7765 = vmatprep.subr.bf16.mxu0 %v6434
        %7766 = vmatpush1.bf16.msra.mxu0 %v6433
        %7767 = vmatprep.subr.bf16.mxu0 %v6400
        %7768 = vmatpush1.bf16.msra.mxu0 %v6399
        %7769 = vmatprep.subr.bf16.mxu0 %v6366
        %7770 = vmatpush1.bf16.msra.mxu0 %v6365
        %7771 = vmatprep.subr.bf16.mxu0 %v6332
        %7772 = vmatpush1.bf16.msra.mxu0 %v6331
        %7773 = vmatprep.subr.bf16.mxu0 %v6298
        %7774 = vmatpush1.bf16.msra.mxu0 %v6297
        %7775 = vmatprep.subr.bf16.mxu0 %v6264
        %7776 = vmatpush1.bf16.msra.mxu0 %v6263
        %7777 = vmatprep.subr.bf16.mxu0 %v6230
        %7778 = vmatpush1.bf16.msra.mxu0 %v6229
        %7779 = vmatprep.subr.bf16.mxu0 %v6196
        %7780 = vmatpush1.bf16.msra.mxu0 %v6195
        %7781 = vmatprep.subr.bf16.mxu0 0
        %7782 = vmatpush2.bf16.msra.mxu0 0
        %7783 = vmatprep.subr.bf16.mxu0 0
        %7784 = vmatpush2.bf16.msra.mxu0 0
        %7785 = vmatprep.subr.bf16.mxu0 %v7177
        %7786 = vmatpush2.bf16.msra.mxu0 %v7174
        %7787 = vmatprep.subr.bf16.mxu0 %v6604
        %7788 = vmatpush2.bf16.msra.mxu0 %v6603
        %7789 = vmatprep.subr.bf16.mxu0 %v6570
        %7790 = vmatpush2.bf16.msra.mxu0 %v6569
        %7791 = vmatprep.subr.bf16.mxu0 %v6536
        %7792 = vmatpush2.bf16.msra.mxu0 %v6535
        %7793 = vmatprep.subr.bf16.mxu0 %v6502
        %7794 = vmatpush2.bf16.msra.mxu0 %v6501
        %7795 = vmatprep.subr.bf16.mxu0 %v6468
        %7796 = vmatpush2.bf16.msra.mxu0 %v6467
        %7797 = vmatprep.mubr.bf16.mxu0 %v7087
        %7798 = vmatmul.mubr.bf16.gmra.mxu0 %v4787
        %v7799 = vpop.f32.mrf.mxu0
        %v7800 = vadd.f32 0.0, %v7799
        %v7801 = vpop.f32.mrf.mxu0
        %v7802 = vadd.f32 0.0, %v7801
        %v7803 = vpop.f32.mrf.mxu0
        %v7804 = vpop.f32.mrf.mxu0
        %7805 = vdwg.mxu0
        %7806 = vmatprep.subr.bf16.mxu0 %v6436
        %7807 = vmatpush1.bf16.msra.mxu0 %v6435
        %7808 = vmatprep.subr.bf16.mxu0 %v6402
        %7809 = vmatpush1.bf16.msra.mxu0 %v6401
        %7810 = vmatprep.subr.bf16.mxu0 %v6368
        %7811 = vmatpush1.bf16.msra.mxu0 %v6367
        %7812 = vmatprep.subr.bf16.mxu0 %v6334
        %7813 = vmatpush1.bf16.msra.mxu0 %v6333
        %7814 = vmatprep.subr.bf16.mxu0 %v6300
        %7815 = vmatpush1.bf16.msra.mxu0 %v6299
        %7816 = vmatprep.subr.bf16.mxu0 %v6266
        %7817 = vmatpush1.bf16.msra.mxu0 %v6265
        %7818 = vmatprep.subr.bf16.mxu0 %v6232
        %7819 = vmatpush1.bf16.msra.mxu0 %v6231
        %7820 = vmatprep.subr.bf16.mxu0 %v6198
        %7821 = vmatpush1.bf16.msra.mxu0 %v6197
        %7822 = vmatprep.subr.bf16.mxu0 0
        %7823 = vmatpush2.bf16.msra.mxu0 0
        %7824 = vmatprep.subr.bf16.mxu0 0
        %7825 = vmatpush2.bf16.msra.mxu0 0
        %7826 = vmatprep.subr.bf16.mxu0 %v7183
        %7827 = vmatpush2.bf16.msra.mxu0 %v7180
        %7828 = vmatprep.subr.bf16.mxu0 %v6606
        %7829 = vmatpush2.bf16.msra.mxu0 %v6605
        %7830 = vmatprep.subr.bf16.mxu0 %v6572
        %7831 = vmatpush2.bf16.msra.mxu0 %v6571
        %7832 = vmatprep.subr.bf16.mxu0 %v6538
        %7833 = vmatpush2.bf16.msra.mxu0 %v6537
        %7834 = vmatprep.subr.bf16.mxu0 %v6504
        %7835 = vmatpush2.bf16.msra.mxu0 %v6503
        %7836 = vmatprep.subr.bf16.mxu0 %v6470
        %7837 = vmatpush2.bf16.msra.mxu0 %v6469
        %7838 = vmatprep.mubr.bf16.mxu0 %v7087
        %7839 = vmatmul.mubr.bf16.gmra.mxu0 %v4787
        %v7840 = vpop.f32.mrf.mxu0
        %v7841 = vadd.f32 0.0, %v7840
        %v7842 = vpop.f32.mrf.mxu0
        %v7843 = vadd.f32 0.0, %v7842
        %v7844 = vpop.f32.mrf.mxu0
        %v7845 = vpop.f32.mrf.mxu0
        %7846 = vdwg.mxu0
        %7847 = vmatprep.subr.bf16.mxu0 %v6438
        %7848 = vmatpush1.bf16.msra.mxu0 %v6437
        %7849 = vmatprep.subr.bf16.mxu0 %v6404
        %7850 = vmatpush1.bf16.msra.mxu0 %v6403
        %7851 = vmatprep.subr.bf16.mxu0 %v6370
        %7852 = vmatpush1.bf16.msra.mxu0 %v6369
        %7853 = vmatprep.subr.bf16.mxu0 %v6336
        %7854 = vmatpush1.bf16.msra.mxu0 %v6335
        %7855 = vmatprep.subr.bf16.mxu0 %v6302
        %7856 = vmatpush1.bf16.msra.mxu0 %v6301
        %7857 = vmatprep.subr.bf16.mxu0 %v6268
        %7858 = vmatpush1.bf16.msra.mxu0 %v6267
        %7859 = vmatprep.subr.bf16.mxu0 %v6234
        %7860 = vmatpush1.bf16.msra.mxu0 %v6233
        %7861 = vmatprep.subr.bf16.mxu0 %v6200
        %7862 = vmatpush1.bf16.msra.mxu0 %v6199
        %7863 = vmatprep.subr.bf16.mxu0 0
        %7864 = vmatpush2.bf16.msra.mxu0 0
        %7865 = vmatprep.subr.bf16.mxu0 0
        %7866 = vmatpush2.bf16.msra.mxu0 0
        %7867 = vmatprep.subr.bf16.mxu0 %v7189
        %7868 = vmatpush2.bf16.msra.mxu0 %v7186
        %7869 = vmatprep.subr.bf16.mxu0 %v6608
        %7870 = vmatpush2.bf16.msra.mxu0 %v6607
        %7871 = vmatprep.subr.bf16.mxu0 %v6574
        %7872 = vmatpush2.bf16.msra.mxu0 %v6573
        %7873 = vmatprep.subr.bf16.mxu0 %v6540
        %7874 = vmatpush2.bf16.msra.mxu0 %v6539
        %7875 = vmatprep.subr.bf16.mxu0 %v6506
        %7876 = vmatpush2.bf16.msra.mxu0 %v6505
        %7877 = vmatprep.subr.bf16.mxu0 %v6472
        %7878 = vmatpush2.bf16.msra.mxu0 %v6471
        %7879 = vmatprep.mubr.bf16.mxu0 %v7087
        %7880 = vmatmul.mubr.bf16.gmra.mxu0 %v4787
        %v7881 = vpop.f32.mrf.mxu0
        %v7882 = vadd.f32 0.0, %v7881
        %v7883 = vpop.f32.mrf.mxu0
        %v7884 = vadd.f32 0.0, %v7883
        %v7885 = vpop.f32.mrf.mxu0
        %v7886 = vpop.f32.mrf.mxu0
        %7887 = vdwg.mxu0
        %7888 = vst [vmem:[%s172] sm:$0xff] %v7226
        %7889 = vst [vmem:[%s172 + $0x8] sm:$0xff] %v7228
        %7890 = vst [vmem:[%s172 + $0x10] sm:$0xff] %v7267
        %7891 = vst [vmem:[%s172 + $0x18] sm:$0xff] %v7269
        %7892 = vst [vmem:[%s172 + $0x20] sm:$0xff] %v7308
        %7893 = vst [vmem:[%s172 + $0x28] sm:$0xff] %v7310
        %7894 = vst [vmem:[%s172 + $0x30] sm:$0xff] %v7349
        %7895 = vst [vmem:[%s172 + $0x38] sm:$0xff] %v7351
        %7896 = vst [vmem:[%s172 + $0x40] sm:$0xff] %v7390
        %7897 = vst [vmem:[%s172 + $0x48] sm:$0xff] %v7392
        %7898 = vst [vmem:[%s172 + $0x50] sm:$0xff] %v7431
        %7899 = vst [vmem:[%s172 + $0x58] sm:$0xff] %v7433
        %7900 = vst [vmem:[%s172 + $0x60] sm:$0xff] %v7472
        %7901 = vst [vmem:[%s172 + $0x68] sm:$0xff] %v7474
        %7902 = vst [vmem:[%s172 + $0x70] sm:$0xff] %v7513
        %7903 = vst [vmem:[%s172 + $0x78] sm:$0xff] %v7515
        %7904 = vst [vmem:[%s172 + $0x80] sm:$0xff] %v7554
        %7905 = vst [vmem:[%s172 + $0x88] sm:$0xff] %v7556
        %7906 = vst [vmem:[%s172 + $0x90] sm:$0xff] %v7595
        %7907 = vst [vmem:[%s172 + $0x98] sm:$0xff] %v7597
        %7908 = vst [vmem:[%s172 + $0xa0] sm:$0xff] %v7636
        %7909 = vst [vmem:[%s172 + $0xa8] sm:$0xff] %v7638
        %7910 = vst [vmem:[%s172 + $0xb0] sm:$0xff] %v7677
        %7911 = vst [vmem:[%s172 + $0xb8] sm:$0xff] %v7679
        %7912 = vst [vmem:[%s172 + $0xc0] sm:$0xff] %v7718
        %7913 = vst [vmem:[%s172 + $0xc8] sm:$0xff] %v7720
        %7914 = vst [vmem:[%s172 + $0xd0] sm:$0xff] %v7759
        %7915 = vst [vmem:[%s172 + $0xd8] sm:$0xff] %v7761
        %7916 = vst [vmem:[%s172 + $0xe0] sm:$0xff] %v7800
        %7917 = vst [vmem:[%s172 + $0xe8] sm:$0xff] %v7802
        %7918 = vst [vmem:[%s172 + $0xf0] sm:$0xff] %v7841
        %7919 = vst [vmem:[%s172 + $0xf8] sm:$0xff] %v7843
        %7920 = vst [vmem:[%s172 + $0x100] sm:$0xff] %v7882
        %vm7921 = vcmask 908288
        %7922 = vst.msk [vmem:[%s172 + $0x108] sm:$0xff] %vm7921, %v7884
        %s7923 = sand.u32 %s75, 1
        %s7924 = scalar_lea.sflag [#allocation5], %s7923
        %s7925 = sand.u32 %s75, 1
        %s7926 = smul.addr %s7925, 272
        %s7927 = scalar_lea.vmem [#allocation8], %s7926
        // Predicated region
        $region37: #{tpu_custom_call.1} parent=27 // pred_check
          %p7928 = pneg %p85
        $region38: #{tpu_custom_call.1} parent=27 // pred_check_branch
          %7930 = sbr.rel (%p7928) target = $region40
        $region39: #{tpu_custom_call.1} parent=27 // pred_region
          %s7932 = ssub.s32 4352, 4352
          %7933 = vsyncadd %s7924, %s7932
          %s7934 = smul.addr %s20, 34
          %s7935 = smul.addr %s7934, 128
          %s7936 = scalar_lea.hbm %s2, %s7935
          %s7938 = sshll.u32 %s7927, 4
          %s7939 = int_to_ptr.vmem [resolvable:$true] %s7938
          %7941 = dma.vmem_to_hbm [thread:$0]  %s7939, 4352, %s7936, %s7924
        $region40: #{tpu_custom_call.1} parent=27 // pred_fallthru
          _
      $region28: #{tpu_custom_call.1} parent=5 // pred_fallthru
        _
      %p7942 = scmp.le.s32.totalorder 2, %s15
      // Predicated region
      $region41: #{tpu_custom_call.1} parent=5 // pred_check
        %p7943 = pneg %p7942
      $region42: #{tpu_custom_call.1} parent=5 // pred_check_branch
        %7945 = sbr.rel (%p7943) target = $region44
      $region43: #{tpu_custom_call.1} parent=5 // pred_region
        %s7946 = ssub.s32 %s15, 2
        // Predicated region
        $region45: #{tpu_custom_call.1} parent=43 // pred_check
          %p7947 = pneg %p91
        $region46: #{tpu_custom_call.1} parent=43 // pred_check_branch
          %7949 = sbr.rel (%p7947) target = $region48
        $region47: #{tpu_custom_call.1} parent=43 // pred_region
          %s7950 = sand.u32 %s76, 1
          %s7951 = scalar_lea.sflag [#allocation5], %s7950
          %s7952 = sand.u32 %s76, 1
          %s7953 = smul.addr %s7952, 272
          %s7954 = scalar_lea.vmem [#allocation8], %s7953
          %7955 = dma.done %s7951, 4352
        $region48: #{tpu_custom_call.1} parent=43 // pred_fallthru
          _
      $region44: #{tpu_custom_call.1} parent=5 // pred_fallthru
        _
    $region6: #{tpu_custom_call.1} parent=1 // loop_footer
      %s19 = sadd.s32 1, %s15
    $region7: #{tpu_custom_call.1} parent=1 // loop_footer_branch
      %14 = sbr.rel target = $region3
    $region8: #{tpu_custom_call.1} parent=1 // loop_exit
      _
    %7956 = vsyncpa [#allocation4], 1
    %s7957 = scalar_lea.sflag [#allocation4], 1
    %7958 = vsyncpa %s7957, 1
    %7959 = vsyncpa [#allocation7], 1
    %7960 = vsyncpa [#allocation5], 1
    %s7961 = scalar_lea.sflag [#allocation5], 1
    %7962 = vsyncpa %s7961, 1

</llo_original>
